<compile_context>
chip_gen: v7x
topology: tpu7x:2x2x1
jax: 0.10.0
libtpu: 0.0.40
codegen_flags: <defaults>
</compile_context>

<pallas_src>
import functools

import jax
import jax.numpy as jnp
from jax.experimental import pallas as pl
from jax.experimental.pallas import tpu as pltpu


# Matmul operand dtype: bf16 feeds the MXUs at full rate on every TPU generation
# and halves A/B DMA traffic; accumulation stays float32. Set to jnp.float32 for
# bit-closer parity with the PyTorch f32 reference.
MATMUL_DTYPE = jnp.bfloat16


def _round_up(x, m):
    return (x + m - 1) // m * m


def _pick_tm(m):
    """Pick an M tile: full extent for small M; otherwise the largest tile
    <= 512 that divides the (8-rounded) row count so no row padding / output
    slicing is needed; fall back to padding up to a multiple of 512."""
    mp8 = _round_up(m, 8)
    if mp8 <= 512:
        return mp8, mp8
    for tm in range(512, 127, -8):
        if mp8 % tm == 0:
            return tm, mp8
    return 512, _round_up(m, 512)


# ----------------------------------------------------------------------------
# Fused GEMM + bias (+ optional ReLU) Pallas kernel (used for both convs)
# ----------------------------------------------------------------------------
def _gemm_bias_kernel(a_ref, b_ref, bias_ref, o_ref, *, relu):
    acc = jnp.dot(a_ref[...], b_ref[...], preferred_element_type=jnp.float32)
    acc = acc + bias_ref[...]
    if relu:
        acc = jnp.maximum(acc, 0.0)
    o_ref[...] = acc.astype(o_ref.dtype)


def gemm_bias(a, b, bias, *, relu):
    """(M, K) @ (K, N) + bias[N], optional ReLU. K and N are used at full
    extent (no 128-padding); only M is tiled (and, if needed, padded to 8)."""
    M, K = a.shape
    K2, N = b.shape
    assert K == K2, (K, K2)

    tm, Mp = _pick_tm(M)
    a_c = a.astype(MATMUL_DTYPE)
    if Mp != M:
        a_c = jnp.zeros((Mp, K), MATMUL_DTYPE).at[:M].set(a_c)
    b_c = b.astype(MATMUL_DTYPE)
    bias_c = bias.reshape(1, N).astype(jnp.float32)

    out = pl.pallas_call(
        functools.partial(_gemm_bias_kernel, relu=relu),
        out_shape=jax.ShapeDtypeStruct((Mp, N), jnp.float32),
        grid=(Mp // tm,),
        in_specs=[
            pl.BlockSpec((tm, K), lambda i: (i, 0)),   # A tile marches down M
            pl.BlockSpec((K, N), lambda i: (0, 0)),    # whole B resident
            pl.BlockSpec((1, N), lambda i: (0, 0)),    # bias row resident
        ],
        out_specs=pl.BlockSpec((tm, N), lambda i: (i, 0)),
        # NOTE: default scoped VMEM limit (16/32 MiB) is plenty here and is
        # portable to v7x (64 MiB physical VMEM), so no vmem_limit_bytes.
        compiler_params=pltpu.CompilerParams(
            dimension_semantics=("parallel",),
        ),
    )(a_c, b_c, bias_c)
    return out[:M] if Mp != M else out


# ----------------------------------------------------------------------------
# 2x2 max-pool (stride 2): single-input kernel over a free contiguous reshape
# ----------------------------------------------------------------------------
def _maxpool_kernel(x_ref, o_ref, *, c):
    v = x_ref[...]                                      # (R, 2, Wo, 2*C)
    m = jnp.maximum(v[:, 0], v[:, 1])                   # max over the 2 H-rows
    o_ref[...] = jnp.maximum(m[:, :, :c], m[:, :, c:])  # max over the 2 W-cols


def maxpool2x2_nhwc(x):
    """2x2 max pool with stride 2 on an NHWC tensor."""
    N, H, W, C = x.shape
    Ho, Wo = H // 2, W // 2
    if H % 2 or W % 2:
        x = x[:, :2 * Ho, :2 * Wo, :]
    # Pure (contiguous) reshape: rows pair as (N*Ho, 2), cols pair as (Wo, 2*C).
    x4 = x.reshape(N * Ho, 2, Wo, 2 * C)
    out = pl.pallas_call(
        functools.partial(_maxpool_kernel, c=C),
        out_shape=jax.ShapeDtypeStruct((N * Ho, Wo, C), x.dtype),
    )(x4)
    return out.reshape(N, Ho, Wo, C)


# ----------------------------------------------------------------------------
# Convolution = im2col (channel-axis concat, no activation transpose) + GEMM
# ----------------------------------------------------------------------------
def _im2col_nhwc(x, kh, kw):
    """Patch matrix with feature order (kh, kw, Cin)."""
    N, H, W, C = x.shape
    Ho, Wo = H - kh + 1, W - kw + 1
    cols = [x[:, i:i + Ho, j:j + Wo, :] for i in range(kh) for j in range(kw)]
    patches = jnp.concatenate(cols, axis=-1)            # (N, Ho, Wo, kh*kw*C)
    return patches.reshape(N * Ho * Wo, kh * kw * C), (N, Ho, Wo)


def conv2d_bias_relu(x_nhwc, w_oihw, bias, *, relu=True):
    """Valid (padding=0, stride=1) conv with PyTorch-layout weights (O,I,kh,kw)."""
    Cout, Cin, kh, kw = w_oihw.shape
    patches, (N, Ho, Wo) = _im2col_nhwc(x_nhwc, kh, kw)
    # Compensate the (kh, kw, Cin) patch ordering on the (tiny) weight side.
    w_mat = jnp.transpose(w_oihw, (2, 3, 1, 0)).reshape(kh * kw * Cin, Cout)
    out = gemm_bias(patches, w_mat, bias, relu=relu)
    return out.reshape(N, Ho, Wo, Cout)


# ----------------------------------------------------------------------------
# Fused fc1 -> ReLU -> fc2: one kernel, everything VMEM-resident
# ----------------------------------------------------------------------------
def _fc_fused_kernel(x_ref, w1_ref, b1_ref, w2_ref, b2_ref, o_ref):
    h = jnp.dot(x_ref[...], w1_ref[...], preferred_element_type=jnp.float32)
    h = jnp.maximum(h + b1_ref[...], 0.0)
    out = jnp.dot(h.astype(w2_ref.dtype), w2_ref[...],
                  preferred_element_type=jnp.float32)
    o_ref[...] = (out + b2_ref[...]).astype(o_ref.dtype)


def fc1_relu_fc2(x, wf1, bf1, wf2, bf2):
    M, K1 = x.shape
    Mp = _round_up(M, 8)
    x_c = x.astype(MATMUL_DTYPE)
    if Mp != M:
        x_c = jnp.zeros((Mp, K1), MATMUL_DTYPE).at[:M].set(x_c)
    w1 = wf1.T.astype(MATMUL_DTYPE)                     # (9216, 128)
    w2 = wf2.T.astype(MATMUL_DTYPE)                     # (128, 10)
    b1 = bf1.reshape(1, -1).astype(jnp.float32)
    b2 = bf2.reshape(1, -1).astype(jnp.float32)
    N2 = w2.shape[1]
    out = pl.pallas_call(
        _fc_fused_kernel,
        out_shape=jax.ShapeDtypeStruct((Mp, N2), jnp.float32),
    )(x_c, w1, b1, w2, b2)
    return out[:M] if Mp != M else out


# ----------------------------------------------------------------------------
# Full Net forward pass
# ----------------------------------------------------------------------------
def net_forward(x_nchw, params):
    x = jnp.transpose(x_nchw, (0, 2, 3, 1))                           # NCHW -> NHWC
    x = conv2d_bias_relu(x, params["w1"], params["b1"], relu=True)    # (N,52,52,32)
    x = maxpool2x2_nhwc(x)                                            # (N,26,26,32)
    x = conv2d_bias_relu(x, params["w2"], params["b2"], relu=True)    # (N,24,24,64)
    x = maxpool2x2_nhwc(x)                                            # (N,12,12,64)
    n = x.shape[0]
    # torch flattens NCHW -> (N, C*H*W); reproduce that ordering exactly.
    x = jnp.transpose(x, (0, 3, 1, 2)).reshape(n, -1)                 # (N, 9216)
    return fc1_relu_fc2(x, params["wf1"], params["bf1"],
                        params["wf2"], params["bf2"])                 # (N, 10)


def init_params(key):
    k = jax.random.split(key, 8)
    s = 0.05
    return {
        # conv weights in PyTorch layout (Cout, Cin, kh, kw)
        "w1": s * jax.random.normal(k[0], (32, 1, 3, 3), jnp.float32),
        "b1": s * jax.random.normal(k[1], (32,), jnp.float32),
        "w2": s * jax.random.normal(k[2], (64, 32, 3, 3), jnp.float32),
        "b2": s * jax.random.normal(k[3], (64,), jnp.float32),
        # linear weights in PyTorch layout (out_features, in_features)
        "wf1": s * jax.random.normal(k[4], (128, 9216), jnp.float32),
        "bf1": s * jax.random.normal(k[5], (128,), jnp.float32),
        "wf2": s * jax.random.normal(k[6], (10, 128), jnp.float32),
        "bf2": s * jax.random.normal(k[7], (10,), jnp.float32),
    }


if __name__ == "__main__":
    key = jax.random.PRNGKey(0)
    kx, kp = jax.random.split(key)
    params = init_params(kp)

    # fc1 expects 9216 = 64 * 12 * 12 flattened features, which (with two
    # pool-after-conv stages) implies a 54x54 single-channel input.
    x = jax.random.normal(kx, (2, 1, 54, 54), jnp.float32)

    out = jax.jit(net_forward)(x, params)
    out = jax.block_until_ready(out)
    assert out.shape == (2, 10), out.shape
    assert out.dtype == jnp.float32
    print("KERNEL_OK")
</pallas_src>

<mosaic_0001>
module attributes {stable_mosaic.version = 11 : i64} {
  func.func @_gemm_bias_kernel(%arg0: i32, %arg1: memref<416x9xbf16, #tpu.memory_space<vmem>>, %arg2: memref<9x32xbf16, #tpu.memory_space<vmem>>, %arg3: memref<1x32xf32, #tpu.memory_space<vmem>>, %arg4: memref<416x32xf32, #tpu.memory_space<vmem>>) attributes {dimension_semantics = [#tpu.dimension_semantics<parallel>], iteration_bounds = array<i64: 13>, scalar_prefetch = 0 : i64, scratch_operands = 0 : i64, tpu.core_type = #tpu.core_type<tc>, window_params = [{transform_indices = @transform_0, window_bounds = array<i64: 416, 9>}, {pipeline_mode = #tpu.pipeline_mode<synchronous>, transform_indices = @transform_1, window_bounds = array<i64: 9, 32>}, {pipeline_mode = #tpu.pipeline_mode<synchronous>, transform_indices = @transform_2, window_bounds = array<i64: 1, 32>}, {transform_indices = @transform_3, window_bounds = array<i64: 416, 32>}]} {
    %c0 = arith.constant 0 : index
    %c0_0 = arith.constant 0 : index
    %0 = vector.load %arg1[%c0, %c0_0] : memref<416x9xbf16, #tpu.memory_space<vmem>>, vector<416x9xbf16>
    %c0_1 = arith.constant 0 : index
    %c0_2 = arith.constant 0 : index
    %1 = vector.load %arg2[%c0_1, %c0_2] : memref<9x32xbf16, #tpu.memory_space<vmem>>, vector<9x32xbf16>
    %cst = arith.constant dense<0.000000e+00> : vector<416x32xf32>
    %2 = tpu.matmul %0, %1, %cst {dimension_numbers = #tpu.dot_dimension_numbers<[1], [0], [0], [1], [0, 0, 1, 1], [], []>} : vector<416x9xbf16>, vector<9x32xbf16>, vector<416x32xf32> -> vector<416x32xf32>
    %c0_3 = arith.constant 0 : index
    %c0_4 = arith.constant 0 : index
    %3 = vector.load %arg3[%c0_3, %c0_4] : memref<1x32xf32, #tpu.memory_space<vmem>>, vector<1x32xf32>
    %4 = vector.broadcast %3 : vector<1x32xf32> to vector<416x32xf32>
    %5 = arith.addf %2, %4 : vector<416x32xf32>
    %cst_5 = arith.constant 0.000000e+00 : f32
    %6 = vector.broadcast %cst_5 : f32 to vector<416x32xf32>
    %7 = arith.maximumf %5, %6 : vector<416x32xf32>
    %c0_6 = arith.constant 0 : index
    %c0_7 = arith.constant 0 : index
    %8 = vector.load %arg4[%c0_6, %c0_7] : memref<416x32xf32, #tpu.memory_space<vmem>>, vector<416x32xf32>
    tpu.vector_store %arg4[%c0_6, %c0_7], %7 {strides = array<i32>} : memref<416x32xf32, #tpu.memory_space<vmem>>, vector<416x32xf32>,
    return
  }
  func.func @transform_0(%arg0: i32) -> (i32, i32) {
    %c0_i32 = arith.constant 0 : i32
    %c0_i32_0 = arith.constant 0 : i32
    return %arg0, %c0_i32 : i32, i32
  }
  func.func @transform_1(%arg0: i32) -> (i32, i32) {
    %c0_i32 = arith.constant 0 : i32
    %c0_i32_0 = arith.constant 0 : i32
    %c0_i32_1 = arith.constant 0 : i32
    return %c0_i32, %c0_i32_0 : i32, i32
  }
  func.func @transform_2(%arg0: i32) -> (i32, i32) {
    %c0_i32 = arith.constant 0 : i32
    %c0_i32_0 = arith.constant 0 : i32
    %c0_i32_1 = arith.constant 0 : i32
    return %c0_i32, %c0_i32_0 : i32, i32
  }
  func.func @transform_3(%arg0: i32) -> (i32, i32) {
    %c0_i32 = arith.constant 0 : i32
    %c0_i32_0 = arith.constant 0 : i32
    return %arg0, %c0_i32 : i32, i32
  }
}

module attributes {stable_mosaic.version = 11 : i64} {
  func.func @_maxpool_kernel(%arg0: memref<52x2x26x64xf32, #tpu.memory_space<vmem>>, %arg1: memref<52x26x32xf32, #tpu.memory_space<vmem>>) attributes {dimension_semantics = [], scalar_prefetch = 0 : i64, scratch_operands = 0 : i64, tpu.core_type = #tpu.core_type<tc>} {
    %c0 = arith.constant 0 : index
    %c0_0 = arith.constant 0 : index
    %c0_1 = arith.constant 0 : index
    %c0_2 = arith.constant 0 : index
    %0 = vector.load %arg0[%c0, %c0_0, %c0_1, %c0_2] : memref<52x2x26x64xf32, #tpu.memory_space<vmem>>, vector<52x2x26x64xf32>
    %1 = vector.extract_strided_slice %0 {offsets = [0, 0, 0, 0], sizes = [52, 1, 26, 64], strides = [1, 1, 1, 1]} : vector<52x2x26x64xf32> to vector<52x1x26x64xf32>
    %2 = vector.shape_cast %1 : vector<52x1x26x64xf32> to vector<52x26x64xf32>
    %3 = vector.extract_strided_slice %0 {offsets = [0, 1, 0, 0], sizes = [52, 1, 26, 64], strides = [1, 1, 1, 1]} : vector<52x2x26x64xf32> to vector<52x1x26x64xf32>
    %4 = vector.shape_cast %3 : vector<52x1x26x64xf32> to vector<52x26x64xf32>
    %5 = arith.maximumf %2, %4 : vector<52x26x64xf32>
    %6 = vector.extract_strided_slice %5 {offsets = [0, 0, 0], sizes = [52, 26, 32], strides = [1, 1, 1]} : vector<52x26x64xf32> to vector<52x26x32xf32>
    %7 = vector.extract_strided_slice %5 {offsets = [0, 0, 32], sizes = [52, 26, 32], strides = [1, 1, 1]} : vector<52x26x64xf32> to vector<52x26x32xf32>
    %8 = arith.maximumf %6, %7 : vector<52x26x32xf32>
    %c0_3 = arith.constant 0 : index
    %c0_4 = arith.constant 0 : index
    %c0_5 = arith.constant 0 : index
    %9 = vector.load %arg1[%c0_3, %c0_4, %c0_5] : memref<52x26x32xf32, #tpu.memory_space<vmem>>, vector<52x26x32xf32>
    tpu.vector_store %arg1[%c0_3, %c0_4, %c0_5], %8 {strides = array<i32>} : memref<52x26x32xf32, #tpu.memory_space<vmem>>, vector<52x26x32xf32>,
    return
  }
}

module attributes {stable_mosaic.version = 11 : i64} {
  func.func @_gemm_bias_kernel(%arg0: i32, %arg1: memref<384x288xbf16, #tpu.memory_space<vmem>>, %arg2: memref<288x64xbf16, #tpu.memory_space<vmem>>, %arg3: memref<1x64xf32, #tpu.memory_space<vmem>>, %arg4: memref<384x64xf32, #tpu.memory_space<vmem>>) attributes {dimension_semantics = [#tpu.dimension_semantics<parallel>], iteration_bounds = array<i64: 3>, scalar_prefetch = 0 : i64, scratch_operands = 0 : i64, tpu.core_type = #tpu.core_type<tc>, window_params = [{transform_indices = @transform_0, window_bounds = array<i64: 384, 288>}, {pipeline_mode = #tpu.pipeline_mode<synchronous>, transform_indices = @transform_1, window_bounds = array<i64: 288, 64>}, {pipeline_mode = #tpu.pipeline_mode<synchronous>, transform_indices = @transform_2, window_bounds = array<i64: 1, 64>}, {transform_indices = @transform_3, window_bounds = array<i64: 384, 64>}]} {
    %c0 = arith.constant 0 : index
    %c0_0 = arith.constant 0 : index
    %0 = vector.load %arg1[%c0, %c0_0] : memref<384x288xbf16, #tpu.memory_space<vmem>>, vector<384x288xbf16>
    %c0_1 = arith.constant 0 : index
    %c0_2 = arith.constant 0 : index
    %1 = vector.load %arg2[%c0_1, %c0_2] : memref<288x64xbf16, #tpu.memory_space<vmem>>, vector<288x64xbf16>
    %cst = arith.constant dense<0.000000e+00> : vector<384x64xf32>
    %2 = tpu.matmul %0, %1, %cst {dimension_numbers = #tpu.dot_dimension_numbers<[1], [0], [0], [1], [0, 0, 1, 1], [], []>} : vector<384x288xbf16>, vector<288x64xbf16>, vector<384x64xf32> -> vector<384x64xf32>
    %c0_3 = arith.constant 0 : index
    %c0_4 = arith.constant 0 : index
    %3 = vector.load %arg3[%c0_3, %c0_4] : memref<1x64xf32, #tpu.memory_space<vmem>>, vector<1x64xf32>
    %4 = vector.broadcast %3 : vector<1x64xf32> to vector<384x64xf32>
    %5 = arith.addf %2, %4 : vector<384x64xf32>
    %cst_5 = arith.constant 0.000000e+00 : f32
    %6 = vector.broadcast %cst_5 : f32 to vector<384x64xf32>
    %7 = arith.maximumf %5, %6 : vector<384x64xf32>
    %c0_6 = arith.constant 0 : index
    %c0_7 = arith.constant 0 : index
    %8 = vector.load %arg4[%c0_6, %c0_7] : memref<384x64xf32, #tpu.memory_space<vmem>>, vector<384x64xf32>
    tpu.vector_store %arg4[%c0_6, %c0_7], %7 {strides = array<i32>} : memref<384x64xf32, #tpu.memory_space<vmem>>, vector<384x64xf32>,
    return
  }
  func.func @transform_0(%arg0: i32) -> (i32, i32) {
    %c0_i32 = arith.constant 0 : i32
    %c0_i32_0 = arith.constant 0 : i32
    return %arg0, %c0_i32 : i32, i32
  }
  func.func @transform_1(%arg0: i32) -> (i32, i32) {
    %c0_i32 = arith.constant 0 : i32
    %c0_i32_0 = arith.constant 0 : i32
    %c0_i32_1 = arith.constant 0 : i32
    return %c0_i32, %c0_i32_0 : i32, i32
  }
  func.func @transform_2(%arg0: i32) -> (i32, i32) {
    %c0_i32 = arith.constant 0 : i32
    %c0_i32_0 = arith.constant 0 : i32
    %c0_i32_1 = arith.constant 0 : i32
    return %c0_i32, %c0_i32_0 : i32, i32
  }
  func.func @transform_3(%arg0: i32) -> (i32, i32) {
    %c0_i32 = arith.constant 0 : i32
    %c0_i32_0 = arith.constant 0 : i32
    return %arg0, %c0_i32 : i32, i32
  }
}

module attributes {stable_mosaic.version = 11 : i64} {
  func.func @_maxpool_kernel(%arg0: memref<24x2x12x128xf32, #tpu.memory_space<vmem>>, %arg1: memref<24x12x64xf32, #tpu.memory_space<vmem>>) attributes {dimension_semantics = [], scalar_prefetch = 0 : i64, scratch_operands = 0 : i64, tpu.core_type = #tpu.core_type<tc>} {
    %c0 = arith.constant 0 : index
    %c0_0 = arith.constant 0 : index
    %c0_1 = arith.constant 0 : index
    %c0_2 = arith.constant 0 : index
    %0 = vector.load %arg0[%c0, %c0_0, %c0_1, %c0_2] : memref<24x2x12x128xf32, #tpu.memory_space<vmem>>, vector<24x2x12x128xf32>
    %1 = vector.extract_strided_slice %0 {offsets = [0, 0, 0, 0], sizes = [24, 1, 12, 128], strides = [1, 1, 1, 1]} : vector<24x2x12x128xf32> to vector<24x1x12x128xf32>
    %2 = vector.shape_cast %1 : vector<24x1x12x128xf32> to vector<24x12x128xf32>
    %3 = vector.extract_strided_slice %0 {offsets = [0, 1, 0, 0], sizes = [24, 1, 12, 128], strides = [1, 1, 1, 1]} : vector<24x2x12x128xf32> to vector<24x1x12x128xf32>
    %4 = vector.shape_cast %3 : vector<24x1x12x128xf32> to vector<24x12x128xf32>
    %5 = arith.maximumf %2, %4 : vector<24x12x128xf32>
    %6 = vector.extract_strided_slice %5 {offsets = [0, 0, 0], sizes = [24, 12, 64], strides = [1, 1, 1]} : vector<24x12x128xf32> to vector<24x12x64xf32>
    %7 = vector.extract_strided_slice %5 {offsets = [0, 0, 64], sizes = [24, 12, 64], strides = [1, 1, 1]} : vector<24x12x128xf32> to vector<24x12x64xf32>
    %8 = arith.maximumf %6, %7 : vector<24x12x64xf32>
    %c0_3 = arith.constant 0 : index
    %c0_4 = arith.constant 0 : index
    %c0_5 = arith.constant 0 : index
    %9 = vector.load %arg1[%c0_3, %c0_4, %c0_5] : memref<24x12x64xf32, #tpu.memory_space<vmem>>, vector<24x12x64xf32>
    tpu.vector_store %arg1[%c0_3, %c0_4, %c0_5], %8 {strides = array<i32>} : memref<24x12x64xf32, #tpu.memory_space<vmem>>, vector<24x12x64xf32>,
    return
  }
}

module attributes {stable_mosaic.version = 11 : i64} {
  func.func @_fc_fused_kernel(%arg0: memref<8x9216xbf16, #tpu.memory_space<vmem>>, %arg1: memref<9216x128xbf16, #tpu.memory_space<vmem>>, %arg2: memref<1x128xf32, #tpu.memory_space<vmem>>, %arg3: memref<128x10xbf16, #tpu.memory_space<vmem>>, %arg4: memref<1x10xf32, #tpu.memory_space<vmem>>, %arg5: memref<8x10xf32, #tpu.memory_space<vmem>>) attributes {dimension_semantics = [], scalar_prefetch = 0 : i64, scratch_operands = 0 : i64, tpu.core_type = #tpu.core_type<tc>} {
    %c0 = arith.constant 0 : index
    %c0_0 = arith.constant 0 : index
    %0 = vector.load %arg0[%c0, %c0_0] : memref<8x9216xbf16, #tpu.memory_space<vmem>>, vector<8x9216xbf16>
    %c0_1 = arith.constant 0 : index
    %c0_2 = arith.constant 0 : index
    %1 = vector.load %arg1[%c0_1, %c0_2] : memref<9216x128xbf16, #tpu.memory_space<vmem>>, vector<9216x128xbf16>
    %cst = arith.constant dense<0.000000e+00> : vector<8x128xf32>
    %2 = tpu.matmul %0, %1, %cst {dimension_numbers = #tpu.dot_dimension_numbers<[1], [0], [0], [1], [0, 0, 1, 1], [], []>} : vector<8x9216xbf16>, vector<9216x128xbf16>, vector<8x128xf32> -> vector<8x128xf32>
    %c0_3 = arith.constant 0 : index
    %c0_4 = arith.constant 0 : index
    %3 = vector.load %arg2[%c0_3, %c0_4] : memref<1x128xf32, #tpu.memory_space<vmem>>, vector<1x128xf32>
    %4 = vector.broadcast %3 : vector<1x128xf32> to vector<8x128xf32>
    %5 = arith.addf %2, %4 : vector<8x128xf32>
    %cst_5 = arith.constant 0.000000e+00 : f32
    %6 = vector.broadcast %cst_5 : f32 to vector<8x128xf32>
    %7 = arith.maximumf %5, %6 : vector<8x128xf32>
    %8 = arith.truncf %7 : vector<8x128xf32> to vector<8x128xbf16>
    %c0_6 = arith.constant 0 : index
    %c0_7 = arith.constant 0 : index
    %9 = vector.load %arg3[%c0_6, %c0_7] : memref<128x10xbf16, #tpu.memory_space<vmem>>, vector<128x10xbf16>
    %cst_8 = arith.constant dense<0.000000e+00> : vector<8x10xf32>
    %10 = tpu.matmul %8, %9, %cst_8 {dimension_numbers = #tpu.dot_dimension_numbers<[1], [0], [0], [1], [0, 0, 1, 1], [], []>} : vector<8x128xbf16>, vector<128x10xbf16>, vector<8x10xf32> -> vector<8x10xf32>
    %c0_9 = arith.constant 0 : index
    %c0_10 = arith.constant 0 : index
    %11 = vector.load %arg4[%c0_9, %c0_10] : memref<1x10xf32, #tpu.memory_space<vmem>>, vector<1x10xf32>
    %12 = vector.broadcast %11 : vector<1x10xf32> to vector<8x10xf32>
    %13 = arith.addf %10, %12 : vector<8x10xf32>
    %c0_11 = arith.constant 0 : index
    %c0_12 = arith.constant 0 : index
    %14 = vector.load %arg5[%c0_11, %c0_12] : memref<8x10xf32, #tpu.memory_space<vmem>>, vector<8x10xf32>
    tpu.vector_store %arg5[%c0_11, %c0_12], %13 {strides = array<i32>} : memref<8x10xf32, #tpu.memory_space<vmem>>, vector<8x10xf32>,
    return
  }
}

</mosaic_0001>

<llo_original>
// kernel: net_forward.5
$region0: #{net_forward.5}
  #allocation0 [shape = 'u32[]', space=smem, size = 0x4, offset = 0x4, fixed_abs, tag = 'smem constant byte address 0x4 - core index']
  #allocation1 [shape = 'u32[144,128]{1,0:T(1,128)}', space=vmem, size = 0x12000, scoped, tag = 'internal scratch']
  %s0 = inlined_call_operand.vmem [shape: bf16[5408,9], index: 0, kind: input, shape index: {}]
  %s1 = inlined_call_operand.vmem [shape: bf16[9,32], index: 1, kind: input, shape index: {}]
  %s2 = inlined_call_operand.vmem [shape: f32[1,32], index: 2, kind: input, shape index: {}]
  %s3 = inlined_call_operand.vmem [shape: f32[5408,32], index: 3, kind: output, shape index: {}]
  %s4 = sld [smem:[#allocation0]]
  $region45: #{net_forward.5} parent=0
    _
  %s6 = ssub.s32 1, %s4
  %s7 = scalar_select 0, %s6, %s4
  loop: start=0, step=1, limit=15
  $region2: #{net_forward.5} parent=0 // loop_pre_header
    _
  $region3: #{net_forward.5} parent=0 // loop_header
    %s9 = sphi 0, %s13
    %p10 = scmp.ge.s32.totalorder %s9, 15
    %s19 = sphi 0, %s21
    %s22 = sphi 0, %s19
    %s23 = sphi 0, %s22
    %s39 = sphi 0, %s23
    %s43 = sphi 0, %s43
    %s45 = sphi 0, %s43
    %s46 = sphi 0, %s45
    %s60 = sphi 0, %s46
    %s64 = sphi 0, %s64
    %s66 = sphi 0, %s64
    %s67 = sphi 0, %s66
    %s81 = sphi 0, %s67
    %s87 = sphi 0, %s89
    %s90 = sphi 0, %s87
    %s91 = sphi 0, %s90
    %s107 = sphi 0, %s91
  $region4: #{net_forward.5} parent=0 // loop_header_branch
    %12 = sbr.rel (%p10) target = $region8
  $region5: #{net_forward.5} parent=0 // loop_body
    %s14 = ssub.s32 %s9, 1
    %s15 = ssub.s32 %s9, 2
    %s16 = sadd.s32 %s9, 1
    %s17 = ssub.s32 %s9, %s16
    %p18 = scmp.eq.s32.totalorder %s17, 0
    %s20 = sadd.s32 %s19, 1
    %s21 = scalar_select %p18, %s19, %s20
    %p24 = pneg %p18
    %p25 = scmp.eq.s32.totalorder %s9, 12
    %p26 = por %p24, %p25
    %p27 = scmp.ne.s32.totalorder %s19, %s22
    %p28 = scmp.eq.s32.totalorder %s9, 0
    %p29 = por %p27, %p28
    %p30 = scmp.ne.s32.totalorder %s19, %s22
    %p31 = scmp.eq.s32.totalorder %s14, 12
    %p32 = por %p30, %p31
    %p33 = scmp.ne.s32.totalorder %s22, %s23
    %p34 = scmp.eq.s32.totalorder %s14, 0
    %p35 = por %p33, %p34
    %p36 = scmp.ne.s32.totalorder %s22, %s23
    %p37 = scmp.eq.s32.totalorder %s15, 12
    %p38 = por %p36, %p37
    %p40 = scmp.ne.s32.totalorder %s23, %s39
    %p41 = scmp.eq.s32.totalorder %s15, 0
    %p42 = por %p40, %p41
    %s44 = sadd.s32 %s43, 1
    %p47 = scmp.eq.s32.totalorder %s9, 12
    %p48 = scmp.ne.s32.totalorder %s43, %s45
    %p49 = scmp.eq.s32.totalorder %s9, 0
    %p50 = por %p48, %p49
    %p51 = scmp.ne.s32.totalorder %s43, %s45
    %p52 = scmp.eq.s32.totalorder %s14, 12
    %p53 = por %p51, %p52
    %p54 = scmp.ne.s32.totalorder %s45, %s46
    %p55 = scmp.eq.s32.totalorder %s14, 0
    %p56 = por %p54, %p55
    %p57 = scmp.ne.s32.totalorder %s45, %s46
    %p58 = scmp.eq.s32.totalorder %s15, 12
    %p59 = por %p57, %p58
    %p61 = scmp.ne.s32.totalorder %s46, %s60
    %p62 = scmp.eq.s32.totalorder %s15, 0
    %p63 = por %p61, %p62
    %s65 = sadd.s32 %s64, 1
    %p68 = scmp.eq.s32.totalorder %s9, 12
    %p69 = scmp.ne.s32.totalorder %s64, %s66
    %p70 = scmp.eq.s32.totalorder %s9, 0
    %p71 = por %p69, %p70
    %p72 = scmp.ne.s32.totalorder %s64, %s66
    %p73 = scmp.eq.s32.totalorder %s14, 12
    %p74 = por %p72, %p73
    %p75 = scmp.ne.s32.totalorder %s66, %s67
    %p76 = scmp.eq.s32.totalorder %s14, 0
    %p77 = por %p75, %p76
    %p78 = scmp.ne.s32.totalorder %s66, %s67
    %p79 = scmp.eq.s32.totalorder %s15, 12
    %p80 = por %p78, %p79
    %p82 = scmp.ne.s32.totalorder %s67, %s81
    %p83 = scmp.eq.s32.totalorder %s15, 0
    %p84 = por %p82, %p83
    %s85 = ssub.s32 %s9, %s16
    %p86 = scmp.eq.s32.totalorder %s85, 0
    %s88 = sadd.s32 %s87, 1
    %s89 = scalar_select %p86, %s87, %s88
    %p92 = pneg %p86
    %p93 = scmp.eq.s32.totalorder %s9, 12
    %p94 = por %p92, %p93
    %p95 = scmp.ne.s32.totalorder %s87, %s90
    %p96 = scmp.eq.s32.totalorder %s9, 0
    %p97 = por %p95, %p96
    %p98 = scmp.ne.s32.totalorder %s87, %s90
    %p99 = scmp.eq.s32.totalorder %s14, 12
    %p100 = por %p98, %p99
    %p101 = scmp.ne.s32.totalorder %s90, %s91
    %p102 = scmp.eq.s32.totalorder %s14, 0
    %p103 = por %p101, %p102
    %p104 = scmp.ne.s32.totalorder %s90, %s91
    %p105 = scmp.eq.s32.totalorder %s15, 12
    %p106 = por %p104, %p105
    %p108 = scmp.ne.s32.totalorder %s91, %s107
    %p109 = scmp.eq.s32.totalorder %s15, 0
    %p110 = por %p108, %p109
    %p111 = scmp.le.s32.totalorder 1, %s9
    %p112 = scmp.lt.s32.totalorder %s9, 14
    %p113 = pnand %p111, %p112
    %p114 = pneg %p113
    // Predicated region
    $region9: #{net_forward.5} parent=5 // pred_check
      _
    $region10: #{net_forward.5} parent=5 // pred_check_branch
      %116 = sbr.rel (%p113) target = $region12
    $region11: #{net_forward.5} parent=5 // pred_region
      %s117 = ssub.s32 %s9, 1
      // Predicated region
      $region13: #{net_forward.5} parent=11 // pred_check
        %p118 = pneg %p56
      $region14: #{net_forward.5} parent=11 // pred_check_branch
        %120 = sbr.rel (%p118) target = $region16
      $region15: #{net_forward.5} parent=11 // pred_region
        _
      $region16: #{net_forward.5} parent=11 // pred_fallthru
        _
      // Predicated region
      $region17: #{net_forward.5} parent=11 // pred_check
        %p121 = pneg %p77
      $region18: #{net_forward.5} parent=11 // pred_check_branch
        %123 = sbr.rel (%p121) target = $region20
      $region19: #{net_forward.5} parent=11 // pred_region
        _
      $region20: #{net_forward.5} parent=11 // pred_fallthru
        _
    $region12: #{net_forward.5} parent=5 // pred_fallthru
      _
    %p124 = scmp.lt.s32.totalorder %s9, 13
    // Predicated region
    $region21: #{net_forward.5} parent=5 // pred_check
      %p125 = pneg %p124
    $region22: #{net_forward.5} parent=5 // pred_check_branch
      %127 = sbr.rel (%p125) target = $region24
    $region23: #{net_forward.5} parent=5 // pred_region
      // Predicated region
      $region25: #{net_forward.5} parent=23 // pred_check
        %p128 = pneg %p29
      $region26: #{net_forward.5} parent=23 // pred_check_branch
        %130 = sbr.rel (%p128) target = $region28
      $region27: #{net_forward.5} parent=23 // pred_region
        %s131 = smul.u32 52, %s9
        %p132 = scmp.lt.s32.totalorder %s131, 675
        %s133 = scalar_select %p132, %s131, 675
        %s134 = smul.addr %s133, 4
        %s135 = scalar_lea.vmem %s0, %s134
        %s136 = smul.u32 52, %s9
      $region28: #{net_forward.5} parent=23 // pred_fallthru
        _
    $region24: #{net_forward.5} parent=5 // pred_fallthru
      _
    %p137 = scmp.le.s32.totalorder 1, %s9
    %p138 = scmp.lt.s32.totalorder %s9, 14
    %p139 = pnand %p137, %p138
    %p140 = pneg %p139
    // Predicated region
    $region29: #{net_forward.5} parent=5 // pred_check
      _
    $region30: #{net_forward.5} parent=5 // pred_check_branch
      %142 = sbr.rel (%p139) target = $region32
    $region31: #{net_forward.5} parent=5 // pred_region
      %s143 = ssub.s32 %s9, 1
      %s144 = smul.u32 52, %s14
      %p145 = scmp.lt.s32.totalorder %s144, 675
      %s146 = scalar_select %p145, %s144, 675
      %s147 = smul.addr %s146, 4
      %s148 = scalar_lea.vmem %s0, %s147
      %p149 = pneg %p35
      %p150 = pneg %p32
      %p151 = pneg %p56
      %p152 = pneg %p53
      %p153 = pneg %p77
      %p154 = pneg %p74
      %p155 = pneg %p103
      %p156 = pneg %p100
      %s157 = smul.u32 52, %s14
      %p158 = scmp.lt.s32.totalorder %s157, 675
      %s159 = scalar_select %p158, %s157, 675
      %s160 = smul.addr %s159, 8
      %s161 = scalar_lea.vmem %s3, %s160
      %s162 = smul.u32 52, %s14
      %p163 = scmp.lt.s32.totalorder %s162, 675
      %s164 = scalar_select %p163, %s162, 675
      %s165 = smul.addr %s164, 4
      %s166 = scalar_lea.vmem %s0, %s165
      %s167 = smul.u32 52, %s14
      %s168 = smul.u32 52, %s14
      %p169 = scmp.lt.s32.totalorder %s168, 675
      %s170 = scalar_select %p169, %s168, 675
      %s171 = smul.addr %s170, 8
      %s172 = scalar_lea.vmem %s3, %s171
      %s173 = smul.u32 52, %s14
      %v175 = vld [vmem:[%s166] sm:$0xf]
      %v176 = vld [vmem:[%s166 + $0x4] sm:$0xf]
      %v177 = vld [vmem:[%s166 + $0x8] sm:$0xf]
      %v178 = vld [vmem:[%s166 + $0xc] sm:$0xf]
      %v179 = vld [vmem:[%s166 + $0x10] sm:$0xf]
      %v180 = vld [vmem:[%s166 + $0x14] sm:$0xf]
      %v181 = vld [vmem:[%s166 + $0x18] sm:$0xf]
      %v182 = vld [vmem:[%s166 + $0x1c] sm:$0xf]
      %v183 = vld [vmem:[%s166 + $0x20] sm:$0xf]
      %v184 = vld [vmem:[%s166 + $0x24] sm:$0xf]
      %v185 = vld [vmem:[%s166 + $0x28] sm:$0xf]
      %v186 = vld [vmem:[%s166 + $0x2c] sm:$0xf]
      %v187 = vld [vmem:[%s166 + $0x30] sm:$0xf]
      %v188 = vld [vmem:[%s166 + $0x34] sm:$0xf]
      %v189 = vld [vmem:[%s166 + $0x38] sm:$0xf]
      %v190 = vld [vmem:[%s166 + $0x3c] sm:$0xf]
      %v191 = vld [vmem:[%s166 + $0x40] sm:$0xf]
      %v192 = vld [vmem:[%s166 + $0x44] sm:$0xf]
      %v193 = vld [vmem:[%s166 + $0x48] sm:$0xf]
      %v194 = vld [vmem:[%s166 + $0x4c] sm:$0xf]
      %v195 = vld [vmem:[%s166 + $0x50] sm:$0xf]
      %v196 = vld [vmem:[%s166 + $0x54] sm:$0xf]
      %v197 = vld [vmem:[%s166 + $0x58] sm:$0xf]
      %v198 = vld [vmem:[%s166 + $0x5c] sm:$0xf]
      %v199 = vld [vmem:[%s166 + $0x60] sm:$0xf]
      %v200 = vld [vmem:[%s166 + $0x64] sm:$0xf]
      %v201 = vld [vmem:[%s166 + $0x68] sm:$0xf]
      %v202 = vld [vmem:[%s166 + $0x6c] sm:$0xf]
      %v203 = vld [vmem:[%s166 + $0x70] sm:$0xf]
      %v204 = vld [vmem:[%s166 + $0x74] sm:$0xf]
      %v205 = vld [vmem:[%s166 + $0x78] sm:$0xf]
      %v206 = vld [vmem:[%s166 + $0x7c] sm:$0xf]
      %v207 = vld [vmem:[%s166 + $0x80] sm:$0xf]
      %v208 = vld [vmem:[%s166 + $0x84] sm:$0xf]
      %v209 = vld [vmem:[%s166 + $0x88] sm:$0xf]
      %v210 = vld [vmem:[%s166 + $0x8c] sm:$0xf]
      %v211 = vld [vmem:[%s166 + $0x90] sm:$0xf]
      %v212 = vld [vmem:[%s166 + $0x94] sm:$0xf]
      %v213 = vld [vmem:[%s166 + $0x98] sm:$0xf]
      %v214 = vld [vmem:[%s166 + $0x9c] sm:$0xf]
      %v215 = vld [vmem:[%s166 + $0xa0] sm:$0xf]
      %v216 = vld [vmem:[%s166 + $0xa4] sm:$0xf]
      %v217 = vld [vmem:[%s166 + $0xa8] sm:$0xf]
      %v218 = vld [vmem:[%s166 + $0xac] sm:$0xf]
      %v219 = vld [vmem:[%s166 + $0xb0] sm:$0xf]
      %v220 = vld [vmem:[%s166 + $0xb4] sm:$0xf]
      %v221 = vld [vmem:[%s166 + $0xb8] sm:$0xf]
      %v222 = vld [vmem:[%s166 + $0xbc] sm:$0xf]
      %v223 = vld [vmem:[%s166 + $0xc0] sm:$0xf]
      %v224 = vld [vmem:[%s166 + $0xc4] sm:$0xf]
      %v225 = vld [vmem:[%s166 + $0xc8] sm:$0xf]
      %v226 = vld [vmem:[%s166 + $0xcc] sm:$0xf]
      %v227 = vld [vmem:[%s1] sm:$0xf]
      %v228 = vld [vmem:[%s1 + $0x4] sm:$0x1]
      %v229 = vld [vmem:[%s2] sm:$0x1]
      %v231 = vlaneseq
      %v232 = vshrl.u32 %v231, 7
      %v233 = vsub.s32 0, %v232
      %v234 = vrot.slane %v229, %v233
      %v288 = vunpack.c.l.b16 %v175
      %v289 = vunpack.c.l.b16 %v176
      %v290 = vunpack.c.l.b16 %v177
      %v291 = vunpack.c.l.b16 %v178
      %v292 = vunpack.c.l.b16 %v179
      %v293 = vunpack.c.l.b16 %v180
      %v294 = vunpack.c.l.b16 %v181
      %v295 = vunpack.c.l.b16 %v182
      %v296 = vunpack.c.l.b16 %v183
      %v297 = vunpack.c.l.b16 %v184
      %v298 = vunpack.c.l.b16 %v185
      %v299 = vunpack.c.l.b16 %v186
      %v300 = vunpack.c.l.b16 %v187
      %v301 = vunpack.c.l.b16 %v188
      %v302 = vunpack.c.l.b16 %v189
      %v303 = vunpack.c.l.b16 %v190
      %v304 = vunpack.c.l.b16 %v191
      %v305 = vunpack.c.l.b16 %v192
      %v306 = vunpack.c.l.b16 %v193
      %v307 = vunpack.c.l.b16 %v194
      %v308 = vunpack.c.l.b16 %v195
      %v309 = vunpack.c.l.b16 %v196
      %v310 = vunpack.c.l.b16 %v197
      %v311 = vunpack.c.l.b16 %v198
      %v312 = vunpack.c.l.b16 %v199
      %v313 = vunpack.c.l.b16 %v200
      %v314 = vunpack.c.l.b16 %v201
      %v315 = vunpack.c.l.b16 %v202
      %v316 = vunpack.c.l.b16 %v203
      %v317 = vunpack.c.l.b16 %v204
      %v318 = vunpack.c.l.b16 %v205
      %v319 = vunpack.c.l.b16 %v206
      %v320 = vunpack.c.l.b16 %v207
      %v321 = vunpack.c.l.b16 %v208
      %v322 = vunpack.c.l.b16 %v209
      %v323 = vunpack.c.l.b16 %v210
      %v324 = vunpack.c.l.b16 %v211
      %v325 = vunpack.c.l.b16 %v212
      %v326 = vunpack.c.l.b16 %v213
      %v327 = vunpack.c.l.b16 %v214
      %v328 = vunpack.c.l.b16 %v215
      %v329 = vunpack.c.l.b16 %v216
      %v330 = vunpack.c.l.b16 %v217
      %v331 = vunpack.c.l.b16 %v218
      %v332 = vunpack.c.l.b16 %v219
      %v333 = vunpack.c.l.b16 %v220
      %v334 = vunpack.c.l.b16 %v221
      %v335 = vunpack.c.l.b16 %v222
      %v336 = vunpack.c.l.b16 %v223
      %v337 = vunpack.c.l.b16 %v224
      %v338 = vunpack.c.l.b16 %v225
      %v339 = vunpack.c.l.b16 %v226
      %v340 = vpack.c.b16 %v289, %v288
      %v341 = vpack.c.b16 %v291, %v290
      %v342 = vpack.c.b16 %v293, %v292
      %v343 = vpack.c.b16 %v295, %v294
      %v344 = vpack.c.b16 %v297, %v296
      %v345 = vpack.c.b16 %v299, %v298
      %v346 = vpack.c.b16 %v301, %v300
      %v347 = vpack.c.b16 %v303, %v302
      %v348 = vpack.c.b16 %v305, %v304
      %v349 = vpack.c.b16 %v307, %v306
      %v350 = vpack.c.b16 %v309, %v308
      %v351 = vpack.c.b16 %v311, %v310
      %v352 = vpack.c.b16 %v313, %v312
      %v353 = vpack.c.b16 %v315, %v314
      %v354 = vpack.c.b16 %v317, %v316
      %v355 = vpack.c.b16 %v319, %v318
      %v356 = vpack.c.b16 %v321, %v320
      %v357 = vpack.c.b16 %v323, %v322
      %v358 = vpack.c.b16 %v325, %v324
      %v359 = vpack.c.b16 %v327, %v326
      %v360 = vpack.c.b16 %v329, %v328
      %v361 = vpack.c.b16 %v331, %v330
      %v362 = vpack.c.b16 %v333, %v332
      %v363 = vpack.c.b16 %v335, %v334
      %v364 = vpack.c.b16 %v337, %v336
      %v365 = vpack.c.b16 %v339, %v338
      %v368 = vunpack.c.l.b16 %v227
      %v369 = vunpack.c.l.b16 %v228
      %v370 = vpack.c.b16 %v369, %v368
      %vm371 = vcmask 72704
      %v373 = vsel %vm371, %v340, 0
      %v376 = vsel %vm371, %v341, 0
      %v379 = vsel %vm371, %v342, 0
      %v382 = vsel %vm371, %v343, 0
      %v385 = vsel %vm371, %v344, 0
      %v388 = vsel %vm371, %v345, 0
      %v391 = vsel %vm371, %v346, 0
      %v394 = vsel %vm371, %v347, 0
      %v397 = vsel %vm371, %v348, 0
      %v400 = vsel %vm371, %v349, 0
      %v403 = vsel %vm371, %v350, 0
      %v406 = vsel %vm371, %v351, 0
      %v409 = vsel %vm371, %v352, 0
      %v412 = vsel %vm371, %v353, 0
      %v415 = vsel %vm371, %v354, 0
      %v418 = vsel %vm371, %v355, 0
      %v421 = vsel %vm371, %v356, 0
      %v424 = vsel %vm371, %v357, 0
      %v427 = vsel %vm371, %v358, 0
      %v430 = vsel %vm371, %v359, 0
      %v433 = vsel %vm371, %v360, 0
      %v436 = vsel %vm371, %v361, 0
      %v439 = vsel %vm371, %v362, 0
      %v442 = vsel %vm371, %v363, 0
      %v445 = vsel %vm371, %v364, 0
      %v448 = vsel %vm371, %v365, 0
      %vm450 = vcmask 1043456
      %vm451 = vcmask 1044480
      %v452 = vsel %vm450, 4294967295, 65535
      %v453 = vsel %vm451, %v452, 0
      %v455 = vand.u32 %v370, %v453
      %457 = vmatprep.subr.bf16.mxu0 0
      %458 = vmatpush1.bf16.msra.mxu0 %v455
      %459 = vmatprep.subr.bf16.mxu0 0
      %460 = vmatpush1.bf16.msra.mxu0 0
      %461 = vmatprep.subr.bf16.mxu0 0
      %462 = vmatpush1.bf16.msra.mxu0 0
      %463 = vmatprep.subr.bf16.mxu0 0
      %464 = vmatpush1.bf16.msra.mxu0 0
      %465 = vmatprep.subr.bf16.mxu0 0
      %466 = vmatpush1.bf16.msra.mxu0 0
      %467 = vmatprep.subr.bf16.mxu0 0
      %468 = vmatpush1.bf16.msra.mxu0 0
      %469 = vmatprep.subr.bf16.mxu0 0
      %470 = vmatpush1.bf16.msra.mxu0 0
      %471 = vmatprep.subr.bf16.mxu0 0
      %472 = vmatpush1.bf16.msra.mxu0 0
      %473 = vmatprep.subr.bf16.mxu0 0
      %474 = vmatpush1.bf16.msra.mxu0 0
      %475 = vmatprep.subr.bf16.mxu0 0
      %476 = vmatpush1.bf16.msra.mxu0 0
      %477 = vmatprep.subr.bf16.mxu0 0
      %478 = vmatpush1.bf16.msra.mxu0 0
      %479 = vmatprep.subr.bf16.mxu0 0
      %480 = vmatpush1.bf16.msra.mxu0 0
      %481 = vmatprep.subr.bf16.mxu0 0
      %482 = vmatpush1.bf16.msra.mxu0 0
      %483 = vmatprep.subr.bf16.mxu0 0
      %484 = vmatpush1.bf16.msra.mxu0 0
      %485 = vmatprep.subr.bf16.mxu0 0
      %486 = vmatpush1.bf16.msra.mxu0 0
      %487 = vmatprep.subr.bf16.mxu0 0
      %488 = vmatpush1.bf16.msra.mxu0 0
      %489 = vmatprep.mubr.bf16.mxu0 0
      %490 = vmatmul.mubr.bf16.gmra.mrb[0].mxu0 %v373
      %v491 = vpop.f32.mrb[0].mxu0
      %v492 = vadd.f32 %v234, %v491
      %v493 = vpop.f32.mrb[0].mxu0
      %v494 = vpop.f32.mrb[0].mxu0
      %v495 = vadd.f32 %v234, %v494
      %v496 = vpop.f32.mrb[0].mxu0
      %497 = vmatprep.mubr.bf16.mxu0 0
      %498 = vmatmul.mubr.bf16.gmra.mrb[0].mxu0 %v376
      %v499 = vpop.f32.mrb[0].mxu0
      %v500 = vadd.f32 %v234, %v499
      %v501 = vpop.f32.mrb[0].mxu0
      %v502 = vpop.f32.mrb[0].mxu0
      %v503 = vadd.f32 %v234, %v502
      %v504 = vpop.f32.mrb[0].mxu0
      %505 = vmatprep.mubr.bf16.mxu0 0
      %506 = vmatmul.mubr.bf16.gmra.mrb[0].mxu0 %v379
      %v507 = vpop.f32.mrb[0].mxu0
      %v508 = vadd.f32 %v234, %v507
      %v509 = vpop.f32.mrb[0].mxu0
      %v510 = vpop.f32.mrb[0].mxu0
      %v511 = vadd.f32 %v234, %v510
      %v512 = vpop.f32.mrb[0].mxu0
      %513 = vmatprep.mubr.bf16.mxu0 0
      %514 = vmatmul.mubr.bf16.gmra.mrb[0].mxu0 %v382
      %v515 = vpop.f32.mrb[0].mxu0
      %v516 = vadd.f32 %v234, %v515
      %v517 = vpop.f32.mrb[0].mxu0
      %v518 = vpop.f32.mrb[0].mxu0
      %v519 = vadd.f32 %v234, %v518
      %v520 = vpop.f32.mrb[0].mxu0
      %521 = vmatprep.mubr.bf16.mxu0 0
      %522 = vmatmul.mubr.bf16.gmra.mrb[0].mxu0 %v385
      %v523 = vpop.f32.mrb[0].mxu0
      %v524 = vadd.f32 %v234, %v523
      %v525 = vpop.f32.mrb[0].mxu0
      %v526 = vpop.f32.mrb[0].mxu0
      %v527 = vadd.f32 %v234, %v526
      %v528 = vpop.f32.mrb[0].mxu0
      %529 = vmatprep.mubr.bf16.mxu0 0
      %530 = vmatmul.mubr.bf16.gmra.mrb[0].mxu0 %v388
      %v531 = vpop.f32.mrb[0].mxu0
      %v532 = vadd.f32 %v234, %v531
      %v533 = vpop.f32.mrb[0].mxu0
      %v534 = vpop.f32.mrb[0].mxu0
      %v535 = vadd.f32 %v234, %v534
      %v536 = vpop.f32.mrb[0].mxu0
      %537 = vmatprep.mubr.bf16.mxu0 0
      %538 = vmatmul.mubr.bf16.gmra.mrb[0].mxu0 %v391
      %v539 = vpop.f32.mrb[0].mxu0
      %v540 = vadd.f32 %v234, %v539
      %v541 = vpop.f32.mrb[0].mxu0
      %v542 = vpop.f32.mrb[0].mxu0
      %v543 = vadd.f32 %v234, %v542
      %v544 = vpop.f32.mrb[0].mxu0
      %545 = vmatprep.mubr.bf16.mxu0 0
      %546 = vmatmul.mubr.bf16.gmra.mrb[0].mxu0 %v394
      %v547 = vpop.f32.mrb[0].mxu0
      %v548 = vadd.f32 %v234, %v547
      %v549 = vpop.f32.mrb[0].mxu0
      %v550 = vpop.f32.mrb[0].mxu0
      %v551 = vadd.f32 %v234, %v550
      %v552 = vpop.f32.mrb[0].mxu0
      %553 = vmatprep.mubr.bf16.mxu0 0
      %554 = vmatmul.mubr.bf16.gmra.mrb[0].mxu0 %v397
      %v555 = vpop.f32.mrb[0].mxu0
      %v556 = vadd.f32 %v234, %v555
      %v557 = vpop.f32.mrb[0].mxu0
      %v558 = vpop.f32.mrb[0].mxu0
      %v559 = vadd.f32 %v234, %v558
      %v560 = vpop.f32.mrb[0].mxu0
      %561 = vmatprep.mubr.bf16.mxu0 0
      %562 = vmatmul.mubr.bf16.gmra.mrb[0].mxu0 %v400
      %v563 = vpop.f32.mrb[0].mxu0
      %v564 = vadd.f32 %v234, %v563
      %v565 = vpop.f32.mrb[0].mxu0
      %v566 = vpop.f32.mrb[0].mxu0
      %v567 = vadd.f32 %v234, %v566
      %v568 = vpop.f32.mrb[0].mxu0
      %569 = vmatprep.mubr.bf16.mxu0 0
      %570 = vmatmul.mubr.bf16.gmra.mrb[0].mxu0 %v403
      %v571 = vpop.f32.mrb[0].mxu0
      %v572 = vadd.f32 %v234, %v571
      %v573 = vpop.f32.mrb[0].mxu0
      %v574 = vpop.f32.mrb[0].mxu0
      %v575 = vadd.f32 %v234, %v574
      %v576 = vpop.f32.mrb[0].mxu0
      %577 = vmatprep.mubr.bf16.mxu0 0
      %578 = vmatmul.mubr.bf16.gmra.mrb[0].mxu0 %v406
      %v579 = vpop.f32.mrb[0].mxu0
      %v580 = vadd.f32 %v234, %v579
      %v581 = vpop.f32.mrb[0].mxu0
      %v582 = vpop.f32.mrb[0].mxu0
      %v583 = vadd.f32 %v234, %v582
      %v584 = vpop.f32.mrb[0].mxu0
      %585 = vmatprep.mubr.bf16.mxu0 0
      %586 = vmatmul.mubr.bf16.gmra.mrb[0].mxu0 %v409
      %v587 = vpop.f32.mrb[0].mxu0
      %v588 = vadd.f32 %v234, %v587
      %v589 = vpop.f32.mrb[0].mxu0
      %v590 = vpop.f32.mrb[0].mxu0
      %v591 = vadd.f32 %v234, %v590
      %v592 = vpop.f32.mrb[0].mxu0
      %593 = vmatprep.mubr.bf16.mxu0 0
      %594 = vmatmul.mubr.bf16.gmra.mrb[0].mxu0 %v412
      %v595 = vpop.f32.mrb[0].mxu0
      %v596 = vadd.f32 %v234, %v595
      %v597 = vpop.f32.mrb[0].mxu0
      %v598 = vpop.f32.mrb[0].mxu0
      %v599 = vadd.f32 %v234, %v598
      %v600 = vpop.f32.mrb[0].mxu0
      %601 = vmatprep.mubr.bf16.mxu0 0
      %602 = vmatmul.mubr.bf16.gmra.mrb[0].mxu0 %v415
      %v603 = vpop.f32.mrb[0].mxu0
      %v604 = vadd.f32 %v234, %v603
      %v605 = vpop.f32.mrb[0].mxu0
      %v606 = vpop.f32.mrb[0].mxu0
      %v607 = vadd.f32 %v234, %v606
      %v608 = vpop.f32.mrb[0].mxu0
      %609 = vmatprep.mubr.bf16.mxu0 0
      %610 = vmatmul.mubr.bf16.gmra.mrb[0].mxu0 %v418
      %v611 = vpop.f32.mrb[0].mxu0
      %v612 = vadd.f32 %v234, %v611
      %v613 = vpop.f32.mrb[0].mxu0
      %v614 = vpop.f32.mrb[0].mxu0
      %v615 = vadd.f32 %v234, %v614
      %v616 = vpop.f32.mrb[0].mxu0
      %617 = vmatprep.mubr.bf16.mxu0 0
      %618 = vmatmul.mubr.bf16.gmra.mrb[0].mxu0 %v421
      %v619 = vpop.f32.mrb[0].mxu0
      %v620 = vadd.f32 %v234, %v619
      %v621 = vpop.f32.mrb[0].mxu0
      %v622 = vpop.f32.mrb[0].mxu0
      %v623 = vadd.f32 %v234, %v622
      %v624 = vpop.f32.mrb[0].mxu0
      %625 = vmatprep.mubr.bf16.mxu0 0
      %626 = vmatmul.mubr.bf16.gmra.mrb[0].mxu0 %v424
      %v627 = vpop.f32.mrb[0].mxu0
      %v628 = vadd.f32 %v234, %v627
      %v629 = vpop.f32.mrb[0].mxu0
      %v630 = vpop.f32.mrb[0].mxu0
      %v631 = vadd.f32 %v234, %v630
      %v632 = vpop.f32.mrb[0].mxu0
      %633 = vmatprep.mubr.bf16.mxu0 0
      %634 = vmatmul.mubr.bf16.gmra.mrb[0].mxu0 %v427
      %v635 = vpop.f32.mrb[0].mxu0
      %v636 = vadd.f32 %v234, %v635
      %v637 = vpop.f32.mrb[0].mxu0
      %v638 = vpop.f32.mrb[0].mxu0
      %v639 = vadd.f32 %v234, %v638
      %v640 = vpop.f32.mrb[0].mxu0
      %641 = vmatprep.mubr.bf16.mxu0 0
      %642 = vmatmul.mubr.bf16.gmra.mrb[0].mxu0 %v430
      %v643 = vpop.f32.mrb[0].mxu0
      %v644 = vadd.f32 %v234, %v643
      %v645 = vpop.f32.mrb[0].mxu0
      %v646 = vpop.f32.mrb[0].mxu0
      %v647 = vadd.f32 %v234, %v646
      %v648 = vpop.f32.mrb[0].mxu0
      %649 = vmatprep.mubr.bf16.mxu0 0
      %650 = vmatmul.mubr.bf16.gmra.mrb[0].mxu0 %v433
      %v651 = vpop.f32.mrb[0].mxu0
      %v652 = vadd.f32 %v234, %v651
      %v653 = vpop.f32.mrb[0].mxu0
      %v654 = vpop.f32.mrb[0].mxu0
      %v655 = vadd.f32 %v234, %v654
      %v656 = vpop.f32.mrb[0].mxu0
      %657 = vmatprep.mubr.bf16.mxu0 0
      %658 = vmatmul.mubr.bf16.gmra.mrb[0].mxu0 %v436
      %v659 = vpop.f32.mrb[0].mxu0
      %v660 = vadd.f32 %v234, %v659
      %v661 = vpop.f32.mrb[0].mxu0
      %v662 = vpop.f32.mrb[0].mxu0
      %v663 = vadd.f32 %v234, %v662
      %v664 = vpop.f32.mrb[0].mxu0
      %665 = vmatprep.mubr.bf16.mxu0 0
      %666 = vmatmul.mubr.bf16.gmra.mrb[0].mxu0 %v439
      %v667 = vpop.f32.mrb[0].mxu0
      %v668 = vadd.f32 %v234, %v667
      %v669 = vpop.f32.mrb[0].mxu0
      %v670 = vpop.f32.mrb[0].mxu0
      %v671 = vadd.f32 %v234, %v670
      %v672 = vpop.f32.mrb[0].mxu0
      %673 = vmatprep.mubr.bf16.mxu0 0
      %674 = vmatmul.mubr.bf16.gmra.mrb[0].mxu0 %v442
      %v675 = vpop.f32.mrb[0].mxu0
      %v676 = vadd.f32 %v234, %v675
      %v677 = vpop.f32.mrb[0].mxu0
      %v678 = vpop.f32.mrb[0].mxu0
      %v679 = vadd.f32 %v234, %v678
      %v680 = vpop.f32.mrb[0].mxu0
      %681 = vmatprep.mubr.bf16.mxu0 0
      %682 = vmatmul.mubr.bf16.gmra.mrb[0].mxu0 %v445
      %v683 = vpop.f32.mrb[0].mxu0
      %v684 = vadd.f32 %v234, %v683
      %v685 = vpop.f32.mrb[0].mxu0
      %v686 = vpop.f32.mrb[0].mxu0
      %v687 = vadd.f32 %v234, %v686
      %v688 = vpop.f32.mrb[0].mxu0
      %689 = vmatprep.mubr.bf16.mxu0 0
      %690 = vmatmul.mubr.bf16.gmra.mrb[0].mxu0 %v448
      %v691 = vpop.f32.mrb[0].mxu0
      %v692 = vadd.f32 %v234, %v691
      %v693 = vpop.f32.mrb[0].mxu0
      %v694 = vpop.f32.mrb[0].mxu0
      %v695 = vadd.f32 %v234, %v694
      %v696 = vpop.f32.mrb[0].mxu0
      %697 = vdwg.mxu0
      %v698 = vmax.f32 %v492, 0.0
      %v699 = vmax.f32 %v495, 0.0
      %v700 = vmax.f32 %v500, 0.0
      %v701 = vmax.f32 %v503, 0.0
      %v702 = vmax.f32 %v508, 0.0
      %v703 = vmax.f32 %v511, 0.0
      %v704 = vmax.f32 %v516, 0.0
      %v705 = vmax.f32 %v519, 0.0
      %v706 = vmax.f32 %v524, 0.0
      %v707 = vmax.f32 %v527, 0.0
      %v708 = vmax.f32 %v532, 0.0
      %v709 = vmax.f32 %v535, 0.0
      %v710 = vmax.f32 %v540, 0.0
      %v711 = vmax.f32 %v543, 0.0
      %v712 = vmax.f32 %v548, 0.0
      %v713 = vmax.f32 %v551, 0.0
      %v714 = vmax.f32 %v556, 0.0
      %v715 = vmax.f32 %v559, 0.0
      %v716 = vmax.f32 %v564, 0.0
      %v717 = vmax.f32 %v567, 0.0
      %v718 = vmax.f32 %v572, 0.0
      %v719 = vmax.f32 %v575, 0.0
      %v720 = vmax.f32 %v580, 0.0
      %v721 = vmax.f32 %v583, 0.0
      %v722 = vmax.f32 %v588, 0.0
      %v723 = vmax.f32 %v591, 0.0
      %v724 = vmax.f32 %v596, 0.0
      %v725 = vmax.f32 %v599, 0.0
      %v726 = vmax.f32 %v604, 0.0
      %v727 = vmax.f32 %v607, 0.0
      %v728 = vmax.f32 %v612, 0.0
      %v729 = vmax.f32 %v615, 0.0
      %v730 = vmax.f32 %v620, 0.0
      %v731 = vmax.f32 %v623, 0.0
      %v732 = vmax.f32 %v628, 0.0
      %v733 = vmax.f32 %v631, 0.0
      %v734 = vmax.f32 %v636, 0.0
      %v735 = vmax.f32 %v639, 0.0
      %v736 = vmax.f32 %v644, 0.0
      %v737 = vmax.f32 %v647, 0.0
      %v738 = vmax.f32 %v652, 0.0
      %v739 = vmax.f32 %v655, 0.0
      %v740 = vmax.f32 %v660, 0.0
      %v741 = vmax.f32 %v663, 0.0
      %v742 = vmax.f32 %v668, 0.0
      %v743 = vmax.f32 %v671, 0.0
      %v744 = vmax.f32 %v676, 0.0
      %v745 = vmax.f32 %v679, 0.0
      %v746 = vmax.f32 %v684, 0.0
      %v747 = vmax.f32 %v687, 0.0
      %v748 = vmax.f32 %v692, 0.0
      %v749 = vmax.f32 %v695, 0.0
      %vm750 = vcmask 261120
      %751 = vst.msk [vmem:[%s172] sm:$0xff] %vm750, %v698
      %752 = vst.msk [vmem:[%s172 + $0x8] sm:$0xff] %vm750, %v699
      %753 = vst.msk [vmem:[%s172 + $0x10] sm:$0xff] %vm750, %v700
      %754 = vst.msk [vmem:[%s172 + $0x18] sm:$0xff] %vm750, %v701
      %755 = vst.msk [vmem:[%s172 + $0x20] sm:$0xff] %vm750, %v702
      %756 = vst.msk [vmem:[%s172 + $0x28] sm:$0xff] %vm750, %v703
      %757 = vst.msk [vmem:[%s172 + $0x30] sm:$0xff] %vm750, %v704
      %758 = vst.msk [vmem:[%s172 + $0x38] sm:$0xff] %vm750, %v705
      %759 = vst.msk [vmem:[%s172 + $0x40] sm:$0xff] %vm750, %v706
      %760 = vst.msk [vmem:[%s172 + $0x48] sm:$0xff] %vm750, %v707
      %761 = vst.msk [vmem:[%s172 + $0x50] sm:$0xff] %vm750, %v708
      %762 = vst.msk [vmem:[%s172 + $0x58] sm:$0xff] %vm750, %v709
      %763 = vst.msk [vmem:[%s172 + $0x60] sm:$0xff] %vm750, %v710
      %764 = vst.msk [vmem:[%s172 + $0x68] sm:$0xff] %vm750, %v711
      %765 = vst.msk [vmem:[%s172 + $0x70] sm:$0xff] %vm750, %v712
      %766 = vst.msk [vmem:[%s172 + $0x78] sm:$0xff] %vm750, %v713
      %767 = vst.msk [vmem:[%s172 + $0x80] sm:$0xff] %vm750, %v714
      %768 = vst.msk [vmem:[%s172 + $0x88] sm:$0xff] %vm750, %v715
      %769 = vst.msk [vmem:[%s172 + $0x90] sm:$0xff] %vm750, %v716
      %770 = vst.msk [vmem:[%s172 + $0x98] sm:$0xff] %vm750, %v717
      %771 = vst.msk [vmem:[%s172 + $0xa0] sm:$0xff] %vm750, %v718
      %772 = vst.msk [vmem:[%s172 + $0xa8] sm:$0xff] %vm750, %v719
      %773 = vst.msk [vmem:[%s172 + $0xb0] sm:$0xff] %vm750, %v720
      %774 = vst.msk [vmem:[%s172 + $0xb8] sm:$0xff] %vm750, %v721
      %775 = vst.msk [vmem:[%s172 + $0xc0] sm:$0xff] %vm750, %v722
      %776 = vst.msk [vmem:[%s172 + $0xc8] sm:$0xff] %vm750, %v723
      %777 = vst.msk [vmem:[%s172 + $0xd0] sm:$0xff] %vm750, %v724
      %778 = vst.msk [vmem:[%s172 + $0xd8] sm:$0xff] %vm750, %v725
      %779 = vst.msk [vmem:[%s172 + $0xe0] sm:$0xff] %vm750, %v726
      %780 = vst.msk [vmem:[%s172 + $0xe8] sm:$0xff] %vm750, %v727
      %781 = vst.msk [vmem:[%s172 + $0xf0] sm:$0xff] %vm750, %v728
      %782 = vst.msk [vmem:[%s172 + $0xf8] sm:$0xff] %vm750, %v729
      %783 = vst.msk [vmem:[%s172 + $0x100] sm:$0xff] %vm750, %v730
      %784 = vst.msk [vmem:[%s172 + $0x108] sm:$0xff] %vm750, %v731
      %785 = vst.msk [vmem:[%s172 + $0x110] sm:$0xff] %vm750, %v732
      %786 = vst.msk [vmem:[%s172 + $0x118] sm:$0xff] %vm750, %v733
      %787 = vst.msk [vmem:[%s172 + $0x120] sm:$0xff] %vm750, %v734
      %788 = vst.msk [vmem:[%s172 + $0x128] sm:$0xff] %vm750, %v735
      %789 = vst.msk [vmem:[%s172 + $0x130] sm:$0xff] %vm750, %v736
      %790 = vst.msk [vmem:[%s172 + $0x138] sm:$0xff] %vm750, %v737
      %791 = vst.msk [vmem:[%s172 + $0x140] sm:$0xff] %vm750, %v738
      %792 = vst.msk [vmem:[%s172 + $0x148] sm:$0xff] %vm750, %v739
      %793 = vst.msk [vmem:[%s172 + $0x150] sm:$0xff] %vm750, %v740
      %794 = vst.msk [vmem:[%s172 + $0x158] sm:$0xff] %vm750, %v741
      %795 = vst.msk [vmem:[%s172 + $0x160] sm:$0xff] %vm750, %v742
      %796 = vst.msk [vmem:[%s172 + $0x168] sm:$0xff] %vm750, %v743
      %797 = vst.msk [vmem:[%s172 + $0x170] sm:$0xff] %vm750, %v744
      %798 = vst.msk [vmem:[%s172 + $0x178] sm:$0xff] %vm750, %v745
      %799 = vst.msk [vmem:[%s172 + $0x180] sm:$0xff] %vm750, %v746
      %800 = vst.msk [vmem:[%s172 + $0x188] sm:$0xff] %vm750, %v747
      %801 = vst.msk [vmem:[%s172 + $0x190] sm:$0xff] %vm750, %v748
      %802 = vst.msk [vmem:[%s172 + $0x198] sm:$0xff] %vm750, %v749
      %s803 = smul.u32 52, %s14
      %p804 = scmp.lt.s32.totalorder %s803, 675
      %s805 = scalar_select %p804, %s803, 675
      %s806 = smul.addr %s805, 8
      %s807 = scalar_lea.vmem %s3, %s806
      // Predicated region
      $region33: #{net_forward.5} parent=31 // pred_check
        %p808 = pneg %p100
      $region34: #{net_forward.5} parent=31 // pred_check_branch
        %810 = sbr.rel (%p808) target = $region36
      $region35: #{net_forward.5} parent=31 // pred_region
        %s811 = smul.u32 52, %s14
      $region36: #{net_forward.5} parent=31 // pred_fallthru
        _
    $region32: #{net_forward.5} parent=5 // pred_fallthru
      _
    %p812 = scmp.le.s32.totalorder 2, %s9
    // Predicated region
    $region37: #{net_forward.5} parent=5 // pred_check
      %p813 = pneg %p812
    $region38: #{net_forward.5} parent=5 // pred_check_branch
      %815 = sbr.rel (%p813) target = $region40
    $region39: #{net_forward.5} parent=5 // pred_region
      %s816 = ssub.s32 %s9, 2
      // Predicated region
      $region41: #{net_forward.5} parent=39 // pred_check
        %p817 = pneg %p106
      $region42: #{net_forward.5} parent=39 // pred_check_branch
        %819 = sbr.rel (%p817) target = $region44
      $region43: #{net_forward.5} parent=39 // pred_region
        %s820 = smul.u32 52, %s15
        %p821 = scmp.lt.s32.totalorder %s820, 675
        %s822 = scalar_select %p821, %s820, 675
        %s823 = smul.addr %s822, 8
        %s824 = scalar_lea.vmem %s3, %s823
      $region44: #{net_forward.5} parent=39 // pred_fallthru
        _
    $region40: #{net_forward.5} parent=5 // pred_fallthru
      _
  $region6: #{net_forward.5} parent=0 // loop_footer
    %s13 = sadd.s32 1, %s9
  $region7: #{net_forward.5} parent=0 // loop_footer_branch
    %8 = sbr.rel target = $region3
  $region8: #{net_forward.5} parent=0 // loop_exit
    _

// kernel: net_forward.6
$region0: #{net_forward.6}
  #allocation0 [shape = 'u32[]', space=smem, size = 0x4, offset = 0x4, fixed_abs, tag = 'smem constant byte address 0x4 - core index']
  #allocation1 [shape = 'u32[144,128]{1,0:T(1,128)}', space=vmem, size = 0x12000, scoped, tag = 'internal scratch']
  %s0 = inlined_call_operand.vmem [shape: f32[52,2,26,64], index: 0, kind: input, shape index: {}]
  %s1 = inlined_call_operand.vmem [shape: f32[52,26,32], index: 1, kind: output, shape index: {}]
  %s2 = sld [smem:[#allocation0]]
  $region14: #{net_forward.6} parent=0
    _
  %s4 = ssub.s32 1, %s2
  %s5 = scalar_select 0, %s4, %s2
  // Predicated region
  $region2: #{net_forward.6} parent=0 // pred_check
    _
  $region3: #{net_forward.6} parent=0 // pred_check_branch
    %7 = sbr.rel (0) target = $region5
  $region4: #{net_forward.6} parent=0 // pred_region
    _
  $region5: #{net_forward.6} parent=0 // pred_fallthru
    _
  %v8 = vld [vmem:[%s0] sm:$0xff]
  %v9 = vld [vmem:[%s0 + $0x8] sm:$0xff]
  %v10 = vld [vmem:[%s0 + $0x10] sm:$0xff]
  %v11 = vld [vmem:[%s0 + $0x18] sm:$0x3]
  %v12 = vld [vmem:[%s0 + $0x20] sm:$0xff]
  %v13 = vld [vmem:[%s0 + $0x28] sm:$0xff]
  %v14 = vld [vmem:[%s0 + $0x30] sm:$0xff]
  %v15 = vld [vmem:[%s0 + $0x38] sm:$0x3]
  %v16 = vld [vmem:[%s0 + $0x40] sm:$0xff]
  %v17 = vld [vmem:[%s0 + $0x48] sm:$0xff]
  %v18 = vld [vmem:[%s0 + $0x50] sm:$0xff]
  %v19 = vld [vmem:[%s0 + $0x58] sm:$0x3]
  %v20 = vld [vmem:[%s0 + $0x60] sm:$0xff]
  %v21 = vld [vmem:[%s0 + $0x68] sm:$0xff]
  %v22 = vld [vmem:[%s0 + $0x70] sm:$0xff]
  %v23 = vld [vmem:[%s0 + $0x78] sm:$0x3]
  %v24 = vld [vmem:[%s0 + $0x80] sm:$0xff]
  %v25 = vld [vmem:[%s0 + $0x88] sm:$0xff]
  %v26 = vld [vmem:[%s0 + $0x90] sm:$0xff]
  %v27 = vld [vmem:[%s0 + $0x98] sm:$0x3]
  %v28 = vld [vmem:[%s0 + $0xa0] sm:$0xff]
  %v29 = vld [vmem:[%s0 + $0xa8] sm:$0xff]
  %v30 = vld [vmem:[%s0 + $0xb0] sm:$0xff]
  %v31 = vld [vmem:[%s0 + $0xb8] sm:$0x3]
  %v32 = vld [vmem:[%s0 + $0xc0] sm:$0xff]
  %v33 = vld [vmem:[%s0 + $0xc8] sm:$0xff]
  %v34 = vld [vmem:[%s0 + $0xd0] sm:$0xff]
  %v35 = vld [vmem:[%s0 + $0xd8] sm:$0x3]
  %v36 = vld [vmem:[%s0 + $0xe0] sm:$0xff]
  %v37 = vld [vmem:[%s0 + $0xe8] sm:$0xff]
  %v38 = vld [vmem:[%s0 + $0xf0] sm:$0xff]
  %v39 = vld [vmem:[%s0 + $0xf8] sm:$0x3]
  %v40 = vld [vmem:[%s0 + $0x100] sm:$0xff]
  %v41 = vld [vmem:[%s0 + $0x108] sm:$0xff]
  %v42 = vld [vmem:[%s0 + $0x110] sm:$0xff]
  %v43 = vld [vmem:[%s0 + $0x118] sm:$0x3]
  %v44 = vld [vmem:[%s0 + $0x120] sm:$0xff]
  %v45 = vld [vmem:[%s0 + $0x128] sm:$0xff]
  %v46 = vld [vmem:[%s0 + $0x130] sm:$0xff]
  %v47 = vld [vmem:[%s0 + $0x138] sm:$0x3]
  %v48 = vld [vmem:[%s0 + $0x140] sm:$0xff]
  %v49 = vld [vmem:[%s0 + $0x148] sm:$0xff]
  %v50 = vld [vmem:[%s0 + $0x150] sm:$0xff]
  %v51 = vld [vmem:[%s0 + $0x158] sm:$0x3]
  %v52 = vld [vmem:[%s0 + $0x160] sm:$0xff]
  %v53 = vld [vmem:[%s0 + $0x168] sm:$0xff]
  %v54 = vld [vmem:[%s0 + $0x170] sm:$0xff]
  %v55 = vld [vmem:[%s0 + $0x178] sm:$0x3]
  %v56 = vld [vmem:[%s0 + $0x180] sm:$0xff]
  %v57 = vld [vmem:[%s0 + $0x188] sm:$0xff]
  %v58 = vld [vmem:[%s0 + $0x190] sm:$0xff]
  %v59 = vld [vmem:[%s0 + $0x198] sm:$0x3]
  %v60 = vld [vmem:[%s0 + $0x1a0] sm:$0xff]
  %v61 = vld [vmem:[%s0 + $0x1a8] sm:$0xff]
  %v62 = vld [vmem:[%s0 + $0x1b0] sm:$0xff]
  %v63 = vld [vmem:[%s0 + $0x1b8] sm:$0x3]
  %v64 = vld [vmem:[%s0 + $0x1c0] sm:$0xff]
  %v65 = vld [vmem:[%s0 + $0x1c8] sm:$0xff]
  %v66 = vld [vmem:[%s0 + $0x1d0] sm:$0xff]
  %v67 = vld [vmem:[%s0 + $0x1d8] sm:$0x3]
  %v68 = vld [vmem:[%s0 + $0x1e0] sm:$0xff]
  %v69 = vld [vmem:[%s0 + $0x1e8] sm:$0xff]
  %v70 = vld [vmem:[%s0 + $0x1f0] sm:$0xff]
  %v71 = vld [vmem:[%s0 + $0x1f8] sm:$0x3]
  %v72 = vld [vmem:[%s0 + $0x200] sm:$0xff]
  %v73 = vld [vmem:[%s0 + $0x208] sm:$0xff]
  %v74 = vld [vmem:[%s0 + $0x210] sm:$0xff]
  %v75 = vld [vmem:[%s0 + $0x218] sm:$0x3]
  %v76 = vld [vmem:[%s0 + $0x220] sm:$0xff]
  %v77 = vld [vmem:[%s0 + $0x228] sm:$0xff]
  %v78 = vld [vmem:[%s0 + $0x230] sm:$0xff]
  %v79 = vld [vmem:[%s0 + $0x238] sm:$0x3]
  %v80 = vld [vmem:[%s0 + $0x240] sm:$0xff]
  %v81 = vld [vmem:[%s0 + $0x248] sm:$0xff]
  %v82 = vld [vmem:[%s0 + $0x250] sm:$0xff]
  %v83 = vld [vmem:[%s0 + $0x258] sm:$0x3]
  %v84 = vld [vmem:[%s0 + $0x260] sm:$0xff]
  %v85 = vld [vmem:[%s0 + $0x268] sm:$0xff]
  %v86 = vld [vmem:[%s0 + $0x270] sm:$0xff]
  %v87 = vld [vmem:[%s0 + $0x278] sm:$0x3]
  %v88 = vld [vmem:[%s0 + $0x280] sm:$0xff]
  %v89 = vld [vmem:[%s0 + $0x288] sm:$0xff]
  %v90 = vld [vmem:[%s0 + $0x290] sm:$0xff]
  %v91 = vld [vmem:[%s0 + $0x298] sm:$0x3]
  %v92 = vld [vmem:[%s0 + $0x2a0] sm:$0xff]
  %v93 = vld [vmem:[%s0 + $0x2a8] sm:$0xff]
  %v94 = vld [vmem:[%s0 + $0x2b0] sm:$0xff]
  %v95 = vld [vmem:[%s0 + $0x2b8] sm:$0x3]
  %v96 = vld [vmem:[%s0 + $0x2c0] sm:$0xff]
  %v97 = vld [vmem:[%s0 + $0x2c8] sm:$0xff]
  %v98 = vld [vmem:[%s0 + $0x2d0] sm:$0xff]
  %v99 = vld [vmem:[%s0 + $0x2d8] sm:$0x3]
  %v100 = vld [vmem:[%s0 + $0x2e0] sm:$0xff]
  %v101 = vld [vmem:[%s0 + $0x2e8] sm:$0xff]
  %v102 = vld [vmem:[%s0 + $0x2f0] sm:$0xff]
  %v103 = vld [vmem:[%s0 + $0x2f8] sm:$0x3]
  %v104 = vld [vmem:[%s0 + $0x300] sm:$0xff]
  %v105 = vld [vmem:[%s0 + $0x308] sm:$0xff]
  %v106 = vld [vmem:[%s0 + $0x310] sm:$0xff]
  %v107 = vld [vmem:[%s0 + $0x318] sm:$0x3]
  %v108 = vld [vmem:[%s0 + $0x320] sm:$0xff]
  %v109 = vld [vmem:[%s0 + $0x328] sm:$0xff]
  %v110 = vld [vmem:[%s0 + $0x330] sm:$0xff]
  %v111 = vld [vmem:[%s0 + $0x338] sm:$0x3]
  %v112 = vld [vmem:[%s0 + $0x340] sm:$0xff]
  %v113 = vld [vmem:[%s0 + $0x348] sm:$0xff]
  %v114 = vld [vmem:[%s0 + $0x350] sm:$0xff]
  %v115 = vld [vmem:[%s0 + $0x358] sm:$0x3]
  %v116 = vld [vmem:[%s0 + $0x360] sm:$0xff]
  %v117 = vld [vmem:[%s0 + $0x368] sm:$0xff]
  %v118 = vld [vmem:[%s0 + $0x370] sm:$0xff]
  %v119 = vld [vmem:[%s0 + $0x378] sm:$0x3]
  %v120 = vld [vmem:[%s0 + $0x380] sm:$0xff]
  %v121 = vld [vmem:[%s0 + $0x388] sm:$0xff]
  %v122 = vld [vmem:[%s0 + $0x390] sm:$0xff]
  %v123 = vld [vmem:[%s0 + $0x398] sm:$0x3]
  %v124 = vld [vmem:[%s0 + $0x3a0] sm:$0xff]
  %v125 = vld [vmem:[%s0 + $0x3a8] sm:$0xff]
  %v126 = vld [vmem:[%s0 + $0x3b0] sm:$0xff]
  %v127 = vld [vmem:[%s0 + $0x3b8] sm:$0x3]
  %v128 = vld [vmem:[%s0 + $0x3c0] sm:$0xff]
  %v129 = vld [vmem:[%s0 + $0x3c8] sm:$0xff]
  %v130 = vld [vmem:[%s0 + $0x3d0] sm:$0xff]
  %v131 = vld [vmem:[%s0 + $0x3d8] sm:$0x3]
  %v132 = vld [vmem:[%s0 + $0x3e0] sm:$0xff]
  %v133 = vld [vmem:[%s0 + $0x3e8] sm:$0xff]
  %v134 = vld [vmem:[%s0 + $0x3f0] sm:$0xff]
  %v135 = vld [vmem:[%s0 + $0x3f8] sm:$0x3]
  %v136 = vld [vmem:[%s0 + $0x400] sm:$0xff]
  %v137 = vld [vmem:[%s0 + $0x408] sm:$0xff]
  %v138 = vld [vmem:[%s0 + $0x410] sm:$0xff]
  %v139 = vld [vmem:[%s0 + $0x418] sm:$0x3]
  %v140 = vld [vmem:[%s0 + $0x420] sm:$0xff]
  %v141 = vld [vmem:[%s0 + $0x428] sm:$0xff]
  %v142 = vld [vmem:[%s0 + $0x430] sm:$0xff]
  %v143 = vld [vmem:[%s0 + $0x438] sm:$0x3]
  %v144 = vld [vmem:[%s0 + $0x440] sm:$0xff]
  %v145 = vld [vmem:[%s0 + $0x448] sm:$0xff]
  %v146 = vld [vmem:[%s0 + $0x450] sm:$0xff]
  %v147 = vld [vmem:[%s0 + $0x458] sm:$0x3]
  %v148 = vld [vmem:[%s0 + $0x460] sm:$0xff]
  %v149 = vld [vmem:[%s0 + $0x468] sm:$0xff]
  %v150 = vld [vmem:[%s0 + $0x470] sm:$0xff]
  %v151 = vld [vmem:[%s0 + $0x478] sm:$0x3]
  %v152 = vld [vmem:[%s0 + $0x480] sm:$0xff]
  %v153 = vld [vmem:[%s0 + $0x488] sm:$0xff]
  %v154 = vld [vmem:[%s0 + $0x490] sm:$0xff]
  %v155 = vld [vmem:[%s0 + $0x498] sm:$0x3]
  %v156 = vld [vmem:[%s0 + $0x4a0] sm:$0xff]
  %v157 = vld [vmem:[%s0 + $0x4a8] sm:$0xff]
  %v158 = vld [vmem:[%s0 + $0x4b0] sm:$0xff]
  %v159 = vld [vmem:[%s0 + $0x4b8] sm:$0x3]
  %v160 = vld [vmem:[%s0 + $0x4c0] sm:$0xff]
  %v161 = vld [vmem:[%s0 + $0x4c8] sm:$0xff]
  %v162 = vld [vmem:[%s0 + $0x4d0] sm:$0xff]
  %v163 = vld [vmem:[%s0 + $0x4d8] sm:$0x3]
  %v164 = vld [vmem:[%s0 + $0x4e0] sm:$0xff]
  %v165 = vld [vmem:[%s0 + $0x4e8] sm:$0xff]
  %v166 = vld [vmem:[%s0 + $0x4f0] sm:$0xff]
  %v167 = vld [vmem:[%s0 + $0x4f8] sm:$0x3]
  %v168 = vld [vmem:[%s0 + $0x500] sm:$0xff]
  %v169 = vld [vmem:[%s0 + $0x508] sm:$0xff]
  %v170 = vld [vmem:[%s0 + $0x510] sm:$0xff]
  %v171 = vld [vmem:[%s0 + $0x518] sm:$0x3]
  %v172 = vld [vmem:[%s0 + $0x520] sm:$0xff]
  %v173 = vld [vmem:[%s0 + $0x528] sm:$0xff]
  %v174 = vld [vmem:[%s0 + $0x530] sm:$0xff]
  %v175 = vld [vmem:[%s0 + $0x538] sm:$0x3]
  %v176 = vld [vmem:[%s0 + $0x540] sm:$0xff]
  %v177 = vld [vmem:[%s0 + $0x548] sm:$0xff]
  %v178 = vld [vmem:[%s0 + $0x550] sm:$0xff]
  %v179 = vld [vmem:[%s0 + $0x558] sm:$0x3]
  %v180 = vld [vmem:[%s0 + $0x560] sm:$0xff]
  %v181 = vld [vmem:[%s0 + $0x568] sm:$0xff]
  %v182 = vld [vmem:[%s0 + $0x570] sm:$0xff]
  %v183 = vld [vmem:[%s0 + $0x578] sm:$0x3]
  %v184 = vld [vmem:[%s0 + $0x580] sm:$0xff]
  %v185 = vld [vmem:[%s0 + $0x588] sm:$0xff]
  %v186 = vld [vmem:[%s0 + $0x590] sm:$0xff]
  %v187 = vld [vmem:[%s0 + $0x598] sm:$0x3]
  %v188 = vld [vmem:[%s0 + $0x5a0] sm:$0xff]
  %v189 = vld [vmem:[%s0 + $0x5a8] sm:$0xff]
  %v190 = vld [vmem:[%s0 + $0x5b0] sm:$0xff]
  %v191 = vld [vmem:[%s0 + $0x5b8] sm:$0x3]
  %v192 = vld [vmem:[%s0 + $0x5c0] sm:$0xff]
  %v193 = vld [vmem:[%s0 + $0x5c8] sm:$0xff]
  %v194 = vld [vmem:[%s0 + $0x5d0] sm:$0xff]
  %v195 = vld [vmem:[%s0 + $0x5d8] sm:$0x3]
  %v196 = vld [vmem:[%s0 + $0x5e0] sm:$0xff]
  %v197 = vld [vmem:[%s0 + $0x5e8] sm:$0xff]
  %v198 = vld [vmem:[%s0 + $0x5f0] sm:$0xff]
  %v199 = vld [vmem:[%s0 + $0x5f8] sm:$0x3]
  %v200 = vld [vmem:[%s0 + $0x600] sm:$0xff]
  %v201 = vld [vmem:[%s0 + $0x608] sm:$0xff]
  %v202 = vld [vmem:[%s0 + $0x610] sm:$0xff]
  %v203 = vld [vmem:[%s0 + $0x618] sm:$0x3]
  %v204 = vld [vmem:[%s0 + $0x620] sm:$0xff]
  %v205 = vld [vmem:[%s0 + $0x628] sm:$0xff]
  %v206 = vld [vmem:[%s0 + $0x630] sm:$0xff]
  %v207 = vld [vmem:[%s0 + $0x638] sm:$0x3]
  %v208 = vld [vmem:[%s0 + $0x640] sm:$0xff]
  %v209 = vld [vmem:[%s0 + $0x648] sm:$0xff]
  %v210 = vld [vmem:[%s0 + $0x650] sm:$0xff]
  %v211 = vld [vmem:[%s0 + $0x658] sm:$0x3]
  %v212 = vld [vmem:[%s0 + $0x660] sm:$0xff]
  %v213 = vld [vmem:[%s0 + $0x668] sm:$0xff]
  %v214 = vld [vmem:[%s0 + $0x670] sm:$0xff]
  %v215 = vld [vmem:[%s0 + $0x678] sm:$0x3]
  %v216 = vld [vmem:[%s0 + $0x680] sm:$0xff]
  %v217 = vld [vmem:[%s0 + $0x688] sm:$0xff]
  %v218 = vld [vmem:[%s0 + $0x690] sm:$0xff]
  %v219 = vld [vmem:[%s0 + $0x698] sm:$0x3]
  %v220 = vld [vmem:[%s0 + $0x6a0] sm:$0xff]
  %v221 = vld [vmem:[%s0 + $0x6a8] sm:$0xff]
  %v222 = vld [vmem:[%s0 + $0x6b0] sm:$0xff]
  %v223 = vld [vmem:[%s0 + $0x6b8] sm:$0x3]
  %v224 = vld [vmem:[%s0 + $0x6c0] sm:$0xff]
  %v225 = vld [vmem:[%s0 + $0x6c8] sm:$0xff]
  %v226 = vld [vmem:[%s0 + $0x6d0] sm:$0xff]
  %v227 = vld [vmem:[%s0 + $0x6d8] sm:$0x3]
  %v228 = vld [vmem:[%s0 + $0x6e0] sm:$0xff]
  %v229 = vld [vmem:[%s0 + $0x6e8] sm:$0xff]
  %v230 = vld [vmem:[%s0 + $0x6f0] sm:$0xff]
  %v231 = vld [vmem:[%s0 + $0x6f8] sm:$0x3]
  %v232 = vld [vmem:[%s0 + $0x700] sm:$0xff]
  %v233 = vld [vmem:[%s0 + $0x708] sm:$0xff]
  %v234 = vld [vmem:[%s0 + $0x710] sm:$0xff]
  %v235 = vld [vmem:[%s0 + $0x718] sm:$0x3]
  %v236 = vld [vmem:[%s0 + $0x720] sm:$0xff]
  %v237 = vld [vmem:[%s0 + $0x728] sm:$0xff]
  %v238 = vld [vmem:[%s0 + $0x730] sm:$0xff]
  %v239 = vld [vmem:[%s0 + $0x738] sm:$0x3]
  %v240 = vld [vmem:[%s0 + $0x740] sm:$0xff]
  %v241 = vld [vmem:[%s0 + $0x748] sm:$0xff]
  %v242 = vld [vmem:[%s0 + $0x750] sm:$0xff]
  %v243 = vld [vmem:[%s0 + $0x758] sm:$0x3]
  %v244 = vld [vmem:[%s0 + $0x760] sm:$0xff]
  %v245 = vld [vmem:[%s0 + $0x768] sm:$0xff]
  %v246 = vld [vmem:[%s0 + $0x770] sm:$0xff]
  %v247 = vld [vmem:[%s0 + $0x778] sm:$0x3]
  %v248 = vld [vmem:[%s0 + $0x780] sm:$0xff]
  %v249 = vld [vmem:[%s0 + $0x788] sm:$0xff]
  %v250 = vld [vmem:[%s0 + $0x790] sm:$0xff]
  %v251 = vld [vmem:[%s0 + $0x798] sm:$0x3]
  %v252 = vld [vmem:[%s0 + $0x7a0] sm:$0xff]
  %v253 = vld [vmem:[%s0 + $0x7a8] sm:$0xff]
  %v254 = vld [vmem:[%s0 + $0x7b0] sm:$0xff]
  %v255 = vld [vmem:[%s0 + $0x7b8] sm:$0x3]
  %v256 = vld [vmem:[%s0 + $0x7c0] sm:$0xff]
  %v257 = vld [vmem:[%s0 + $0x7c8] sm:$0xff]
  %v258 = vld [vmem:[%s0 + $0x7d0] sm:$0xff]
  %v259 = vld [vmem:[%s0 + $0x7d8] sm:$0x3]
  %v260 = vld [vmem:[%s0 + $0x7e0] sm:$0xff]
  %v261 = vld [vmem:[%s0 + $0x7e8] sm:$0xff]
  %v262 = vld [vmem:[%s0 + $0x7f0] sm:$0xff]
  %v263 = vld [vmem:[%s0 + $0x7f8] sm:$0x3]
  %v264 = vld [vmem:[%s0 + $0x800] sm:$0xff]
  %v265 = vld [vmem:[%s0 + $0x808] sm:$0xff]
  %v266 = vld [vmem:[%s0 + $0x810] sm:$0xff]
  %v267 = vld [vmem:[%s0 + $0x818] sm:$0x3]
  %v268 = vld [vmem:[%s0 + $0x820] sm:$0xff]
  %v269 = vld [vmem:[%s0 + $0x828] sm:$0xff]
  %v270 = vld [vmem:[%s0 + $0x830] sm:$0xff]
  %v271 = vld [vmem:[%s0 + $0x838] sm:$0x3]
  %v272 = vld [vmem:[%s0 + $0x840] sm:$0xff]
  %v273 = vld [vmem:[%s0 + $0x848] sm:$0xff]
  %v274 = vld [vmem:[%s0 + $0x850] sm:$0xff]
  %v275 = vld [vmem:[%s0 + $0x858] sm:$0x3]
  %v276 = vld [vmem:[%s0 + $0x860] sm:$0xff]
  %v277 = vld [vmem:[%s0 + $0x868] sm:$0xff]
  %v278 = vld [vmem:[%s0 + $0x870] sm:$0xff]
  %v279 = vld [vmem:[%s0 + $0x878] sm:$0x3]
  %v280 = vld [vmem:[%s0 + $0x880] sm:$0xff]
  %v281 = vld [vmem:[%s0 + $0x888] sm:$0xff]
  %v282 = vld [vmem:[%s0 + $0x890] sm:$0xff]
  %v283 = vld [vmem:[%s0 + $0x898] sm:$0x3]
  %v284 = vld [vmem:[%s0 + $0x8a0] sm:$0xff]
  %v285 = vld [vmem:[%s0 + $0x8a8] sm:$0xff]
  %v286 = vld [vmem:[%s0 + $0x8b0] sm:$0xff]
  %v287 = vld [vmem:[%s0 + $0x8b8] sm:$0x3]
  %v288 = vld [vmem:[%s0 + $0x8c0] sm:$0xff]
  %v289 = vld [vmem:[%s0 + $0x8c8] sm:$0xff]
  %v290 = vld [vmem:[%s0 + $0x8d0] sm:$0xff]
  %v291 = vld [vmem:[%s0 + $0x8d8] sm:$0x3]
  %v292 = vld [vmem:[%s0 + $0x8e0] sm:$0xff]
  %v293 = vld [vmem:[%s0 + $0x8e8] sm:$0xff]
  %v294 = vld [vmem:[%s0 + $0x8f0] sm:$0xff]
  %v295 = vld [vmem:[%s0 + $0x8f8] sm:$0x3]
  %v296 = vld [vmem:[%s0 + $0x900] sm:$0xff]
  %v297 = vld [vmem:[%s0 + $0x908] sm:$0xff]
  %v298 = vld [vmem:[%s0 + $0x910] sm:$0xff]
  %v299 = vld [vmem:[%s0 + $0x918] sm:$0x3]
  %v300 = vld [vmem:[%s0 + $0x920] sm:$0xff]
  %v301 = vld [vmem:[%s0 + $0x928] sm:$0xff]
  %v302 = vld [vmem:[%s0 + $0x930] sm:$0xff]
  %v303 = vld [vmem:[%s0 + $0x938] sm:$0x3]
  %v304 = vld [vmem:[%s0 + $0x940] sm:$0xff]
  %v305 = vld [vmem:[%s0 + $0x948] sm:$0xff]
  %v306 = vld [vmem:[%s0 + $0x950] sm:$0xff]
  %v307 = vld [vmem:[%s0 + $0x958] sm:$0x3]
  %v308 = vld [vmem:[%s0 + $0x960] sm:$0xff]
  %v309 = vld [vmem:[%s0 + $0x968] sm:$0xff]
  %v310 = vld [vmem:[%s0 + $0x970] sm:$0xff]
  %v311 = vld [vmem:[%s0 + $0x978] sm:$0x3]
  %v312 = vld [vmem:[%s0 + $0x980] sm:$0xff]
  %v313 = vld [vmem:[%s0 + $0x988] sm:$0xff]
  %v314 = vld [vmem:[%s0 + $0x990] sm:$0xff]
  %v315 = vld [vmem:[%s0 + $0x998] sm:$0x3]
  %v316 = vld [vmem:[%s0 + $0x9a0] sm:$0xff]
  %v317 = vld [vmem:[%s0 + $0x9a8] sm:$0xff]
  %v318 = vld [vmem:[%s0 + $0x9b0] sm:$0xff]
  %v319 = vld [vmem:[%s0 + $0x9b8] sm:$0x3]
  %v320 = vld [vmem:[%s0 + $0x9c0] sm:$0xff]
  %v321 = vld [vmem:[%s0 + $0x9c8] sm:$0xff]
  %v322 = vld [vmem:[%s0 + $0x9d0] sm:$0xff]
  %v323 = vld [vmem:[%s0 + $0x9d8] sm:$0x3]
  %v324 = vld [vmem:[%s0 + $0x9e0] sm:$0xff]
  %v325 = vld [vmem:[%s0 + $0x9e8] sm:$0xff]
  %v326 = vld [vmem:[%s0 + $0x9f0] sm:$0xff]
  %v327 = vld [vmem:[%s0 + $0x9f8] sm:$0x3]
  %v328 = vld [vmem:[%s0 + $0xa00] sm:$0xff]
  %v329 = vld [vmem:[%s0 + $0xa08] sm:$0xff]
  %v330 = vld [vmem:[%s0 + $0xa10] sm:$0xff]
  %v331 = vld [vmem:[%s0 + $0xa18] sm:$0x3]
  %v332 = vld [vmem:[%s0 + $0xa20] sm:$0xff]
  %v333 = vld [vmem:[%s0 + $0xa28] sm:$0xff]
  %v334 = vld [vmem:[%s0 + $0xa30] sm:$0xff]
  %v335 = vld [vmem:[%s0 + $0xa38] sm:$0x3]
  %v336 = vld [vmem:[%s0 + $0xa40] sm:$0xff]
  %v337 = vld [vmem:[%s0 + $0xa48] sm:$0xff]
  %v338 = vld [vmem:[%s0 + $0xa50] sm:$0xff]
  %v339 = vld [vmem:[%s0 + $0xa58] sm:$0x3]
  %v340 = vld [vmem:[%s0 + $0xa60] sm:$0xff]
  %v341 = vld [vmem:[%s0 + $0xa68] sm:$0xff]
  %v342 = vld [vmem:[%s0 + $0xa70] sm:$0xff]
  %v343 = vld [vmem:[%s0 + $0xa78] sm:$0x3]
  %v344 = vld [vmem:[%s0 + $0xa80] sm:$0xff]
  %v345 = vld [vmem:[%s0 + $0xa88] sm:$0xff]
  %v346 = vld [vmem:[%s0 + $0xa90] sm:$0xff]
  %v347 = vld [vmem:[%s0 + $0xa98] sm:$0x3]
  %v348 = vld [vmem:[%s0 + $0xaa0] sm:$0xff]
  %v349 = vld [vmem:[%s0 + $0xaa8] sm:$0xff]
  %v350 = vld [vmem:[%s0 + $0xab0] sm:$0xff]
  %v351 = vld [vmem:[%s0 + $0xab8] sm:$0x3]
  %v352 = vld [vmem:[%s0 + $0xac0] sm:$0xff]
  %v353 = vld [vmem:[%s0 + $0xac8] sm:$0xff]
  %v354 = vld [vmem:[%s0 + $0xad0] sm:$0xff]
  %v355 = vld [vmem:[%s0 + $0xad8] sm:$0x3]
  %v356 = vld [vmem:[%s0 + $0xae0] sm:$0xff]
  %v357 = vld [vmem:[%s0 + $0xae8] sm:$0xff]
  %v358 = vld [vmem:[%s0 + $0xaf0] sm:$0xff]
  %v359 = vld [vmem:[%s0 + $0xaf8] sm:$0x3]
  %v360 = vld [vmem:[%s0 + $0xb00] sm:$0xff]
  %v361 = vld [vmem:[%s0 + $0xb08] sm:$0xff]
  %v362 = vld [vmem:[%s0 + $0xb10] sm:$0xff]
  %v363 = vld [vmem:[%s0 + $0xb18] sm:$0x3]
  %v364 = vld [vmem:[%s0 + $0xb20] sm:$0xff]
  %v365 = vld [vmem:[%s0 + $0xb28] sm:$0xff]
  %v366 = vld [vmem:[%s0 + $0xb30] sm:$0xff]
  %v367 = vld [vmem:[%s0 + $0xb38] sm:$0x3]
  %v368 = vld [vmem:[%s0 + $0xb40] sm:$0xff]
  %v369 = vld [vmem:[%s0 + $0xb48] sm:$0xff]
  %v370 = vld [vmem:[%s0 + $0xb50] sm:$0xff]
  %v371 = vld [vmem:[%s0 + $0xb58] sm:$0x3]
  %v372 = vld [vmem:[%s0 + $0xb60] sm:$0xff]
  %v373 = vld [vmem:[%s0 + $0xb68] sm:$0xff]
  %v374 = vld [vmem:[%s0 + $0xb70] sm:$0xff]
  %v375 = vld [vmem:[%s0 + $0xb78] sm:$0x3]
  %v376 = vld [vmem:[%s0 + $0xb80] sm:$0xff]
  %v377 = vld [vmem:[%s0 + $0xb88] sm:$0xff]
  %v378 = vld [vmem:[%s0 + $0xb90] sm:$0xff]
  %v379 = vld [vmem:[%s0 + $0xb98] sm:$0x3]
  %v380 = vld [vmem:[%s0 + $0xba0] sm:$0xff]
  %v381 = vld [vmem:[%s0 + $0xba8] sm:$0xff]
  %v382 = vld [vmem:[%s0 + $0xbb0] sm:$0xff]
  %v383 = vld [vmem:[%s0 + $0xbb8] sm:$0x3]
  %v384 = vld [vmem:[%s0 + $0xbc0] sm:$0xff]
  %v385 = vld [vmem:[%s0 + $0xbc8] sm:$0xff]
  %v386 = vld [vmem:[%s0 + $0xbd0] sm:$0xff]
  %v387 = vld [vmem:[%s0 + $0xbd8] sm:$0x3]
  %v388 = vld [vmem:[%s0 + $0xbe0] sm:$0xff]
  %v389 = vld [vmem:[%s0 + $0xbe8] sm:$0xff]
  %v390 = vld [vmem:[%s0 + $0xbf0] sm:$0xff]
  %v391 = vld [vmem:[%s0 + $0xbf8] sm:$0x3]
  %v392 = vld [vmem:[%s0 + $0xc00] sm:$0xff]
  %v393 = vld [vmem:[%s0 + $0xc08] sm:$0xff]
  %v394 = vld [vmem:[%s0 + $0xc10] sm:$0xff]
  %v395 = vld [vmem:[%s0 + $0xc18] sm:$0x3]
  %v396 = vld [vmem:[%s0 + $0xc20] sm:$0xff]
  %v397 = vld [vmem:[%s0 + $0xc28] sm:$0xff]
  %v398 = vld [vmem:[%s0 + $0xc30] sm:$0xff]
  %v399 = vld [vmem:[%s0 + $0xc38] sm:$0x3]
  %v400 = vld [vmem:[%s0 + $0xc40] sm:$0xff]
  %v401 = vld [vmem:[%s0 + $0xc48] sm:$0xff]
  %v402 = vld [vmem:[%s0 + $0xc50] sm:$0xff]
  %v403 = vld [vmem:[%s0 + $0xc58] sm:$0x3]
  %v404 = vld [vmem:[%s0 + $0xc60] sm:$0xff]
  %v405 = vld [vmem:[%s0 + $0xc68] sm:$0xff]
  %v406 = vld [vmem:[%s0 + $0xc70] sm:$0xff]
  %v407 = vld [vmem:[%s0 + $0xc78] sm:$0x3]
  %v408 = vld [vmem:[%s0 + $0xc80] sm:$0xff]
  %v409 = vld [vmem:[%s0 + $0xc88] sm:$0xff]
  %v410 = vld [vmem:[%s0 + $0xc90] sm:$0xff]
  %v411 = vld [vmem:[%s0 + $0xc98] sm:$0x3]
  %v412 = vld [vmem:[%s0 + $0xca0] sm:$0xff]
  %v413 = vld [vmem:[%s0 + $0xca8] sm:$0xff]
  %v414 = vld [vmem:[%s0 + $0xcb0] sm:$0xff]
  %v415 = vld [vmem:[%s0 + $0xcb8] sm:$0x3]
  %v416 = vld [vmem:[%s0 + $0xcc0] sm:$0xff]
  %v417 = vld [vmem:[%s0 + $0xcc8] sm:$0xff]
  %v418 = vld [vmem:[%s0 + $0xcd0] sm:$0xff]
  %v419 = vld [vmem:[%s0 + $0xcd8] sm:$0x3]
  %v420 = vld [vmem:[%s0 + $0xce0] sm:$0xff]
  %v421 = vld [vmem:[%s0 + $0xce8] sm:$0xff]
  %v422 = vld [vmem:[%s0 + $0xcf0] sm:$0xff]
  %v423 = vld [vmem:[%s0 + $0xcf8] sm:$0x3]
  %v424 = vmax.f32 %v8, %v12
  %v425 = vmax.f32 %v9, %v13
  %v426 = vmax.f32 %v10, %v14
  %v427 = vmax.f32 %v11, %v15
  %v428 = vmax.f32 %v16, %v20
  %v429 = vmax.f32 %v17, %v21
  %v430 = vmax.f32 %v18, %v22
  %v431 = vmax.f32 %v19, %v23
  %v432 = vmax.f32 %v24, %v28
  %v433 = vmax.f32 %v25, %v29
  %v434 = vmax.f32 %v26, %v30
  %v435 = vmax.f32 %v27, %v31
  %v436 = vmax.f32 %v32, %v36
  %v437 = vmax.f32 %v33, %v37
  %v438 = vmax.f32 %v34, %v38
  %v439 = vmax.f32 %v35, %v39
  %v440 = vmax.f32 %v40, %v44
  %v441 = vmax.f32 %v41, %v45
  %v442 = vmax.f32 %v42, %v46
  %v443 = vmax.f32 %v43, %v47
  %v444 = vmax.f32 %v48, %v52
  %v445 = vmax.f32 %v49, %v53
  %v446 = vmax.f32 %v50, %v54
  %v447 = vmax.f32 %v51, %v55
  %v448 = vmax.f32 %v56, %v60
  %v449 = vmax.f32 %v57, %v61
  %v450 = vmax.f32 %v58, %v62
  %v451 = vmax.f32 %v59, %v63
  %v452 = vmax.f32 %v64, %v68
  %v453 = vmax.f32 %v65, %v69
  %v454 = vmax.f32 %v66, %v70
  %v455 = vmax.f32 %v67, %v71
  %v456 = vmax.f32 %v72, %v76
  %v457 = vmax.f32 %v73, %v77
  %v458 = vmax.f32 %v74, %v78
  %v459 = vmax.f32 %v75, %v79
  %v460 = vmax.f32 %v80, %v84
  %v461 = vmax.f32 %v81, %v85
  %v462 = vmax.f32 %v82, %v86
  %v463 = vmax.f32 %v83, %v87
  %v464 = vmax.f32 %v88, %v92
  %v465 = vmax.f32 %v89, %v93
  %v466 = vmax.f32 %v90, %v94
  %v467 = vmax.f32 %v91, %v95
  %v468 = vmax.f32 %v96, %v100
  %v469 = vmax.f32 %v97, %v101
  %v470 = vmax.f32 %v98, %v102
  %v471 = vmax.f32 %v99, %v103
  %v472 = vmax.f32 %v104, %v108
  %v473 = vmax.f32 %v105, %v109
  %v474 = vmax.f32 %v106, %v110
  %v475 = vmax.f32 %v107, %v111
  %v476 = vmax.f32 %v112, %v116
  %v477 = vmax.f32 %v113, %v117
  %v478 = vmax.f32 %v114, %v118
  %v479 = vmax.f32 %v115, %v119
  %v480 = vmax.f32 %v120, %v124
  %v481 = vmax.f32 %v121, %v125
  %v482 = vmax.f32 %v122, %v126
  %v483 = vmax.f32 %v123, %v127
  %v484 = vmax.f32 %v128, %v132
  %v485 = vmax.f32 %v129, %v133
  %v486 = vmax.f32 %v130, %v134
  %v487 = vmax.f32 %v131, %v135
  %v488 = vmax.f32 %v136, %v140
  %v489 = vmax.f32 %v137, %v141
  %v490 = vmax.f32 %v138, %v142
  %v491 = vmax.f32 %v139, %v143
  %v492 = vmax.f32 %v144, %v148
  %v493 = vmax.f32 %v145, %v149
  %v494 = vmax.f32 %v146, %v150
  %v495 = vmax.f32 %v147, %v151
  %v496 = vmax.f32 %v152, %v156
  %v497 = vmax.f32 %v153, %v157
  %v498 = vmax.f32 %v154, %v158
  %v499 = vmax.f32 %v155, %v159
  %v500 = vmax.f32 %v160, %v164
  %v501 = vmax.f32 %v161, %v165
  %v502 = vmax.f32 %v162, %v166
  %v503 = vmax.f32 %v163, %v167
  %v504 = vmax.f32 %v168, %v172
  %v505 = vmax.f32 %v169, %v173
  %v506 = vmax.f32 %v170, %v174
  %v507 = vmax.f32 %v171, %v175
  %v508 = vmax.f32 %v176, %v180
  %v509 = vmax.f32 %v177, %v181
  %v510 = vmax.f32 %v178, %v182
  %v511 = vmax.f32 %v179, %v183
  %v512 = vmax.f32 %v184, %v188
  %v513 = vmax.f32 %v185, %v189
  %v514 = vmax.f32 %v186, %v190
  %v515 = vmax.f32 %v187, %v191
  %v516 = vmax.f32 %v192, %v196
  %v517 = vmax.f32 %v193, %v197
  %v518 = vmax.f32 %v194, %v198
  %v519 = vmax.f32 %v195, %v199
  %v520 = vmax.f32 %v200, %v204
  %v521 = vmax.f32 %v201, %v205
  %v522 = vmax.f32 %v202, %v206
  %v523 = vmax.f32 %v203, %v207
  %v524 = vmax.f32 %v208, %v212
  %v525 = vmax.f32 %v209, %v213
  %v526 = vmax.f32 %v210, %v214
  %v527 = vmax.f32 %v211, %v215
  %v528 = vmax.f32 %v216, %v220
  %v529 = vmax.f32 %v217, %v221
  %v530 = vmax.f32 %v218, %v222
  %v531 = vmax.f32 %v219, %v223
  %v532 = vmax.f32 %v224, %v228
  %v533 = vmax.f32 %v225, %v229
  %v534 = vmax.f32 %v226, %v230
  %v535 = vmax.f32 %v227, %v231
  %v536 = vmax.f32 %v232, %v236
  %v537 = vmax.f32 %v233, %v237
  %v538 = vmax.f32 %v234, %v238
  %v539 = vmax.f32 %v235, %v239
  %v540 = vmax.f32 %v240, %v244
  %v541 = vmax.f32 %v241, %v245
  %v542 = vmax.f32 %v242, %v246
  %v543 = vmax.f32 %v243, %v247
  %v544 = vmax.f32 %v248, %v252
  %v545 = vmax.f32 %v249, %v253
  %v546 = vmax.f32 %v250, %v254
  %v547 = vmax.f32 %v251, %v255
  %v548 = vmax.f32 %v256, %v260
  %v549 = vmax.f32 %v257, %v261
  %v550 = vmax.f32 %v258, %v262
  %v551 = vmax.f32 %v259, %v263
  %v552 = vmax.f32 %v264, %v268
  %v553 = vmax.f32 %v265, %v269
  %v554 = vmax.f32 %v266, %v270
  %v555 = vmax.f32 %v267, %v271
  %v556 = vmax.f32 %v272, %v276
  %v557 = vmax.f32 %v273, %v277
  %v558 = vmax.f32 %v274, %v278
  %v559 = vmax.f32 %v275, %v279
  %v560 = vmax.f32 %v280, %v284
  %v561 = vmax.f32 %v281, %v285
  %v562 = vmax.f32 %v282, %v286
  %v563 = vmax.f32 %v283, %v287
  %v564 = vmax.f32 %v288, %v292
  %v565 = vmax.f32 %v289, %v293
  %v566 = vmax.f32 %v290, %v294
  %v567 = vmax.f32 %v291, %v295
  %v568 = vmax.f32 %v296, %v300
  %v569 = vmax.f32 %v297, %v301
  %v570 = vmax.f32 %v298, %v302
  %v571 = vmax.f32 %v299, %v303
  %v572 = vmax.f32 %v304, %v308
  %v573 = vmax.f32 %v305, %v309
  %v574 = vmax.f32 %v306, %v310
  %v575 = vmax.f32 %v307, %v311
  %v576 = vmax.f32 %v312, %v316
  %v577 = vmax.f32 %v313, %v317
  %v578 = vmax.f32 %v314, %v318
  %v579 = vmax.f32 %v315, %v319
  %v580 = vmax.f32 %v320, %v324
  %v581 = vmax.f32 %v321, %v325
  %v582 = vmax.f32 %v322, %v326
  %v583 = vmax.f32 %v323, %v327
  %v584 = vmax.f32 %v328, %v332
  %v585 = vmax.f32 %v329, %v333
  %v586 = vmax.f32 %v330, %v334
  %v587 = vmax.f32 %v331, %v335
  %v588 = vmax.f32 %v336, %v340
  %v589 = vmax.f32 %v337, %v341
  %v590 = vmax.f32 %v338, %v342
  %v591 = vmax.f32 %v339, %v343
  %v592 = vmax.f32 %v344, %v348
  %v593 = vmax.f32 %v345, %v349
  %v594 = vmax.f32 %v346, %v350
  %v595 = vmax.f32 %v347, %v351
  %v596 = vmax.f32 %v352, %v356
  %v597 = vmax.f32 %v353, %v357
  %v598 = vmax.f32 %v354, %v358
  %v599 = vmax.f32 %v355, %v359
  %v600 = vmax.f32 %v360, %v364
  %v601 = vmax.f32 %v361, %v365
  %v602 = vmax.f32 %v362, %v366
  %v603 = vmax.f32 %v363, %v367
  %v604 = vmax.f32 %v368, %v372
  %v605 = vmax.f32 %v369, %v373
  %v606 = vmax.f32 %v370, %v374
  %v607 = vmax.f32 %v371, %v375
  %v608 = vmax.f32 %v376, %v380
  %v609 = vmax.f32 %v377, %v381
  %v610 = vmax.f32 %v378, %v382
  %v611 = vmax.f32 %v379, %v383
  %v612 = vmax.f32 %v384, %v388
  %v613 = vmax.f32 %v385, %v389
  %v614 = vmax.f32 %v386, %v390
  %v615 = vmax.f32 %v387, %v391
  %v616 = vmax.f32 %v392, %v396
  %v617 = vmax.f32 %v393, %v397
  %v618 = vmax.f32 %v394, %v398
  %v619 = vmax.f32 %v395, %v399
  %v620 = vmax.f32 %v400, %v404
  %v621 = vmax.f32 %v401, %v405
  %v622 = vmax.f32 %v402, %v406
  %v623 = vmax.f32 %v403, %v407
  %v624 = vmax.f32 %v408, %v412
  %v625 = vmax.f32 %v409, %v413
  %v626 = vmax.f32 %v410, %v414
  %v627 = vmax.f32 %v411, %v415
  %v628 = vmax.f32 %v416, %v420
  %v629 = vmax.f32 %v417, %v421
  %v630 = vmax.f32 %v418, %v422
  %v631 = vmax.f32 %v419, %v423
  %840 = vrot.lane.b32.xlu0 %v424, 96
  %v841 = vpop.permute.xlu0 %840
  %842 = vrot.lane.b32.xlu0 %v425, 96
  %v843 = vpop.permute.xlu0 %842
  %844 = vrot.lane.b32.xlu0 %v426, 96
  %v845 = vpop.permute.xlu0 %844
  %846 = vrot.lane.b32.xlu0 %v427, 96
  %v847 = vpop.permute.xlu0 %846
  %848 = vrot.lane.b32.xlu0 %v428, 96
  %v849 = vpop.permute.xlu0 %848
  %850 = vrot.lane.b32.xlu0 %v429, 96
  %v851 = vpop.permute.xlu0 %850
  %852 = vrot.lane.b32.xlu0 %v430, 96
  %v853 = vpop.permute.xlu0 %852
  %854 = vrot.lane.b32.xlu0 %v431, 96
  %v855 = vpop.permute.xlu0 %854
  %856 = vrot.lane.b32.xlu0 %v432, 96
  %v857 = vpop.permute.xlu0 %856
  %858 = vrot.lane.b32.xlu0 %v433, 96
  %v859 = vpop.permute.xlu0 %858
  %860 = vrot.lane.b32.xlu0 %v434, 96
  %v861 = vpop.permute.xlu0 %860
  %862 = vrot.lane.b32.xlu0 %v435, 96
  %v863 = vpop.permute.xlu0 %862
  %864 = vrot.lane.b32.xlu0 %v436, 96
  %v865 = vpop.permute.xlu0 %864
  %866 = vrot.lane.b32.xlu0 %v437, 96
  %v867 = vpop.permute.xlu0 %866
  %868 = vrot.lane.b32.xlu0 %v438, 96
  %v869 = vpop.permute.xlu0 %868
  %870 = vrot.lane.b32.xlu0 %v439, 96
  %v871 = vpop.permute.xlu0 %870
  %872 = vrot.lane.b32.xlu0 %v440, 96
  %v873 = vpop.permute.xlu0 %872
  %874 = vrot.lane.b32.xlu0 %v441, 96
  %v875 = vpop.permute.xlu0 %874
  %876 = vrot.lane.b32.xlu0 %v442, 96
  %v877 = vpop.permute.xlu0 %876
  %878 = vrot.lane.b32.xlu0 %v443, 96
  %v879 = vpop.permute.xlu0 %878
  %880 = vrot.lane.b32.xlu0 %v444, 96
  %v881 = vpop.permute.xlu0 %880
  %882 = vrot.lane.b32.xlu0 %v445, 96
  %v883 = vpop.permute.xlu0 %882
  %884 = vrot.lane.b32.xlu0 %v446, 96
  %v885 = vpop.permute.xlu0 %884
  %886 = vrot.lane.b32.xlu0 %v447, 96
  %v887 = vpop.permute.xlu0 %886
  %888 = vrot.lane.b32.xlu0 %v448, 96
  %v889 = vpop.permute.xlu0 %888
  %890 = vrot.lane.b32.xlu0 %v449, 96
  %v891 = vpop.permute.xlu0 %890
  %892 = vrot.lane.b32.xlu0 %v450, 96
  %v893 = vpop.permute.xlu0 %892
  %894 = vrot.lane.b32.xlu0 %v451, 96
  %v895 = vpop.permute.xlu0 %894
  %896 = vrot.lane.b32.xlu0 %v452, 96
  %v897 = vpop.permute.xlu0 %896
  %898 = vrot.lane.b32.xlu0 %v453, 96
  %v899 = vpop.permute.xlu0 %898
  %900 = vrot.lane.b32.xlu0 %v454, 96
  %v901 = vpop.permute.xlu0 %900
  %902 = vrot.lane.b32.xlu0 %v455, 96
  %v903 = vpop.permute.xlu0 %902
  %904 = vrot.lane.b32.xlu0 %v456, 96
  %v905 = vpop.permute.xlu0 %904
  %906 = vrot.lane.b32.xlu0 %v457, 96
  %v907 = vpop.permute.xlu0 %906
  %908 = vrot.lane.b32.xlu0 %v458, 96
  %v909 = vpop.permute.xlu0 %908
  %910 = vrot.lane.b32.xlu0 %v459, 96
  %v911 = vpop.permute.xlu0 %910
  %912 = vrot.lane.b32.xlu0 %v460, 96
  %v913 = vpop.permute.xlu0 %912
  %914 = vrot.lane.b32.xlu0 %v461, 96
  %v915 = vpop.permute.xlu0 %914
  %916 = vrot.lane.b32.xlu0 %v462, 96
  %v917 = vpop.permute.xlu0 %916
  %918 = vrot.lane.b32.xlu0 %v463, 96
  %v919 = vpop.permute.xlu0 %918
  %920 = vrot.lane.b32.xlu0 %v464, 96
  %v921 = vpop.permute.xlu0 %920
  %922 = vrot.lane.b32.xlu0 %v465, 96
  %v923 = vpop.permute.xlu0 %922
  %924 = vrot.lane.b32.xlu0 %v466, 96
  %v925 = vpop.permute.xlu0 %924
  %926 = vrot.lane.b32.xlu0 %v467, 96
  %v927 = vpop.permute.xlu0 %926
  %928 = vrot.lane.b32.xlu0 %v468, 96
  %v929 = vpop.permute.xlu0 %928
  %930 = vrot.lane.b32.xlu0 %v469, 96
  %v931 = vpop.permute.xlu0 %930
  %932 = vrot.lane.b32.xlu0 %v470, 96
  %v933 = vpop.permute.xlu0 %932
  %934 = vrot.lane.b32.xlu0 %v471, 96
  %v935 = vpop.permute.xlu0 %934
  %936 = vrot.lane.b32.xlu0 %v472, 96
  %v937 = vpop.permute.xlu0 %936
  %938 = vrot.lane.b32.xlu0 %v473, 96
  %v939 = vpop.permute.xlu0 %938
  %940 = vrot.lane.b32.xlu0 %v474, 96
  %v941 = vpop.permute.xlu0 %940
  %942 = vrot.lane.b32.xlu0 %v475, 96
  %v943 = vpop.permute.xlu0 %942
  %944 = vrot.lane.b32.xlu0 %v476, 96
  %v945 = vpop.permute.xlu0 %944
  %946 = vrot.lane.b32.xlu0 %v477, 96
  %v947 = vpop.permute.xlu0 %946
  %948 = vrot.lane.b32.xlu0 %v478, 96
  %v949 = vpop.permute.xlu0 %948
  %950 = vrot.lane.b32.xlu0 %v479, 96
  %v951 = vpop.permute.xlu0 %950
  %952 = vrot.lane.b32.xlu0 %v480, 96
  %v953 = vpop.permute.xlu0 %952
  %954 = vrot.lane.b32.xlu0 %v481, 96
  %v955 = vpop.permute.xlu0 %954
  %956 = vrot.lane.b32.xlu0 %v482, 96
  %v957 = vpop.permute.xlu0 %956
  %958 = vrot.lane.b32.xlu0 %v483, 96
  %v959 = vpop.permute.xlu0 %958
  %960 = vrot.lane.b32.xlu0 %v484, 96
  %v961 = vpop.permute.xlu0 %960
  %962 = vrot.lane.b32.xlu0 %v485, 96
  %v963 = vpop.permute.xlu0 %962
  %964 = vrot.lane.b32.xlu0 %v486, 96
  %v965 = vpop.permute.xlu0 %964
  %966 = vrot.lane.b32.xlu0 %v487, 96
  %v967 = vpop.permute.xlu0 %966
  %968 = vrot.lane.b32.xlu0 %v488, 96
  %v969 = vpop.permute.xlu0 %968
  %970 = vrot.lane.b32.xlu0 %v489, 96
  %v971 = vpop.permute.xlu0 %970
  %972 = vrot.lane.b32.xlu0 %v490, 96
  %v973 = vpop.permute.xlu0 %972
  %974 = vrot.lane.b32.xlu0 %v491, 96
  %v975 = vpop.permute.xlu0 %974
  %976 = vrot.lane.b32.xlu0 %v492, 96
  %v977 = vpop.permute.xlu0 %976
  %978 = vrot.lane.b32.xlu0 %v493, 96
  %v979 = vpop.permute.xlu0 %978
  %980 = vrot.lane.b32.xlu0 %v494, 96
  %v981 = vpop.permute.xlu0 %980
  %982 = vrot.lane.b32.xlu0 %v495, 96
  %v983 = vpop.permute.xlu0 %982
  %984 = vrot.lane.b32.xlu0 %v496, 96
  %v985 = vpop.permute.xlu0 %984
  %986 = vrot.lane.b32.xlu0 %v497, 96
  %v987 = vpop.permute.xlu0 %986
  %988 = vrot.lane.b32.xlu0 %v498, 96
  %v989 = vpop.permute.xlu0 %988
  %990 = vrot.lane.b32.xlu0 %v499, 96
  %v991 = vpop.permute.xlu0 %990
  %992 = vrot.lane.b32.xlu0 %v500, 96
  %v993 = vpop.permute.xlu0 %992
  %994 = vrot.lane.b32.xlu0 %v501, 96
  %v995 = vpop.permute.xlu0 %994
  %996 = vrot.lane.b32.xlu0 %v502, 96
  %v997 = vpop.permute.xlu0 %996
  %998 = vrot.lane.b32.xlu0 %v503, 96
  %v999 = vpop.permute.xlu0 %998
  %1000 = vrot.lane.b32.xlu0 %v504, 96
  %v1001 = vpop.permute.xlu0 %1000
  %1002 = vrot.lane.b32.xlu0 %v505, 96
  %v1003 = vpop.permute.xlu0 %1002
  %1004 = vrot.lane.b32.xlu0 %v506, 96
  %v1005 = vpop.permute.xlu0 %1004
  %1006 = vrot.lane.b32.xlu0 %v507, 96
  %v1007 = vpop.permute.xlu0 %1006
  %1008 = vrot.lane.b32.xlu0 %v508, 96
  %v1009 = vpop.permute.xlu0 %1008
  %1010 = vrot.lane.b32.xlu0 %v509, 96
  %v1011 = vpop.permute.xlu0 %1010
  %1012 = vrot.lane.b32.xlu0 %v510, 96
  %v1013 = vpop.permute.xlu0 %1012
  %1014 = vrot.lane.b32.xlu0 %v511, 96
  %v1015 = vpop.permute.xlu0 %1014
  %1016 = vrot.lane.b32.xlu0 %v512, 96
  %v1017 = vpop.permute.xlu0 %1016
  %1018 = vrot.lane.b32.xlu0 %v513, 96
  %v1019 = vpop.permute.xlu0 %1018
  %1020 = vrot.lane.b32.xlu0 %v514, 96
  %v1021 = vpop.permute.xlu0 %1020
  %1022 = vrot.lane.b32.xlu0 %v515, 96
  %v1023 = vpop.permute.xlu0 %1022
  %1024 = vrot.lane.b32.xlu0 %v516, 96
  %v1025 = vpop.permute.xlu0 %1024
  %1026 = vrot.lane.b32.xlu0 %v517, 96
  %v1027 = vpop.permute.xlu0 %1026
  %1028 = vrot.lane.b32.xlu0 %v518, 96
  %v1029 = vpop.permute.xlu0 %1028
  %1030 = vrot.lane.b32.xlu0 %v519, 96
  %v1031 = vpop.permute.xlu0 %1030
  %1032 = vrot.lane.b32.xlu0 %v520, 96
  %v1033 = vpop.permute.xlu0 %1032
  %1034 = vrot.lane.b32.xlu0 %v521, 96
  %v1035 = vpop.permute.xlu0 %1034
  %1036 = vrot.lane.b32.xlu0 %v522, 96
  %v1037 = vpop.permute.xlu0 %1036
  %1038 = vrot.lane.b32.xlu0 %v523, 96
  %v1039 = vpop.permute.xlu0 %1038
  %1040 = vrot.lane.b32.xlu0 %v524, 96
  %v1041 = vpop.permute.xlu0 %1040
  %1042 = vrot.lane.b32.xlu0 %v525, 96
  %v1043 = vpop.permute.xlu0 %1042
  %1044 = vrot.lane.b32.xlu0 %v526, 96
  %v1045 = vpop.permute.xlu0 %1044
  %1046 = vrot.lane.b32.xlu0 %v527, 96
  %v1047 = vpop.permute.xlu0 %1046
  %1048 = vrot.lane.b32.xlu0 %v528, 96
  %v1049 = vpop.permute.xlu0 %1048
  %1050 = vrot.lane.b32.xlu0 %v529, 96
  %v1051 = vpop.permute.xlu0 %1050
  %1052 = vrot.lane.b32.xlu0 %v530, 96
  %v1053 = vpop.permute.xlu0 %1052
  %1054 = vrot.lane.b32.xlu0 %v531, 96
  %v1055 = vpop.permute.xlu0 %1054
  %1056 = vrot.lane.b32.xlu0 %v532, 96
  %v1057 = vpop.permute.xlu0 %1056
  %1058 = vrot.lane.b32.xlu0 %v533, 96
  %v1059 = vpop.permute.xlu0 %1058
  %1060 = vrot.lane.b32.xlu0 %v534, 96
  %v1061 = vpop.permute.xlu0 %1060
  %1062 = vrot.lane.b32.xlu0 %v535, 96
  %v1063 = vpop.permute.xlu0 %1062
  %1064 = vrot.lane.b32.xlu0 %v536, 96
  %v1065 = vpop.permute.xlu0 %1064
  %1066 = vrot.lane.b32.xlu0 %v537, 96
  %v1067 = vpop.permute.xlu0 %1066
  %1068 = vrot.lane.b32.xlu0 %v538, 96
  %v1069 = vpop.permute.xlu0 %1068
  %1070 = vrot.lane.b32.xlu0 %v539, 96
  %v1071 = vpop.permute.xlu0 %1070
  %1072 = vrot.lane.b32.xlu0 %v540, 96
  %v1073 = vpop.permute.xlu0 %1072
  %1074 = vrot.lane.b32.xlu0 %v541, 96
  %v1075 = vpop.permute.xlu0 %1074
  %1076 = vrot.lane.b32.xlu0 %v542, 96
  %v1077 = vpop.permute.xlu0 %1076
  %1078 = vrot.lane.b32.xlu0 %v543, 96
  %v1079 = vpop.permute.xlu0 %1078
  %1080 = vrot.lane.b32.xlu0 %v544, 96
  %v1081 = vpop.permute.xlu0 %1080
  %1082 = vrot.lane.b32.xlu0 %v545, 96
  %v1083 = vpop.permute.xlu0 %1082
  %1084 = vrot.lane.b32.xlu0 %v546, 96
  %v1085 = vpop.permute.xlu0 %1084
  %1086 = vrot.lane.b32.xlu0 %v547, 96
  %v1087 = vpop.permute.xlu0 %1086
  %1088 = vrot.lane.b32.xlu0 %v548, 96
  %v1089 = vpop.permute.xlu0 %1088
  %1090 = vrot.lane.b32.xlu0 %v549, 96
  %v1091 = vpop.permute.xlu0 %1090
  %1092 = vrot.lane.b32.xlu0 %v550, 96
  %v1093 = vpop.permute.xlu0 %1092
  %1094 = vrot.lane.b32.xlu0 %v551, 96
  %v1095 = vpop.permute.xlu0 %1094
  %1096 = vrot.lane.b32.xlu0 %v552, 96
  %v1097 = vpop.permute.xlu0 %1096
  %1098 = vrot.lane.b32.xlu0 %v553, 96
  %v1099 = vpop.permute.xlu0 %1098
  %1100 = vrot.lane.b32.xlu0 %v554, 96
  %v1101 = vpop.permute.xlu0 %1100
  %1102 = vrot.lane.b32.xlu0 %v555, 96
  %v1103 = vpop.permute.xlu0 %1102
  %1104 = vrot.lane.b32.xlu0 %v556, 96
  %v1105 = vpop.permute.xlu0 %1104
  %1106 = vrot.lane.b32.xlu0 %v557, 96
  %v1107 = vpop.permute.xlu0 %1106
  %1108 = vrot.lane.b32.xlu0 %v558, 96
  %v1109 = vpop.permute.xlu0 %1108
  %1110 = vrot.lane.b32.xlu0 %v559, 96
  %v1111 = vpop.permute.xlu0 %1110
  %1112 = vrot.lane.b32.xlu0 %v560, 96
  %v1113 = vpop.permute.xlu0 %1112
  %1114 = vrot.lane.b32.xlu0 %v561, 96
  %v1115 = vpop.permute.xlu0 %1114
  %1116 = vrot.lane.b32.xlu0 %v562, 96
  %v1117 = vpop.permute.xlu0 %1116
  %1118 = vrot.lane.b32.xlu0 %v563, 96
  %v1119 = vpop.permute.xlu0 %1118
  %1120 = vrot.lane.b32.xlu0 %v564, 96
  %v1121 = vpop.permute.xlu0 %1120
  %1122 = vrot.lane.b32.xlu0 %v565, 96
  %v1123 = vpop.permute.xlu0 %1122
  %1124 = vrot.lane.b32.xlu0 %v566, 96
  %v1125 = vpop.permute.xlu0 %1124
  %1126 = vrot.lane.b32.xlu0 %v567, 96
  %v1127 = vpop.permute.xlu0 %1126
  %1128 = vrot.lane.b32.xlu0 %v568, 96
  %v1129 = vpop.permute.xlu0 %1128
  %1130 = vrot.lane.b32.xlu0 %v569, 96
  %v1131 = vpop.permute.xlu0 %1130
  %1132 = vrot.lane.b32.xlu0 %v570, 96
  %v1133 = vpop.permute.xlu0 %1132
  %1134 = vrot.lane.b32.xlu0 %v571, 96
  %v1135 = vpop.permute.xlu0 %1134
  %1136 = vrot.lane.b32.xlu0 %v572, 96
  %v1137 = vpop.permute.xlu0 %1136
  %1138 = vrot.lane.b32.xlu0 %v573, 96
  %v1139 = vpop.permute.xlu0 %1138
  %1140 = vrot.lane.b32.xlu0 %v574, 96
  %v1141 = vpop.permute.xlu0 %1140
  %1142 = vrot.lane.b32.xlu0 %v575, 96
  %v1143 = vpop.permute.xlu0 %1142
  %1144 = vrot.lane.b32.xlu0 %v576, 96
  %v1145 = vpop.permute.xlu0 %1144
  %1146 = vrot.lane.b32.xlu0 %v577, 96
  %v1147 = vpop.permute.xlu0 %1146
  %1148 = vrot.lane.b32.xlu0 %v578, 96
  %v1149 = vpop.permute.xlu0 %1148
  %1150 = vrot.lane.b32.xlu0 %v579, 96
  %v1151 = vpop.permute.xlu0 %1150
  %1152 = vrot.lane.b32.xlu0 %v580, 96
  %v1153 = vpop.permute.xlu0 %1152
  %1154 = vrot.lane.b32.xlu0 %v581, 96
  %v1155 = vpop.permute.xlu0 %1154
  %1156 = vrot.lane.b32.xlu0 %v582, 96
  %v1157 = vpop.permute.xlu0 %1156
  %1158 = vrot.lane.b32.xlu0 %v583, 96
  %v1159 = vpop.permute.xlu0 %1158
  %1160 = vrot.lane.b32.xlu0 %v584, 96
  %v1161 = vpop.permute.xlu0 %1160
  %1162 = vrot.lane.b32.xlu0 %v585, 96
  %v1163 = vpop.permute.xlu0 %1162
  %1164 = vrot.lane.b32.xlu0 %v586, 96
  %v1165 = vpop.permute.xlu0 %1164
  %1166 = vrot.lane.b32.xlu0 %v587, 96
  %v1167 = vpop.permute.xlu0 %1166
  %1168 = vrot.lane.b32.xlu0 %v588, 96
  %v1169 = vpop.permute.xlu0 %1168
  %1170 = vrot.lane.b32.xlu0 %v589, 96
  %v1171 = vpop.permute.xlu0 %1170
  %1172 = vrot.lane.b32.xlu0 %v590, 96
  %v1173 = vpop.permute.xlu0 %1172
  %1174 = vrot.lane.b32.xlu0 %v591, 96
  %v1175 = vpop.permute.xlu0 %1174
  %1176 = vrot.lane.b32.xlu0 %v592, 96
  %v1177 = vpop.permute.xlu0 %1176
  %1178 = vrot.lane.b32.xlu0 %v593, 96
  %v1179 = vpop.permute.xlu0 %1178
  %1180 = vrot.lane.b32.xlu0 %v594, 96
  %v1181 = vpop.permute.xlu0 %1180
  %1182 = vrot.lane.b32.xlu0 %v595, 96
  %v1183 = vpop.permute.xlu0 %1182
  %1184 = vrot.lane.b32.xlu0 %v596, 96
  %v1185 = vpop.permute.xlu0 %1184
  %1186 = vrot.lane.b32.xlu0 %v597, 96
  %v1187 = vpop.permute.xlu0 %1186
  %1188 = vrot.lane.b32.xlu0 %v598, 96
  %v1189 = vpop.permute.xlu0 %1188
  %1190 = vrot.lane.b32.xlu0 %v599, 96
  %v1191 = vpop.permute.xlu0 %1190
  %1192 = vrot.lane.b32.xlu0 %v600, 96
  %v1193 = vpop.permute.xlu0 %1192
  %1194 = vrot.lane.b32.xlu0 %v601, 96
  %v1195 = vpop.permute.xlu0 %1194
  %1196 = vrot.lane.b32.xlu0 %v602, 96
  %v1197 = vpop.permute.xlu0 %1196
  %1198 = vrot.lane.b32.xlu0 %v603, 96
  %v1199 = vpop.permute.xlu0 %1198
  %1200 = vrot.lane.b32.xlu0 %v604, 96
  %v1201 = vpop.permute.xlu0 %1200
  %1202 = vrot.lane.b32.xlu0 %v605, 96
  %v1203 = vpop.permute.xlu0 %1202
  %1204 = vrot.lane.b32.xlu0 %v606, 96
  %v1205 = vpop.permute.xlu0 %1204
  %1206 = vrot.lane.b32.xlu0 %v607, 96
  %v1207 = vpop.permute.xlu0 %1206
  %1208 = vrot.lane.b32.xlu0 %v608, 96
  %v1209 = vpop.permute.xlu0 %1208
  %1210 = vrot.lane.b32.xlu0 %v609, 96
  %v1211 = vpop.permute.xlu0 %1210
  %1212 = vrot.lane.b32.xlu0 %v610, 96
  %v1213 = vpop.permute.xlu0 %1212
  %1214 = vrot.lane.b32.xlu0 %v611, 96
  %v1215 = vpop.permute.xlu0 %1214
  %1216 = vrot.lane.b32.xlu0 %v612, 96
  %v1217 = vpop.permute.xlu0 %1216
  %1218 = vrot.lane.b32.xlu0 %v613, 96
  %v1219 = vpop.permute.xlu0 %1218
  %1220 = vrot.lane.b32.xlu0 %v614, 96
  %v1221 = vpop.permute.xlu0 %1220
  %1222 = vrot.lane.b32.xlu0 %v615, 96
  %v1223 = vpop.permute.xlu0 %1222
  %1224 = vrot.lane.b32.xlu0 %v616, 96
  %v1225 = vpop.permute.xlu0 %1224
  %1226 = vrot.lane.b32.xlu0 %v617, 96
  %v1227 = vpop.permute.xlu0 %1226
  %1228 = vrot.lane.b32.xlu0 %v618, 96
  %v1229 = vpop.permute.xlu0 %1228
  %1230 = vrot.lane.b32.xlu0 %v619, 96
  %v1231 = vpop.permute.xlu0 %1230
  %1232 = vrot.lane.b32.xlu0 %v620, 96
  %v1233 = vpop.permute.xlu0 %1232
  %1234 = vrot.lane.b32.xlu0 %v621, 96
  %v1235 = vpop.permute.xlu0 %1234
  %1236 = vrot.lane.b32.xlu0 %v622, 96
  %v1237 = vpop.permute.xlu0 %1236
  %1238 = vrot.lane.b32.xlu0 %v623, 96
  %v1239 = vpop.permute.xlu0 %1238
  %1240 = vrot.lane.b32.xlu0 %v624, 96
  %v1241 = vpop.permute.xlu0 %1240
  %1242 = vrot.lane.b32.xlu0 %v625, 96
  %v1243 = vpop.permute.xlu0 %1242
  %1244 = vrot.lane.b32.xlu0 %v626, 96
  %v1245 = vpop.permute.xlu0 %1244
  %1246 = vrot.lane.b32.xlu0 %v627, 96
  %v1247 = vpop.permute.xlu0 %1246
  %1248 = vrot.lane.b32.xlu0 %v628, 96
  %v1249 = vpop.permute.xlu0 %1248
  %1250 = vrot.lane.b32.xlu0 %v629, 96
  %v1251 = vpop.permute.xlu0 %1250
  %1252 = vrot.lane.b32.xlu0 %v630, 96
  %v1253 = vpop.permute.xlu0 %1252
  %1254 = vrot.lane.b32.xlu0 %v631, 96
  %v1255 = vpop.permute.xlu0 %1254
  %v1464 = vmax.f32 %v424, %v841
  %v1465 = vmax.f32 %v425, %v843
  %v1466 = vmax.f32 %v426, %v845
  %v1467 = vmax.f32 %v427, %v847
  %v1468 = vmax.f32 %v428, %v849
  %v1469 = vmax.f32 %v429, %v851
  %v1470 = vmax.f32 %v430, %v853
  %v1471 = vmax.f32 %v431, %v855
  %v1472 = vmax.f32 %v432, %v857
  %v1473 = vmax.f32 %v433, %v859
  %v1474 = vmax.f32 %v434, %v861
  %v1475 = vmax.f32 %v435, %v863
  %v1476 = vmax.f32 %v436, %v865
  %v1477 = vmax.f32 %v437, %v867
  %v1478 = vmax.f32 %v438, %v869
  %v1479 = vmax.f32 %v439, %v871
  %v1480 = vmax.f32 %v440, %v873
  %v1481 = vmax.f32 %v441, %v875
  %v1482 = vmax.f32 %v442, %v877
  %v1483 = vmax.f32 %v443, %v879
  %v1484 = vmax.f32 %v444, %v881
  %v1485 = vmax.f32 %v445, %v883
  %v1486 = vmax.f32 %v446, %v885
  %v1487 = vmax.f32 %v447, %v887
  %v1488 = vmax.f32 %v448, %v889
  %v1489 = vmax.f32 %v449, %v891
  %v1490 = vmax.f32 %v450, %v893
  %v1491 = vmax.f32 %v451, %v895
  %v1492 = vmax.f32 %v452, %v897
  %v1493 = vmax.f32 %v453, %v899
  %v1494 = vmax.f32 %v454, %v901
  %v1495 = vmax.f32 %v455, %v903
  %v1496 = vmax.f32 %v456, %v905
  %v1497 = vmax.f32 %v457, %v907
  %v1498 = vmax.f32 %v458, %v909
  %v1499 = vmax.f32 %v459, %v911
  %v1500 = vmax.f32 %v460, %v913
  %v1501 = vmax.f32 %v461, %v915
  %v1502 = vmax.f32 %v462, %v917
  %v1503 = vmax.f32 %v463, %v919
  %v1504 = vmax.f32 %v464, %v921
  %v1505 = vmax.f32 %v465, %v923
  %v1506 = vmax.f32 %v466, %v925
  %v1507 = vmax.f32 %v467, %v927
  %v1508 = vmax.f32 %v468, %v929
  %v1509 = vmax.f32 %v469, %v931
  %v1510 = vmax.f32 %v470, %v933
  %v1511 = vmax.f32 %v471, %v935
  %v1512 = vmax.f32 %v472, %v937
  %v1513 = vmax.f32 %v473, %v939
  %v1514 = vmax.f32 %v474, %v941
  %v1515 = vmax.f32 %v475, %v943
  %v1516 = vmax.f32 %v476, %v945
  %v1517 = vmax.f32 %v477, %v947
  %v1518 = vmax.f32 %v478, %v949
  %v1519 = vmax.f32 %v479, %v951
  %v1520 = vmax.f32 %v480, %v953
  %v1521 = vmax.f32 %v481, %v955
  %v1522 = vmax.f32 %v482, %v957
  %v1523 = vmax.f32 %v483, %v959
  %v1524 = vmax.f32 %v484, %v961
  %v1525 = vmax.f32 %v485, %v963
  %v1526 = vmax.f32 %v486, %v965
  %v1527 = vmax.f32 %v487, %v967
  %v1528 = vmax.f32 %v488, %v969
  %v1529 = vmax.f32 %v489, %v971
  %v1530 = vmax.f32 %v490, %v973
  %v1531 = vmax.f32 %v491, %v975
  %v1532 = vmax.f32 %v492, %v977
  %v1533 = vmax.f32 %v493, %v979
  %v1534 = vmax.f32 %v494, %v981
  %v1535 = vmax.f32 %v495, %v983
  %v1536 = vmax.f32 %v496, %v985
  %v1537 = vmax.f32 %v497, %v987
  %v1538 = vmax.f32 %v498, %v989
  %v1539 = vmax.f32 %v499, %v991
  %v1540 = vmax.f32 %v500, %v993
  %v1541 = vmax.f32 %v501, %v995
  %v1542 = vmax.f32 %v502, %v997
  %v1543 = vmax.f32 %v503, %v999
  %v1544 = vmax.f32 %v504, %v1001
  %v1545 = vmax.f32 %v505, %v1003
  %v1546 = vmax.f32 %v506, %v1005
  %v1547 = vmax.f32 %v507, %v1007
  %v1548 = vmax.f32 %v508, %v1009
  %v1549 = vmax.f32 %v509, %v1011
  %v1550 = vmax.f32 %v510, %v1013
  %v1551 = vmax.f32 %v511, %v1015
  %v1552 = vmax.f32 %v512, %v1017
  %v1553 = vmax.f32 %v513, %v1019
  %v1554 = vmax.f32 %v514, %v1021
  %v1555 = vmax.f32 %v515, %v1023
  %v1556 = vmax.f32 %v516, %v1025
  %v1557 = vmax.f32 %v517, %v1027
  %v1558 = vmax.f32 %v518, %v1029
  %v1559 = vmax.f32 %v519, %v1031
  %v1560 = vmax.f32 %v520, %v1033
  %v1561 = vmax.f32 %v521, %v1035
  %v1562 = vmax.f32 %v522, %v1037
  %v1563 = vmax.f32 %v523, %v1039
  %v1564 = vmax.f32 %v524, %v1041
  %v1565 = vmax.f32 %v525, %v1043
  %v1566 = vmax.f32 %v526, %v1045
  %v1567 = vmax.f32 %v527, %v1047
  %v1568 = vmax.f32 %v528, %v1049
  %v1569 = vmax.f32 %v529, %v1051
  %v1570 = vmax.f32 %v530, %v1053
  %v1571 = vmax.f32 %v531, %v1055
  %v1572 = vmax.f32 %v532, %v1057
  %v1573 = vmax.f32 %v533, %v1059
  %v1574 = vmax.f32 %v534, %v1061
  %v1575 = vmax.f32 %v535, %v1063
  %v1576 = vmax.f32 %v536, %v1065
  %v1577 = vmax.f32 %v537, %v1067
  %v1578 = vmax.f32 %v538, %v1069
  %v1579 = vmax.f32 %v539, %v1071
  %v1580 = vmax.f32 %v540, %v1073
  %v1581 = vmax.f32 %v541, %v1075
  %v1582 = vmax.f32 %v542, %v1077
  %v1583 = vmax.f32 %v543, %v1079
  %v1584 = vmax.f32 %v544, %v1081
  %v1585 = vmax.f32 %v545, %v1083
  %v1586 = vmax.f32 %v546, %v1085
  %v1587 = vmax.f32 %v547, %v1087
  %v1588 = vmax.f32 %v548, %v1089
  %v1589 = vmax.f32 %v549, %v1091
  %v1590 = vmax.f32 %v550, %v1093
  %v1591 = vmax.f32 %v551, %v1095
  %v1592 = vmax.f32 %v552, %v1097
  %v1593 = vmax.f32 %v553, %v1099
  %v1594 = vmax.f32 %v554, %v1101
  %v1595 = vmax.f32 %v555, %v1103
  %v1596 = vmax.f32 %v556, %v1105
  %v1597 = vmax.f32 %v557, %v1107
  %v1598 = vmax.f32 %v558, %v1109
  %v1599 = vmax.f32 %v559, %v1111
  %v1600 = vmax.f32 %v560, %v1113
  %v1601 = vmax.f32 %v561, %v1115
  %v1602 = vmax.f32 %v562, %v1117
  %v1603 = vmax.f32 %v563, %v1119
  %v1604 = vmax.f32 %v564, %v1121
  %v1605 = vmax.f32 %v565, %v1123
  %v1606 = vmax.f32 %v566, %v1125
  %v1607 = vmax.f32 %v567, %v1127
  %v1608 = vmax.f32 %v568, %v1129
  %v1609 = vmax.f32 %v569, %v1131
  %v1610 = vmax.f32 %v570, %v1133
  %v1611 = vmax.f32 %v571, %v1135
  %v1612 = vmax.f32 %v572, %v1137
  %v1613 = vmax.f32 %v573, %v1139
  %v1614 = vmax.f32 %v574, %v1141
  %v1615 = vmax.f32 %v575, %v1143
  %v1616 = vmax.f32 %v576, %v1145
  %v1617 = vmax.f32 %v577, %v1147
  %v1618 = vmax.f32 %v578, %v1149
  %v1619 = vmax.f32 %v579, %v1151
  %v1620 = vmax.f32 %v580, %v1153
  %v1621 = vmax.f32 %v581, %v1155
  %v1622 = vmax.f32 %v582, %v1157
  %v1623 = vmax.f32 %v583, %v1159
  %v1624 = vmax.f32 %v584, %v1161
  %v1625 = vmax.f32 %v585, %v1163
  %v1626 = vmax.f32 %v586, %v1165
  %v1627 = vmax.f32 %v587, %v1167
  %v1628 = vmax.f32 %v588, %v1169
  %v1629 = vmax.f32 %v589, %v1171
  %v1630 = vmax.f32 %v590, %v1173
  %v1631 = vmax.f32 %v591, %v1175
  %v1632 = vmax.f32 %v592, %v1177
  %v1633 = vmax.f32 %v593, %v1179
  %v1634 = vmax.f32 %v594, %v1181
  %v1635 = vmax.f32 %v595, %v1183
  %v1636 = vmax.f32 %v596, %v1185
  %v1637 = vmax.f32 %v597, %v1187
  %v1638 = vmax.f32 %v598, %v1189
  %v1639 = vmax.f32 %v599, %v1191
  %v1640 = vmax.f32 %v600, %v1193
  %v1641 = vmax.f32 %v601, %v1195
  %v1642 = vmax.f32 %v602, %v1197
  %v1643 = vmax.f32 %v603, %v1199
  %v1644 = vmax.f32 %v604, %v1201
  %v1645 = vmax.f32 %v605, %v1203
  %v1646 = vmax.f32 %v606, %v1205
  %v1647 = vmax.f32 %v607, %v1207
  %v1648 = vmax.f32 %v608, %v1209
  %v1649 = vmax.f32 %v609, %v1211
  %v1650 = vmax.f32 %v610, %v1213
  %v1651 = vmax.f32 %v611, %v1215
  %v1652 = vmax.f32 %v612, %v1217
  %v1653 = vmax.f32 %v613, %v1219
  %v1654 = vmax.f32 %v614, %v1221
  %v1655 = vmax.f32 %v615, %v1223
  %v1656 = vmax.f32 %v616, %v1225
  %v1657 = vmax.f32 %v617, %v1227
  %v1658 = vmax.f32 %v618, %v1229
  %v1659 = vmax.f32 %v619, %v1231
  %v1660 = vmax.f32 %v620, %v1233
  %v1661 = vmax.f32 %v621, %v1235
  %v1662 = vmax.f32 %v622, %v1237
  %v1663 = vmax.f32 %v623, %v1239
  %v1664 = vmax.f32 %v624, %v1241
  %v1665 = vmax.f32 %v625, %v1243
  %v1666 = vmax.f32 %v626, %v1245
  %v1667 = vmax.f32 %v627, %v1247
  %v1668 = vmax.f32 %v628, %v1249
  %v1669 = vmax.f32 %v629, %v1251
  %v1670 = vmax.f32 %v630, %v1253
  %v1671 = vmax.f32 %v631, %v1255
  %vm1672 = vcmask 261120
  %1673 = vst.msk [vmem:[%s1] sm:$0xff] %vm1672, %v1464
  %1674 = vst.msk [vmem:[%s1 + $0x8] sm:$0xff] %vm1672, %v1465
  %1675 = vst.msk [vmem:[%s1 + $0x10] sm:$0xff] %vm1672, %v1466
  %vm1676 = vcmask 254976
  %1677 = vst.msk [vmem:[%s1 + $0x18] sm:$0x3] %vm1676, %v1467
  %1678 = vst.msk [vmem:[%s1 + $0x20] sm:$0xff] %vm1672, %v1468
  %1679 = vst.msk [vmem:[%s1 + $0x28] sm:$0xff] %vm1672, %v1469
  %1680 = vst.msk [vmem:[%s1 + $0x30] sm:$0xff] %vm1672, %v1470
  %1681 = vst.msk [vmem:[%s1 + $0x38] sm:$0x3] %vm1676, %v1471
  %1682 = vst.msk [vmem:[%s1 + $0x40] sm:$0xff] %vm1672, %v1472
  %1683 = vst.msk [vmem:[%s1 + $0x48] sm:$0xff] %vm1672, %v1473
  %1684 = vst.msk [vmem:[%s1 + $0x50] sm:$0xff] %vm1672, %v1474
  %1685 = vst.msk [vmem:[%s1 + $0x58] sm:$0x3] %vm1676, %v1475
  %1686 = vst.msk [vmem:[%s1 + $0x60] sm:$0xff] %vm1672, %v1476
  %1687 = vst.msk [vmem:[%s1 + $0x68] sm:$0xff] %vm1672, %v1477
  %1688 = vst.msk [vmem:[%s1 + $0x70] sm:$0xff] %vm1672, %v1478
  %1689 = vst.msk [vmem:[%s1 + $0x78] sm:$0x3] %vm1676, %v1479
  %1690 = vst.msk [vmem:[%s1 + $0x80] sm:$0xff] %vm1672, %v1480
  %1691 = vst.msk [vmem:[%s1 + $0x88] sm:$0xff] %vm1672, %v1481
  %1692 = vst.msk [vmem:[%s1 + $0x90] sm:$0xff] %vm1672, %v1482
  %1693 = vst.msk [vmem:[%s1 + $0x98] sm:$0x3] %vm1676, %v1483
  %1694 = vst.msk [vmem:[%s1 + $0xa0] sm:$0xff] %vm1672, %v1484
  %1695 = vst.msk [vmem:[%s1 + $0xa8] sm:$0xff] %vm1672, %v1485
  %1696 = vst.msk [vmem:[%s1 + $0xb0] sm:$0xff] %vm1672, %v1486
  %1697 = vst.msk [vmem:[%s1 + $0xb8] sm:$0x3] %vm1676, %v1487
  %1698 = vst.msk [vmem:[%s1 + $0xc0] sm:$0xff] %vm1672, %v1488
  %1699 = vst.msk [vmem:[%s1 + $0xc8] sm:$0xff] %vm1672, %v1489
  %1700 = vst.msk [vmem:[%s1 + $0xd0] sm:$0xff] %vm1672, %v1490
  %1701 = vst.msk [vmem:[%s1 + $0xd8] sm:$0x3] %vm1676, %v1491
  %1702 = vst.msk [vmem:[%s1 + $0xe0] sm:$0xff] %vm1672, %v1492
  %1703 = vst.msk [vmem:[%s1 + $0xe8] sm:$0xff] %vm1672, %v1493
  %1704 = vst.msk [vmem:[%s1 + $0xf0] sm:$0xff] %vm1672, %v1494
  %1705 = vst.msk [vmem:[%s1 + $0xf8] sm:$0x3] %vm1676, %v1495
  %1706 = vst.msk [vmem:[%s1 + $0x100] sm:$0xff] %vm1672, %v1496
  %1707 = vst.msk [vmem:[%s1 + $0x108] sm:$0xff] %vm1672, %v1497
  %1708 = vst.msk [vmem:[%s1 + $0x110] sm:$0xff] %vm1672, %v1498
  %1709 = vst.msk [vmem:[%s1 + $0x118] sm:$0x3] %vm1676, %v1499
  %1710 = vst.msk [vmem:[%s1 + $0x120] sm:$0xff] %vm1672, %v1500
  %1711 = vst.msk [vmem:[%s1 + $0x128] sm:$0xff] %vm1672, %v1501
  %1712 = vst.msk [vmem:[%s1 + $0x130] sm:$0xff] %vm1672, %v1502
  %1713 = vst.msk [vmem:[%s1 + $0x138] sm:$0x3] %vm1676, %v1503
  %1714 = vst.msk [vmem:[%s1 + $0x140] sm:$0xff] %vm1672, %v1504
  %1715 = vst.msk [vmem:[%s1 + $0x148] sm:$0xff] %vm1672, %v1505
  %1716 = vst.msk [vmem:[%s1 + $0x150] sm:$0xff] %vm1672, %v1506
  %1717 = vst.msk [vmem:[%s1 + $0x158] sm:$0x3] %vm1676, %v1507
  %1718 = vst.msk [vmem:[%s1 + $0x160] sm:$0xff] %vm1672, %v1508
  %1719 = vst.msk [vmem:[%s1 + $0x168] sm:$0xff] %vm1672, %v1509
  %1720 = vst.msk [vmem:[%s1 + $0x170] sm:$0xff] %vm1672, %v1510
  %1721 = vst.msk [vmem:[%s1 + $0x178] sm:$0x3] %vm1676, %v1511
  %1722 = vst.msk [vmem:[%s1 + $0x180] sm:$0xff] %vm1672, %v1512
  %1723 = vst.msk [vmem:[%s1 + $0x188] sm:$0xff] %vm1672, %v1513
  %1724 = vst.msk [vmem:[%s1 + $0x190] sm:$0xff] %vm1672, %v1514
  %1725 = vst.msk [vmem:[%s1 + $0x198] sm:$0x3] %vm1676, %v1515
  %1726 = vst.msk [vmem:[%s1 + $0x1a0] sm:$0xff] %vm1672, %v1516
  %1727 = vst.msk [vmem:[%s1 + $0x1a8] sm:$0xff] %vm1672, %v1517
  %1728 = vst.msk [vmem:[%s1 + $0x1b0] sm:$0xff] %vm1672, %v1518
  %1729 = vst.msk [vmem:[%s1 + $0x1b8] sm:$0x3] %vm1676, %v1519
  %1730 = vst.msk [vmem:[%s1 + $0x1c0] sm:$0xff] %vm1672, %v1520
  %1731 = vst.msk [vmem:[%s1 + $0x1c8] sm:$0xff] %vm1672, %v1521
  %1732 = vst.msk [vmem:[%s1 + $0x1d0] sm:$0xff] %vm1672, %v1522
  %1733 = vst.msk [vmem:[%s1 + $0x1d8] sm:$0x3] %vm1676, %v1523
  %1734 = vst.msk [vmem:[%s1 + $0x1e0] sm:$0xff] %vm1672, %v1524
  %1735 = vst.msk [vmem:[%s1 + $0x1e8] sm:$0xff] %vm1672, %v1525
  %1736 = vst.msk [vmem:[%s1 + $0x1f0] sm:$0xff] %vm1672, %v1526
  %1737 = vst.msk [vmem:[%s1 + $0x1f8] sm:$0x3] %vm1676, %v1527
  %1738 = vst.msk [vmem:[%s1 + $0x200] sm:$0xff] %vm1672, %v1528
  %1739 = vst.msk [vmem:[%s1 + $0x208] sm:$0xff] %vm1672, %v1529
  %1740 = vst.msk [vmem:[%s1 + $0x210] sm:$0xff] %vm1672, %v1530
  %1741 = vst.msk [vmem:[%s1 + $0x218] sm:$0x3] %vm1676, %v1531
  %1742 = vst.msk [vmem:[%s1 + $0x220] sm:$0xff] %vm1672, %v1532
  %1743 = vst.msk [vmem:[%s1 + $0x228] sm:$0xff] %vm1672, %v1533
  %1744 = vst.msk [vmem:[%s1 + $0x230] sm:$0xff] %vm1672, %v1534
  %1745 = vst.msk [vmem:[%s1 + $0x238] sm:$0x3] %vm1676, %v1535
  %1746 = vst.msk [vmem:[%s1 + $0x240] sm:$0xff] %vm1672, %v1536
  %1747 = vst.msk [vmem:[%s1 + $0x248] sm:$0xff] %vm1672, %v1537
  %1748 = vst.msk [vmem:[%s1 + $0x250] sm:$0xff] %vm1672, %v1538
  %1749 = vst.msk [vmem:[%s1 + $0x258] sm:$0x3] %vm1676, %v1539
  %1750 = vst.msk [vmem:[%s1 + $0x260] sm:$0xff] %vm1672, %v1540
  %1751 = vst.msk [vmem:[%s1 + $0x268] sm:$0xff] %vm1672, %v1541
  %1752 = vst.msk [vmem:[%s1 + $0x270] sm:$0xff] %vm1672, %v1542
  %1753 = vst.msk [vmem:[%s1 + $0x278] sm:$0x3] %vm1676, %v1543
  %1754 = vst.msk [vmem:[%s1 + $0x280] sm:$0xff] %vm1672, %v1544
  %1755 = vst.msk [vmem:[%s1 + $0x288] sm:$0xff] %vm1672, %v1545
  %1756 = vst.msk [vmem:[%s1 + $0x290] sm:$0xff] %vm1672, %v1546
  %1757 = vst.msk [vmem:[%s1 + $0x298] sm:$0x3] %vm1676, %v1547
  %1758 = vst.msk [vmem:[%s1 + $0x2a0] sm:$0xff] %vm1672, %v1548
  %1759 = vst.msk [vmem:[%s1 + $0x2a8] sm:$0xff] %vm1672, %v1549
  %1760 = vst.msk [vmem:[%s1 + $0x2b0] sm:$0xff] %vm1672, %v1550
  %1761 = vst.msk [vmem:[%s1 + $0x2b8] sm:$0x3] %vm1676, %v1551
  %1762 = vst.msk [vmem:[%s1 + $0x2c0] sm:$0xff] %vm1672, %v1552
  %1763 = vst.msk [vmem:[%s1 + $0x2c8] sm:$0xff] %vm1672, %v1553
  %1764 = vst.msk [vmem:[%s1 + $0x2d0] sm:$0xff] %vm1672, %v1554
  %1765 = vst.msk [vmem:[%s1 + $0x2d8] sm:$0x3] %vm1676, %v1555
  %1766 = vst.msk [vmem:[%s1 + $0x2e0] sm:$0xff] %vm1672, %v1556
  %1767 = vst.msk [vmem:[%s1 + $0x2e8] sm:$0xff] %vm1672, %v1557
  %1768 = vst.msk [vmem:[%s1 + $0x2f0] sm:$0xff] %vm1672, %v1558
  %1769 = vst.msk [vmem:[%s1 + $0x2f8] sm:$0x3] %vm1676, %v1559
  %1770 = vst.msk [vmem:[%s1 + $0x300] sm:$0xff] %vm1672, %v1560
  %1771 = vst.msk [vmem:[%s1 + $0x308] sm:$0xff] %vm1672, %v1561
  %1772 = vst.msk [vmem:[%s1 + $0x310] sm:$0xff] %vm1672, %v1562
  %1773 = vst.msk [vmem:[%s1 + $0x318] sm:$0x3] %vm1676, %v1563
  %1774 = vst.msk [vmem:[%s1 + $0x320] sm:$0xff] %vm1672, %v1564
  %1775 = vst.msk [vmem:[%s1 + $0x328] sm:$0xff] %vm1672, %v1565
  %1776 = vst.msk [vmem:[%s1 + $0x330] sm:$0xff] %vm1672, %v1566
  %1777 = vst.msk [vmem:[%s1 + $0x338] sm:$0x3] %vm1676, %v1567
  %1778 = vst.msk [vmem:[%s1 + $0x340] sm:$0xff] %vm1672, %v1568
  %1779 = vst.msk [vmem:[%s1 + $0x348] sm:$0xff] %vm1672, %v1569
  %1780 = vst.msk [vmem:[%s1 + $0x350] sm:$0xff] %vm1672, %v1570
  %1781 = vst.msk [vmem:[%s1 + $0x358] sm:$0x3] %vm1676, %v1571
  %1782 = vst.msk [vmem:[%s1 + $0x360] sm:$0xff] %vm1672, %v1572
  %1783 = vst.msk [vmem:[%s1 + $0x368] sm:$0xff] %vm1672, %v1573
  %1784 = vst.msk [vmem:[%s1 + $0x370] sm:$0xff] %vm1672, %v1574
  %1785 = vst.msk [vmem:[%s1 + $0x378] sm:$0x3] %vm1676, %v1575
  %1786 = vst.msk [vmem:[%s1 + $0x380] sm:$0xff] %vm1672, %v1576
  %1787 = vst.msk [vmem:[%s1 + $0x388] sm:$0xff] %vm1672, %v1577
  %1788 = vst.msk [vmem:[%s1 + $0x390] sm:$0xff] %vm1672, %v1578
  %1789 = vst.msk [vmem:[%s1 + $0x398] sm:$0x3] %vm1676, %v1579
  %1790 = vst.msk [vmem:[%s1 + $0x3a0] sm:$0xff] %vm1672, %v1580
  %1791 = vst.msk [vmem:[%s1 + $0x3a8] sm:$0xff] %vm1672, %v1581
  %1792 = vst.msk [vmem:[%s1 + $0x3b0] sm:$0xff] %vm1672, %v1582
  %1793 = vst.msk [vmem:[%s1 + $0x3b8] sm:$0x3] %vm1676, %v1583
  %1794 = vst.msk [vmem:[%s1 + $0x3c0] sm:$0xff] %vm1672, %v1584
  %1795 = vst.msk [vmem:[%s1 + $0x3c8] sm:$0xff] %vm1672, %v1585
  %1796 = vst.msk [vmem:[%s1 + $0x3d0] sm:$0xff] %vm1672, %v1586
  %1797 = vst.msk [vmem:[%s1 + $0x3d8] sm:$0x3] %vm1676, %v1587
  %1798 = vst.msk [vmem:[%s1 + $0x3e0] sm:$0xff] %vm1672, %v1588
  %1799 = vst.msk [vmem:[%s1 + $0x3e8] sm:$0xff] %vm1672, %v1589
  %1800 = vst.msk [vmem:[%s1 + $0x3f0] sm:$0xff] %vm1672, %v1590
  %1801 = vst.msk [vmem:[%s1 + $0x3f8] sm:$0x3] %vm1676, %v1591
  %1802 = vst.msk [vmem:[%s1 + $0x400] sm:$0xff] %vm1672, %v1592
  %1803 = vst.msk [vmem:[%s1 + $0x408] sm:$0xff] %vm1672, %v1593
  %1804 = vst.msk [vmem:[%s1 + $0x410] sm:$0xff] %vm1672, %v1594
  %1805 = vst.msk [vmem:[%s1 + $0x418] sm:$0x3] %vm1676, %v1595
  %1806 = vst.msk [vmem:[%s1 + $0x420] sm:$0xff] %vm1672, %v1596
  %1807 = vst.msk [vmem:[%s1 + $0x428] sm:$0xff] %vm1672, %v1597
  %1808 = vst.msk [vmem:[%s1 + $0x430] sm:$0xff] %vm1672, %v1598
  %1809 = vst.msk [vmem:[%s1 + $0x438] sm:$0x3] %vm1676, %v1599
  %1810 = vst.msk [vmem:[%s1 + $0x440] sm:$0xff] %vm1672, %v1600
  %1811 = vst.msk [vmem:[%s1 + $0x448] sm:$0xff] %vm1672, %v1601
  %1812 = vst.msk [vmem:[%s1 + $0x450] sm:$0xff] %vm1672, %v1602
  %1813 = vst.msk [vmem:[%s1 + $0x458] sm:$0x3] %vm1676, %v1603
  %1814 = vst.msk [vmem:[%s1 + $0x460] sm:$0xff] %vm1672, %v1604
  %1815 = vst.msk [vmem:[%s1 + $0x468] sm:$0xff] %vm1672, %v1605
  %1816 = vst.msk [vmem:[%s1 + $0x470] sm:$0xff] %vm1672, %v1606
  %1817 = vst.msk [vmem:[%s1 + $0x478] sm:$0x3] %vm1676, %v1607
  %1818 = vst.msk [vmem:[%s1 + $0x480] sm:$0xff] %vm1672, %v1608
  %1819 = vst.msk [vmem:[%s1 + $0x488] sm:$0xff] %vm1672, %v1609
  %1820 = vst.msk [vmem:[%s1 + $0x490] sm:$0xff] %vm1672, %v1610
  %1821 = vst.msk [vmem:[%s1 + $0x498] sm:$0x3] %vm1676, %v1611
  %1822 = vst.msk [vmem:[%s1 + $0x4a0] sm:$0xff] %vm1672, %v1612
  %1823 = vst.msk [vmem:[%s1 + $0x4a8] sm:$0xff] %vm1672, %v1613
  %1824 = vst.msk [vmem:[%s1 + $0x4b0] sm:$0xff] %vm1672, %v1614
  %1825 = vst.msk [vmem:[%s1 + $0x4b8] sm:$0x3] %vm1676, %v1615
  %1826 = vst.msk [vmem:[%s1 + $0x4c0] sm:$0xff] %vm1672, %v1616
  %1827 = vst.msk [vmem:[%s1 + $0x4c8] sm:$0xff] %vm1672, %v1617
  %1828 = vst.msk [vmem:[%s1 + $0x4d0] sm:$0xff] %vm1672, %v1618
  %1829 = vst.msk [vmem:[%s1 + $0x4d8] sm:$0x3] %vm1676, %v1619
  %1830 = vst.msk [vmem:[%s1 + $0x4e0] sm:$0xff] %vm1672, %v1620
  %1831 = vst.msk [vmem:[%s1 + $0x4e8] sm:$0xff] %vm1672, %v1621
  %1832 = vst.msk [vmem:[%s1 + $0x4f0] sm:$0xff] %vm1672, %v1622
  %1833 = vst.msk [vmem:[%s1 + $0x4f8] sm:$0x3] %vm1676, %v1623
  %1834 = vst.msk [vmem:[%s1 + $0x500] sm:$0xff] %vm1672, %v1624
  %1835 = vst.msk [vmem:[%s1 + $0x508] sm:$0xff] %vm1672, %v1625
  %1836 = vst.msk [vmem:[%s1 + $0x510] sm:$0xff] %vm1672, %v1626
  %1837 = vst.msk [vmem:[%s1 + $0x518] sm:$0x3] %vm1676, %v1627
  %1838 = vst.msk [vmem:[%s1 + $0x520] sm:$0xff] %vm1672, %v1628
  %1839 = vst.msk [vmem:[%s1 + $0x528] sm:$0xff] %vm1672, %v1629
  %1840 = vst.msk [vmem:[%s1 + $0x530] sm:$0xff] %vm1672, %v1630
  %1841 = vst.msk [vmem:[%s1 + $0x538] sm:$0x3] %vm1676, %v1631
  %1842 = vst.msk [vmem:[%s1 + $0x540] sm:$0xff] %vm1672, %v1632
  %1843 = vst.msk [vmem:[%s1 + $0x548] sm:$0xff] %vm1672, %v1633
  %1844 = vst.msk [vmem:[%s1 + $0x550] sm:$0xff] %vm1672, %v1634
  %1845 = vst.msk [vmem:[%s1 + $0x558] sm:$0x3] %vm1676, %v1635
  %1846 = vst.msk [vmem:[%s1 + $0x560] sm:$0xff] %vm1672, %v1636
  %1847 = vst.msk [vmem:[%s1 + $0x568] sm:$0xff] %vm1672, %v1637
  %1848 = vst.msk [vmem:[%s1 + $0x570] sm:$0xff] %vm1672, %v1638
  %1849 = vst.msk [vmem:[%s1 + $0x578] sm:$0x3] %vm1676, %v1639
  %1850 = vst.msk [vmem:[%s1 + $0x580] sm:$0xff] %vm1672, %v1640
  %1851 = vst.msk [vmem:[%s1 + $0x588] sm:$0xff] %vm1672, %v1641
  %1852 = vst.msk [vmem:[%s1 + $0x590] sm:$0xff] %vm1672, %v1642
  %1853 = vst.msk [vmem:[%s1 + $0x598] sm:$0x3] %vm1676, %v1643
  %1854 = vst.msk [vmem:[%s1 + $0x5a0] sm:$0xff] %vm1672, %v1644
  %1855 = vst.msk [vmem:[%s1 + $0x5a8] sm:$0xff] %vm1672, %v1645
  %1856 = vst.msk [vmem:[%s1 + $0x5b0] sm:$0xff] %vm1672, %v1646
  %1857 = vst.msk [vmem:[%s1 + $0x5b8] sm:$0x3] %vm1676, %v1647
  %1858 = vst.msk [vmem:[%s1 + $0x5c0] sm:$0xff] %vm1672, %v1648
  %1859 = vst.msk [vmem:[%s1 + $0x5c8] sm:$0xff] %vm1672, %v1649
  %1860 = vst.msk [vmem:[%s1 + $0x5d0] sm:$0xff] %vm1672, %v1650
  %1861 = vst.msk [vmem:[%s1 + $0x5d8] sm:$0x3] %vm1676, %v1651
  %1862 = vst.msk [vmem:[%s1 + $0x5e0] sm:$0xff] %vm1672, %v1652
  %1863 = vst.msk [vmem:[%s1 + $0x5e8] sm:$0xff] %vm1672, %v1653
  %1864 = vst.msk [vmem:[%s1 + $0x5f0] sm:$0xff] %vm1672, %v1654
  %1865 = vst.msk [vmem:[%s1 + $0x5f8] sm:$0x3] %vm1676, %v1655
  %1866 = vst.msk [vmem:[%s1 + $0x600] sm:$0xff] %vm1672, %v1656
  %1867 = vst.msk [vmem:[%s1 + $0x608] sm:$0xff] %vm1672, %v1657
  %1868 = vst.msk [vmem:[%s1 + $0x610] sm:$0xff] %vm1672, %v1658
  %1869 = vst.msk [vmem:[%s1 + $0x618] sm:$0x3] %vm1676, %v1659
  %1870 = vst.msk [vmem:[%s1 + $0x620] sm:$0xff] %vm1672, %v1660
  %1871 = vst.msk [vmem:[%s1 + $0x628] sm:$0xff] %vm1672, %v1661
  %1872 = vst.msk [vmem:[%s1 + $0x630] sm:$0xff] %vm1672, %v1662
  %1873 = vst.msk [vmem:[%s1 + $0x638] sm:$0x3] %vm1676, %v1663
  %1874 = vst.msk [vmem:[%s1 + $0x640] sm:$0xff] %vm1672, %v1664
  %1875 = vst.msk [vmem:[%s1 + $0x648] sm:$0xff] %vm1672, %v1665
  %1876 = vst.msk [vmem:[%s1 + $0x650] sm:$0xff] %vm1672, %v1666
  %1877 = vst.msk [vmem:[%s1 + $0x658] sm:$0x3] %vm1676, %v1667
  %1878 = vst.msk [vmem:[%s1 + $0x660] sm:$0xff] %vm1672, %v1668
  %1879 = vst.msk [vmem:[%s1 + $0x668] sm:$0xff] %vm1672, %v1669
  %1880 = vst.msk [vmem:[%s1 + $0x670] sm:$0xff] %vm1672, %v1670
  %1881 = vst.msk [vmem:[%s1 + $0x678] sm:$0x3] %vm1676, %v1671
  // Predicated region
  $region6: #{net_forward.6} parent=0 // pred_check
    _
  $region7: #{net_forward.6} parent=0 // pred_check_branch
    %1883 = sbr.rel (0) target = $region9
  $region8: #{net_forward.6} parent=0 // pred_region
    _
  $region9: #{net_forward.6} parent=0 // pred_fallthru
    _
  // Predicated region
  $region10: #{net_forward.6} parent=0 // pred_check
    _
  $region11: #{net_forward.6} parent=0 // pred_check_branch
    %1885 = sbr.rel (0) target = $region13
  $region12: #{net_forward.6} parent=0 // pred_region
    _
  $region13: #{net_forward.6} parent=0 // pred_fallthru
    _

// kernel: net_forward.7
$region0: #{net_forward.7}
  #allocation0 [shape = 'u32[]', space=smem, size = 0x4, offset = 0x4, fixed_abs, tag = 'smem constant byte address 0x4 - core index']
  #allocation1 [shape = 'u32[144,128]{1,0:T(1,128)}', space=vmem, size = 0x12000, scoped, tag = 'internal scratch']
  %s0 = inlined_call_operand.vmem [shape: bf16[1152,288], index: 0, kind: input, shape index: {}]
  %s1 = inlined_call_operand.vmem [shape: bf16[288,64], index: 1, kind: input, shape index: {}]
  %s2 = inlined_call_operand.vmem [shape: f32[1,64], index: 2, kind: input, shape index: {}]
  %s3 = inlined_call_operand.vmem [shape: f32[1152,64], index: 3, kind: output, shape index: {}]
  %s4 = sld [smem:[#allocation0]]
  $region45: #{net_forward.7} parent=0
    _
  %s6 = ssub.s32 1, %s4
  %s7 = scalar_select 0, %s6, %s4
  loop: start=0, step=1, limit=5
  $region2: #{net_forward.7} parent=0 // loop_pre_header
    _
  $region3: #{net_forward.7} parent=0 // loop_header
    %s9 = sphi 0, %s13
    %p10 = scmp.ge.s32.totalorder %s9, 5
    %s19 = sphi 0, %s21
    %s22 = sphi 0, %s19
    %s23 = sphi 0, %s22
    %s39 = sphi 0, %s23
    %s43 = sphi 0, %s43
    %s45 = sphi 0, %s43
    %s46 = sphi 0, %s45
    %s60 = sphi 0, %s46
    %s64 = sphi 0, %s64
    %s66 = sphi 0, %s64
    %s67 = sphi 0, %s66
    %s81 = sphi 0, %s67
    %s87 = sphi 0, %s89
    %s90 = sphi 0, %s87
    %s91 = sphi 0, %s90
    %s107 = sphi 0, %s91
  $region4: #{net_forward.7} parent=0 // loop_header_branch
    %12 = sbr.rel (%p10) target = $region8
  $region5: #{net_forward.7} parent=0 // loop_body
    %s14 = ssub.s32 %s9, 1
    %s15 = ssub.s32 %s9, 2
    %s16 = sadd.s32 %s9, 1
    %s17 = ssub.s32 %s9, %s16
    %p18 = scmp.eq.s32.totalorder %s17, 0
    %s20 = sadd.s32 %s19, 1
    %s21 = scalar_select %p18, %s19, %s20
    %p24 = pneg %p18
    %p25 = scmp.eq.s32.totalorder %s9, 2
    %p26 = por %p24, %p25
    %p27 = scmp.ne.s32.totalorder %s19, %s22
    %p28 = scmp.eq.s32.totalorder %s9, 0
    %p29 = por %p27, %p28
    %p30 = scmp.ne.s32.totalorder %s19, %s22
    %p31 = scmp.eq.s32.totalorder %s14, 2
    %p32 = por %p30, %p31
    %p33 = scmp.ne.s32.totalorder %s22, %s23
    %p34 = scmp.eq.s32.totalorder %s14, 0
    %p35 = por %p33, %p34
    %p36 = scmp.ne.s32.totalorder %s22, %s23
    %p37 = scmp.eq.s32.totalorder %s15, 2
    %p38 = por %p36, %p37
    %p40 = scmp.ne.s32.totalorder %s23, %s39
    %p41 = scmp.eq.s32.totalorder %s15, 0
    %p42 = por %p40, %p41
    %s44 = sadd.s32 %s43, 1
    %p47 = scmp.eq.s32.totalorder %s9, 2
    %p48 = scmp.ne.s32.totalorder %s43, %s45
    %p49 = scmp.eq.s32.totalorder %s9, 0
    %p50 = por %p48, %p49
    %p51 = scmp.ne.s32.totalorder %s43, %s45
    %p52 = scmp.eq.s32.totalorder %s14, 2
    %p53 = por %p51, %p52
    %p54 = scmp.ne.s32.totalorder %s45, %s46
    %p55 = scmp.eq.s32.totalorder %s14, 0
    %p56 = por %p54, %p55
    %p57 = scmp.ne.s32.totalorder %s45, %s46
    %p58 = scmp.eq.s32.totalorder %s15, 2
    %p59 = por %p57, %p58
    %p61 = scmp.ne.s32.totalorder %s46, %s60
    %p62 = scmp.eq.s32.totalorder %s15, 0
    %p63 = por %p61, %p62
    %s65 = sadd.s32 %s64, 1
    %p68 = scmp.eq.s32.totalorder %s9, 2
    %p69 = scmp.ne.s32.totalorder %s64, %s66
    %p70 = scmp.eq.s32.totalorder %s9, 0
    %p71 = por %p69, %p70
    %p72 = scmp.ne.s32.totalorder %s64, %s66
    %p73 = scmp.eq.s32.totalorder %s14, 2
    %p74 = por %p72, %p73
    %p75 = scmp.ne.s32.totalorder %s66, %s67
    %p76 = scmp.eq.s32.totalorder %s14, 0
    %p77 = por %p75, %p76
    %p78 = scmp.ne.s32.totalorder %s66, %s67
    %p79 = scmp.eq.s32.totalorder %s15, 2
    %p80 = por %p78, %p79
    %p82 = scmp.ne.s32.totalorder %s67, %s81
    %p83 = scmp.eq.s32.totalorder %s15, 0
    %p84 = por %p82, %p83
    %s85 = ssub.s32 %s9, %s16
    %p86 = scmp.eq.s32.totalorder %s85, 0
    %s88 = sadd.s32 %s87, 1
    %s89 = scalar_select %p86, %s87, %s88
    %p92 = pneg %p86
    %p93 = scmp.eq.s32.totalorder %s9, 2
    %p94 = por %p92, %p93
    %p95 = scmp.ne.s32.totalorder %s87, %s90
    %p96 = scmp.eq.s32.totalorder %s9, 0
    %p97 = por %p95, %p96
    %p98 = scmp.ne.s32.totalorder %s87, %s90
    %p99 = scmp.eq.s32.totalorder %s14, 2
    %p100 = por %p98, %p99
    %p101 = scmp.ne.s32.totalorder %s90, %s91
    %p102 = scmp.eq.s32.totalorder %s14, 0
    %p103 = por %p101, %p102
    %p104 = scmp.ne.s32.totalorder %s90, %s91
    %p105 = scmp.eq.s32.totalorder %s15, 2
    %p106 = por %p104, %p105
    %p108 = scmp.ne.s32.totalorder %s91, %s107
    %p109 = scmp.eq.s32.totalorder %s15, 0
    %p110 = por %p108, %p109
    %p111 = scmp.le.s32.totalorder 1, %s9
    %p112 = scmp.lt.s32.totalorder %s9, 4
    %p113 = pnand %p111, %p112
    %p114 = pneg %p113
    // Predicated region
    $region9: #{net_forward.7} parent=5 // pred_check
      _
    $region10: #{net_forward.7} parent=5 // pred_check_branch
      %116 = sbr.rel (%p113) target = $region12
    $region11: #{net_forward.7} parent=5 // pred_region
      %s117 = ssub.s32 %s9, 1
      // Predicated region
      $region13: #{net_forward.7} parent=11 // pred_check
        %p118 = pneg %p56
      $region14: #{net_forward.7} parent=11 // pred_check_branch
        %120 = sbr.rel (%p118) target = $region16
      $region15: #{net_forward.7} parent=11 // pred_region
        _
      $region16: #{net_forward.7} parent=11 // pred_fallthru
        _
      // Predicated region
      $region17: #{net_forward.7} parent=11 // pred_check
        %p121 = pneg %p77
      $region18: #{net_forward.7} parent=11 // pred_check_branch
        %123 = sbr.rel (%p121) target = $region20
      $region19: #{net_forward.7} parent=11 // pred_region
        _
      $region20: #{net_forward.7} parent=11 // pred_fallthru
        _
    $region12: #{net_forward.7} parent=5 // pred_fallthru
      _
    %p124 = scmp.lt.s32.totalorder %s9, 3
    // Predicated region
    $region21: #{net_forward.7} parent=5 // pred_check
      %p125 = pneg %p124
    $region22: #{net_forward.7} parent=5 // pred_check_branch
      %127 = sbr.rel (%p125) target = $region24
    $region23: #{net_forward.7} parent=5 // pred_region
      // Predicated region
      $region25: #{net_forward.7} parent=23 // pred_check
        %p128 = pneg %p29
      $region26: #{net_forward.7} parent=23 // pred_check_branch
        %130 = sbr.rel (%p128) target = $region28
      $region27: #{net_forward.7} parent=23 // pred_region
        %s131 = smul.u32 48, %s9
        %p132 = scmp.lt.s32.totalorder %s131, 143
        %s133 = scalar_select %p132, %s131, 143
        %s134 = smul.addr %s133, 3
        %s135 = smul.addr %s134, 4
        %s136 = scalar_lea.vmem %s0, %s135
        %s137 = smul.u32 48, %s9
      $region28: #{net_forward.7} parent=23 // pred_fallthru
        _
    $region24: #{net_forward.7} parent=5 // pred_fallthru
      _
    %p138 = scmp.le.s32.totalorder 1, %s9
    %p139 = scmp.lt.s32.totalorder %s9, 4
    %p140 = pnand %p138, %p139
    %p141 = pneg %p140
    // Predicated region
    $region29: #{net_forward.7} parent=5 // pred_check
      _
    $region30: #{net_forward.7} parent=5 // pred_check_branch
      %143 = sbr.rel (%p140) target = $region32
    $region31: #{net_forward.7} parent=5 // pred_region
      %s144 = ssub.s32 %s9, 1
      %s145 = smul.u32 48, %s14
      %p146 = scmp.lt.s32.totalorder %s145, 143
      %s147 = scalar_select %p146, %s145, 143
      %s148 = smul.addr %s147, 3
      %s149 = smul.addr %s148, 4
      %s150 = scalar_lea.vmem %s0, %s149
      %p151 = pneg %p35
      %p152 = pneg %p32
      %p153 = pneg %p56
      %p154 = pneg %p53
      %p155 = pneg %p77
      %p156 = pneg %p74
      %p157 = pneg %p103
      %p158 = pneg %p100
      %s159 = smul.u32 48, %s14
      %p160 = scmp.lt.s32.totalorder %s159, 143
      %s161 = scalar_select %p160, %s159, 143
      %s162 = smul.addr %s161, 8
      %s163 = scalar_lea.vmem %s3, %s162
      %s164 = smul.u32 48, %s14
      %p165 = scmp.lt.s32.totalorder %s164, 143
      %s166 = scalar_select %p165, %s164, 143
      %s167 = smul.addr %s166, 3
      %s168 = smul.addr %s167, 4
      %s169 = scalar_lea.vmem %s0, %s168
      %s170 = smul.u32 48, %s14
      %s171 = smul.u32 48, %s14
      %p172 = scmp.lt.s32.totalorder %s171, 143
      %s173 = scalar_select %p172, %s171, 143
      %s174 = smul.addr %s173, 8
      %s175 = scalar_lea.vmem %s3, %s174
      %s176 = smul.u32 48, %s14
      %v178 = vld [vmem:[%s169] sm:$0xff]
      %v179 = vld [vmem:[%s169 + $0x8] sm:$0xf]
      %v180 = vld [vmem:[%s169 + $0xc] sm:$0xff]
      %v181 = vld [vmem:[%s169 + $0x14] sm:$0xf]
      %v182 = vld [vmem:[%s169 + $0x18] sm:$0xff]
      %v183 = vld [vmem:[%s169 + $0x20] sm:$0xf]
      %v184 = vld [vmem:[%s169 + $0x24] sm:$0xff]
      %v185 = vld [vmem:[%s169 + $0x2c] sm:$0xf]
      %v186 = vld [vmem:[%s169 + $0x30] sm:$0xff]
      %v187 = vld [vmem:[%s169 + $0x38] sm:$0xf]
      %v188 = vld [vmem:[%s169 + $0x3c] sm:$0xff]
      %v189 = vld [vmem:[%s169 + $0x44] sm:$0xf]
      %v190 = vld [vmem:[%s169 + $0x48] sm:$0xff]
      %v191 = vld [vmem:[%s169 + $0x50] sm:$0xf]
      %v192 = vld [vmem:[%s169 + $0x54] sm:$0xff]
      %v193 = vld [vmem:[%s169 + $0x5c] sm:$0xf]
      %v194 = vld [vmem:[%s169 + $0x60] sm:$0xff]
      %v195 = vld [vmem:[%s169 + $0x68] sm:$0xf]
      %v196 = vld [vmem:[%s169 + $0x6c] sm:$0xff]
      %v197 = vld [vmem:[%s169 + $0x74] sm:$0xf]
      %v198 = vld [vmem:[%s169 + $0x78] sm:$0xff]
      %v199 = vld [vmem:[%s169 + $0x80] sm:$0xf]
      %v200 = vld [vmem:[%s169 + $0x84] sm:$0xff]
      %v201 = vld [vmem:[%s169 + $0x8c] sm:$0xf]
      %v202 = vld [vmem:[%s169 + $0x90] sm:$0xff]
      %v203 = vld [vmem:[%s169 + $0x98] sm:$0xf]
      %v204 = vld [vmem:[%s169 + $0x9c] sm:$0xff]
      %v205 = vld [vmem:[%s169 + $0xa4] sm:$0xf]
      %v206 = vld [vmem:[%s169 + $0xa8] sm:$0xff]
      %v207 = vld [vmem:[%s169 + $0xb0] sm:$0xf]
      %v208 = vld [vmem:[%s169 + $0xb4] sm:$0xff]
      %v209 = vld [vmem:[%s169 + $0xbc] sm:$0xf]
      %v210 = vld [vmem:[%s169 + $0xc0] sm:$0xff]
      %v211 = vld [vmem:[%s169 + $0xc8] sm:$0xf]
      %v212 = vld [vmem:[%s169 + $0xcc] sm:$0xff]
      %v213 = vld [vmem:[%s169 + $0xd4] sm:$0xf]
      %v214 = vld [vmem:[%s169 + $0xd8] sm:$0xff]
      %v215 = vld [vmem:[%s169 + $0xe0] sm:$0xf]
      %v216 = vld [vmem:[%s169 + $0xe4] sm:$0xff]
      %v217 = vld [vmem:[%s169 + $0xec] sm:$0xf]
      %v218 = vld [vmem:[%s169 + $0xf0] sm:$0xff]
      %v219 = vld [vmem:[%s169 + $0xf8] sm:$0xf]
      %v220 = vld [vmem:[%s169 + $0xfc] sm:$0xff]
      %v221 = vld [vmem:[%s169 + $0x104] sm:$0xf]
      %v222 = vld [vmem:[%s169 + $0x108] sm:$0xff]
      %v223 = vld [vmem:[%s169 + $0x110] sm:$0xf]
      %v224 = vld [vmem:[%s169 + $0x114] sm:$0xff]
      %v225 = vld [vmem:[%s169 + $0x11c] sm:$0xf]
      %v226 = vld [vmem:[%s169 + $0x120] sm:$0xff]
      %v227 = vld [vmem:[%s169 + $0x128] sm:$0xf]
      %v228 = vld [vmem:[%s169 + $0x12c] sm:$0xff]
      %v229 = vld [vmem:[%s169 + $0x134] sm:$0xf]
      %v230 = vld [vmem:[%s169 + $0x138] sm:$0xff]
      %v231 = vld [vmem:[%s169 + $0x140] sm:$0xf]
      %v232 = vld [vmem:[%s169 + $0x144] sm:$0xff]
      %v233 = vld [vmem:[%s169 + $0x14c] sm:$0xf]
      %v234 = vld [vmem:[%s169 + $0x150] sm:$0xff]
      %v235 = vld [vmem:[%s169 + $0x158] sm:$0xf]
      %v236 = vld [vmem:[%s169 + $0x15c] sm:$0xff]
      %v237 = vld [vmem:[%s169 + $0x164] sm:$0xf]
      %v238 = vld [vmem:[%s169 + $0x168] sm:$0xff]
      %v239 = vld [vmem:[%s169 + $0x170] sm:$0xf]
      %v240 = vld [vmem:[%s169 + $0x174] sm:$0xff]
      %v241 = vld [vmem:[%s169 + $0x17c] sm:$0xf]
      %v242 = vld [vmem:[%s169 + $0x180] sm:$0xff]
      %v243 = vld [vmem:[%s169 + $0x188] sm:$0xf]
      %v244 = vld [vmem:[%s169 + $0x18c] sm:$0xff]
      %v245 = vld [vmem:[%s169 + $0x194] sm:$0xf]
      %v246 = vld [vmem:[%s169 + $0x198] sm:$0xff]
      %v247 = vld [vmem:[%s169 + $0x1a0] sm:$0xf]
      %v248 = vld [vmem:[%s169 + $0x1a4] sm:$0xff]
      %v249 = vld [vmem:[%s169 + $0x1ac] sm:$0xf]
      %v250 = vld [vmem:[%s169 + $0x1b0] sm:$0xff]
      %v251 = vld [vmem:[%s169 + $0x1b8] sm:$0xf]
      %v252 = vld [vmem:[%s169 + $0x1bc] sm:$0xff]
      %v253 = vld [vmem:[%s169 + $0x1c4] sm:$0xf]
      %v254 = vld [vmem:[%s169 + $0x1c8] sm:$0xff]
      %v255 = vld [vmem:[%s169 + $0x1d0] sm:$0xf]
      %v256 = vld [vmem:[%s169 + $0x1d4] sm:$0xff]
      %v257 = vld [vmem:[%s169 + $0x1dc] sm:$0xf]
      %v258 = vld [vmem:[%s169 + $0x1e0] sm:$0xff]
      %v259 = vld [vmem:[%s169 + $0x1e8] sm:$0xf]
      %v260 = vld [vmem:[%s169 + $0x1ec] sm:$0xff]
      %v261 = vld [vmem:[%s169 + $0x1f4] sm:$0xf]
      %v262 = vld [vmem:[%s169 + $0x1f8] sm:$0xff]
      %v263 = vld [vmem:[%s169 + $0x200] sm:$0xf]
      %v264 = vld [vmem:[%s169 + $0x204] sm:$0xff]
      %v265 = vld [vmem:[%s169 + $0x20c] sm:$0xf]
      %v266 = vld [vmem:[%s169 + $0x210] sm:$0xff]
      %v267 = vld [vmem:[%s169 + $0x218] sm:$0xf]
      %v268 = vld [vmem:[%s169 + $0x21c] sm:$0xff]
      %v269 = vld [vmem:[%s169 + $0x224] sm:$0xf]
      %v270 = vld [vmem:[%s169 + $0x228] sm:$0xff]
      %v271 = vld [vmem:[%s169 + $0x230] sm:$0xf]
      %v272 = vld [vmem:[%s169 + $0x234] sm:$0xff]
      %v273 = vld [vmem:[%s169 + $0x23c] sm:$0xf]
      %v274 = vld [vmem:[%s1] sm:$0xf]
      %v275 = vld [vmem:[%s1 + $0x4] sm:$0xf]
      %v276 = vld [vmem:[%s1 + $0x8] sm:$0xf]
      %v277 = vld [vmem:[%s1 + $0xc] sm:$0xf]
      %v278 = vld [vmem:[%s1 + $0x10] sm:$0xf]
      %v279 = vld [vmem:[%s1 + $0x14] sm:$0xf]
      %v280 = vld [vmem:[%s1 + $0x18] sm:$0xf]
      %v281 = vld [vmem:[%s1 + $0x1c] sm:$0xf]
      %v282 = vld [vmem:[%s1 + $0x20] sm:$0xf]
      %v283 = vld [vmem:[%s1 + $0x24] sm:$0xf]
      %v284 = vld [vmem:[%s1 + $0x28] sm:$0xf]
      %v285 = vld [vmem:[%s1 + $0x2c] sm:$0xf]
      %v286 = vld [vmem:[%s1 + $0x30] sm:$0xf]
      %v287 = vld [vmem:[%s1 + $0x34] sm:$0xf]
      %v288 = vld [vmem:[%s1 + $0x38] sm:$0xf]
      %v289 = vld [vmem:[%s1 + $0x3c] sm:$0xf]
      %v290 = vld [vmem:[%s1 + $0x40] sm:$0xf]
      %v291 = vld [vmem:[%s1 + $0x44] sm:$0xf]
      %v292 = vld [vmem:[%s1 + $0x48] sm:$0xf]
      %v293 = vld [vmem:[%s1 + $0x4c] sm:$0xf]
      %v294 = vld [vmem:[%s1 + $0x50] sm:$0xf]
      %v295 = vld [vmem:[%s1 + $0x54] sm:$0xf]
      %v296 = vld [vmem:[%s1 + $0x58] sm:$0xf]
      %v297 = vld [vmem:[%s1 + $0x5c] sm:$0xf]
      %v298 = vld [vmem:[%s1 + $0x60] sm:$0xf]
      %v299 = vld [vmem:[%s1 + $0x64] sm:$0xf]
      %v300 = vld [vmem:[%s1 + $0x68] sm:$0xf]
      %v301 = vld [vmem:[%s1 + $0x6c] sm:$0xf]
      %v302 = vld [vmem:[%s1 + $0x70] sm:$0xf]
      %v303 = vld [vmem:[%s1 + $0x74] sm:$0xf]
      %v304 = vld [vmem:[%s1 + $0x78] sm:$0xf]
      %v305 = vld [vmem:[%s1 + $0x7c] sm:$0xf]
      %v306 = vld [vmem:[%s1 + $0x80] sm:$0xf]
      %v307 = vld [vmem:[%s1 + $0x84] sm:$0xf]
      %v308 = vld [vmem:[%s1 + $0x88] sm:$0xf]
      %v309 = vld [vmem:[%s1 + $0x8c] sm:$0xf]
      %v310 = vld [vmem:[%s2] sm:$0x1]
      %v312 = vlaneseq
      %v313 = vshrl.u32 %v312, 7
      %v314 = vsub.s32 0, %v313
      %v315 = vrot.slane %v310, %v314
      %v413 = vunpack.c.l.b16 %v178
      %v414 = vunpack.c.h.b16 %v178
      %v415 = vunpack.c.l.b16 %v179
      %v416 = vunpack.c.l.b16 %v180
      %v417 = vunpack.c.h.b16 %v180
      %v418 = vunpack.c.l.b16 %v181
      %v419 = vunpack.c.l.b16 %v182
      %v420 = vunpack.c.h.b16 %v182
      %v421 = vunpack.c.l.b16 %v183
      %v422 = vunpack.c.l.b16 %v184
      %v423 = vunpack.c.h.b16 %v184
      %v424 = vunpack.c.l.b16 %v185
      %v425 = vunpack.c.l.b16 %v186
      %v426 = vunpack.c.h.b16 %v186
      %v427 = vunpack.c.l.b16 %v187
      %v428 = vunpack.c.l.b16 %v188
      %v429 = vunpack.c.h.b16 %v188
      %v430 = vunpack.c.l.b16 %v189
      %v431 = vunpack.c.l.b16 %v190
      %v432 = vunpack.c.h.b16 %v190
      %v433 = vunpack.c.l.b16 %v191
      %v434 = vunpack.c.l.b16 %v192
      %v435 = vunpack.c.h.b16 %v192
      %v436 = vunpack.c.l.b16 %v193
      %v437 = vunpack.c.l.b16 %v194
      %v438 = vunpack.c.h.b16 %v194
      %v439 = vunpack.c.l.b16 %v195
      %v440 = vunpack.c.l.b16 %v196
      %v441 = vunpack.c.h.b16 %v196
      %v442 = vunpack.c.l.b16 %v197
      %v443 = vunpack.c.l.b16 %v198
      %v444 = vunpack.c.h.b16 %v198
      %v445 = vunpack.c.l.b16 %v199
      %v446 = vunpack.c.l.b16 %v200
      %v447 = vunpack.c.h.b16 %v200
      %v448 = vunpack.c.l.b16 %v201
      %v449 = vunpack.c.l.b16 %v202
      %v450 = vunpack.c.h.b16 %v202
      %v451 = vunpack.c.l.b16 %v203
      %v452 = vunpack.c.l.b16 %v204
      %v453 = vunpack.c.h.b16 %v204
      %v454 = vunpack.c.l.b16 %v205
      %v455 = vunpack.c.l.b16 %v206
      %v456 = vunpack.c.h.b16 %v206
      %v457 = vunpack.c.l.b16 %v207
      %v458 = vunpack.c.l.b16 %v208
      %v459 = vunpack.c.h.b16 %v208
      %v460 = vunpack.c.l.b16 %v209
      %v461 = vunpack.c.l.b16 %v210
      %v462 = vunpack.c.h.b16 %v210
      %v463 = vunpack.c.l.b16 %v211
      %v464 = vunpack.c.l.b16 %v212
      %v465 = vunpack.c.h.b16 %v212
      %v466 = vunpack.c.l.b16 %v213
      %v467 = vunpack.c.l.b16 %v214
      %v468 = vunpack.c.h.b16 %v214
      %v469 = vunpack.c.l.b16 %v215
      %v470 = vunpack.c.l.b16 %v216
      %v471 = vunpack.c.h.b16 %v216
      %v472 = vunpack.c.l.b16 %v217
      %v473 = vunpack.c.l.b16 %v218
      %v474 = vunpack.c.h.b16 %v218
      %v475 = vunpack.c.l.b16 %v219
      %v476 = vunpack.c.l.b16 %v220
      %v477 = vunpack.c.h.b16 %v220
      %v478 = vunpack.c.l.b16 %v221
      %v479 = vunpack.c.l.b16 %v222
      %v480 = vunpack.c.h.b16 %v222
      %v481 = vunpack.c.l.b16 %v223
      %v482 = vunpack.c.l.b16 %v224
      %v483 = vunpack.c.h.b16 %v224
      %v484 = vunpack.c.l.b16 %v225
      %v485 = vunpack.c.l.b16 %v226
      %v486 = vunpack.c.h.b16 %v226
      %v487 = vunpack.c.l.b16 %v227
      %v488 = vunpack.c.l.b16 %v228
      %v489 = vunpack.c.h.b16 %v228
      %v490 = vunpack.c.l.b16 %v229
      %v491 = vunpack.c.l.b16 %v230
      %v492 = vunpack.c.h.b16 %v230
      %v493 = vunpack.c.l.b16 %v231
      %v494 = vunpack.c.l.b16 %v232
      %v495 = vunpack.c.h.b16 %v232
      %v496 = vunpack.c.l.b16 %v233
      %v497 = vunpack.c.l.b16 %v234
      %v498 = vunpack.c.h.b16 %v234
      %v499 = vunpack.c.l.b16 %v235
      %v500 = vunpack.c.l.b16 %v236
      %v501 = vunpack.c.h.b16 %v236
      %v502 = vunpack.c.l.b16 %v237
      %v503 = vunpack.c.l.b16 %v238
      %v504 = vunpack.c.h.b16 %v238
      %v505 = vunpack.c.l.b16 %v239
      %v506 = vunpack.c.l.b16 %v240
      %v507 = vunpack.c.h.b16 %v240
      %v508 = vunpack.c.l.b16 %v241
      %v509 = vunpack.c.l.b16 %v242
      %v510 = vunpack.c.h.b16 %v242
      %v511 = vunpack.c.l.b16 %v243
      %v512 = vunpack.c.l.b16 %v244
      %v513 = vunpack.c.h.b16 %v244
      %v514 = vunpack.c.l.b16 %v245
      %v515 = vunpack.c.l.b16 %v246
      %v516 = vunpack.c.h.b16 %v246
      %v517 = vunpack.c.l.b16 %v247
      %v518 = vunpack.c.l.b16 %v248
      %v519 = vunpack.c.h.b16 %v248
      %v520 = vunpack.c.l.b16 %v249
      %v521 = vunpack.c.l.b16 %v250
      %v522 = vunpack.c.h.b16 %v250
      %v523 = vunpack.c.l.b16 %v251
      %v524 = vunpack.c.l.b16 %v252
      %v525 = vunpack.c.h.b16 %v252
      %v526 = vunpack.c.l.b16 %v253
      %v527 = vunpack.c.l.b16 %v254
      %v528 = vunpack.c.h.b16 %v254
      %v529 = vunpack.c.l.b16 %v255
      %v530 = vunpack.c.l.b16 %v256
      %v531 = vunpack.c.h.b16 %v256
      %v532 = vunpack.c.l.b16 %v257
      %v533 = vunpack.c.l.b16 %v258
      %v534 = vunpack.c.h.b16 %v258
      %v535 = vunpack.c.l.b16 %v259
      %v536 = vunpack.c.l.b16 %v260
      %v537 = vunpack.c.h.b16 %v260
      %v538 = vunpack.c.l.b16 %v261
      %v539 = vunpack.c.l.b16 %v262
      %v540 = vunpack.c.h.b16 %v262
      %v541 = vunpack.c.l.b16 %v263
      %v542 = vunpack.c.l.b16 %v264
      %v543 = vunpack.c.h.b16 %v264
      %v544 = vunpack.c.l.b16 %v265
      %v545 = vunpack.c.l.b16 %v266
      %v546 = vunpack.c.h.b16 %v266
      %v547 = vunpack.c.l.b16 %v267
      %v548 = vunpack.c.l.b16 %v268
      %v549 = vunpack.c.h.b16 %v268
      %v550 = vunpack.c.l.b16 %v269
      %v551 = vunpack.c.l.b16 %v270
      %v552 = vunpack.c.h.b16 %v270
      %v553 = vunpack.c.l.b16 %v271
      %v554 = vunpack.c.l.b16 %v272
      %v555 = vunpack.c.h.b16 %v272
      %v556 = vunpack.c.l.b16 %v273
      %v557 = vpack.c.b16 %v416, %v413
      %v558 = vpack.c.b16 %v417, %v414
      %v559 = vpack.c.b16 %v418, %v415
      %v560 = vpack.c.b16 %v422, %v419
      %v561 = vpack.c.b16 %v423, %v420
      %v562 = vpack.c.b16 %v424, %v421
      %v563 = vpack.c.b16 %v428, %v425
      %v564 = vpack.c.b16 %v429, %v426
      %v565 = vpack.c.b16 %v430, %v427
      %v566 = vpack.c.b16 %v434, %v431
      %v567 = vpack.c.b16 %v435, %v432
      %v568 = vpack.c.b16 %v436, %v433
      %v569 = vpack.c.b16 %v440, %v437
      %v570 = vpack.c.b16 %v441, %v438
      %v571 = vpack.c.b16 %v442, %v439
      %v572 = vpack.c.b16 %v446, %v443
      %v573 = vpack.c.b16 %v447, %v444
      %v574 = vpack.c.b16 %v448, %v445
      %v575 = vpack.c.b16 %v452, %v449
      %v576 = vpack.c.b16 %v453, %v450
      %v577 = vpack.c.b16 %v454, %v451
      %v578 = vpack.c.b16 %v458, %v455
      %v579 = vpack.c.b16 %v459, %v456
      %v580 = vpack.c.b16 %v460, %v457
      %v581 = vpack.c.b16 %v464, %v461
      %v582 = vpack.c.b16 %v465, %v462
      %v583 = vpack.c.b16 %v466, %v463
      %v584 = vpack.c.b16 %v470, %v467
      %v585 = vpack.c.b16 %v471, %v468
      %v586 = vpack.c.b16 %v472, %v469
      %v587 = vpack.c.b16 %v476, %v473
      %v588 = vpack.c.b16 %v477, %v474
      %v589 = vpack.c.b16 %v478, %v475
      %v590 = vpack.c.b16 %v482, %v479
      %v591 = vpack.c.b16 %v483, %v480
      %v592 = vpack.c.b16 %v484, %v481
      %v593 = vpack.c.b16 %v488, %v485
      %v594 = vpack.c.b16 %v489, %v486
      %v595 = vpack.c.b16 %v490, %v487
      %v596 = vpack.c.b16 %v494, %v491
      %v597 = vpack.c.b16 %v495, %v492
      %v598 = vpack.c.b16 %v496, %v493
      %v599 = vpack.c.b16 %v500, %v497
      %v600 = vpack.c.b16 %v501, %v498
      %v601 = vpack.c.b16 %v502, %v499
      %v602 = vpack.c.b16 %v506, %v503
      %v603 = vpack.c.b16 %v507, %v504
      %v604 = vpack.c.b16 %v508, %v505
      %v605 = vpack.c.b16 %v512, %v509
      %v606 = vpack.c.b16 %v513, %v510
      %v607 = vpack.c.b16 %v514, %v511
      %v608 = vpack.c.b16 %v518, %v515
      %v609 = vpack.c.b16 %v519, %v516
      %v610 = vpack.c.b16 %v520, %v517
      %v611 = vpack.c.b16 %v524, %v521
      %v612 = vpack.c.b16 %v525, %v522
      %v613 = vpack.c.b16 %v526, %v523
      %v614 = vpack.c.b16 %v530, %v527
      %v615 = vpack.c.b16 %v531, %v528
      %v616 = vpack.c.b16 %v532, %v529
      %v617 = vpack.c.b16 %v536, %v533
      %v618 = vpack.c.b16 %v537, %v534
      %v619 = vpack.c.b16 %v538, %v535
      %v620 = vpack.c.b16 %v542, %v539
      %v621 = vpack.c.b16 %v543, %v540
      %v622 = vpack.c.b16 %v544, %v541
      %v623 = vpack.c.b16 %v548, %v545
      %v624 = vpack.c.b16 %v549, %v546
      %v625 = vpack.c.b16 %v550, %v547
      %v626 = vpack.c.b16 %v554, %v551
      %v627 = vpack.c.b16 %v555, %v552
      %v628 = vpack.c.b16 %v556, %v553
      %v713 = vunpack.c.l.b16 %v274
      %v714 = vunpack.c.l.b16 %v275
      %v715 = vunpack.c.l.b16 %v276
      %v716 = vunpack.c.l.b16 %v277
      %v717 = vunpack.c.l.b16 %v278
      %v718 = vunpack.c.l.b16 %v279
      %v719 = vunpack.c.l.b16 %v280
      %v720 = vunpack.c.l.b16 %v281
      %v721 = vunpack.c.l.b16 %v282
      %v722 = vunpack.c.l.b16 %v283
      %v723 = vunpack.c.l.b16 %v284
      %v724 = vunpack.c.l.b16 %v285
      %v725 = vunpack.c.l.b16 %v286
      %v726 = vunpack.c.l.b16 %v287
      %v727 = vunpack.c.l.b16 %v288
      %v728 = vunpack.c.l.b16 %v289
      %v729 = vunpack.c.l.b16 %v290
      %v730 = vunpack.c.l.b16 %v291
      %v731 = vunpack.c.l.b16 %v292
      %v732 = vunpack.c.l.b16 %v293
      %v733 = vunpack.c.l.b16 %v294
      %v734 = vunpack.c.l.b16 %v295
      %v735 = vunpack.c.l.b16 %v296
      %v736 = vunpack.c.l.b16 %v297
      %v737 = vunpack.c.l.b16 %v298
      %v738 = vunpack.c.l.b16 %v299
      %v739 = vunpack.c.l.b16 %v300
      %v740 = vunpack.c.l.b16 %v301
      %v741 = vunpack.c.l.b16 %v302
      %v742 = vunpack.c.l.b16 %v303
      %v743 = vunpack.c.l.b16 %v304
      %v744 = vunpack.c.l.b16 %v305
      %v745 = vunpack.c.l.b16 %v306
      %v746 = vunpack.c.l.b16 %v307
      %v747 = vunpack.c.l.b16 %v308
      %v748 = vunpack.c.l.b16 %v309
      %v749 = vpack.c.b16 %v714, %v713
      %v750 = vpack.c.b16 %v716, %v715
      %v751 = vpack.c.b16 %v718, %v717
      %v752 = vpack.c.b16 %v720, %v719
      %v753 = vpack.c.b16 %v722, %v721
      %v754 = vpack.c.b16 %v724, %v723
      %v755 = vpack.c.b16 %v726, %v725
      %v756 = vpack.c.b16 %v728, %v727
      %v757 = vpack.c.b16 %v730, %v729
      %v758 = vpack.c.b16 %v732, %v731
      %v759 = vpack.c.b16 %v734, %v733
      %v760 = vpack.c.b16 %v736, %v735
      %v761 = vpack.c.b16 %v738, %v737
      %v762 = vpack.c.b16 %v740, %v739
      %v763 = vpack.c.b16 %v742, %v741
      %v764 = vpack.c.b16 %v744, %v743
      %v765 = vpack.c.b16 %v746, %v745
      %v766 = vpack.c.b16 %v748, %v747
      %vm785 = vcmask 261120
      %v787 = vsel %vm785, %v559, 0
      %v790 = vsel %vm785, %v562, 0
      %v793 = vsel %vm785, %v565, 0
      %v796 = vsel %vm785, %v568, 0
      %v799 = vsel %vm785, %v571, 0
      %v802 = vsel %vm785, %v574, 0
      %v805 = vsel %vm785, %v577, 0
      %v808 = vsel %vm785, %v580, 0
      %v811 = vsel %vm785, %v583, 0
      %v814 = vsel %vm785, %v586, 0
      %v817 = vsel %vm785, %v589, 0
      %v820 = vsel %vm785, %v592, 0
      %v823 = vsel %vm785, %v595, 0
      %v826 = vsel %vm785, %v598, 0
      %v829 = vsel %vm785, %v601, 0
      %v832 = vsel %vm785, %v604, 0
      %v835 = vsel %vm785, %v607, 0
      %v838 = vsel %vm785, %v610, 0
      %v841 = vsel %vm785, %v613, 0
      %v844 = vsel %vm785, %v616, 0
      %v847 = vsel %vm785, %v619, 0
      %v850 = vsel %vm785, %v622, 0
      %v853 = vsel %vm785, %v625, 0
      %v856 = vsel %vm785, %v628, 0
      %858 = vmatprep.subr.bf16.mxu0 0
      %859 = vmatpush1.bf16.msra.mxu0 %v749
      %860 = vmatprep.subr.bf16.mxu0 0
      %861 = vmatpush1.bf16.msra.mxu0 %v750
      %862 = vmatprep.subr.bf16.mxu0 0
      %863 = vmatpush1.bf16.msra.mxu0 %v751
      %864 = vmatprep.subr.bf16.mxu0 0
      %865 = vmatpush1.bf16.msra.mxu0 %v752
      %866 = vmatprep.subr.bf16.mxu0 0
      %867 = vmatpush1.bf16.msra.mxu0 %v753
      %868 = vmatprep.subr.bf16.mxu0 0
      %869 = vmatpush1.bf16.msra.mxu0 %v754
      %870 = vmatprep.subr.bf16.mxu0 0
      %871 = vmatpush1.bf16.msra.mxu0 %v755
      %872 = vmatprep.subr.bf16.mxu0 0
      %873 = vmatpush1.bf16.msra.mxu0 %v756
      %874 = vmatprep.subr.bf16.mxu0 0
      %875 = vmatpush1.bf16.msra.mxu0 %v757
      %876 = vmatprep.subr.bf16.mxu0 0
      %877 = vmatpush1.bf16.msra.mxu0 %v758
      %878 = vmatprep.subr.bf16.mxu0 0
      %879 = vmatpush1.bf16.msra.mxu0 %v759
      %880 = vmatprep.subr.bf16.mxu0 0
      %881 = vmatpush1.bf16.msra.mxu0 %v760
      %882 = vmatprep.subr.bf16.mxu0 0
      %883 = vmatpush1.bf16.msra.mxu0 %v761
      %884 = vmatprep.subr.bf16.mxu0 0
      %885 = vmatpush1.bf16.msra.mxu0 %v762
      %886 = vmatprep.subr.bf16.mxu0 0
      %887 = vmatpush1.bf16.msra.mxu0 %v763
      %888 = vmatprep.subr.bf16.mxu0 0
      %889 = vmatpush1.bf16.msra.mxu0 %v764
      %890 = vmatprep.mubr.bf16.mxu0 %v558
      %891 = vmatmul.mubr.bf16.gmra.mrb[0].mxu0 %v557
      %v892 = vpop.f32.mrb[0].mxu0
      %v893 = vadd.f32 %v315, %v892
      %v894 = vpop.f32.mrb[0].mxu0
      %v895 = vpop.f32.mrb[0].mxu0
      %v896 = vadd.f32 %v315, %v895
      %v897 = vpop.f32.mrb[0].mxu0
      %898 = vmatprep.mubr.bf16.mxu0 %v561
      %899 = vmatmul.mubr.bf16.gmra.mrb[0].mxu0 %v560
      %v900 = vpop.f32.mrb[0].mxu0
      %v901 = vadd.f32 %v315, %v900
      %v902 = vpop.f32.mrb[0].mxu0
      %v903 = vpop.f32.mrb[0].mxu0
      %v904 = vadd.f32 %v315, %v903
      %v905 = vpop.f32.mrb[0].mxu0
      %906 = vmatprep.mubr.bf16.mxu0 %v564
      %907 = vmatmul.mubr.bf16.gmra.mrb[0].mxu0 %v563
      %v908 = vpop.f32.mrb[0].mxu0
      %v909 = vadd.f32 %v315, %v908
      %v910 = vpop.f32.mrb[0].mxu0
      %v911 = vpop.f32.mrb[0].mxu0
      %v912 = vadd.f32 %v315, %v911
      %v913 = vpop.f32.mrb[0].mxu0
      %914 = vmatprep.mubr.bf16.mxu0 %v567
      %915 = vmatmul.mubr.bf16.gmra.mrb[0].mxu0 %v566
      %v916 = vpop.f32.mrb[0].mxu0
      %v917 = vadd.f32 %v315, %v916
      %v918 = vpop.f32.mrb[0].mxu0
      %v919 = vpop.f32.mrb[0].mxu0
      %v920 = vadd.f32 %v315, %v919
      %v921 = vpop.f32.mrb[0].mxu0
      %922 = vmatprep.mubr.bf16.mxu0 %v570
      %923 = vmatmul.mubr.bf16.gmra.mrb[0].mxu0 %v569
      %v924 = vpop.f32.mrb[0].mxu0
      %v925 = vadd.f32 %v315, %v924
      %v926 = vpop.f32.mrb[0].mxu0
      %v927 = vpop.f32.mrb[0].mxu0
      %v928 = vadd.f32 %v315, %v927
      %v929 = vpop.f32.mrb[0].mxu0
      %930 = vmatprep.mubr.bf16.mxu0 %v573
      %931 = vmatmul.mubr.bf16.gmra.mrb[0].mxu0 %v572
      %v932 = vpop.f32.mrb[0].mxu0
      %v933 = vadd.f32 %v315, %v932
      %v934 = vpop.f32.mrb[0].mxu0
      %v935 = vpop.f32.mrb[0].mxu0
      %v936 = vadd.f32 %v315, %v935
      %v937 = vpop.f32.mrb[0].mxu0
      %938 = vmatprep.mubr.bf16.mxu0 %v576
      %939 = vmatmul.mubr.bf16.gmra.mrb[0].mxu0 %v575
      %v940 = vpop.f32.mrb[0].mxu0
      %v941 = vadd.f32 %v315, %v940
      %v942 = vpop.f32.mrb[0].mxu0
      %v943 = vpop.f32.mrb[0].mxu0
      %v944 = vadd.f32 %v315, %v943
      %v945 = vpop.f32.mrb[0].mxu0
      %946 = vmatprep.mubr.bf16.mxu0 %v579
      %947 = vmatmul.mubr.bf16.gmra.mrb[0].mxu0 %v578
      %v948 = vpop.f32.mrb[0].mxu0
      %v949 = vadd.f32 %v315, %v948
      %v950 = vpop.f32.mrb[0].mxu0
      %v951 = vpop.f32.mrb[0].mxu0
      %v952 = vadd.f32 %v315, %v951
      %v953 = vpop.f32.mrb[0].mxu0
      %954 = vmatprep.mubr.bf16.mxu0 %v582
      %955 = vmatmul.mubr.bf16.gmra.mrb[0].mxu0 %v581
      %v956 = vpop.f32.mrb[0].mxu0
      %v957 = vadd.f32 %v315, %v956
      %v958 = vpop.f32.mrb[0].mxu0
      %v959 = vpop.f32.mrb[0].mxu0
      %v960 = vadd.f32 %v315, %v959
      %v961 = vpop.f32.mrb[0].mxu0
      %962 = vmatprep.mubr.bf16.mxu0 %v585
      %963 = vmatmul.mubr.bf16.gmra.mrb[0].mxu0 %v584
      %v964 = vpop.f32.mrb[0].mxu0
      %v965 = vadd.f32 %v315, %v964
      %v966 = vpop.f32.mrb[0].mxu0
      %v967 = vpop.f32.mrb[0].mxu0
      %v968 = vadd.f32 %v315, %v967
      %v969 = vpop.f32.mrb[0].mxu0
      %970 = vmatprep.mubr.bf16.mxu0 %v588
      %971 = vmatmul.mubr.bf16.gmra.mrb[0].mxu0 %v587
      %v972 = vpop.f32.mrb[0].mxu0
      %v973 = vadd.f32 %v315, %v972
      %v974 = vpop.f32.mrb[0].mxu0
      %v975 = vpop.f32.mrb[0].mxu0
      %v976 = vadd.f32 %v315, %v975
      %v977 = vpop.f32.mrb[0].mxu0
      %978 = vmatprep.mubr.bf16.mxu0 %v591
      %979 = vmatmul.mubr.bf16.gmra.mrb[0].mxu0 %v590
      %v980 = vpop.f32.mrb[0].mxu0
      %v981 = vadd.f32 %v315, %v980
      %v982 = vpop.f32.mrb[0].mxu0
      %v983 = vpop.f32.mrb[0].mxu0
      %v984 = vadd.f32 %v315, %v983
      %v985 = vpop.f32.mrb[0].mxu0
      %986 = vmatprep.mubr.bf16.mxu0 %v594
      %987 = vmatmul.mubr.bf16.gmra.mrb[0].mxu0 %v593
      %v988 = vpop.f32.mrb[0].mxu0
      %v989 = vadd.f32 %v315, %v988
      %v990 = vpop.f32.mrb[0].mxu0
      %v991 = vpop.f32.mrb[0].mxu0
      %v992 = vadd.f32 %v315, %v991
      %v993 = vpop.f32.mrb[0].mxu0
      %994 = vmatprep.mubr.bf16.mxu0 %v597
      %995 = vmatmul.mubr.bf16.gmra.mrb[0].mxu0 %v596
      %v996 = vpop.f32.mrb[0].mxu0
      %v997 = vadd.f32 %v315, %v996
      %v998 = vpop.f32.mrb[0].mxu0
      %v999 = vpop.f32.mrb[0].mxu0
      %v1000 = vadd.f32 %v315, %v999
      %v1001 = vpop.f32.mrb[0].mxu0
      %1002 = vmatprep.mubr.bf16.mxu0 %v600
      %1003 = vmatmul.mubr.bf16.gmra.mrb[0].mxu0 %v599
      %v1004 = vpop.f32.mrb[0].mxu0
      %v1005 = vadd.f32 %v315, %v1004
      %v1006 = vpop.f32.mrb[0].mxu0
      %v1007 = vpop.f32.mrb[0].mxu0
      %v1008 = vadd.f32 %v315, %v1007
      %v1009 = vpop.f32.mrb[0].mxu0
      %1010 = vmatprep.mubr.bf16.mxu0 %v603
      %1011 = vmatmul.mubr.bf16.gmra.mrb[0].mxu0 %v602
      %v1012 = vpop.f32.mrb[0].mxu0
      %v1013 = vadd.f32 %v315, %v1012
      %v1014 = vpop.f32.mrb[0].mxu0
      %v1015 = vpop.f32.mrb[0].mxu0
      %v1016 = vadd.f32 %v315, %v1015
      %v1017 = vpop.f32.mrb[0].mxu0
      %1018 = vmatprep.mubr.bf16.mxu0 %v606
      %1019 = vmatmul.mubr.bf16.gmra.mrb[0].mxu0 %v605
      %v1020 = vpop.f32.mrb[0].mxu0
      %v1021 = vadd.f32 %v315, %v1020
      %v1022 = vpop.f32.mrb[0].mxu0
      %v1023 = vpop.f32.mrb[0].mxu0
      %v1024 = vadd.f32 %v315, %v1023
      %v1025 = vpop.f32.mrb[0].mxu0
      %1026 = vmatprep.mubr.bf16.mxu0 %v609
      %1027 = vmatmul.mubr.bf16.gmra.mrb[0].mxu0 %v608
      %v1028 = vpop.f32.mrb[0].mxu0
      %v1029 = vadd.f32 %v315, %v1028
      %v1030 = vpop.f32.mrb[0].mxu0
      %v1031 = vpop.f32.mrb[0].mxu0
      %v1032 = vadd.f32 %v315, %v1031
      %v1033 = vpop.f32.mrb[0].mxu0
      %1034 = vmatprep.mubr.bf16.mxu0 %v612
      %1035 = vmatmul.mubr.bf16.gmra.mrb[0].mxu0 %v611
      %v1036 = vpop.f32.mrb[0].mxu0
      %v1037 = vadd.f32 %v315, %v1036
      %v1038 = vpop.f32.mrb[0].mxu0
      %v1039 = vpop.f32.mrb[0].mxu0
      %v1040 = vadd.f32 %v315, %v1039
      %v1041 = vpop.f32.mrb[0].mxu0
      %1042 = vmatprep.mubr.bf16.mxu0 %v615
      %1043 = vmatmul.mubr.bf16.gmra.mrb[0].mxu0 %v614
      %v1044 = vpop.f32.mrb[0].mxu0
      %v1045 = vadd.f32 %v315, %v1044
      %v1046 = vpop.f32.mrb[0].mxu0
      %v1047 = vpop.f32.mrb[0].mxu0
      %v1048 = vadd.f32 %v315, %v1047
      %v1049 = vpop.f32.mrb[0].mxu0
      %1050 = vmatprep.mubr.bf16.mxu0 %v618
      %1051 = vmatmul.mubr.bf16.gmra.mrb[0].mxu0 %v617
      %v1052 = vpop.f32.mrb[0].mxu0
      %v1053 = vadd.f32 %v315, %v1052
      %v1054 = vpop.f32.mrb[0].mxu0
      %v1055 = vpop.f32.mrb[0].mxu0
      %v1056 = vadd.f32 %v315, %v1055
      %v1057 = vpop.f32.mrb[0].mxu0
      %1058 = vmatprep.mubr.bf16.mxu0 %v621
      %1059 = vmatmul.mubr.bf16.gmra.mrb[0].mxu0 %v620
      %v1060 = vpop.f32.mrb[0].mxu0
      %v1061 = vadd.f32 %v315, %v1060
      %v1062 = vpop.f32.mrb[0].mxu0
      %v1063 = vpop.f32.mrb[0].mxu0
      %v1064 = vadd.f32 %v315, %v1063
      %v1065 = vpop.f32.mrb[0].mxu0
      %1066 = vmatprep.mubr.bf16.mxu0 %v624
      %1067 = vmatmul.mubr.bf16.gmra.mrb[0].mxu0 %v623
      %v1068 = vpop.f32.mrb[0].mxu0
      %v1069 = vadd.f32 %v315, %v1068
      %v1070 = vpop.f32.mrb[0].mxu0
      %v1071 = vpop.f32.mrb[0].mxu0
      %v1072 = vadd.f32 %v315, %v1071
      %v1073 = vpop.f32.mrb[0].mxu0
      %1074 = vmatprep.mubr.bf16.mxu0 %v627
      %1075 = vmatmul.mubr.bf16.gmra.mrb[0].mxu0 %v626
      %v1076 = vpop.f32.mrb[0].mxu0
      %v1077 = vadd.f32 %v315, %v1076
      %v1078 = vpop.f32.mrb[0].mxu0
      %v1079 = vpop.f32.mrb[0].mxu0
      %v1080 = vadd.f32 %v315, %v1079
      %v1081 = vpop.f32.mrb[0].mxu0
      %1082 = vdwg.mxu0
      %1083 = vmatprep.subr.bf16.mxu0 0
      %1084 = vmatpush1.bf16.msra.mxu0 %v765
      %1085 = vmatprep.subr.bf16.mxu0 0
      %1086 = vmatpush1.bf16.msra.mxu0 %v766
      %1087 = vmatprep.subr.bf16.mxu0 0
      %1088 = vmatpush1.bf16.msra.mxu0 0
      %1089 = vmatprep.subr.bf16.mxu0 0
      %1090 = vmatpush1.bf16.msra.mxu0 0
      %1091 = vmatprep.subr.bf16.mxu0 0
      %1092 = vmatpush1.bf16.msra.mxu0 0
      %1093 = vmatprep.subr.bf16.mxu0 0
      %1094 = vmatpush1.bf16.msra.mxu0 0
      %1095 = vmatprep.subr.bf16.mxu0 0
      %1096 = vmatpush1.bf16.msra.mxu0 0
      %1097 = vmatprep.subr.bf16.mxu0 0
      %1098 = vmatpush1.bf16.msra.mxu0 0
      %1099 = vmatprep.subr.bf16.mxu0 0
      %1100 = vmatpush1.bf16.msra.mxu0 0
      %1101 = vmatprep.subr.bf16.mxu0 0
      %1102 = vmatpush1.bf16.msra.mxu0 0
      %1103 = vmatprep.subr.bf16.mxu0 0
      %1104 = vmatpush1.bf16.msra.mxu0 0
      %1105 = vmatprep.subr.bf16.mxu0 0
      %1106 = vmatpush1.bf16.msra.mxu0 0
      %1107 = vmatprep.subr.bf16.mxu0 0
      %1108 = vmatpush1.bf16.msra.mxu0 0
      %1109 = vmatprep.subr.bf16.mxu0 0
      %1110 = vmatpush1.bf16.msra.mxu0 0
      %1111 = vmatprep.subr.bf16.mxu0 0
      %1112 = vmatpush1.bf16.msra.mxu0 0
      %1113 = vmatprep.subr.bf16.mxu0 0
      %1114 = vmatpush1.bf16.msra.mxu0 0
      %1115 = vmatprep.mubr.bf16.mxu0 0
      %1116 = vmatmul.mubr.bf16.gmra.mrb[0].mxu0 %v787
      %v1117 = vpop.f32.mrb[0].mxu0
      %v1118 = vadd.f32 %v893, %v1117
      %v1119 = vpop.f32.mrb[0].mxu0
      %v1120 = vpop.f32.mrb[0].mxu0
      %v1121 = vadd.f32 %v896, %v1120
      %v1122 = vpop.f32.mrb[0].mxu0
      %1123 = vmatprep.mubr.bf16.mxu0 0
      %1124 = vmatmul.mubr.bf16.gmra.mrb[0].mxu0 %v790
      %v1125 = vpop.f32.mrb[0].mxu0
      %v1126 = vadd.f32 %v901, %v1125
      %v1127 = vpop.f32.mrb[0].mxu0
      %v1128 = vpop.f32.mrb[0].mxu0
      %v1129 = vadd.f32 %v904, %v1128
      %v1130 = vpop.f32.mrb[0].mxu0
      %1131 = vmatprep.mubr.bf16.mxu0 0
      %1132 = vmatmul.mubr.bf16.gmra.mrb[0].mxu0 %v793
      %v1133 = vpop.f32.mrb[0].mxu0
      %v1134 = vadd.f32 %v909, %v1133
      %v1135 = vpop.f32.mrb[0].mxu0
      %v1136 = vpop.f32.mrb[0].mxu0
      %v1137 = vadd.f32 %v912, %v1136
      %v1138 = vpop.f32.mrb[0].mxu0
      %1139 = vmatprep.mubr.bf16.mxu0 0
      %1140 = vmatmul.mubr.bf16.gmra.mrb[0].mxu0 %v796
      %v1141 = vpop.f32.mrb[0].mxu0
      %v1142 = vadd.f32 %v917, %v1141
      %v1143 = vpop.f32.mrb[0].mxu0
      %v1144 = vpop.f32.mrb[0].mxu0
      %v1145 = vadd.f32 %v920, %v1144
      %v1146 = vpop.f32.mrb[0].mxu0
      %1147 = vmatprep.mubr.bf16.mxu0 0
      %1148 = vmatmul.mubr.bf16.gmra.mrb[0].mxu0 %v799
      %v1149 = vpop.f32.mrb[0].mxu0
      %v1150 = vadd.f32 %v925, %v1149
      %v1151 = vpop.f32.mrb[0].mxu0
      %v1152 = vpop.f32.mrb[0].mxu0
      %v1153 = vadd.f32 %v928, %v1152
      %v1154 = vpop.f32.mrb[0].mxu0
      %1155 = vmatprep.mubr.bf16.mxu0 0
      %1156 = vmatmul.mubr.bf16.gmra.mrb[0].mxu0 %v802
      %v1157 = vpop.f32.mrb[0].mxu0
      %v1158 = vadd.f32 %v933, %v1157
      %v1159 = vpop.f32.mrb[0].mxu0
      %v1160 = vpop.f32.mrb[0].mxu0
      %v1161 = vadd.f32 %v936, %v1160
      %v1162 = vpop.f32.mrb[0].mxu0
      %1163 = vmatprep.mubr.bf16.mxu0 0
      %1164 = vmatmul.mubr.bf16.gmra.mrb[0].mxu0 %v805
      %v1165 = vpop.f32.mrb[0].mxu0
      %v1166 = vadd.f32 %v941, %v1165
      %v1167 = vpop.f32.mrb[0].mxu0
      %v1168 = vpop.f32.mrb[0].mxu0
      %v1169 = vadd.f32 %v944, %v1168
      %v1170 = vpop.f32.mrb[0].mxu0
      %1171 = vmatprep.mubr.bf16.mxu0 0
      %1172 = vmatmul.mubr.bf16.gmra.mrb[0].mxu0 %v808
      %v1173 = vpop.f32.mrb[0].mxu0
      %v1174 = vadd.f32 %v949, %v1173
      %v1175 = vpop.f32.mrb[0].mxu0
      %v1176 = vpop.f32.mrb[0].mxu0
      %v1177 = vadd.f32 %v952, %v1176
      %v1178 = vpop.f32.mrb[0].mxu0
      %1179 = vmatprep.mubr.bf16.mxu0 0
      %1180 = vmatmul.mubr.bf16.gmra.mrb[0].mxu0 %v811
      %v1181 = vpop.f32.mrb[0].mxu0
      %v1182 = vadd.f32 %v957, %v1181
      %v1183 = vpop.f32.mrb[0].mxu0
      %v1184 = vpop.f32.mrb[0].mxu0
      %v1185 = vadd.f32 %v960, %v1184
      %v1186 = vpop.f32.mrb[0].mxu0
      %1187 = vmatprep.mubr.bf16.mxu0 0
      %1188 = vmatmul.mubr.bf16.gmra.mrb[0].mxu0 %v814
      %v1189 = vpop.f32.mrb[0].mxu0
      %v1190 = vadd.f32 %v965, %v1189
      %v1191 = vpop.f32.mrb[0].mxu0
      %v1192 = vpop.f32.mrb[0].mxu0
      %v1193 = vadd.f32 %v968, %v1192
      %v1194 = vpop.f32.mrb[0].mxu0
      %1195 = vmatprep.mubr.bf16.mxu0 0
      %1196 = vmatmul.mubr.bf16.gmra.mrb[0].mxu0 %v817
      %v1197 = vpop.f32.mrb[0].mxu0
      %v1198 = vadd.f32 %v973, %v1197
      %v1199 = vpop.f32.mrb[0].mxu0
      %v1200 = vpop.f32.mrb[0].mxu0
      %v1201 = vadd.f32 %v976, %v1200
      %v1202 = vpop.f32.mrb[0].mxu0
      %1203 = vmatprep.mubr.bf16.mxu0 0
      %1204 = vmatmul.mubr.bf16.gmra.mrb[0].mxu0 %v820
      %v1205 = vpop.f32.mrb[0].mxu0
      %v1206 = vadd.f32 %v981, %v1205
      %v1207 = vpop.f32.mrb[0].mxu0
      %v1208 = vpop.f32.mrb[0].mxu0
      %v1209 = vadd.f32 %v984, %v1208
      %v1210 = vpop.f32.mrb[0].mxu0
      %1211 = vmatprep.mubr.bf16.mxu0 0
      %1212 = vmatmul.mubr.bf16.gmra.mrb[0].mxu0 %v823
      %v1213 = vpop.f32.mrb[0].mxu0
      %v1214 = vadd.f32 %v989, %v1213
      %v1215 = vpop.f32.mrb[0].mxu0
      %v1216 = vpop.f32.mrb[0].mxu0
      %v1217 = vadd.f32 %v992, %v1216
      %v1218 = vpop.f32.mrb[0].mxu0
      %1219 = vmatprep.mubr.bf16.mxu0 0
      %1220 = vmatmul.mubr.bf16.gmra.mrb[0].mxu0 %v826
      %v1221 = vpop.f32.mrb[0].mxu0
      %v1222 = vadd.f32 %v997, %v1221
      %v1223 = vpop.f32.mrb[0].mxu0
      %v1224 = vpop.f32.mrb[0].mxu0
      %v1225 = vadd.f32 %v1000, %v1224
      %v1226 = vpop.f32.mrb[0].mxu0
      %1227 = vmatprep.mubr.bf16.mxu0 0
      %1228 = vmatmul.mubr.bf16.gmra.mrb[0].mxu0 %v829
      %v1229 = vpop.f32.mrb[0].mxu0
      %v1230 = vadd.f32 %v1005, %v1229
      %v1231 = vpop.f32.mrb[0].mxu0
      %v1232 = vpop.f32.mrb[0].mxu0
      %v1233 = vadd.f32 %v1008, %v1232
      %v1234 = vpop.f32.mrb[0].mxu0
      %1235 = vmatprep.mubr.bf16.mxu0 0
      %1236 = vmatmul.mubr.bf16.gmra.mrb[0].mxu0 %v832
      %v1237 = vpop.f32.mrb[0].mxu0
      %v1238 = vadd.f32 %v1013, %v1237
      %v1239 = vpop.f32.mrb[0].mxu0
      %v1240 = vpop.f32.mrb[0].mxu0
      %v1241 = vadd.f32 %v1016, %v1240
      %v1242 = vpop.f32.mrb[0].mxu0
      %1243 = vmatprep.mubr.bf16.mxu0 0
      %1244 = vmatmul.mubr.bf16.gmra.mrb[0].mxu0 %v835
      %v1245 = vpop.f32.mrb[0].mxu0
      %v1246 = vadd.f32 %v1021, %v1245
      %v1247 = vpop.f32.mrb[0].mxu0
      %v1248 = vpop.f32.mrb[0].mxu0
      %v1249 = vadd.f32 %v1024, %v1248
      %v1250 = vpop.f32.mrb[0].mxu0
      %1251 = vmatprep.mubr.bf16.mxu0 0
      %1252 = vmatmul.mubr.bf16.gmra.mrb[0].mxu0 %v838
      %v1253 = vpop.f32.mrb[0].mxu0
      %v1254 = vadd.f32 %v1029, %v1253
      %v1255 = vpop.f32.mrb[0].mxu0
      %v1256 = vpop.f32.mrb[0].mxu0
      %v1257 = vadd.f32 %v1032, %v1256
      %v1258 = vpop.f32.mrb[0].mxu0
      %1259 = vmatprep.mubr.bf16.mxu0 0
      %1260 = vmatmul.mubr.bf16.gmra.mrb[0].mxu0 %v841
      %v1261 = vpop.f32.mrb[0].mxu0
      %v1262 = vadd.f32 %v1037, %v1261
      %v1263 = vpop.f32.mrb[0].mxu0
      %v1264 = vpop.f32.mrb[0].mxu0
      %v1265 = vadd.f32 %v1040, %v1264
      %v1266 = vpop.f32.mrb[0].mxu0
      %1267 = vmatprep.mubr.bf16.mxu0 0
      %1268 = vmatmul.mubr.bf16.gmra.mrb[0].mxu0 %v844
      %v1269 = vpop.f32.mrb[0].mxu0
      %v1270 = vadd.f32 %v1045, %v1269
      %v1271 = vpop.f32.mrb[0].mxu0
      %v1272 = vpop.f32.mrb[0].mxu0
      %v1273 = vadd.f32 %v1048, %v1272
      %v1274 = vpop.f32.mrb[0].mxu0
      %1275 = vmatprep.mubr.bf16.mxu0 0
      %1276 = vmatmul.mubr.bf16.gmra.mrb[0].mxu0 %v847
      %v1277 = vpop.f32.mrb[0].mxu0
      %v1278 = vadd.f32 %v1053, %v1277
      %v1279 = vpop.f32.mrb[0].mxu0
      %v1280 = vpop.f32.mrb[0].mxu0
      %v1281 = vadd.f32 %v1056, %v1280
      %v1282 = vpop.f32.mrb[0].mxu0
      %1283 = vmatprep.mubr.bf16.mxu0 0
      %1284 = vmatmul.mubr.bf16.gmra.mrb[0].mxu0 %v850
      %v1285 = vpop.f32.mrb[0].mxu0
      %v1286 = vadd.f32 %v1061, %v1285
      %v1287 = vpop.f32.mrb[0].mxu0
      %v1288 = vpop.f32.mrb[0].mxu0
      %v1289 = vadd.f32 %v1064, %v1288
      %v1290 = vpop.f32.mrb[0].mxu0
      %1291 = vmatprep.mubr.bf16.mxu0 0
      %1292 = vmatmul.mubr.bf16.gmra.mrb[0].mxu0 %v853
      %v1293 = vpop.f32.mrb[0].mxu0
      %v1294 = vadd.f32 %v1069, %v1293
      %v1295 = vpop.f32.mrb[0].mxu0
      %v1296 = vpop.f32.mrb[0].mxu0
      %v1297 = vadd.f32 %v1072, %v1296
      %v1298 = vpop.f32.mrb[0].mxu0
      %1299 = vmatprep.mubr.bf16.mxu0 0
      %1300 = vmatmul.mubr.bf16.gmra.mrb[0].mxu0 %v856
      %v1301 = vpop.f32.mrb[0].mxu0
      %v1302 = vadd.f32 %v1077, %v1301
      %v1303 = vpop.f32.mrb[0].mxu0
      %v1304 = vpop.f32.mrb[0].mxu0
      %v1305 = vadd.f32 %v1080, %v1304
      %v1306 = vpop.f32.mrb[0].mxu0
      %1307 = vdwg.mxu0
      %v1308 = vmax.f32 %v1118, 0.0
      %v1309 = vmax.f32 %v1121, 0.0
      %v1310 = vmax.f32 %v1126, 0.0
      %v1311 = vmax.f32 %v1129, 0.0
      %v1312 = vmax.f32 %v1134, 0.0
      %v1313 = vmax.f32 %v1137, 0.0
      %v1314 = vmax.f32 %v1142, 0.0
      %v1315 = vmax.f32 %v1145, 0.0
      %v1316 = vmax.f32 %v1150, 0.0
      %v1317 = vmax.f32 %v1153, 0.0
      %v1318 = vmax.f32 %v1158, 0.0
      %v1319 = vmax.f32 %v1161, 0.0
      %v1320 = vmax.f32 %v1166, 0.0
      %v1321 = vmax.f32 %v1169, 0.0
      %v1322 = vmax.f32 %v1174, 0.0
      %v1323 = vmax.f32 %v1177, 0.0
      %v1324 = vmax.f32 %v1182, 0.0
      %v1325 = vmax.f32 %v1185, 0.0
      %v1326 = vmax.f32 %v1190, 0.0
      %v1327 = vmax.f32 %v1193, 0.0
      %v1328 = vmax.f32 %v1198, 0.0
      %v1329 = vmax.f32 %v1201, 0.0
      %v1330 = vmax.f32 %v1206, 0.0
      %v1331 = vmax.f32 %v1209, 0.0
      %v1332 = vmax.f32 %v1214, 0.0
      %v1333 = vmax.f32 %v1217, 0.0
      %v1334 = vmax.f32 %v1222, 0.0
      %v1335 = vmax.f32 %v1225, 0.0
      %v1336 = vmax.f32 %v1230, 0.0
      %v1337 = vmax.f32 %v1233, 0.0
      %v1338 = vmax.f32 %v1238, 0.0
      %v1339 = vmax.f32 %v1241, 0.0
      %v1340 = vmax.f32 %v1246, 0.0
      %v1341 = vmax.f32 %v1249, 0.0
      %v1342 = vmax.f32 %v1254, 0.0
      %v1343 = vmax.f32 %v1257, 0.0
      %v1344 = vmax.f32 %v1262, 0.0
      %v1345 = vmax.f32 %v1265, 0.0
      %v1346 = vmax.f32 %v1270, 0.0
      %v1347 = vmax.f32 %v1273, 0.0
      %v1348 = vmax.f32 %v1278, 0.0
      %v1349 = vmax.f32 %v1281, 0.0
      %v1350 = vmax.f32 %v1286, 0.0
      %v1351 = vmax.f32 %v1289, 0.0
      %v1352 = vmax.f32 %v1294, 0.0
      %v1353 = vmax.f32 %v1297, 0.0
      %v1354 = vmax.f32 %v1302, 0.0
      %v1355 = vmax.f32 %v1305, 0.0
      %vm1356 = vcmask 523264
      %1357 = vst.msk [vmem:[%s175] sm:$0xff] %vm1356, %v1308
      %1358 = vst.msk [vmem:[%s175 + $0x8] sm:$0xff] %vm1356, %v1309
      %1359 = vst.msk [vmem:[%s175 + $0x10] sm:$0xff] %vm1356, %v1310
      %1360 = vst.msk [vmem:[%s175 + $0x18] sm:$0xff] %vm1356, %v1311
      %1361 = vst.msk [vmem:[%s175 + $0x20] sm:$0xff] %vm1356, %v1312
      %1362 = vst.msk [vmem:[%s175 + $0x28] sm:$0xff] %vm1356, %v1313
      %1363 = vst.msk [vmem:[%s175 + $0x30] sm:$0xff] %vm1356, %v1314
      %1364 = vst.msk [vmem:[%s175 + $0x38] sm:$0xff] %vm1356, %v1315
      %1365 = vst.msk [vmem:[%s175 + $0x40] sm:$0xff] %vm1356, %v1316
      %1366 = vst.msk [vmem:[%s175 + $0x48] sm:$0xff] %vm1356, %v1317
      %1367 = vst.msk [vmem:[%s175 + $0x50] sm:$0xff] %vm1356, %v1318
      %1368 = vst.msk [vmem:[%s175 + $0x58] sm:$0xff] %vm1356, %v1319
      %1369 = vst.msk [vmem:[%s175 + $0x60] sm:$0xff] %vm1356, %v1320
      %1370 = vst.msk [vmem:[%s175 + $0x68] sm:$0xff] %vm1356, %v1321
      %1371 = vst.msk [vmem:[%s175 + $0x70] sm:$0xff] %vm1356, %v1322
      %1372 = vst.msk [vmem:[%s175 + $0x78] sm:$0xff] %vm1356, %v1323
      %1373 = vst.msk [vmem:[%s175 + $0x80] sm:$0xff] %vm1356, %v1324
      %1374 = vst.msk [vmem:[%s175 + $0x88] sm:$0xff] %vm1356, %v1325
      %1375 = vst.msk [vmem:[%s175 + $0x90] sm:$0xff] %vm1356, %v1326
      %1376 = vst.msk [vmem:[%s175 + $0x98] sm:$0xff] %vm1356, %v1327
      %1377 = vst.msk [vmem:[%s175 + $0xa0] sm:$0xff] %vm1356, %v1328
      %1378 = vst.msk [vmem:[%s175 + $0xa8] sm:$0xff] %vm1356, %v1329
      %1379 = vst.msk [vmem:[%s175 + $0xb0] sm:$0xff] %vm1356, %v1330
      %1380 = vst.msk [vmem:[%s175 + $0xb8] sm:$0xff] %vm1356, %v1331
      %1381 = vst.msk [vmem:[%s175 + $0xc0] sm:$0xff] %vm1356, %v1332
      %1382 = vst.msk [vmem:[%s175 + $0xc8] sm:$0xff] %vm1356, %v1333
      %1383 = vst.msk [vmem:[%s175 + $0xd0] sm:$0xff] %vm1356, %v1334
      %1384 = vst.msk [vmem:[%s175 + $0xd8] sm:$0xff] %vm1356, %v1335
      %1385 = vst.msk [vmem:[%s175 + $0xe0] sm:$0xff] %vm1356, %v1336
      %1386 = vst.msk [vmem:[%s175 + $0xe8] sm:$0xff] %vm1356, %v1337
      %1387 = vst.msk [vmem:[%s175 + $0xf0] sm:$0xff] %vm1356, %v1338
      %1388 = vst.msk [vmem:[%s175 + $0xf8] sm:$0xff] %vm1356, %v1339
      %1389 = vst.msk [vmem:[%s175 + $0x100] sm:$0xff] %vm1356, %v1340
      %1390 = vst.msk [vmem:[%s175 + $0x108] sm:$0xff] %vm1356, %v1341
      %1391 = vst.msk [vmem:[%s175 + $0x110] sm:$0xff] %vm1356, %v1342
      %1392 = vst.msk [vmem:[%s175 + $0x118] sm:$0xff] %vm1356, %v1343
      %1393 = vst.msk [vmem:[%s175 + $0x120] sm:$0xff] %vm1356, %v1344
      %1394 = vst.msk [vmem:[%s175 + $0x128] sm:$0xff] %vm1356, %v1345
      %1395 = vst.msk [vmem:[%s175 + $0x130] sm:$0xff] %vm1356, %v1346
      %1396 = vst.msk [vmem:[%s175 + $0x138] sm:$0xff] %vm1356, %v1347
      %1397 = vst.msk [vmem:[%s175 + $0x140] sm:$0xff] %vm1356, %v1348
      %1398 = vst.msk [vmem:[%s175 + $0x148] sm:$0xff] %vm1356, %v1349
      %1399 = vst.msk [vmem:[%s175 + $0x150] sm:$0xff] %vm1356, %v1350
      %1400 = vst.msk [vmem:[%s175 + $0x158] sm:$0xff] %vm1356, %v1351
      %1401 = vst.msk [vmem:[%s175 + $0x160] sm:$0xff] %vm1356, %v1352
      %1402 = vst.msk [vmem:[%s175 + $0x168] sm:$0xff] %vm1356, %v1353
      %1403 = vst.msk [vmem:[%s175 + $0x170] sm:$0xff] %vm1356, %v1354
      %1404 = vst.msk [vmem:[%s175 + $0x178] sm:$0xff] %vm1356, %v1355
      %s1405 = smul.u32 48, %s14
      %p1406 = scmp.lt.s32.totalorder %s1405, 143
      %s1407 = scalar_select %p1406, %s1405, 143
      %s1408 = smul.addr %s1407, 8
      %s1409 = scalar_lea.vmem %s3, %s1408
      // Predicated region
      $region33: #{net_forward.7} parent=31 // pred_check
        %p1410 = pneg %p100
      $region34: #{net_forward.7} parent=31 // pred_check_branch
        %1412 = sbr.rel (%p1410) target = $region36
      $region35: #{net_forward.7} parent=31 // pred_region
        %s1413 = smul.u32 48, %s14
      $region36: #{net_forward.7} parent=31 // pred_fallthru
        _
    $region32: #{net_forward.7} parent=5 // pred_fallthru
      _
    %p1414 = scmp.le.s32.totalorder 2, %s9
    // Predicated region
    $region37: #{net_forward.7} parent=5 // pred_check
      %p1415 = pneg %p1414
    $region38: #{net_forward.7} parent=5 // pred_check_branch
      %1417 = sbr.rel (%p1415) target = $region40
    $region39: #{net_forward.7} parent=5 // pred_region
      %s1418 = ssub.s32 %s9, 2
      // Predicated region
      $region41: #{net_forward.7} parent=39 // pred_check
        %p1419 = pneg %p106
      $region42: #{net_forward.7} parent=39 // pred_check_branch
        %1421 = sbr.rel (%p1419) target = $region44
      $region43: #{net_forward.7} parent=39 // pred_region
        %s1422 = smul.u32 48, %s15
        %p1423 = scmp.lt.s32.totalorder %s1422, 143
        %s1424 = scalar_select %p1423, %s1422, 143
        %s1425 = smul.addr %s1424, 8
        %s1426 = scalar_lea.vmem %s3, %s1425
      $region44: #{net_forward.7} parent=39 // pred_fallthru
        _
    $region40: #{net_forward.7} parent=5 // pred_fallthru
      _
  $region6: #{net_forward.7} parent=0 // loop_footer
    %s13 = sadd.s32 1, %s9
  $region7: #{net_forward.7} parent=0 // loop_footer_branch
    %8 = sbr.rel target = $region3
  $region8: #{net_forward.7} parent=0 // loop_exit
    _

// kernel: net_forward.8
$region0: #{net_forward.8}
  #allocation0 [shape = 'u32[]', space=smem, size = 0x4, offset = 0x4, fixed_abs, tag = 'smem constant byte address 0x4 - core index']
  #allocation1 [shape = 'u32[144,128]{1,0:T(1,128)}', space=vmem, size = 0x12000, scoped, tag = 'internal scratch']
  %s0 = inlined_call_operand.vmem [shape: f32[24,2,12,128], index: 0, kind: input, shape index: {}]
  %s1 = inlined_call_operand.vmem [shape: f32[24,12,64], index: 1, kind: output, shape index: {}]
  %s2 = sld [smem:[#allocation0]]
  $region14: #{net_forward.8} parent=0
    _
  %s4 = ssub.s32 1, %s2
  %s5 = scalar_select 0, %s4, %s2
  // Predicated region
  $region2: #{net_forward.8} parent=0 // pred_check
    _
  $region3: #{net_forward.8} parent=0 // pred_check_branch
    %7 = sbr.rel (0) target = $region5
  $region4: #{net_forward.8} parent=0 // pred_region
    _
  $region5: #{net_forward.8} parent=0 // pred_fallthru
    _
  %v8 = vld [vmem:[%s0] sm:$0xff]
  %v9 = vld [vmem:[%s0 + $0x8] sm:$0xf]
  %v10 = vld [vmem:[%s0 + $0x10] sm:$0xff]
  %v11 = vld [vmem:[%s0 + $0x18] sm:$0xf]
  %v12 = vld [vmem:[%s0 + $0x20] sm:$0xff]
  %v13 = vld [vmem:[%s0 + $0x28] sm:$0xf]
  %v14 = vld [vmem:[%s0 + $0x30] sm:$0xff]
  %v15 = vld [vmem:[%s0 + $0x38] sm:$0xf]
  %v16 = vld [vmem:[%s0 + $0x40] sm:$0xff]
  %v17 = vld [vmem:[%s0 + $0x48] sm:$0xf]
  %v18 = vld [vmem:[%s0 + $0x50] sm:$0xff]
  %v19 = vld [vmem:[%s0 + $0x58] sm:$0xf]
  %v20 = vld [vmem:[%s0 + $0x60] sm:$0xff]
  %v21 = vld [vmem:[%s0 + $0x68] sm:$0xf]
  %v22 = vld [vmem:[%s0 + $0x70] sm:$0xff]
  %v23 = vld [vmem:[%s0 + $0x78] sm:$0xf]
  %v24 = vld [vmem:[%s0 + $0x80] sm:$0xff]
  %v25 = vld [vmem:[%s0 + $0x88] sm:$0xf]
  %v26 = vld [vmem:[%s0 + $0x90] sm:$0xff]
  %v27 = vld [vmem:[%s0 + $0x98] sm:$0xf]
  %v28 = vld [vmem:[%s0 + $0xa0] sm:$0xff]
  %v29 = vld [vmem:[%s0 + $0xa8] sm:$0xf]
  %v30 = vld [vmem:[%s0 + $0xb0] sm:$0xff]
  %v31 = vld [vmem:[%s0 + $0xb8] sm:$0xf]
  %v32 = vld [vmem:[%s0 + $0xc0] sm:$0xff]
  %v33 = vld [vmem:[%s0 + $0xc8] sm:$0xf]
  %v34 = vld [vmem:[%s0 + $0xd0] sm:$0xff]
  %v35 = vld [vmem:[%s0 + $0xd8] sm:$0xf]
  %v36 = vld [vmem:[%s0 + $0xe0] sm:$0xff]
  %v37 = vld [vmem:[%s0 + $0xe8] sm:$0xf]
  %v38 = vld [vmem:[%s0 + $0xf0] sm:$0xff]
  %v39 = vld [vmem:[%s0 + $0xf8] sm:$0xf]
  %v40 = vld [vmem:[%s0 + $0x100] sm:$0xff]
  %v41 = vld [vmem:[%s0 + $0x108] sm:$0xf]
  %v42 = vld [vmem:[%s0 + $0x110] sm:$0xff]
  %v43 = vld [vmem:[%s0 + $0x118] sm:$0xf]
  %v44 = vld [vmem:[%s0 + $0x120] sm:$0xff]
  %v45 = vld [vmem:[%s0 + $0x128] sm:$0xf]
  %v46 = vld [vmem:[%s0 + $0x130] sm:$0xff]
  %v47 = vld [vmem:[%s0 + $0x138] sm:$0xf]
  %v48 = vld [vmem:[%s0 + $0x140] sm:$0xff]
  %v49 = vld [vmem:[%s0 + $0x148] sm:$0xf]
  %v50 = vld [vmem:[%s0 + $0x150] sm:$0xff]
  %v51 = vld [vmem:[%s0 + $0x158] sm:$0xf]
  %v52 = vld [vmem:[%s0 + $0x160] sm:$0xff]
  %v53 = vld [vmem:[%s0 + $0x168] sm:$0xf]
  %v54 = vld [vmem:[%s0 + $0x170] sm:$0xff]
  %v55 = vld [vmem:[%s0 + $0x178] sm:$0xf]
  %v56 = vld [vmem:[%s0 + $0x180] sm:$0xff]
  %v57 = vld [vmem:[%s0 + $0x188] sm:$0xf]
  %v58 = vld [vmem:[%s0 + $0x190] sm:$0xff]
  %v59 = vld [vmem:[%s0 + $0x198] sm:$0xf]
  %v60 = vld [vmem:[%s0 + $0x1a0] sm:$0xff]
  %v61 = vld [vmem:[%s0 + $0x1a8] sm:$0xf]
  %v62 = vld [vmem:[%s0 + $0x1b0] sm:$0xff]
  %v63 = vld [vmem:[%s0 + $0x1b8] sm:$0xf]
  %v64 = vld [vmem:[%s0 + $0x1c0] sm:$0xff]
  %v65 = vld [vmem:[%s0 + $0x1c8] sm:$0xf]
  %v66 = vld [vmem:[%s0 + $0x1d0] sm:$0xff]
  %v67 = vld [vmem:[%s0 + $0x1d8] sm:$0xf]
  %v68 = vld [vmem:[%s0 + $0x1e0] sm:$0xff]
  %v69 = vld [vmem:[%s0 + $0x1e8] sm:$0xf]
  %v70 = vld [vmem:[%s0 + $0x1f0] sm:$0xff]
  %v71 = vld [vmem:[%s0 + $0x1f8] sm:$0xf]
  %v72 = vld [vmem:[%s0 + $0x200] sm:$0xff]
  %v73 = vld [vmem:[%s0 + $0x208] sm:$0xf]
  %v74 = vld [vmem:[%s0 + $0x210] sm:$0xff]
  %v75 = vld [vmem:[%s0 + $0x218] sm:$0xf]
  %v76 = vld [vmem:[%s0 + $0x220] sm:$0xff]
  %v77 = vld [vmem:[%s0 + $0x228] sm:$0xf]
  %v78 = vld [vmem:[%s0 + $0x230] sm:$0xff]
  %v79 = vld [vmem:[%s0 + $0x238] sm:$0xf]
  %v80 = vld [vmem:[%s0 + $0x240] sm:$0xff]
  %v81 = vld [vmem:[%s0 + $0x248] sm:$0xf]
  %v82 = vld [vmem:[%s0 + $0x250] sm:$0xff]
  %v83 = vld [vmem:[%s0 + $0x258] sm:$0xf]
  %v84 = vld [vmem:[%s0 + $0x260] sm:$0xff]
  %v85 = vld [vmem:[%s0 + $0x268] sm:$0xf]
  %v86 = vld [vmem:[%s0 + $0x270] sm:$0xff]
  %v87 = vld [vmem:[%s0 + $0x278] sm:$0xf]
  %v88 = vld [vmem:[%s0 + $0x280] sm:$0xff]
  %v89 = vld [vmem:[%s0 + $0x288] sm:$0xf]
  %v90 = vld [vmem:[%s0 + $0x290] sm:$0xff]
  %v91 = vld [vmem:[%s0 + $0x298] sm:$0xf]
  %v92 = vld [vmem:[%s0 + $0x2a0] sm:$0xff]
  %v93 = vld [vmem:[%s0 + $0x2a8] sm:$0xf]
  %v94 = vld [vmem:[%s0 + $0x2b0] sm:$0xff]
  %v95 = vld [vmem:[%s0 + $0x2b8] sm:$0xf]
  %v96 = vld [vmem:[%s0 + $0x2c0] sm:$0xff]
  %v97 = vld [vmem:[%s0 + $0x2c8] sm:$0xf]
  %v98 = vld [vmem:[%s0 + $0x2d0] sm:$0xff]
  %v99 = vld [vmem:[%s0 + $0x2d8] sm:$0xf]
  %v100 = vld [vmem:[%s0 + $0x2e0] sm:$0xff]
  %v101 = vld [vmem:[%s0 + $0x2e8] sm:$0xf]
  %v102 = vld [vmem:[%s0 + $0x2f0] sm:$0xff]
  %v103 = vld [vmem:[%s0 + $0x2f8] sm:$0xf]
  %v104 = vmax.f32 %v8, %v10
  %v105 = vmax.f32 %v9, %v11
  %v106 = vmax.f32 %v12, %v14
  %v107 = vmax.f32 %v13, %v15
  %v108 = vmax.f32 %v16, %v18
  %v109 = vmax.f32 %v17, %v19
  %v110 = vmax.f32 %v20, %v22
  %v111 = vmax.f32 %v21, %v23
  %v112 = vmax.f32 %v24, %v26
  %v113 = vmax.f32 %v25, %v27
  %v114 = vmax.f32 %v28, %v30
  %v115 = vmax.f32 %v29, %v31
  %v116 = vmax.f32 %v32, %v34
  %v117 = vmax.f32 %v33, %v35
  %v118 = vmax.f32 %v36, %v38
  %v119 = vmax.f32 %v37, %v39
  %v120 = vmax.f32 %v40, %v42
  %v121 = vmax.f32 %v41, %v43
  %v122 = vmax.f32 %v44, %v46
  %v123 = vmax.f32 %v45, %v47
  %v124 = vmax.f32 %v48, %v50
  %v125 = vmax.f32 %v49, %v51
  %v126 = vmax.f32 %v52, %v54
  %v127 = vmax.f32 %v53, %v55
  %v128 = vmax.f32 %v56, %v58
  %v129 = vmax.f32 %v57, %v59
  %v130 = vmax.f32 %v60, %v62
  %v131 = vmax.f32 %v61, %v63
  %v132 = vmax.f32 %v64, %v66
  %v133 = vmax.f32 %v65, %v67
  %v134 = vmax.f32 %v68, %v70
  %v135 = vmax.f32 %v69, %v71
  %v136 = vmax.f32 %v72, %v74
  %v137 = vmax.f32 %v73, %v75
  %v138 = vmax.f32 %v76, %v78
  %v139 = vmax.f32 %v77, %v79
  %v140 = vmax.f32 %v80, %v82
  %v141 = vmax.f32 %v81, %v83
  %v142 = vmax.f32 %v84, %v86
  %v143 = vmax.f32 %v85, %v87
  %v144 = vmax.f32 %v88, %v90
  %v145 = vmax.f32 %v89, %v91
  %v146 = vmax.f32 %v92, %v94
  %v147 = vmax.f32 %v93, %v95
  %v148 = vmax.f32 %v96, %v98
  %v149 = vmax.f32 %v97, %v99
  %v150 = vmax.f32 %v100, %v102
  %v151 = vmax.f32 %v101, %v103
  %200 = vrot.lane.b32.xlu0 %v104, 64
  %v201 = vpop.permute.xlu0 %200
  %202 = vrot.lane.b32.xlu0 %v105, 64
  %v203 = vpop.permute.xlu0 %202
  %204 = vrot.lane.b32.xlu0 %v106, 64
  %v205 = vpop.permute.xlu0 %204
  %206 = vrot.lane.b32.xlu0 %v107, 64
  %v207 = vpop.permute.xlu0 %206
  %208 = vrot.lane.b32.xlu0 %v108, 64
  %v209 = vpop.permute.xlu0 %208
  %210 = vrot.lane.b32.xlu0 %v109, 64
  %v211 = vpop.permute.xlu0 %210
  %212 = vrot.lane.b32.xlu0 %v110, 64
  %v213 = vpop.permute.xlu0 %212
  %214 = vrot.lane.b32.xlu0 %v111, 64
  %v215 = vpop.permute.xlu0 %214
  %216 = vrot.lane.b32.xlu0 %v112, 64
  %v217 = vpop.permute.xlu0 %216
  %218 = vrot.lane.b32.xlu0 %v113, 64
  %v219 = vpop.permute.xlu0 %218
  %220 = vrot.lane.b32.xlu0 %v114, 64
  %v221 = vpop.permute.xlu0 %220
  %222 = vrot.lane.b32.xlu0 %v115, 64
  %v223 = vpop.permute.xlu0 %222
  %224 = vrot.lane.b32.xlu0 %v116, 64
  %v225 = vpop.permute.xlu0 %224
  %226 = vrot.lane.b32.xlu0 %v117, 64
  %v227 = vpop.permute.xlu0 %226
  %228 = vrot.lane.b32.xlu0 %v118, 64
  %v229 = vpop.permute.xlu0 %228
  %230 = vrot.lane.b32.xlu0 %v119, 64
  %v231 = vpop.permute.xlu0 %230
  %232 = vrot.lane.b32.xlu0 %v120, 64
  %v233 = vpop.permute.xlu0 %232
  %234 = vrot.lane.b32.xlu0 %v121, 64
  %v235 = vpop.permute.xlu0 %234
  %236 = vrot.lane.b32.xlu0 %v122, 64
  %v237 = vpop.permute.xlu0 %236
  %238 = vrot.lane.b32.xlu0 %v123, 64
  %v239 = vpop.permute.xlu0 %238
  %240 = vrot.lane.b32.xlu0 %v124, 64
  %v241 = vpop.permute.xlu0 %240
  %242 = vrot.lane.b32.xlu0 %v125, 64
  %v243 = vpop.permute.xlu0 %242
  %244 = vrot.lane.b32.xlu0 %v126, 64
  %v245 = vpop.permute.xlu0 %244
  %246 = vrot.lane.b32.xlu0 %v127, 64
  %v247 = vpop.permute.xlu0 %246
  %248 = vrot.lane.b32.xlu0 %v128, 64
  %v249 = vpop.permute.xlu0 %248
  %250 = vrot.lane.b32.xlu0 %v129, 64
  %v251 = vpop.permute.xlu0 %250
  %252 = vrot.lane.b32.xlu0 %v130, 64
  %v253 = vpop.permute.xlu0 %252
  %254 = vrot.lane.b32.xlu0 %v131, 64
  %v255 = vpop.permute.xlu0 %254
  %256 = vrot.lane.b32.xlu0 %v132, 64
  %v257 = vpop.permute.xlu0 %256
  %258 = vrot.lane.b32.xlu0 %v133, 64
  %v259 = vpop.permute.xlu0 %258
  %260 = vrot.lane.b32.xlu0 %v134, 64
  %v261 = vpop.permute.xlu0 %260
  %262 = vrot.lane.b32.xlu0 %v135, 64
  %v263 = vpop.permute.xlu0 %262
  %264 = vrot.lane.b32.xlu0 %v136, 64
  %v265 = vpop.permute.xlu0 %264
  %266 = vrot.lane.b32.xlu0 %v137, 64
  %v267 = vpop.permute.xlu0 %266
  %268 = vrot.lane.b32.xlu0 %v138, 64
  %v269 = vpop.permute.xlu0 %268
  %270 = vrot.lane.b32.xlu0 %v139, 64
  %v271 = vpop.permute.xlu0 %270
  %272 = vrot.lane.b32.xlu0 %v140, 64
  %v273 = vpop.permute.xlu0 %272
  %274 = vrot.lane.b32.xlu0 %v141, 64
  %v275 = vpop.permute.xlu0 %274
  %276 = vrot.lane.b32.xlu0 %v142, 64
  %v277 = vpop.permute.xlu0 %276
  %278 = vrot.lane.b32.xlu0 %v143, 64
  %v279 = vpop.permute.xlu0 %278
  %280 = vrot.lane.b32.xlu0 %v144, 64
  %v281 = vpop.permute.xlu0 %280
  %282 = vrot.lane.b32.xlu0 %v145, 64
  %v283 = vpop.permute.xlu0 %282
  %284 = vrot.lane.b32.xlu0 %v146, 64
  %v285 = vpop.permute.xlu0 %284
  %286 = vrot.lane.b32.xlu0 %v147, 64
  %v287 = vpop.permute.xlu0 %286
  %288 = vrot.lane.b32.xlu0 %v148, 64
  %v289 = vpop.permute.xlu0 %288
  %290 = vrot.lane.b32.xlu0 %v149, 64
  %v291 = vpop.permute.xlu0 %290
  %292 = vrot.lane.b32.xlu0 %v150, 64
  %v293 = vpop.permute.xlu0 %292
  %294 = vrot.lane.b32.xlu0 %v151, 64
  %v295 = vpop.permute.xlu0 %294
  %v344 = vmax.f32 %v104, %v201
  %v345 = vmax.f32 %v105, %v203
  %v346 = vmax.f32 %v106, %v205
  %v347 = vmax.f32 %v107, %v207
  %v348 = vmax.f32 %v108, %v209
  %v349 = vmax.f32 %v109, %v211
  %v350 = vmax.f32 %v110, %v213
  %v351 = vmax.f32 %v111, %v215
  %v352 = vmax.f32 %v112, %v217
  %v353 = vmax.f32 %v113, %v219
  %v354 = vmax.f32 %v114, %v221
  %v355 = vmax.f32 %v115, %v223
  %v356 = vmax.f32 %v116, %v225
  %v357 = vmax.f32 %v117, %v227
  %v358 = vmax.f32 %v118, %v229
  %v359 = vmax.f32 %v119, %v231
  %v360 = vmax.f32 %v120, %v233
  %v361 = vmax.f32 %v121, %v235
  %v362 = vmax.f32 %v122, %v237
  %v363 = vmax.f32 %v123, %v239
  %v364 = vmax.f32 %v124, %v241
  %v365 = vmax.f32 %v125, %v243
  %v366 = vmax.f32 %v126, %v245
  %v367 = vmax.f32 %v127, %v247
  %v368 = vmax.f32 %v128, %v249
  %v369 = vmax.f32 %v129, %v251
  %v370 = vmax.f32 %v130, %v253
  %v371 = vmax.f32 %v131, %v255
  %v372 = vmax.f32 %v132, %v257
  %v373 = vmax.f32 %v133, %v259
  %v374 = vmax.f32 %v134, %v261
  %v375 = vmax.f32 %v135, %v263
  %v376 = vmax.f32 %v136, %v265
  %v377 = vmax.f32 %v137, %v267
  %v378 = vmax.f32 %v138, %v269
  %v379 = vmax.f32 %v139, %v271
  %v380 = vmax.f32 %v140, %v273
  %v381 = vmax.f32 %v141, %v275
  %v382 = vmax.f32 %v142, %v277
  %v383 = vmax.f32 %v143, %v279
  %v384 = vmax.f32 %v144, %v281
  %v385 = vmax.f32 %v145, %v283
  %v386 = vmax.f32 %v146, %v285
  %v387 = vmax.f32 %v147, %v287
  %v388 = vmax.f32 %v148, %v289
  %v389 = vmax.f32 %v149, %v291
  %v390 = vmax.f32 %v150, %v293
  %v391 = vmax.f32 %v151, %v295
  %vm392 = vcmask 523264
  %393 = vst.msk [vmem:[%s1] sm:$0xff] %vm392, %v344
  %vm394 = vcmask 519168
  %395 = vst.msk [vmem:[%s1 + $0x8] sm:$0xf] %vm394, %v345
  %396 = vst.msk [vmem:[%s1 + $0x10] sm:$0xff] %vm392, %v346
  %397 = vst.msk [vmem:[%s1 + $0x18] sm:$0xf] %vm394, %v347
  %398 = vst.msk [vmem:[%s1 + $0x20] sm:$0xff] %vm392, %v348
  %399 = vst.msk [vmem:[%s1 + $0x28] sm:$0xf] %vm394, %v349
  %400 = vst.msk [vmem:[%s1 + $0x30] sm:$0xff] %vm392, %v350
  %401 = vst.msk [vmem:[%s1 + $0x38] sm:$0xf] %vm394, %v351
  %402 = vst.msk [vmem:[%s1 + $0x40] sm:$0xff] %vm392, %v352
  %403 = vst.msk [vmem:[%s1 + $0x48] sm:$0xf] %vm394, %v353
  %404 = vst.msk [vmem:[%s1 + $0x50] sm:$0xff] %vm392, %v354
  %405 = vst.msk [vmem:[%s1 + $0x58] sm:$0xf] %vm394, %v355
  %406 = vst.msk [vmem:[%s1 + $0x60] sm:$0xff] %vm392, %v356
  %407 = vst.msk [vmem:[%s1 + $0x68] sm:$0xf] %vm394, %v357
  %408 = vst.msk [vmem:[%s1 + $0x70] sm:$0xff] %vm392, %v358
  %409 = vst.msk [vmem:[%s1 + $0x78] sm:$0xf] %vm394, %v359
  %410 = vst.msk [vmem:[%s1 + $0x80] sm:$0xff] %vm392, %v360
  %411 = vst.msk [vmem:[%s1 + $0x88] sm:$0xf] %vm394, %v361
  %412 = vst.msk [vmem:[%s1 + $0x90] sm:$0xff] %vm392, %v362
  %413 = vst.msk [vmem:[%s1 + $0x98] sm:$0xf] %vm394, %v363
  %414 = vst.msk [vmem:[%s1 + $0xa0] sm:$0xff] %vm392, %v364
  %415 = vst.msk [vmem:[%s1 + $0xa8] sm:$0xf] %vm394, %v365
  %416 = vst.msk [vmem:[%s1 + $0xb0] sm:$0xff] %vm392, %v366
  %417 = vst.msk [vmem:[%s1 + $0xb8] sm:$0xf] %vm394, %v367
  %418 = vst.msk [vmem:[%s1 + $0xc0] sm:$0xff] %vm392, %v368
  %419 = vst.msk [vmem:[%s1 + $0xc8] sm:$0xf] %vm394, %v369
  %420 = vst.msk [vmem:[%s1 + $0xd0] sm:$0xff] %vm392, %v370
  %421 = vst.msk [vmem:[%s1 + $0xd8] sm:$0xf] %vm394, %v371
  %422 = vst.msk [vmem:[%s1 + $0xe0] sm:$0xff] %vm392, %v372
  %423 = vst.msk [vmem:[%s1 + $0xe8] sm:$0xf] %vm394, %v373
  %424 = vst.msk [vmem:[%s1 + $0xf0] sm:$0xff] %vm392, %v374
  %425 = vst.msk [vmem:[%s1 + $0xf8] sm:$0xf] %vm394, %v375
  %426 = vst.msk [vmem:[%s1 + $0x100] sm:$0xff] %vm392, %v376
  %427 = vst.msk [vmem:[%s1 + $0x108] sm:$0xf] %vm394, %v377
  %428 = vst.msk [vmem:[%s1 + $0x110] sm:$0xff] %vm392, %v378
  %429 = vst.msk [vmem:[%s1 + $0x118] sm:$0xf] %vm394, %v379
  %430 = vst.msk [vmem:[%s1 + $0x120] sm:$0xff] %vm392, %v380
  %431 = vst.msk [vmem:[%s1 + $0x128] sm:$0xf] %vm394, %v381
  %432 = vst.msk [vmem:[%s1 + $0x130] sm:$0xff] %vm392, %v382
  %433 = vst.msk [vmem:[%s1 + $0x138] sm:$0xf] %vm394, %v383
  %434 = vst.msk [vmem:[%s1 + $0x140] sm:$0xff] %vm392, %v384
  %435 = vst.msk [vmem:[%s1 + $0x148] sm:$0xf] %vm394, %v385
  %436 = vst.msk [vmem:[%s1 + $0x150] sm:$0xff] %vm392, %v386
  %437 = vst.msk [vmem:[%s1 + $0x158] sm:$0xf] %vm394, %v387
  %438 = vst.msk [vmem:[%s1 + $0x160] sm:$0xff] %vm392, %v388
  %439 = vst.msk [vmem:[%s1 + $0x168] sm:$0xf] %vm394, %v389
  %440 = vst.msk [vmem:[%s1 + $0x170] sm:$0xff] %vm392, %v390
  %441 = vst.msk [vmem:[%s1 + $0x178] sm:$0xf] %vm394, %v391
  // Predicated region
  $region6: #{net_forward.8} parent=0 // pred_check
    _
  $region7: #{net_forward.8} parent=0 // pred_check_branch
    %443 = sbr.rel (0) target = $region9
  $region8: #{net_forward.8} parent=0 // pred_region
    _
  $region9: #{net_forward.8} parent=0 // pred_fallthru
    _
  // Predicated region
  $region10: #{net_forward.8} parent=0 // pred_check
    _
  $region11: #{net_forward.8} parent=0 // pred_check_branch
    %445 = sbr.rel (0) target = $region13
  $region12: #{net_forward.8} parent=0 // pred_region
    _
  $region13: #{net_forward.8} parent=0 // pred_fallthru
    _

// kernel: net_forward.9
$region0: #{net_forward.9}
  #allocation0 [shape = 'u32[]', space=smem, size = 0x4, offset = 0x4, fixed_abs, tag = 'smem constant byte address 0x4 - core index']
  #allocation1 [shape = 'u32[144,128]{1,0:T(1,128)}', space=vmem, size = 0x12000, scoped, tag = 'internal scratch']
  %s0 = inlined_call_operand.vmem [shape: bf16[8,9216], index: 0, kind: input, shape index: {}]
  %s1 = inlined_call_operand.vmem [shape: bf16[9216,128], index: 1, kind: input, shape index: {}]
  %s2 = inlined_call_operand.vmem [shape: f32[1,128], index: 2, kind: input, shape index: {}]
  %s3 = inlined_call_operand.vmem [shape: bf16[128,10], index: 3, kind: input, shape index: {}]
  %s4 = inlined_call_operand.vmem [shape: f32[1,10], index: 4, kind: input, shape index: {}]
  %s5 = inlined_call_operand.vmem [shape: f32[8,10], index: 5, kind: output, shape index: {}]
  %s6 = sld [smem:[#allocation0]]
  $region30: #{net_forward.9} parent=0
    _
  %s8 = ssub.s32 1, %s6
  %s9 = scalar_select 0, %s8, %s6
  // Predicated region
  $region2: #{net_forward.9} parent=0 // pred_check
    _
  $region3: #{net_forward.9} parent=0 // pred_check_branch
    %11 = sbr.rel (0) target = $region5
  $region4: #{net_forward.9} parent=0 // pred_region
    _
  $region5: #{net_forward.9} parent=0 // pred_fallthru
    _
  // Predicated region
  $region6: #{net_forward.9} parent=0 // pred_check
    _
  $region7: #{net_forward.9} parent=0 // pred_check_branch
    %13 = sbr.rel (0) target = $region9
  $region8: #{net_forward.9} parent=0 // pred_region
    _
  $region9: #{net_forward.9} parent=0 // pred_fallthru
    _
  // Predicated region
  $region10: #{net_forward.9} parent=0 // pred_check
    _
  $region11: #{net_forward.9} parent=0 // pred_check_branch
    %15 = sbr.rel (0) target = $region13
  $region12: #{net_forward.9} parent=0 // pred_region
    _
  $region13: #{net_forward.9} parent=0 // pred_fallthru
    _
  // Predicated region
  $region14: #{net_forward.9} parent=0 // pred_check
    _
  $region15: #{net_forward.9} parent=0 // pred_check_branch
    %17 = sbr.rel (0) target = $region17
  $region16: #{net_forward.9} parent=0 // pred_region
    _
  $region17: #{net_forward.9} parent=0 // pred_fallthru
    _
  // Predicated region
  $region18: #{net_forward.9} parent=0 // pred_check
    _
  $region19: #{net_forward.9} parent=0 // pred_check_branch
    %19 = sbr.rel (0) target = $region21
  $region20: #{net_forward.9} parent=0 // pred_region
    _
  $region21: #{net_forward.9} parent=0 // pred_fallthru
    _
  %v21 = vld [vmem:[%s0] sm:$0xff]
  %v22 = vld [vmem:[%s0 + $0x8] sm:$0xff]
  %v23 = vld [vmem:[%s0 + $0x10] sm:$0xff]
  %v24 = vld [vmem:[%s0 + $0x18] sm:$0xff]
  %v25 = vld [vmem:[%s0 + $0x20] sm:$0xff]
  %v26 = vld [vmem:[%s0 + $0x28] sm:$0xff]
  %v27 = vld [vmem:[%s0 + $0x30] sm:$0xff]
  %v28 = vld [vmem:[%s0 + $0x38] sm:$0xff]
  %v29 = vld [vmem:[%s0 + $0x40] sm:$0xff]
  %v30 = vld [vmem:[%s0 + $0x48] sm:$0xff]
  %v31 = vld [vmem:[%s0 + $0x50] sm:$0xff]
  %v32 = vld [vmem:[%s0 + $0x58] sm:$0xff]
  %v33 = vld [vmem:[%s0 + $0x60] sm:$0xff]
  %v34 = vld [vmem:[%s0 + $0x68] sm:$0xff]
  %v35 = vld [vmem:[%s0 + $0x70] sm:$0xff]
  %v36 = vld [vmem:[%s0 + $0x78] sm:$0xff]
  %v37 = vld [vmem:[%s0 + $0x80] sm:$0xff]
  %v38 = vld [vmem:[%s0 + $0x88] sm:$0xff]
  %v39 = vld [vmem:[%s0 + $0x90] sm:$0xff]
  %v40 = vld [vmem:[%s0 + $0x98] sm:$0xff]
  %v41 = vld [vmem:[%s0 + $0xa0] sm:$0xff]
  %v42 = vld [vmem:[%s0 + $0xa8] sm:$0xff]
  %v43 = vld [vmem:[%s0 + $0xb0] sm:$0xff]
  %v44 = vld [vmem:[%s0 + $0xb8] sm:$0xff]
  %v45 = vld [vmem:[%s0 + $0xc0] sm:$0xff]
  %v46 = vld [vmem:[%s0 + $0xc8] sm:$0xff]
  %v47 = vld [vmem:[%s0 + $0xd0] sm:$0xff]
  %v48 = vld [vmem:[%s0 + $0xd8] sm:$0xff]
  %v49 = vld [vmem:[%s0 + $0xe0] sm:$0xff]
  %v50 = vld [vmem:[%s0 + $0xe8] sm:$0xff]
  %v51 = vld [vmem:[%s0 + $0xf0] sm:$0xff]
  %v52 = vld [vmem:[%s0 + $0xf8] sm:$0xff]
  %v53 = vld [vmem:[%s0 + $0x100] sm:$0xff]
  %v54 = vld [vmem:[%s0 + $0x108] sm:$0xff]
  %v55 = vld [vmem:[%s0 + $0x110] sm:$0xff]
  %v56 = vld [vmem:[%s0 + $0x118] sm:$0xff]
  %v57 = vld [vmem:[%s1] sm:$0xf]
  %v58 = vld [vmem:[%s1 + $0x4] sm:$0xf]
  %v59 = vld [vmem:[%s1 + $0x8] sm:$0xf]
  %v60 = vld [vmem:[%s1 + $0xc] sm:$0xf]
  %v61 = vld [vmem:[%s1 + $0x10] sm:$0xf]
  %v62 = vld [vmem:[%s1 + $0x14] sm:$0xf]
  %v63 = vld [vmem:[%s1 + $0x18] sm:$0xf]
  %v64 = vld [vmem:[%s1 + $0x1c] sm:$0xf]
  %v65 = vld [vmem:[%s1 + $0x20] sm:$0xf]
  %v66 = vld [vmem:[%s1 + $0x24] sm:$0xf]
  %v67 = vld [vmem:[%s1 + $0x28] sm:$0xf]
  %v68 = vld [vmem:[%s1 + $0x2c] sm:$0xf]
  %v69 = vld [vmem:[%s1 + $0x30] sm:$0xf]
  %v70 = vld [vmem:[%s1 + $0x34] sm:$0xf]
  %v71 = vld [vmem:[%s1 + $0x38] sm:$0xf]
  %v72 = vld [vmem:[%s1 + $0x3c] sm:$0xf]
  %v73 = vld [vmem:[%s1 + $0x40] sm:$0xf]
  %v74 = vld [vmem:[%s1 + $0x44] sm:$0xf]
  %v75 = vld [vmem:[%s1 + $0x48] sm:$0xf]
  %v76 = vld [vmem:[%s1 + $0x4c] sm:$0xf]
  %v77 = vld [vmem:[%s1 + $0x50] sm:$0xf]
  %v78 = vld [vmem:[%s1 + $0x54] sm:$0xf]
  %v79 = vld [vmem:[%s1 + $0x58] sm:$0xf]
  %v80 = vld [vmem:[%s1 + $0x5c] sm:$0xf]
  %v81 = vld [vmem:[%s1 + $0x60] sm:$0xf]
  %v82 = vld [vmem:[%s1 + $0x64] sm:$0xf]
  %v83 = vld [vmem:[%s1 + $0x68] sm:$0xf]
  %v84 = vld [vmem:[%s1 + $0x6c] sm:$0xf]
  %v85 = vld [vmem:[%s1 + $0x70] sm:$0xf]
  %v86 = vld [vmem:[%s1 + $0x74] sm:$0xf]
  %v87 = vld [vmem:[%s1 + $0x78] sm:$0xf]
  %v88 = vld [vmem:[%s1 + $0x7c] sm:$0xf]
  %v89 = vld [vmem:[%s1 + $0x80] sm:$0xf]
  %v90 = vld [vmem:[%s1 + $0x84] sm:$0xf]
  %v91 = vld [vmem:[%s1 + $0x88] sm:$0xf]
  %v92 = vld [vmem:[%s1 + $0x8c] sm:$0xf]
  %v93 = vld [vmem:[%s1 + $0x90] sm:$0xf]
  %v94 = vld [vmem:[%s1 + $0x94] sm:$0xf]
  %v95 = vld [vmem:[%s1 + $0x98] sm:$0xf]
  %v96 = vld [vmem:[%s1 + $0x9c] sm:$0xf]
  %v97 = vld [vmem:[%s1 + $0xa0] sm:$0xf]
  %v98 = vld [vmem:[%s1 + $0xa4] sm:$0xf]
  %v99 = vld [vmem:[%s1 + $0xa8] sm:$0xf]
  %v100 = vld [vmem:[%s1 + $0xac] sm:$0xf]
  %v101 = vld [vmem:[%s1 + $0xb0] sm:$0xf]
  %v102 = vld [vmem:[%s1 + $0xb4] sm:$0xf]
  %v103 = vld [vmem:[%s1 + $0xb8] sm:$0xf]
  %v104 = vld [vmem:[%s1 + $0xbc] sm:$0xf]
  %v105 = vld [vmem:[%s1 + $0xc0] sm:$0xf]
  %v106 = vld [vmem:[%s1 + $0xc4] sm:$0xf]
  %v107 = vld [vmem:[%s1 + $0xc8] sm:$0xf]
  %v108 = vld [vmem:[%s1 + $0xcc] sm:$0xf]
  %v109 = vld [vmem:[%s1 + $0xd0] sm:$0xf]
  %v110 = vld [vmem:[%s1 + $0xd4] sm:$0xf]
  %v111 = vld [vmem:[%s1 + $0xd8] sm:$0xf]
  %v112 = vld [vmem:[%s1 + $0xdc] sm:$0xf]
  %v113 = vld [vmem:[%s1 + $0xe0] sm:$0xf]
  %v114 = vld [vmem:[%s1 + $0xe4] sm:$0xf]
  %v115 = vld [vmem:[%s1 + $0xe8] sm:$0xf]
  %v116 = vld [vmem:[%s1 + $0xec] sm:$0xf]
  %v117 = vld [vmem:[%s1 + $0xf0] sm:$0xf]
  %v118 = vld [vmem:[%s1 + $0xf4] sm:$0xf]
  %v119 = vld [vmem:[%s1 + $0xf8] sm:$0xf]
  %v120 = vld [vmem:[%s1 + $0xfc] sm:$0xf]
  %v121 = vld [vmem:[%s1 + $0x100] sm:$0xf]
  %v122 = vld [vmem:[%s1 + $0x104] sm:$0xf]
  %v123 = vld [vmem:[%s1 + $0x108] sm:$0xf]
  %v124 = vld [vmem:[%s1 + $0x10c] sm:$0xf]
  %v125 = vld [vmem:[%s1 + $0x110] sm:$0xf]
  %v126 = vld [vmem:[%s1 + $0x114] sm:$0xf]
  %v127 = vld [vmem:[%s1 + $0x118] sm:$0xf]
  %v128 = vld [vmem:[%s1 + $0x11c] sm:$0xf]
  %v129 = vld [vmem:[%s1 + $0x120] sm:$0xf]
  %v130 = vld [vmem:[%s1 + $0x124] sm:$0xf]
  %v131 = vld [vmem:[%s1 + $0x128] sm:$0xf]
  %v132 = vld [vmem:[%s1 + $0x12c] sm:$0xf]
  %v133 = vld [vmem:[%s1 + $0x130] sm:$0xf]
  %v134 = vld [vmem:[%s1 + $0x134] sm:$0xf]
  %v135 = vld [vmem:[%s1 + $0x138] sm:$0xf]
  %v136 = vld [vmem:[%s1 + $0x13c] sm:$0xf]
  %v137 = vld [vmem:[%s1 + $0x140] sm:$0xf]
  %v138 = vld [vmem:[%s1 + $0x144] sm:$0xf]
  %v139 = vld [vmem:[%s1 + $0x148] sm:$0xf]
  %v140 = vld [vmem:[%s1 + $0x14c] sm:$0xf]
  %v141 = vld [vmem:[%s1 + $0x150] sm:$0xf]
  %v142 = vld [vmem:[%s1 + $0x154] sm:$0xf]
  %v143 = vld [vmem:[%s1 + $0x158] sm:$0xf]
  %v144 = vld [vmem:[%s1 + $0x15c] sm:$0xf]
  %v145 = vld [vmem:[%s1 + $0x160] sm:$0xf]
  %v146 = vld [vmem:[%s1 + $0x164] sm:$0xf]
  %v147 = vld [vmem:[%s1 + $0x168] sm:$0xf]
  %v148 = vld [vmem:[%s1 + $0x16c] sm:$0xf]
  %v149 = vld [vmem:[%s1 + $0x170] sm:$0xf]
  %v150 = vld [vmem:[%s1 + $0x174] sm:$0xf]
  %v151 = vld [vmem:[%s1 + $0x178] sm:$0xf]
  %v152 = vld [vmem:[%s1 + $0x17c] sm:$0xf]
  %v153 = vld [vmem:[%s1 + $0x180] sm:$0xf]
  %v154 = vld [vmem:[%s1 + $0x184] sm:$0xf]
  %v155 = vld [vmem:[%s1 + $0x188] sm:$0xf]
  %v156 = vld [vmem:[%s1 + $0x18c] sm:$0xf]
  %v157 = vld [vmem:[%s1 + $0x190] sm:$0xf]
  %v158 = vld [vmem:[%s1 + $0x194] sm:$0xf]
  %v159 = vld [vmem:[%s1 + $0x198] sm:$0xf]
  %v160 = vld [vmem:[%s1 + $0x19c] sm:$0xf]
  %v161 = vld [vmem:[%s1 + $0x1a0] sm:$0xf]
  %v162 = vld [vmem:[%s1 + $0x1a4] sm:$0xf]
  %v163 = vld [vmem:[%s1 + $0x1a8] sm:$0xf]
  %v164 = vld [vmem:[%s1 + $0x1ac] sm:$0xf]
  %v165 = vld [vmem:[%s1 + $0x1b0] sm:$0xf]
  %v166 = vld [vmem:[%s1 + $0x1b4] sm:$0xf]
  %v167 = vld [vmem:[%s1 + $0x1b8] sm:$0xf]
  %v168 = vld [vmem:[%s1 + $0x1bc] sm:$0xf]
  %v169 = vld [vmem:[%s1 + $0x1c0] sm:$0xf]
  %v170 = vld [vmem:[%s1 + $0x1c4] sm:$0xf]
  %v171 = vld [vmem:[%s1 + $0x1c8] sm:$0xf]
  %v172 = vld [vmem:[%s1 + $0x1cc] sm:$0xf]
  %v173 = vld [vmem:[%s1 + $0x1d0] sm:$0xf]
  %v174 = vld [vmem:[%s1 + $0x1d4] sm:$0xf]
  %v175 = vld [vmem:[%s1 + $0x1d8] sm:$0xf]
  %v176 = vld [vmem:[%s1 + $0x1dc] sm:$0xf]
  %v177 = vld [vmem:[%s1 + $0x1e0] sm:$0xf]
  %v178 = vld [vmem:[%s1 + $0x1e4] sm:$0xf]
  %v179 = vld [vmem:[%s1 + $0x1e8] sm:$0xf]
  %v180 = vld [vmem:[%s1 + $0x1ec] sm:$0xf]
  %v181 = vld [vmem:[%s1 + $0x1f0] sm:$0xf]
  %v182 = vld [vmem:[%s1 + $0x1f4] sm:$0xf]
  %v183 = vld [vmem:[%s1 + $0x1f8] sm:$0xf]
  %v184 = vld [vmem:[%s1 + $0x1fc] sm:$0xf]
  %v185 = vld [vmem:[%s1 + $0x200] sm:$0xf]
  %v186 = vld [vmem:[%s1 + $0x204] sm:$0xf]
  %v187 = vld [vmem:[%s1 + $0x208] sm:$0xf]
  %v188 = vld [vmem:[%s1 + $0x20c] sm:$0xf]
  %v189 = vld [vmem:[%s1 + $0x210] sm:$0xf]
  %v190 = vld [vmem:[%s1 + $0x214] sm:$0xf]
  %v191 = vld [vmem:[%s1 + $0x218] sm:$0xf]
  %v192 = vld [vmem:[%s1 + $0x21c] sm:$0xf]
  %v193 = vld [vmem:[%s1 + $0x220] sm:$0xf]
  %v194 = vld [vmem:[%s1 + $0x224] sm:$0xf]
  %v195 = vld [vmem:[%s1 + $0x228] sm:$0xf]
  %v196 = vld [vmem:[%s1 + $0x22c] sm:$0xf]
  %v197 = vld [vmem:[%s1 + $0x230] sm:$0xf]
  %v198 = vld [vmem:[%s1 + $0x234] sm:$0xf]
  %v199 = vld [vmem:[%s1 + $0x238] sm:$0xf]
  %v200 = vld [vmem:[%s1 + $0x23c] sm:$0xf]
  %v201 = vld [vmem:[%s1 + $0x240] sm:$0xf]
  %v202 = vld [vmem:[%s1 + $0x244] sm:$0xf]
  %v203 = vld [vmem:[%s1 + $0x248] sm:$0xf]
  %v204 = vld [vmem:[%s1 + $0x24c] sm:$0xf]
  %v205 = vld [vmem:[%s1 + $0x250] sm:$0xf]
  %v206 = vld [vmem:[%s1 + $0x254] sm:$0xf]
  %v207 = vld [vmem:[%s1 + $0x258] sm:$0xf]
  %v208 = vld [vmem:[%s1 + $0x25c] sm:$0xf]
  %v209 = vld [vmem:[%s1 + $0x260] sm:$0xf]
  %v210 = vld [vmem:[%s1 + $0x264] sm:$0xf]
  %v211 = vld [vmem:[%s1 + $0x268] sm:$0xf]
  %v212 = vld [vmem:[%s1 + $0x26c] sm:$0xf]
  %v213 = vld [vmem:[%s1 + $0x270] sm:$0xf]
  %v214 = vld [vmem:[%s1 + $0x274] sm:$0xf]
  %v215 = vld [vmem:[%s1 + $0x278] sm:$0xf]
  %v216 = vld [vmem:[%s1 + $0x27c] sm:$0xf]
  %v217 = vld [vmem:[%s1 + $0x280] sm:$0xf]
  %v218 = vld [vmem:[%s1 + $0x284] sm:$0xf]
  %v219 = vld [vmem:[%s1 + $0x288] sm:$0xf]
  %v220 = vld [vmem:[%s1 + $0x28c] sm:$0xf]
  %v221 = vld [vmem:[%s1 + $0x290] sm:$0xf]
  %v222 = vld [vmem:[%s1 + $0x294] sm:$0xf]
  %v223 = vld [vmem:[%s1 + $0x298] sm:$0xf]
  %v224 = vld [vmem:[%s1 + $0x29c] sm:$0xf]
  %v225 = vld [vmem:[%s1 + $0x2a0] sm:$0xf]
  %v226 = vld [vmem:[%s1 + $0x2a4] sm:$0xf]
  %v227 = vld [vmem:[%s1 + $0x2a8] sm:$0xf]
  %v228 = vld [vmem:[%s1 + $0x2ac] sm:$0xf]
  %v229 = vld [vmem:[%s1 + $0x2b0] sm:$0xf]
  %v230 = vld [vmem:[%s1 + $0x2b4] sm:$0xf]
  %v231 = vld [vmem:[%s1 + $0x2b8] sm:$0xf]
  %v232 = vld [vmem:[%s1 + $0x2bc] sm:$0xf]
  %v233 = vld [vmem:[%s1 + $0x2c0] sm:$0xf]
  %v234 = vld [vmem:[%s1 + $0x2c4] sm:$0xf]
  %v235 = vld [vmem:[%s1 + $0x2c8] sm:$0xf]
  %v236 = vld [vmem:[%s1 + $0x2cc] sm:$0xf]
  %v237 = vld [vmem:[%s1 + $0x2d0] sm:$0xf]
  %v238 = vld [vmem:[%s1 + $0x2d4] sm:$0xf]
  %v239 = vld [vmem:[%s1 + $0x2d8] sm:$0xf]
  %v240 = vld [vmem:[%s1 + $0x2dc] sm:$0xf]
  %v241 = vld [vmem:[%s1 + $0x2e0] sm:$0xf]
  %v242 = vld [vmem:[%s1 + $0x2e4] sm:$0xf]
  %v243 = vld [vmem:[%s1 + $0x2e8] sm:$0xf]
  %v244 = vld [vmem:[%s1 + $0x2ec] sm:$0xf]
  %v245 = vld [vmem:[%s1 + $0x2f0] sm:$0xf]
  %v246 = vld [vmem:[%s1 + $0x2f4] sm:$0xf]
  %v247 = vld [vmem:[%s1 + $0x2f8] sm:$0xf]
  %v248 = vld [vmem:[%s1 + $0x2fc] sm:$0xf]
  %v249 = vld [vmem:[%s1 + $0x300] sm:$0xf]
  %v250 = vld [vmem:[%s1 + $0x304] sm:$0xf]
  %v251 = vld [vmem:[%s1 + $0x308] sm:$0xf]
  %v252 = vld [vmem:[%s1 + $0x30c] sm:$0xf]
  %v253 = vld [vmem:[%s1 + $0x310] sm:$0xf]
  %v254 = vld [vmem:[%s1 + $0x314] sm:$0xf]
  %v255 = vld [vmem:[%s1 + $0x318] sm:$0xf]
  %v256 = vld [vmem:[%s1 + $0x31c] sm:$0xf]
  %v257 = vld [vmem:[%s1 + $0x320] sm:$0xf]
  %v258 = vld [vmem:[%s1 + $0x324] sm:$0xf]
  %v259 = vld [vmem:[%s1 + $0x328] sm:$0xf]
  %v260 = vld [vmem:[%s1 + $0x32c] sm:$0xf]
  %v261 = vld [vmem:[%s1 + $0x330] sm:$0xf]
  %v262 = vld [vmem:[%s1 + $0x334] sm:$0xf]
  %v263 = vld [vmem:[%s1 + $0x338] sm:$0xf]
  %v264 = vld [vmem:[%s1 + $0x33c] sm:$0xf]
  %v265 = vld [vmem:[%s1 + $0x340] sm:$0xf]
  %v266 = vld [vmem:[%s1 + $0x344] sm:$0xf]
  %v267 = vld [vmem:[%s1 + $0x348] sm:$0xf]
  %v268 = vld [vmem:[%s1 + $0x34c] sm:$0xf]
  %v269 = vld [vmem:[%s1 + $0x350] sm:$0xf]
  %v270 = vld [vmem:[%s1 + $0x354] sm:$0xf]
  %v271 = vld [vmem:[%s1 + $0x358] sm:$0xf]
  %v272 = vld [vmem:[%s1 + $0x35c] sm:$0xf]
  %v273 = vld [vmem:[%s1 + $0x360] sm:$0xf]
  %v274 = vld [vmem:[%s1 + $0x364] sm:$0xf]
  %v275 = vld [vmem:[%s1 + $0x368] sm:$0xf]
  %v276 = vld [vmem:[%s1 + $0x36c] sm:$0xf]
  %v277 = vld [vmem:[%s1 + $0x370] sm:$0xf]
  %v278 = vld [vmem:[%s1 + $0x374] sm:$0xf]
  %v279 = vld [vmem:[%s1 + $0x378] sm:$0xf]
  %v280 = vld [vmem:[%s1 + $0x37c] sm:$0xf]
  %v281 = vld [vmem:[%s1 + $0x380] sm:$0xf]
  %v282 = vld [vmem:[%s1 + $0x384] sm:$0xf]
  %v283 = vld [vmem:[%s1 + $0x388] sm:$0xf]
  %v284 = vld [vmem:[%s1 + $0x38c] sm:$0xf]
  %v285 = vld [vmem:[%s1 + $0x390] sm:$0xf]
  %v286 = vld [vmem:[%s1 + $0x394] sm:$0xf]
  %v287 = vld [vmem:[%s1 + $0x398] sm:$0xf]
  %v288 = vld [vmem:[%s1 + $0x39c] sm:$0xf]
  %v289 = vld [vmem:[%s1 + $0x3a0] sm:$0xf]
  %v290 = vld [vmem:[%s1 + $0x3a4] sm:$0xf]
  %v291 = vld [vmem:[%s1 + $0x3a8] sm:$0xf]
  %v292 = vld [vmem:[%s1 + $0x3ac] sm:$0xf]
  %v293 = vld [vmem:[%s1 + $0x3b0] sm:$0xf]
  %v294 = vld [vmem:[%s1 + $0x3b4] sm:$0xf]
  %v295 = vld [vmem:[%s1 + $0x3b8] sm:$0xf]
  %v296 = vld [vmem:[%s1 + $0x3bc] sm:$0xf]
  %v297 = vld [vmem:[%s1 + $0x3c0] sm:$0xf]
  %v298 = vld [vmem:[%s1 + $0x3c4] sm:$0xf]
  %v299 = vld [vmem:[%s1 + $0x3c8] sm:$0xf]
  %v300 = vld [vmem:[%s1 + $0x3cc] sm:$0xf]
  %v301 = vld [vmem:[%s1 + $0x3d0] sm:$0xf]
  %v302 = vld [vmem:[%s1 + $0x3d4] sm:$0xf]
  %v303 = vld [vmem:[%s1 + $0x3d8] sm:$0xf]
  %v304 = vld [vmem:[%s1 + $0x3dc] sm:$0xf]
  %v305 = vld [vmem:[%s1 + $0x3e0] sm:$0xf]
  %v306 = vld [vmem:[%s1 + $0x3e4] sm:$0xf]
  %v307 = vld [vmem:[%s1 + $0x3e8] sm:$0xf]
  %v308 = vld [vmem:[%s1 + $0x3ec] sm:$0xf]
  %v309 = vld [vmem:[%s1 + $0x3f0] sm:$0xf]
  %v310 = vld [vmem:[%s1 + $0x3f4] sm:$0xf]
  %v311 = vld [vmem:[%s1 + $0x3f8] sm:$0xf]
  %v312 = vld [vmem:[%s1 + $0x3fc] sm:$0xf]
  %v313 = vld [vmem:[%s1 + $0x400] sm:$0xf]
  %v314 = vld [vmem:[%s1 + $0x404] sm:$0xf]
  %v315 = vld [vmem:[%s1 + $0x408] sm:$0xf]
  %v316 = vld [vmem:[%s1 + $0x40c] sm:$0xf]
  %v317 = vld [vmem:[%s1 + $0x410] sm:$0xf]
  %v318 = vld [vmem:[%s1 + $0x414] sm:$0xf]
  %v319 = vld [vmem:[%s1 + $0x418] sm:$0xf]
  %v320 = vld [vmem:[%s1 + $0x41c] sm:$0xf]
  %v321 = vld [vmem:[%s1 + $0x420] sm:$0xf]
  %v322 = vld [vmem:[%s1 + $0x424] sm:$0xf]
  %v323 = vld [vmem:[%s1 + $0x428] sm:$0xf]
  %v324 = vld [vmem:[%s1 + $0x42c] sm:$0xf]
  %v325 = vld [vmem:[%s1 + $0x430] sm:$0xf]
  %v326 = vld [vmem:[%s1 + $0x434] sm:$0xf]
  %v327 = vld [vmem:[%s1 + $0x438] sm:$0xf]
  %v328 = vld [vmem:[%s1 + $0x43c] sm:$0xf]
  %v329 = vld [vmem:[%s1 + $0x440] sm:$0xf]
  %v330 = vld [vmem:[%s1 + $0x444] sm:$0xf]
  %v331 = vld [vmem:[%s1 + $0x448] sm:$0xf]
  %v332 = vld [vmem:[%s1 + $0x44c] sm:$0xf]
  %v333 = vld [vmem:[%s1 + $0x450] sm:$0xf]
  %v334 = vld [vmem:[%s1 + $0x454] sm:$0xf]
  %v335 = vld [vmem:[%s1 + $0x458] sm:$0xf]
  %v336 = vld [vmem:[%s1 + $0x45c] sm:$0xf]
  %v337 = vld [vmem:[%s1 + $0x460] sm:$0xf]
  %v338 = vld [vmem:[%s1 + $0x464] sm:$0xf]
  %v339 = vld [vmem:[%s1 + $0x468] sm:$0xf]
  %v340 = vld [vmem:[%s1 + $0x46c] sm:$0xf]
  %v341 = vld [vmem:[%s1 + $0x470] sm:$0xf]
  %v342 = vld [vmem:[%s1 + $0x474] sm:$0xf]
  %v343 = vld [vmem:[%s1 + $0x478] sm:$0xf]
  %v344 = vld [vmem:[%s1 + $0x47c] sm:$0xf]
  %v345 = vld [vmem:[%s1 + $0x480] sm:$0xf]
  %v346 = vld [vmem:[%s1 + $0x484] sm:$0xf]
  %v347 = vld [vmem:[%s1 + $0x488] sm:$0xf]
  %v348 = vld [vmem:[%s1 + $0x48c] sm:$0xf]
  %v349 = vld [vmem:[%s1 + $0x490] sm:$0xf]
  %v350 = vld [vmem:[%s1 + $0x494] sm:$0xf]
  %v351 = vld [vmem:[%s1 + $0x498] sm:$0xf]
  %v352 = vld [vmem:[%s1 + $0x49c] sm:$0xf]
  %v353 = vld [vmem:[%s1 + $0x4a0] sm:$0xf]
  %v354 = vld [vmem:[%s1 + $0x4a4] sm:$0xf]
  %v355 = vld [vmem:[%s1 + $0x4a8] sm:$0xf]
  %v356 = vld [vmem:[%s1 + $0x4ac] sm:$0xf]
  %v357 = vld [vmem:[%s1 + $0x4b0] sm:$0xf]
  %v358 = vld [vmem:[%s1 + $0x4b4] sm:$0xf]
  %v359 = vld [vmem:[%s1 + $0x4b8] sm:$0xf]
  %v360 = vld [vmem:[%s1 + $0x4bc] sm:$0xf]
  %v361 = vld [vmem:[%s1 + $0x4c0] sm:$0xf]
  %v362 = vld [vmem:[%s1 + $0x4c4] sm:$0xf]
  %v363 = vld [vmem:[%s1 + $0x4c8] sm:$0xf]
  %v364 = vld [vmem:[%s1 + $0x4cc] sm:$0xf]
  %v365 = vld [vmem:[%s1 + $0x4d0] sm:$0xf]
  %v366 = vld [vmem:[%s1 + $0x4d4] sm:$0xf]
  %v367 = vld [vmem:[%s1 + $0x4d8] sm:$0xf]
  %v368 = vld [vmem:[%s1 + $0x4dc] sm:$0xf]
  %v369 = vld [vmem:[%s1 + $0x4e0] sm:$0xf]
  %v370 = vld [vmem:[%s1 + $0x4e4] sm:$0xf]
  %v371 = vld [vmem:[%s1 + $0x4e8] sm:$0xf]
  %v372 = vld [vmem:[%s1 + $0x4ec] sm:$0xf]
  %v373 = vld [vmem:[%s1 + $0x4f0] sm:$0xf]
  %v374 = vld [vmem:[%s1 + $0x4f4] sm:$0xf]
  %v375 = vld [vmem:[%s1 + $0x4f8] sm:$0xf]
  %v376 = vld [vmem:[%s1 + $0x4fc] sm:$0xf]
  %v377 = vld [vmem:[%s1 + $0x500] sm:$0xf]
  %v378 = vld [vmem:[%s1 + $0x504] sm:$0xf]
  %v379 = vld [vmem:[%s1 + $0x508] sm:$0xf]
  %v380 = vld [vmem:[%s1 + $0x50c] sm:$0xf]
  %v381 = vld [vmem:[%s1 + $0x510] sm:$0xf]
  %v382 = vld [vmem:[%s1 + $0x514] sm:$0xf]
  %v383 = vld [vmem:[%s1 + $0x518] sm:$0xf]
  %v384 = vld [vmem:[%s1 + $0x51c] sm:$0xf]
  %v385 = vld [vmem:[%s1 + $0x520] sm:$0xf]
  %v386 = vld [vmem:[%s1 + $0x524] sm:$0xf]
  %v387 = vld [vmem:[%s1 + $0x528] sm:$0xf]
  %v388 = vld [vmem:[%s1 + $0x52c] sm:$0xf]
  %v389 = vld [vmem:[%s1 + $0x530] sm:$0xf]
  %v390 = vld [vmem:[%s1 + $0x534] sm:$0xf]
  %v391 = vld [vmem:[%s1 + $0x538] sm:$0xf]
  %v392 = vld [vmem:[%s1 + $0x53c] sm:$0xf]
  %v393 = vld [vmem:[%s1 + $0x540] sm:$0xf]
  %v394 = vld [vmem:[%s1 + $0x544] sm:$0xf]
  %v395 = vld [vmem:[%s1 + $0x548] sm:$0xf]
  %v396 = vld [vmem:[%s1 + $0x54c] sm:$0xf]
  %v397 = vld [vmem:[%s1 + $0x550] sm:$0xf]
  %v398 = vld [vmem:[%s1 + $0x554] sm:$0xf]
  %v399 = vld [vmem:[%s1 + $0x558] sm:$0xf]
  %v400 = vld [vmem:[%s1 + $0x55c] sm:$0xf]
  %v401 = vld [vmem:[%s1 + $0x560] sm:$0xf]
  %v402 = vld [vmem:[%s1 + $0x564] sm:$0xf]
  %v403 = vld [vmem:[%s1 + $0x568] sm:$0xf]
  %v404 = vld [vmem:[%s1 + $0x56c] sm:$0xf]
  %v405 = vld [vmem:[%s1 + $0x570] sm:$0xf]
  %v406 = vld [vmem:[%s1 + $0x574] sm:$0xf]
  %v407 = vld [vmem:[%s1 + $0x578] sm:$0xf]
  %v408 = vld [vmem:[%s1 + $0x57c] sm:$0xf]
  %v409 = vld [vmem:[%s1 + $0x580] sm:$0xf]
  %v410 = vld [vmem:[%s1 + $0x584] sm:$0xf]
  %v411 = vld [vmem:[%s1 + $0x588] sm:$0xf]
  %v412 = vld [vmem:[%s1 + $0x58c] sm:$0xf]
  %v413 = vld [vmem:[%s1 + $0x590] sm:$0xf]
  %v414 = vld [vmem:[%s1 + $0x594] sm:$0xf]
  %v415 = vld [vmem:[%s1 + $0x598] sm:$0xf]
  %v416 = vld [vmem:[%s1 + $0x59c] sm:$0xf]
  %v417 = vld [vmem:[%s1 + $0x5a0] sm:$0xf]
  %v418 = vld [vmem:[%s1 + $0x5a4] sm:$0xf]
  %v419 = vld [vmem:[%s1 + $0x5a8] sm:$0xf]
  %v420 = vld [vmem:[%s1 + $0x5ac] sm:$0xf]
  %v421 = vld [vmem:[%s1 + $0x5b0] sm:$0xf]
  %v422 = vld [vmem:[%s1 + $0x5b4] sm:$0xf]
  %v423 = vld [vmem:[%s1 + $0x5b8] sm:$0xf]
  %v424 = vld [vmem:[%s1 + $0x5bc] sm:$0xf]
  %v425 = vld [vmem:[%s1 + $0x5c0] sm:$0xf]
  %v426 = vld [vmem:[%s1 + $0x5c4] sm:$0xf]
  %v427 = vld [vmem:[%s1 + $0x5c8] sm:$0xf]
  %v428 = vld [vmem:[%s1 + $0x5cc] sm:$0xf]
  %v429 = vld [vmem:[%s1 + $0x5d0] sm:$0xf]
  %v430 = vld [vmem:[%s1 + $0x5d4] sm:$0xf]
  %v431 = vld [vmem:[%s1 + $0x5d8] sm:$0xf]
  %v432 = vld [vmem:[%s1 + $0x5dc] sm:$0xf]
  %v433 = vld [vmem:[%s1 + $0x5e0] sm:$0xf]
  %v434 = vld [vmem:[%s1 + $0x5e4] sm:$0xf]
  %v435 = vld [vmem:[%s1 + $0x5e8] sm:$0xf]
  %v436 = vld [vmem:[%s1 + $0x5ec] sm:$0xf]
  %v437 = vld [vmem:[%s1 + $0x5f0] sm:$0xf]
  %v438 = vld [vmem:[%s1 + $0x5f4] sm:$0xf]
  %v439 = vld [vmem:[%s1 + $0x5f8] sm:$0xf]
  %v440 = vld [vmem:[%s1 + $0x5fc] sm:$0xf]
  %v441 = vld [vmem:[%s1 + $0x600] sm:$0xf]
  %v442 = vld [vmem:[%s1 + $0x604] sm:$0xf]
  %v443 = vld [vmem:[%s1 + $0x608] sm:$0xf]
  %v444 = vld [vmem:[%s1 + $0x60c] sm:$0xf]
  %v445 = vld [vmem:[%s1 + $0x610] sm:$0xf]
  %v446 = vld [vmem:[%s1 + $0x614] sm:$0xf]
  %v447 = vld [vmem:[%s1 + $0x618] sm:$0xf]
  %v448 = vld [vmem:[%s1 + $0x61c] sm:$0xf]
  %v449 = vld [vmem:[%s1 + $0x620] sm:$0xf]
  %v450 = vld [vmem:[%s1 + $0x624] sm:$0xf]
  %v451 = vld [vmem:[%s1 + $0x628] sm:$0xf]
  %v452 = vld [vmem:[%s1 + $0x62c] sm:$0xf]
  %v453 = vld [vmem:[%s1 + $0x630] sm:$0xf]
  %v454 = vld [vmem:[%s1 + $0x634] sm:$0xf]
  %v455 = vld [vmem:[%s1 + $0x638] sm:$0xf]
  %v456 = vld [vmem:[%s1 + $0x63c] sm:$0xf]
  %v457 = vld [vmem:[%s1 + $0x640] sm:$0xf]
  %v458 = vld [vmem:[%s1 + $0x644] sm:$0xf]
  %v459 = vld [vmem:[%s1 + $0x648] sm:$0xf]
  %v460 = vld [vmem:[%s1 + $0x64c] sm:$0xf]
  %v461 = vld [vmem:[%s1 + $0x650] sm:$0xf]
  %v462 = vld [vmem:[%s1 + $0x654] sm:$0xf]
  %v463 = vld [vmem:[%s1 + $0x658] sm:$0xf]
  %v464 = vld [vmem:[%s1 + $0x65c] sm:$0xf]
  %v465 = vld [vmem:[%s1 + $0x660] sm:$0xf]
  %v466 = vld [vmem:[%s1 + $0x664] sm:$0xf]
  %v467 = vld [vmem:[%s1 + $0x668] sm:$0xf]
  %v468 = vld [vmem:[%s1 + $0x66c] sm:$0xf]
  %v469 = vld [vmem:[%s1 + $0x670] sm:$0xf]
  %v470 = vld [vmem:[%s1 + $0x674] sm:$0xf]
  %v471 = vld [vmem:[%s1 + $0x678] sm:$0xf]
  %v472 = vld [vmem:[%s1 + $0x67c] sm:$0xf]
  %v473 = vld [vmem:[%s1 + $0x680] sm:$0xf]
  %v474 = vld [vmem:[%s1 + $0x684] sm:$0xf]
  %v475 = vld [vmem:[%s1 + $0x688] sm:$0xf]
  %v476 = vld [vmem:[%s1 + $0x68c] sm:$0xf]
  %v477 = vld [vmem:[%s1 + $0x690] sm:$0xf]
  %v478 = vld [vmem:[%s1 + $0x694] sm:$0xf]
  %v479 = vld [vmem:[%s1 + $0x698] sm:$0xf]
  %v480 = vld [vmem:[%s1 + $0x69c] sm:$0xf]
  %v481 = vld [vmem:[%s1 + $0x6a0] sm:$0xf]
  %v482 = vld [vmem:[%s1 + $0x6a4] sm:$0xf]
  %v483 = vld [vmem:[%s1 + $0x6a8] sm:$0xf]
  %v484 = vld [vmem:[%s1 + $0x6ac] sm:$0xf]
  %v485 = vld [vmem:[%s1 + $0x6b0] sm:$0xf]
  %v486 = vld [vmem:[%s1 + $0x6b4] sm:$0xf]
  %v487 = vld [vmem:[%s1 + $0x6b8] sm:$0xf]
  %v488 = vld [vmem:[%s1 + $0x6bc] sm:$0xf]
  %v489 = vld [vmem:[%s1 + $0x6c0] sm:$0xf]
  %v490 = vld [vmem:[%s1 + $0x6c4] sm:$0xf]
  %v491 = vld [vmem:[%s1 + $0x6c8] sm:$0xf]
  %v492 = vld [vmem:[%s1 + $0x6cc] sm:$0xf]
  %v493 = vld [vmem:[%s1 + $0x6d0] sm:$0xf]
  %v494 = vld [vmem:[%s1 + $0x6d4] sm:$0xf]
  %v495 = vld [vmem:[%s1 + $0x6d8] sm:$0xf]
  %v496 = vld [vmem:[%s1 + $0x6dc] sm:$0xf]
  %v497 = vld [vmem:[%s1 + $0x6e0] sm:$0xf]
  %v498 = vld [vmem:[%s1 + $0x6e4] sm:$0xf]
  %v499 = vld [vmem:[%s1 + $0x6e8] sm:$0xf]
  %v500 = vld [vmem:[%s1 + $0x6ec] sm:$0xf]
  %v501 = vld [vmem:[%s1 + $0x6f0] sm:$0xf]
  %v502 = vld [vmem:[%s1 + $0x6f4] sm:$0xf]
  %v503 = vld [vmem:[%s1 + $0x6f8] sm:$0xf]
  %v504 = vld [vmem:[%s1 + $0x6fc] sm:$0xf]
  %v505 = vld [vmem:[%s1 + $0x700] sm:$0xf]
  %v506 = vld [vmem:[%s1 + $0x704] sm:$0xf]
  %v507 = vld [vmem:[%s1 + $0x708] sm:$0xf]
  %v508 = vld [vmem:[%s1 + $0x70c] sm:$0xf]
  %v509 = vld [vmem:[%s1 + $0x710] sm:$0xf]
  %v510 = vld [vmem:[%s1 + $0x714] sm:$0xf]
  %v511 = vld [vmem:[%s1 + $0x718] sm:$0xf]
  %v512 = vld [vmem:[%s1 + $0x71c] sm:$0xf]
  %v513 = vld [vmem:[%s1 + $0x720] sm:$0xf]
  %v514 = vld [vmem:[%s1 + $0x724] sm:$0xf]
  %v515 = vld [vmem:[%s1 + $0x728] sm:$0xf]
  %v516 = vld [vmem:[%s1 + $0x72c] sm:$0xf]
  %v517 = vld [vmem:[%s1 + $0x730] sm:$0xf]
  %v518 = vld [vmem:[%s1 + $0x734] sm:$0xf]
  %v519 = vld [vmem:[%s1 + $0x738] sm:$0xf]
  %v520 = vld [vmem:[%s1 + $0x73c] sm:$0xf]
  %v521 = vld [vmem:[%s1 + $0x740] sm:$0xf]
  %v522 = vld [vmem:[%s1 + $0x744] sm:$0xf]
  %v523 = vld [vmem:[%s1 + $0x748] sm:$0xf]
  %v524 = vld [vmem:[%s1 + $0x74c] sm:$0xf]
  %v525 = vld [vmem:[%s1 + $0x750] sm:$0xf]
  %v526 = vld [vmem:[%s1 + $0x754] sm:$0xf]
  %v527 = vld [vmem:[%s1 + $0x758] sm:$0xf]
  %v528 = vld [vmem:[%s1 + $0x75c] sm:$0xf]
  %v529 = vld [vmem:[%s1 + $0x760] sm:$0xf]
  %v530 = vld [vmem:[%s1 + $0x764] sm:$0xf]
  %v531 = vld [vmem:[%s1 + $0x768] sm:$0xf]
  %v532 = vld [vmem:[%s1 + $0x76c] sm:$0xf]
  %v533 = vld [vmem:[%s1 + $0x770] sm:$0xf]
  %v534 = vld [vmem:[%s1 + $0x774] sm:$0xf]
  %v535 = vld [vmem:[%s1 + $0x778] sm:$0xf]
  %v536 = vld [vmem:[%s1 + $0x77c] sm:$0xf]
  %v537 = vld [vmem:[%s1 + $0x780] sm:$0xf]
  %v538 = vld [vmem:[%s1 + $0x784] sm:$0xf]
  %v539 = vld [vmem:[%s1 + $0x788] sm:$0xf]
  %v540 = vld [vmem:[%s1 + $0x78c] sm:$0xf]
  %v541 = vld [vmem:[%s1 + $0x790] sm:$0xf]
  %v542 = vld [vmem:[%s1 + $0x794] sm:$0xf]
  %v543 = vld [vmem:[%s1 + $0x798] sm:$0xf]
  %v544 = vld [vmem:[%s1 + $0x79c] sm:$0xf]
  %v545 = vld [vmem:[%s1 + $0x7a0] sm:$0xf]
  %v546 = vld [vmem:[%s1 + $0x7a4] sm:$0xf]
  %v547 = vld [vmem:[%s1 + $0x7a8] sm:$0xf]
  %v548 = vld [vmem:[%s1 + $0x7ac] sm:$0xf]
  %v549 = vld [vmem:[%s1 + $0x7b0] sm:$0xf]
  %v550 = vld [vmem:[%s1 + $0x7b4] sm:$0xf]
  %v551 = vld [vmem:[%s1 + $0x7b8] sm:$0xf]
  %v552 = vld [vmem:[%s1 + $0x7bc] sm:$0xf]
  %v553 = vld [vmem:[%s1 + $0x7c0] sm:$0xf]
  %v554 = vld [vmem:[%s1 + $0x7c4] sm:$0xf]
  %v555 = vld [vmem:[%s1 + $0x7c8] sm:$0xf]
  %v556 = vld [vmem:[%s1 + $0x7cc] sm:$0xf]
  %v557 = vld [vmem:[%s1 + $0x7d0] sm:$0xf]
  %v558 = vld [vmem:[%s1 + $0x7d4] sm:$0xf]
  %v559 = vld [vmem:[%s1 + $0x7d8] sm:$0xf]
  %v560 = vld [vmem:[%s1 + $0x7dc] sm:$0xf]
  %v561 = vld [vmem:[%s1 + $0x7e0] sm:$0xf]
  %v562 = vld [vmem:[%s1 + $0x7e4] sm:$0xf]
  %v563 = vld [vmem:[%s1 + $0x7e8] sm:$0xf]
  %v564 = vld [vmem:[%s1 + $0x7ec] sm:$0xf]
  %v565 = vld [vmem:[%s1 + $0x7f0] sm:$0xf]
  %v566 = vld [vmem:[%s1 + $0x7f4] sm:$0xf]
  %v567 = vld [vmem:[%s1 + $0x7f8] sm:$0xf]
  %v568 = vld [vmem:[%s1 + $0x7fc] sm:$0xf]
  %v569 = vld [vmem:[%s1 + $0x800] sm:$0xf]
  %v570 = vld [vmem:[%s1 + $0x804] sm:$0xf]
  %v571 = vld [vmem:[%s1 + $0x808] sm:$0xf]
  %v572 = vld [vmem:[%s1 + $0x80c] sm:$0xf]
  %v573 = vld [vmem:[%s1 + $0x810] sm:$0xf]
  %v574 = vld [vmem:[%s1 + $0x814] sm:$0xf]
  %v575 = vld [vmem:[%s1 + $0x818] sm:$0xf]
  %v576 = vld [vmem:[%s1 + $0x81c] sm:$0xf]
  %v577 = vld [vmem:[%s1 + $0x820] sm:$0xf]
  %v578 = vld [vmem:[%s1 + $0x824] sm:$0xf]
  %v579 = vld [vmem:[%s1 + $0x828] sm:$0xf]
  %v580 = vld [vmem:[%s1 + $0x82c] sm:$0xf]
  %v581 = vld [vmem:[%s1 + $0x830] sm:$0xf]
  %v582 = vld [vmem:[%s1 + $0x834] sm:$0xf]
  %v583 = vld [vmem:[%s1 + $0x838] sm:$0xf]
  %v584 = vld [vmem:[%s1 + $0x83c] sm:$0xf]
  %v585 = vld [vmem:[%s1 + $0x840] sm:$0xf]
  %v586 = vld [vmem:[%s1 + $0x844] sm:$0xf]
  %v587 = vld [vmem:[%s1 + $0x848] sm:$0xf]
  %v588 = vld [vmem:[%s1 + $0x84c] sm:$0xf]
  %v589 = vld [vmem:[%s1 + $0x850] sm:$0xf]
  %v590 = vld [vmem:[%s1 + $0x854] sm:$0xf]
  %v591 = vld [vmem:[%s1 + $0x858] sm:$0xf]
  %v592 = vld [vmem:[%s1 + $0x85c] sm:$0xf]
  %v593 = vld [vmem:[%s1 + $0x860] sm:$0xf]
  %v594 = vld [vmem:[%s1 + $0x864] sm:$0xf]
  %v595 = vld [vmem:[%s1 + $0x868] sm:$0xf]
  %v596 = vld [vmem:[%s1 + $0x86c] sm:$0xf]
  %v597 = vld [vmem:[%s1 + $0x870] sm:$0xf]
  %v598 = vld [vmem:[%s1 + $0x874] sm:$0xf]
  %v599 = vld [vmem:[%s1 + $0x878] sm:$0xf]
  %v600 = vld [vmem:[%s1 + $0x87c] sm:$0xf]
  %v601 = vld [vmem:[%s1 + $0x880] sm:$0xf]
  %v602 = vld [vmem:[%s1 + $0x884] sm:$0xf]
  %v603 = vld [vmem:[%s1 + $0x888] sm:$0xf]
  %v604 = vld [vmem:[%s1 + $0x88c] sm:$0xf]
  %v605 = vld [vmem:[%s1 + $0x890] sm:$0xf]
  %v606 = vld [vmem:[%s1 + $0x894] sm:$0xf]
  %v607 = vld [vmem:[%s1 + $0x898] sm:$0xf]
  %v608 = vld [vmem:[%s1 + $0x89c] sm:$0xf]
  %v609 = vld [vmem:[%s1 + $0x8a0] sm:$0xf]
  %v610 = vld [vmem:[%s1 + $0x8a4] sm:$0xf]
  %v611 = vld [vmem:[%s1 + $0x8a8] sm:$0xf]
  %v612 = vld [vmem:[%s1 + $0x8ac] sm:$0xf]
  %v613 = vld [vmem:[%s1 + $0x8b0] sm:$0xf]
  %v614 = vld [vmem:[%s1 + $0x8b4] sm:$0xf]
  %v615 = vld [vmem:[%s1 + $0x8b8] sm:$0xf]
  %v616 = vld [vmem:[%s1 + $0x8bc] sm:$0xf]
  %v617 = vld [vmem:[%s1 + $0x8c0] sm:$0xf]
  %v618 = vld [vmem:[%s1 + $0x8c4] sm:$0xf]
  %v619 = vld [vmem:[%s1 + $0x8c8] sm:$0xf]
  %v620 = vld [vmem:[%s1 + $0x8cc] sm:$0xf]
  %v621 = vld [vmem:[%s1 + $0x8d0] sm:$0xf]
  %v622 = vld [vmem:[%s1 + $0x8d4] sm:$0xf]
  %v623 = vld [vmem:[%s1 + $0x8d8] sm:$0xf]
  %v624 = vld [vmem:[%s1 + $0x8dc] sm:$0xf]
  %v625 = vld [vmem:[%s1 + $0x8e0] sm:$0xf]
  %v626 = vld [vmem:[%s1 + $0x8e4] sm:$0xf]
  %v627 = vld [vmem:[%s1 + $0x8e8] sm:$0xf]
  %v628 = vld [vmem:[%s1 + $0x8ec] sm:$0xf]
  %v629 = vld [vmem:[%s1 + $0x8f0] sm:$0xf]
  %v630 = vld [vmem:[%s1 + $0x8f4] sm:$0xf]
  %v631 = vld [vmem:[%s1 + $0x8f8] sm:$0xf]
  %v632 = vld [vmem:[%s1 + $0x8fc] sm:$0xf]
  %v633 = vld [vmem:[%s1 + $0x900] sm:$0xf]
  %v634 = vld [vmem:[%s1 + $0x904] sm:$0xf]
  %v635 = vld [vmem:[%s1 + $0x908] sm:$0xf]
  %v636 = vld [vmem:[%s1 + $0x90c] sm:$0xf]
  %v637 = vld [vmem:[%s1 + $0x910] sm:$0xf]
  %v638 = vld [vmem:[%s1 + $0x914] sm:$0xf]
  %v639 = vld [vmem:[%s1 + $0x918] sm:$0xf]
  %v640 = vld [vmem:[%s1 + $0x91c] sm:$0xf]
  %v641 = vld [vmem:[%s1 + $0x920] sm:$0xf]
  %v642 = vld [vmem:[%s1 + $0x924] sm:$0xf]
  %v643 = vld [vmem:[%s1 + $0x928] sm:$0xf]
  %v644 = vld [vmem:[%s1 + $0x92c] sm:$0xf]
  %v645 = vld [vmem:[%s1 + $0x930] sm:$0xf]
  %v646 = vld [vmem:[%s1 + $0x934] sm:$0xf]
  %v647 = vld [vmem:[%s1 + $0x938] sm:$0xf]
  %v648 = vld [vmem:[%s1 + $0x93c] sm:$0xf]
  %v649 = vld [vmem:[%s1 + $0x940] sm:$0xf]
  %v650 = vld [vmem:[%s1 + $0x944] sm:$0xf]
  %v651 = vld [vmem:[%s1 + $0x948] sm:$0xf]
  %v652 = vld [vmem:[%s1 + $0x94c] sm:$0xf]
  %v653 = vld [vmem:[%s1 + $0x950] sm:$0xf]
  %v654 = vld [vmem:[%s1 + $0x954] sm:$0xf]
  %v655 = vld [vmem:[%s1 + $0x958] sm:$0xf]
  %v656 = vld [vmem:[%s1 + $0x95c] sm:$0xf]
  %v657 = vld [vmem:[%s1 + $0x960] sm:$0xf]
  %v658 = vld [vmem:[%s1 + $0x964] sm:$0xf]
  %v659 = vld [vmem:[%s1 + $0x968] sm:$0xf]
  %v660 = vld [vmem:[%s1 + $0x96c] sm:$0xf]
  %v661 = vld [vmem:[%s1 + $0x970] sm:$0xf]
  %v662 = vld [vmem:[%s1 + $0x974] sm:$0xf]
  %v663 = vld [vmem:[%s1 + $0x978] sm:$0xf]
  %v664 = vld [vmem:[%s1 + $0x97c] sm:$0xf]
  %v665 = vld [vmem:[%s1 + $0x980] sm:$0xf]
  %v666 = vld [vmem:[%s1 + $0x984] sm:$0xf]
  %v667 = vld [vmem:[%s1 + $0x988] sm:$0xf]
  %v668 = vld [vmem:[%s1 + $0x98c] sm:$0xf]
  %v669 = vld [vmem:[%s1 + $0x990] sm:$0xf]
  %v670 = vld [vmem:[%s1 + $0x994] sm:$0xf]
  %v671 = vld [vmem:[%s1 + $0x998] sm:$0xf]
  %v672 = vld [vmem:[%s1 + $0x99c] sm:$0xf]
  %v673 = vld [vmem:[%s1 + $0x9a0] sm:$0xf]
  %v674 = vld [vmem:[%s1 + $0x9a4] sm:$0xf]
  %v675 = vld [vmem:[%s1 + $0x9a8] sm:$0xf]
  %v676 = vld [vmem:[%s1 + $0x9ac] sm:$0xf]
  %v677 = vld [vmem:[%s1 + $0x9b0] sm:$0xf]
  %v678 = vld [vmem:[%s1 + $0x9b4] sm:$0xf]
  %v679 = vld [vmem:[%s1 + $0x9b8] sm:$0xf]
  %v680 = vld [vmem:[%s1 + $0x9bc] sm:$0xf]
  %v681 = vld [vmem:[%s1 + $0x9c0] sm:$0xf]
  %v682 = vld [vmem:[%s1 + $0x9c4] sm:$0xf]
  %v683 = vld [vmem:[%s1 + $0x9c8] sm:$0xf]
  %v684 = vld [vmem:[%s1 + $0x9cc] sm:$0xf]
  %v685 = vld [vmem:[%s1 + $0x9d0] sm:$0xf]
  %v686 = vld [vmem:[%s1 + $0x9d4] sm:$0xf]
  %v687 = vld [vmem:[%s1 + $0x9d8] sm:$0xf]
  %v688 = vld [vmem:[%s1 + $0x9dc] sm:$0xf]
  %v689 = vld [vmem:[%s1 + $0x9e0] sm:$0xf]
  %v690 = vld [vmem:[%s1 + $0x9e4] sm:$0xf]
  %v691 = vld [vmem:[%s1 + $0x9e8] sm:$0xf]
  %v692 = vld [vmem:[%s1 + $0x9ec] sm:$0xf]
  %v693 = vld [vmem:[%s1 + $0x9f0] sm:$0xf]
  %v694 = vld [vmem:[%s1 + $0x9f4] sm:$0xf]
  %v695 = vld [vmem:[%s1 + $0x9f8] sm:$0xf]
  %v696 = vld [vmem:[%s1 + $0x9fc] sm:$0xf]
  %v697 = vld [vmem:[%s1 + $0xa00] sm:$0xf]
  %v698 = vld [vmem:[%s1 + $0xa04] sm:$0xf]
  %v699 = vld [vmem:[%s1 + $0xa08] sm:$0xf]
  %v700 = vld [vmem:[%s1 + $0xa0c] sm:$0xf]
  %v701 = vld [vmem:[%s1 + $0xa10] sm:$0xf]
  %v702 = vld [vmem:[%s1 + $0xa14] sm:$0xf]
  %v703 = vld [vmem:[%s1 + $0xa18] sm:$0xf]
  %v704 = vld [vmem:[%s1 + $0xa1c] sm:$0xf]
  %v705 = vld [vmem:[%s1 + $0xa20] sm:$0xf]
  %v706 = vld [vmem:[%s1 + $0xa24] sm:$0xf]
  %v707 = vld [vmem:[%s1 + $0xa28] sm:$0xf]
  %v708 = vld [vmem:[%s1 + $0xa2c] sm:$0xf]
  %v709 = vld [vmem:[%s1 + $0xa30] sm:$0xf]
  %v710 = vld [vmem:[%s1 + $0xa34] sm:$0xf]
  %v711 = vld [vmem:[%s1 + $0xa38] sm:$0xf]
  %v712 = vld [vmem:[%s1 + $0xa3c] sm:$0xf]
  %v713 = vld [vmem:[%s1 + $0xa40] sm:$0xf]
  %v714 = vld [vmem:[%s1 + $0xa44] sm:$0xf]
  %v715 = vld [vmem:[%s1 + $0xa48] sm:$0xf]
  %v716 = vld [vmem:[%s1 + $0xa4c] sm:$0xf]
  %v717 = vld [vmem:[%s1 + $0xa50] sm:$0xf]
  %v718 = vld [vmem:[%s1 + $0xa54] sm:$0xf]
  %v719 = vld [vmem:[%s1 + $0xa58] sm:$0xf]
  %v720 = vld [vmem:[%s1 + $0xa5c] sm:$0xf]
  %v721 = vld [vmem:[%s1 + $0xa60] sm:$0xf]
  %v722 = vld [vmem:[%s1 + $0xa64] sm:$0xf]
  %v723 = vld [vmem:[%s1 + $0xa68] sm:$0xf]
  %v724 = vld [vmem:[%s1 + $0xa6c] sm:$0xf]
  %v725 = vld [vmem:[%s1 + $0xa70] sm:$0xf]
  %v726 = vld [vmem:[%s1 + $0xa74] sm:$0xf]
  %v727 = vld [vmem:[%s1 + $0xa78] sm:$0xf]
  %v728 = vld [vmem:[%s1 + $0xa7c] sm:$0xf]
  %v729 = vld [vmem:[%s1 + $0xa80] sm:$0xf]
  %v730 = vld [vmem:[%s1 + $0xa84] sm:$0xf]
  %v731 = vld [vmem:[%s1 + $0xa88] sm:$0xf]
  %v732 = vld [vmem:[%s1 + $0xa8c] sm:$0xf]
  %v733 = vld [vmem:[%s1 + $0xa90] sm:$0xf]
  %v734 = vld [vmem:[%s1 + $0xa94] sm:$0xf]
  %v735 = vld [vmem:[%s1 + $0xa98] sm:$0xf]
  %v736 = vld [vmem:[%s1 + $0xa9c] sm:$0xf]
  %v737 = vld [vmem:[%s1 + $0xaa0] sm:$0xf]
  %v738 = vld [vmem:[%s1 + $0xaa4] sm:$0xf]
  %v739 = vld [vmem:[%s1 + $0xaa8] sm:$0xf]
  %v740 = vld [vmem:[%s1 + $0xaac] sm:$0xf]
  %v741 = vld [vmem:[%s1 + $0xab0] sm:$0xf]
  %v742 = vld [vmem:[%s1 + $0xab4] sm:$0xf]
  %v743 = vld [vmem:[%s1 + $0xab8] sm:$0xf]
  %v744 = vld [vmem:[%s1 + $0xabc] sm:$0xf]
  %v745 = vld [vmem:[%s1 + $0xac0] sm:$0xf]
  %v746 = vld [vmem:[%s1 + $0xac4] sm:$0xf]
  %v747 = vld [vmem:[%s1 + $0xac8] sm:$0xf]
  %v748 = vld [vmem:[%s1 + $0xacc] sm:$0xf]
  %v749 = vld [vmem:[%s1 + $0xad0] sm:$0xf]
  %v750 = vld [vmem:[%s1 + $0xad4] sm:$0xf]
  %v751 = vld [vmem:[%s1 + $0xad8] sm:$0xf]
  %v752 = vld [vmem:[%s1 + $0xadc] sm:$0xf]
  %v753 = vld [vmem:[%s1 + $0xae0] sm:$0xf]
  %v754 = vld [vmem:[%s1 + $0xae4] sm:$0xf]
  %v755 = vld [vmem:[%s1 + $0xae8] sm:$0xf]
  %v756 = vld [vmem:[%s1 + $0xaec] sm:$0xf]
  %v757 = vld [vmem:[%s1 + $0xaf0] sm:$0xf]
  %v758 = vld [vmem:[%s1 + $0xaf4] sm:$0xf]
  %v759 = vld [vmem:[%s1 + $0xaf8] sm:$0xf]
  %v760 = vld [vmem:[%s1 + $0xafc] sm:$0xf]
  %v761 = vld [vmem:[%s1 + $0xb00] sm:$0xf]
  %v762 = vld [vmem:[%s1 + $0xb04] sm:$0xf]
  %v763 = vld [vmem:[%s1 + $0xb08] sm:$0xf]
  %v764 = vld [vmem:[%s1 + $0xb0c] sm:$0xf]
  %v765 = vld [vmem:[%s1 + $0xb10] sm:$0xf]
  %v766 = vld [vmem:[%s1 + $0xb14] sm:$0xf]
  %v767 = vld [vmem:[%s1 + $0xb18] sm:$0xf]
  %v768 = vld [vmem:[%s1 + $0xb1c] sm:$0xf]
  %v769 = vld [vmem:[%s1 + $0xb20] sm:$0xf]
  %v770 = vld [vmem:[%s1 + $0xb24] sm:$0xf]
  %v771 = vld [vmem:[%s1 + $0xb28] sm:$0xf]
  %v772 = vld [vmem:[%s1 + $0xb2c] sm:$0xf]
  %v773 = vld [vmem:[%s1 + $0xb30] sm:$0xf]
  %v774 = vld [vmem:[%s1 + $0xb34] sm:$0xf]
  %v775 = vld [vmem:[%s1 + $0xb38] sm:$0xf]
  %v776 = vld [vmem:[%s1 + $0xb3c] sm:$0xf]
  %v777 = vld [vmem:[%s1 + $0xb40] sm:$0xf]
  %v778 = vld [vmem:[%s1 + $0xb44] sm:$0xf]
  %v779 = vld [vmem:[%s1 + $0xb48] sm:$0xf]
  %v780 = vld [vmem:[%s1 + $0xb4c] sm:$0xf]
  %v781 = vld [vmem:[%s1 + $0xb50] sm:$0xf]
  %v782 = vld [vmem:[%s1 + $0xb54] sm:$0xf]
  %v783 = vld [vmem:[%s1 + $0xb58] sm:$0xf]
  %v784 = vld [vmem:[%s1 + $0xb5c] sm:$0xf]
  %v785 = vld [vmem:[%s1 + $0xb60] sm:$0xf]
  %v786 = vld [vmem:[%s1 + $0xb64] sm:$0xf]
  %v787 = vld [vmem:[%s1 + $0xb68] sm:$0xf]
  %v788 = vld [vmem:[%s1 + $0xb6c] sm:$0xf]
  %v789 = vld [vmem:[%s1 + $0xb70] sm:$0xf]
  %v790 = vld [vmem:[%s1 + $0xb74] sm:$0xf]
  %v791 = vld [vmem:[%s1 + $0xb78] sm:$0xf]
  %v792 = vld [vmem:[%s1 + $0xb7c] sm:$0xf]
  %v793 = vld [vmem:[%s1 + $0xb80] sm:$0xf]
  %v794 = vld [vmem:[%s1 + $0xb84] sm:$0xf]
  %v795 = vld [vmem:[%s1 + $0xb88] sm:$0xf]
  %v796 = vld [vmem:[%s1 + $0xb8c] sm:$0xf]
  %v797 = vld [vmem:[%s1 + $0xb90] sm:$0xf]
  %v798 = vld [vmem:[%s1 + $0xb94] sm:$0xf]
  %v799 = vld [vmem:[%s1 + $0xb98] sm:$0xf]
  %v800 = vld [vmem:[%s1 + $0xb9c] sm:$0xf]
  %v801 = vld [vmem:[%s1 + $0xba0] sm:$0xf]
  %v802 = vld [vmem:[%s1 + $0xba4] sm:$0xf]
  %v803 = vld [vmem:[%s1 + $0xba8] sm:$0xf]
  %v804 = vld [vmem:[%s1 + $0xbac] sm:$0xf]
  %v805 = vld [vmem:[%s1 + $0xbb0] sm:$0xf]
  %v806 = vld [vmem:[%s1 + $0xbb4] sm:$0xf]
  %v807 = vld [vmem:[%s1 + $0xbb8] sm:$0xf]
  %v808 = vld [vmem:[%s1 + $0xbbc] sm:$0xf]
  %v809 = vld [vmem:[%s1 + $0xbc0] sm:$0xf]
  %v810 = vld [vmem:[%s1 + $0xbc4] sm:$0xf]
  %v811 = vld [vmem:[%s1 + $0xbc8] sm:$0xf]
  %v812 = vld [vmem:[%s1 + $0xbcc] sm:$0xf]
  %v813 = vld [vmem:[%s1 + $0xbd0] sm:$0xf]
  %v814 = vld [vmem:[%s1 + $0xbd4] sm:$0xf]
  %v815 = vld [vmem:[%s1 + $0xbd8] sm:$0xf]
  %v816 = vld [vmem:[%s1 + $0xbdc] sm:$0xf]
  %v817 = vld [vmem:[%s1 + $0xbe0] sm:$0xf]
  %v818 = vld [vmem:[%s1 + $0xbe4] sm:$0xf]
  %v819 = vld [vmem:[%s1 + $0xbe8] sm:$0xf]
  %v820 = vld [vmem:[%s1 + $0xbec] sm:$0xf]
  %v821 = vld [vmem:[%s1 + $0xbf0] sm:$0xf]
  %v822 = vld [vmem:[%s1 + $0xbf4] sm:$0xf]
  %v823 = vld [vmem:[%s1 + $0xbf8] sm:$0xf]
  %v824 = vld [vmem:[%s1 + $0xbfc] sm:$0xf]
  %v825 = vld [vmem:[%s1 + $0xc00] sm:$0xf]
  %v826 = vld [vmem:[%s1 + $0xc04] sm:$0xf]
  %v827 = vld [vmem:[%s1 + $0xc08] sm:$0xf]
  %v828 = vld [vmem:[%s1 + $0xc0c] sm:$0xf]
  %v829 = vld [vmem:[%s1 + $0xc10] sm:$0xf]
  %v830 = vld [vmem:[%s1 + $0xc14] sm:$0xf]
  %v831 = vld [vmem:[%s1 + $0xc18] sm:$0xf]
  %v832 = vld [vmem:[%s1 + $0xc1c] sm:$0xf]
  %v833 = vld [vmem:[%s1 + $0xc20] sm:$0xf]
  %v834 = vld [vmem:[%s1 + $0xc24] sm:$0xf]
  %v835 = vld [vmem:[%s1 + $0xc28] sm:$0xf]
  %v836 = vld [vmem:[%s1 + $0xc2c] sm:$0xf]
  %v837 = vld [vmem:[%s1 + $0xc30] sm:$0xf]
  %v838 = vld [vmem:[%s1 + $0xc34] sm:$0xf]
  %v839 = vld [vmem:[%s1 + $0xc38] sm:$0xf]
  %v840 = vld [vmem:[%s1 + $0xc3c] sm:$0xf]
  %v841 = vld [vmem:[%s1 + $0xc40] sm:$0xf]
  %v842 = vld [vmem:[%s1 + $0xc44] sm:$0xf]
  %v843 = vld [vmem:[%s1 + $0xc48] sm:$0xf]
  %v844 = vld [vmem:[%s1 + $0xc4c] sm:$0xf]
  %v845 = vld [vmem:[%s1 + $0xc50] sm:$0xf]
  %v846 = vld [vmem:[%s1 + $0xc54] sm:$0xf]
  %v847 = vld [vmem:[%s1 + $0xc58] sm:$0xf]
  %v848 = vld [vmem:[%s1 + $0xc5c] sm:$0xf]
  %v849 = vld [vmem:[%s1 + $0xc60] sm:$0xf]
  %v850 = vld [vmem:[%s1 + $0xc64] sm:$0xf]
  %v851 = vld [vmem:[%s1 + $0xc68] sm:$0xf]
  %v852 = vld [vmem:[%s1 + $0xc6c] sm:$0xf]
  %v853 = vld [vmem:[%s1 + $0xc70] sm:$0xf]
  %v854 = vld [vmem:[%s1 + $0xc74] sm:$0xf]
  %v855 = vld [vmem:[%s1 + $0xc78] sm:$0xf]
  %v856 = vld [vmem:[%s1 + $0xc7c] sm:$0xf]
  %v857 = vld [vmem:[%s1 + $0xc80] sm:$0xf]
  %v858 = vld [vmem:[%s1 + $0xc84] sm:$0xf]
  %v859 = vld [vmem:[%s1 + $0xc88] sm:$0xf]
  %v860 = vld [vmem:[%s1 + $0xc8c] sm:$0xf]
  %v861 = vld [vmem:[%s1 + $0xc90] sm:$0xf]
  %v862 = vld [vmem:[%s1 + $0xc94] sm:$0xf]
  %v863 = vld [vmem:[%s1 + $0xc98] sm:$0xf]
  %v864 = vld [vmem:[%s1 + $0xc9c] sm:$0xf]
  %v865 = vld [vmem:[%s1 + $0xca0] sm:$0xf]
  %v866 = vld [vmem:[%s1 + $0xca4] sm:$0xf]
  %v867 = vld [vmem:[%s1 + $0xca8] sm:$0xf]
  %v868 = vld [vmem:[%s1 + $0xcac] sm:$0xf]
  %v869 = vld [vmem:[%s1 + $0xcb0] sm:$0xf]
  %v870 = vld [vmem:[%s1 + $0xcb4] sm:$0xf]
  %v871 = vld [vmem:[%s1 + $0xcb8] sm:$0xf]
  %v872 = vld [vmem:[%s1 + $0xcbc] sm:$0xf]
  %v873 = vld [vmem:[%s1 + $0xcc0] sm:$0xf]
  %v874 = vld [vmem:[%s1 + $0xcc4] sm:$0xf]
  %v875 = vld [vmem:[%s1 + $0xcc8] sm:$0xf]
  %v876 = vld [vmem:[%s1 + $0xccc] sm:$0xf]
  %v877 = vld [vmem:[%s1 + $0xcd0] sm:$0xf]
  %v878 = vld [vmem:[%s1 + $0xcd4] sm:$0xf]
  %v879 = vld [vmem:[%s1 + $0xcd8] sm:$0xf]
  %v880 = vld [vmem:[%s1 + $0xcdc] sm:$0xf]
  %v881 = vld [vmem:[%s1 + $0xce0] sm:$0xf]
  %v882 = vld [vmem:[%s1 + $0xce4] sm:$0xf]
  %v883 = vld [vmem:[%s1 + $0xce8] sm:$0xf]
  %v884 = vld [vmem:[%s1 + $0xcec] sm:$0xf]
  %v885 = vld [vmem:[%s1 + $0xcf0] sm:$0xf]
  %v886 = vld [vmem:[%s1 + $0xcf4] sm:$0xf]
  %v887 = vld [vmem:[%s1 + $0xcf8] sm:$0xf]
  %v888 = vld [vmem:[%s1 + $0xcfc] sm:$0xf]
  %v889 = vld [vmem:[%s1 + $0xd00] sm:$0xf]
  %v890 = vld [vmem:[%s1 + $0xd04] sm:$0xf]
  %v891 = vld [vmem:[%s1 + $0xd08] sm:$0xf]
  %v892 = vld [vmem:[%s1 + $0xd0c] sm:$0xf]
  %v893 = vld [vmem:[%s1 + $0xd10] sm:$0xf]
  %v894 = vld [vmem:[%s1 + $0xd14] sm:$0xf]
  %v895 = vld [vmem:[%s1 + $0xd18] sm:$0xf]
  %v896 = vld [vmem:[%s1 + $0xd1c] sm:$0xf]
  %v897 = vld [vmem:[%s1 + $0xd20] sm:$0xf]
  %v898 = vld [vmem:[%s1 + $0xd24] sm:$0xf]
  %v899 = vld [vmem:[%s1 + $0xd28] sm:$0xf]
  %v900 = vld [vmem:[%s1 + $0xd2c] sm:$0xf]
  %v901 = vld [vmem:[%s1 + $0xd30] sm:$0xf]
  %v902 = vld [vmem:[%s1 + $0xd34] sm:$0xf]
  %v903 = vld [vmem:[%s1 + $0xd38] sm:$0xf]
  %v904 = vld [vmem:[%s1 + $0xd3c] sm:$0xf]
  %v905 = vld [vmem:[%s1 + $0xd40] sm:$0xf]
  %v906 = vld [vmem:[%s1 + $0xd44] sm:$0xf]
  %v907 = vld [vmem:[%s1 + $0xd48] sm:$0xf]
  %v908 = vld [vmem:[%s1 + $0xd4c] sm:$0xf]
  %v909 = vld [vmem:[%s1 + $0xd50] sm:$0xf]
  %v910 = vld [vmem:[%s1 + $0xd54] sm:$0xf]
  %v911 = vld [vmem:[%s1 + $0xd58] sm:$0xf]
  %v912 = vld [vmem:[%s1 + $0xd5c] sm:$0xf]
  %v913 = vld [vmem:[%s1 + $0xd60] sm:$0xf]
  %v914 = vld [vmem:[%s1 + $0xd64] sm:$0xf]
  %v915 = vld [vmem:[%s1 + $0xd68] sm:$0xf]
  %v916 = vld [vmem:[%s1 + $0xd6c] sm:$0xf]
  %v917 = vld [vmem:[%s1 + $0xd70] sm:$0xf]
  %v918 = vld [vmem:[%s1 + $0xd74] sm:$0xf]
  %v919 = vld [vmem:[%s1 + $0xd78] sm:$0xf]
  %v920 = vld [vmem:[%s1 + $0xd7c] sm:$0xf]
  %v921 = vld [vmem:[%s1 + $0xd80] sm:$0xf]
  %v922 = vld [vmem:[%s1 + $0xd84] sm:$0xf]
  %v923 = vld [vmem:[%s1 + $0xd88] sm:$0xf]
  %v924 = vld [vmem:[%s1 + $0xd8c] sm:$0xf]
  %v925 = vld [vmem:[%s1 + $0xd90] sm:$0xf]
  %v926 = vld [vmem:[%s1 + $0xd94] sm:$0xf]
  %v927 = vld [vmem:[%s1 + $0xd98] sm:$0xf]
  %v928 = vld [vmem:[%s1 + $0xd9c] sm:$0xf]
  %v929 = vld [vmem:[%s1 + $0xda0] sm:$0xf]
  %v930 = vld [vmem:[%s1 + $0xda4] sm:$0xf]
  %v931 = vld [vmem:[%s1 + $0xda8] sm:$0xf]
  %v932 = vld [vmem:[%s1 + $0xdac] sm:$0xf]
  %v933 = vld [vmem:[%s1 + $0xdb0] sm:$0xf]
  %v934 = vld [vmem:[%s1 + $0xdb4] sm:$0xf]
  %v935 = vld [vmem:[%s1 + $0xdb8] sm:$0xf]
  %v936 = vld [vmem:[%s1 + $0xdbc] sm:$0xf]
  %v937 = vld [vmem:[%s1 + $0xdc0] sm:$0xf]
  %v938 = vld [vmem:[%s1 + $0xdc4] sm:$0xf]
  %v939 = vld [vmem:[%s1 + $0xdc8] sm:$0xf]
  %v940 = vld [vmem:[%s1 + $0xdcc] sm:$0xf]
  %v941 = vld [vmem:[%s1 + $0xdd0] sm:$0xf]
  %v942 = vld [vmem:[%s1 + $0xdd4] sm:$0xf]
  %v943 = vld [vmem:[%s1 + $0xdd8] sm:$0xf]
  %v944 = vld [vmem:[%s1 + $0xddc] sm:$0xf]
  %v945 = vld [vmem:[%s1 + $0xde0] sm:$0xf]
  %v946 = vld [vmem:[%s1 + $0xde4] sm:$0xf]
  %v947 = vld [vmem:[%s1 + $0xde8] sm:$0xf]
  %v948 = vld [vmem:[%s1 + $0xdec] sm:$0xf]
  %v949 = vld [vmem:[%s1 + $0xdf0] sm:$0xf]
  %v950 = vld [vmem:[%s1 + $0xdf4] sm:$0xf]
  %v951 = vld [vmem:[%s1 + $0xdf8] sm:$0xf]
  %v952 = vld [vmem:[%s1 + $0xdfc] sm:$0xf]
  %v953 = vld [vmem:[%s1 + $0xe00] sm:$0xf]
  %v954 = vld [vmem:[%s1 + $0xe04] sm:$0xf]
  %v955 = vld [vmem:[%s1 + $0xe08] sm:$0xf]
  %v956 = vld [vmem:[%s1 + $0xe0c] sm:$0xf]
  %v957 = vld [vmem:[%s1 + $0xe10] sm:$0xf]
  %v958 = vld [vmem:[%s1 + $0xe14] sm:$0xf]
  %v959 = vld [vmem:[%s1 + $0xe18] sm:$0xf]
  %v960 = vld [vmem:[%s1 + $0xe1c] sm:$0xf]
  %v961 = vld [vmem:[%s1 + $0xe20] sm:$0xf]
  %v962 = vld [vmem:[%s1 + $0xe24] sm:$0xf]
  %v963 = vld [vmem:[%s1 + $0xe28] sm:$0xf]
  %v964 = vld [vmem:[%s1 + $0xe2c] sm:$0xf]
  %v965 = vld [vmem:[%s1 + $0xe30] sm:$0xf]
  %v966 = vld [vmem:[%s1 + $0xe34] sm:$0xf]
  %v967 = vld [vmem:[%s1 + $0xe38] sm:$0xf]
  %v968 = vld [vmem:[%s1 + $0xe3c] sm:$0xf]
  %v969 = vld [vmem:[%s1 + $0xe40] sm:$0xf]
  %v970 = vld [vmem:[%s1 + $0xe44] sm:$0xf]
  %v971 = vld [vmem:[%s1 + $0xe48] sm:$0xf]
  %v972 = vld [vmem:[%s1 + $0xe4c] sm:$0xf]
  %v973 = vld [vmem:[%s1 + $0xe50] sm:$0xf]
  %v974 = vld [vmem:[%s1 + $0xe54] sm:$0xf]
  %v975 = vld [vmem:[%s1 + $0xe58] sm:$0xf]
  %v976 = vld [vmem:[%s1 + $0xe5c] sm:$0xf]
  %v977 = vld [vmem:[%s1 + $0xe60] sm:$0xf]
  %v978 = vld [vmem:[%s1 + $0xe64] sm:$0xf]
  %v979 = vld [vmem:[%s1 + $0xe68] sm:$0xf]
  %v980 = vld [vmem:[%s1 + $0xe6c] sm:$0xf]
  %v981 = vld [vmem:[%s1 + $0xe70] sm:$0xf]
  %v982 = vld [vmem:[%s1 + $0xe74] sm:$0xf]
  %v983 = vld [vmem:[%s1 + $0xe78] sm:$0xf]
  %v984 = vld [vmem:[%s1 + $0xe7c] sm:$0xf]
  %v985 = vld [vmem:[%s1 + $0xe80] sm:$0xf]
  %v986 = vld [vmem:[%s1 + $0xe84] sm:$0xf]
  %v987 = vld [vmem:[%s1 + $0xe88] sm:$0xf]
  %v988 = vld [vmem:[%s1 + $0xe8c] sm:$0xf]
  %v989 = vld [vmem:[%s1 + $0xe90] sm:$0xf]
  %v990 = vld [vmem:[%s1 + $0xe94] sm:$0xf]
  %v991 = vld [vmem:[%s1 + $0xe98] sm:$0xf]
  %v992 = vld [vmem:[%s1 + $0xe9c] sm:$0xf]
  %v993 = vld [vmem:[%s1 + $0xea0] sm:$0xf]
  %v994 = vld [vmem:[%s1 + $0xea4] sm:$0xf]
  %v995 = vld [vmem:[%s1 + $0xea8] sm:$0xf]
  %v996 = vld [vmem:[%s1 + $0xeac] sm:$0xf]
  %v997 = vld [vmem:[%s1 + $0xeb0] sm:$0xf]
  %v998 = vld [vmem:[%s1 + $0xeb4] sm:$0xf]
  %v999 = vld [vmem:[%s1 + $0xeb8] sm:$0xf]
  %v1000 = vld [vmem:[%s1 + $0xebc] sm:$0xf]
  %v1001 = vld [vmem:[%s1 + $0xec0] sm:$0xf]
  %v1002 = vld [vmem:[%s1 + $0xec4] sm:$0xf]
  %v1003 = vld [vmem:[%s1 + $0xec8] sm:$0xf]
  %v1004 = vld [vmem:[%s1 + $0xecc] sm:$0xf]
  %v1005 = vld [vmem:[%s1 + $0xed0] sm:$0xf]
  %v1006 = vld [vmem:[%s1 + $0xed4] sm:$0xf]
  %v1007 = vld [vmem:[%s1 + $0xed8] sm:$0xf]
  %v1008 = vld [vmem:[%s1 + $0xedc] sm:$0xf]
  %v1009 = vld [vmem:[%s1 + $0xee0] sm:$0xf]
  %v1010 = vld [vmem:[%s1 + $0xee4] sm:$0xf]
  %v1011 = vld [vmem:[%s1 + $0xee8] sm:$0xf]
  %v1012 = vld [vmem:[%s1 + $0xeec] sm:$0xf]
  %v1013 = vld [vmem:[%s1 + $0xef0] sm:$0xf]
  %v1014 = vld [vmem:[%s1 + $0xef4] sm:$0xf]
  %v1015 = vld [vmem:[%s1 + $0xef8] sm:$0xf]
  %v1016 = vld [vmem:[%s1 + $0xefc] sm:$0xf]
  %v1017 = vld [vmem:[%s1 + $0xf00] sm:$0xf]
  %v1018 = vld [vmem:[%s1 + $0xf04] sm:$0xf]
  %v1019 = vld [vmem:[%s1 + $0xf08] sm:$0xf]
  %v1020 = vld [vmem:[%s1 + $0xf0c] sm:$0xf]
  %v1021 = vld [vmem:[%s1 + $0xf10] sm:$0xf]
  %v1022 = vld [vmem:[%s1 + $0xf14] sm:$0xf]
  %v1023 = vld [vmem:[%s1 + $0xf18] sm:$0xf]
  %v1024 = vld [vmem:[%s1 + $0xf1c] sm:$0xf]
  %v1025 = vld [vmem:[%s1 + $0xf20] sm:$0xf]
  %v1026 = vld [vmem:[%s1 + $0xf24] sm:$0xf]
  %v1027 = vld [vmem:[%s1 + $0xf28] sm:$0xf]
  %v1028 = vld [vmem:[%s1 + $0xf2c] sm:$0xf]
  %v1029 = vld [vmem:[%s1 + $0xf30] sm:$0xf]
  %v1030 = vld [vmem:[%s1 + $0xf34] sm:$0xf]
  %v1031 = vld [vmem:[%s1 + $0xf38] sm:$0xf]
  %v1032 = vld [vmem:[%s1 + $0xf3c] sm:$0xf]
  %v1033 = vld [vmem:[%s1 + $0xf40] sm:$0xf]
  %v1034 = vld [vmem:[%s1 + $0xf44] sm:$0xf]
  %v1035 = vld [vmem:[%s1 + $0xf48] sm:$0xf]
  %v1036 = vld [vmem:[%s1 + $0xf4c] sm:$0xf]
  %v1037 = vld [vmem:[%s1 + $0xf50] sm:$0xf]
  %v1038 = vld [vmem:[%s1 + $0xf54] sm:$0xf]
  %v1039 = vld [vmem:[%s1 + $0xf58] sm:$0xf]
  %v1040 = vld [vmem:[%s1 + $0xf5c] sm:$0xf]
  %v1041 = vld [vmem:[%s1 + $0xf60] sm:$0xf]
  %v1042 = vld [vmem:[%s1 + $0xf64] sm:$0xf]
  %v1043 = vld [vmem:[%s1 + $0xf68] sm:$0xf]
  %v1044 = vld [vmem:[%s1 + $0xf6c] sm:$0xf]
  %v1045 = vld [vmem:[%s1 + $0xf70] sm:$0xf]
  %v1046 = vld [vmem:[%s1 + $0xf74] sm:$0xf]
  %v1047 = vld [vmem:[%s1 + $0xf78] sm:$0xf]
  %v1048 = vld [vmem:[%s1 + $0xf7c] sm:$0xf]
  %v1049 = vld [vmem:[%s1 + $0xf80] sm:$0xf]
  %v1050 = vld [vmem:[%s1 + $0xf84] sm:$0xf]
  %v1051 = vld [vmem:[%s1 + $0xf88] sm:$0xf]
  %v1052 = vld [vmem:[%s1 + $0xf8c] sm:$0xf]
  %v1053 = vld [vmem:[%s1 + $0xf90] sm:$0xf]
  %v1054 = vld [vmem:[%s1 + $0xf94] sm:$0xf]
  %v1055 = vld [vmem:[%s1 + $0xf98] sm:$0xf]
  %v1056 = vld [vmem:[%s1 + $0xf9c] sm:$0xf]
  %v1057 = vld [vmem:[%s1 + $0xfa0] sm:$0xf]
  %v1058 = vld [vmem:[%s1 + $0xfa4] sm:$0xf]
  %v1059 = vld [vmem:[%s1 + $0xfa8] sm:$0xf]
  %v1060 = vld [vmem:[%s1 + $0xfac] sm:$0xf]
  %v1061 = vld [vmem:[%s1 + $0xfb0] sm:$0xf]
  %v1062 = vld [vmem:[%s1 + $0xfb4] sm:$0xf]
  %v1063 = vld [vmem:[%s1 + $0xfb8] sm:$0xf]
  %v1064 = vld [vmem:[%s1 + $0xfbc] sm:$0xf]
  %v1065 = vld [vmem:[%s1 + $0xfc0] sm:$0xf]
  %v1066 = vld [vmem:[%s1 + $0xfc4] sm:$0xf]
  %v1067 = vld [vmem:[%s1 + $0xfc8] sm:$0xf]
  %v1068 = vld [vmem:[%s1 + $0xfcc] sm:$0xf]
  %v1069 = vld [vmem:[%s1 + $0xfd0] sm:$0xf]
  %v1070 = vld [vmem:[%s1 + $0xfd4] sm:$0xf]
  %v1071 = vld [vmem:[%s1 + $0xfd8] sm:$0xf]
  %v1072 = vld [vmem:[%s1 + $0xfdc] sm:$0xf]
  %v1073 = vld [vmem:[%s1 + $0xfe0] sm:$0xf]
  %v1074 = vld [vmem:[%s1 + $0xfe4] sm:$0xf]
  %v1075 = vld [vmem:[%s1 + $0xfe8] sm:$0xf]
  %v1076 = vld [vmem:[%s1 + $0xfec] sm:$0xf]
  %v1077 = vld [vmem:[%s1 + $0xff0] sm:$0xf]
  %v1078 = vld [vmem:[%s1 + $0xff4] sm:$0xf]
  %v1079 = vld [vmem:[%s1 + $0xff8] sm:$0xf]
  %v1080 = vld [vmem:[%s1 + $0xffc] sm:$0xf]
  %v1081 = vld [vmem:[%s1 + $0x1000] sm:$0xf]
  %v1082 = vld [vmem:[%s1 + $0x1004] sm:$0xf]
  %v1083 = vld [vmem:[%s1 + $0x1008] sm:$0xf]
  %v1084 = vld [vmem:[%s1 + $0x100c] sm:$0xf]
  %v1085 = vld [vmem:[%s1 + $0x1010] sm:$0xf]
  %v1086 = vld [vmem:[%s1 + $0x1014] sm:$0xf]
  %v1087 = vld [vmem:[%s1 + $0x1018] sm:$0xf]
  %v1088 = vld [vmem:[%s1 + $0x101c] sm:$0xf]
  %v1089 = vld [vmem:[%s1 + $0x1020] sm:$0xf]
  %v1090 = vld [vmem:[%s1 + $0x1024] sm:$0xf]
  %v1091 = vld [vmem:[%s1 + $0x1028] sm:$0xf]
  %v1092 = vld [vmem:[%s1 + $0x102c] sm:$0xf]
  %v1093 = vld [vmem:[%s1 + $0x1030] sm:$0xf]
  %v1094 = vld [vmem:[%s1 + $0x1034] sm:$0xf]
  %v1095 = vld [vmem:[%s1 + $0x1038] sm:$0xf]
  %v1096 = vld [vmem:[%s1 + $0x103c] sm:$0xf]
  %v1097 = vld [vmem:[%s1 + $0x1040] sm:$0xf]
  %v1098 = vld [vmem:[%s1 + $0x1044] sm:$0xf]
  %v1099 = vld [vmem:[%s1 + $0x1048] sm:$0xf]
  %v1100 = vld [vmem:[%s1 + $0x104c] sm:$0xf]
  %v1101 = vld [vmem:[%s1 + $0x1050] sm:$0xf]
  %v1102 = vld [vmem:[%s1 + $0x1054] sm:$0xf]
  %v1103 = vld [vmem:[%s1 + $0x1058] sm:$0xf]
  %v1104 = vld [vmem:[%s1 + $0x105c] sm:$0xf]
  %v1105 = vld [vmem:[%s1 + $0x1060] sm:$0xf]
  %v1106 = vld [vmem:[%s1 + $0x1064] sm:$0xf]
  %v1107 = vld [vmem:[%s1 + $0x1068] sm:$0xf]
  %v1108 = vld [vmem:[%s1 + $0x106c] sm:$0xf]
  %v1109 = vld [vmem:[%s1 + $0x1070] sm:$0xf]
  %v1110 = vld [vmem:[%s1 + $0x1074] sm:$0xf]
  %v1111 = vld [vmem:[%s1 + $0x1078] sm:$0xf]
  %v1112 = vld [vmem:[%s1 + $0x107c] sm:$0xf]
  %v1113 = vld [vmem:[%s1 + $0x1080] sm:$0xf]
  %v1114 = vld [vmem:[%s1 + $0x1084] sm:$0xf]
  %v1115 = vld [vmem:[%s1 + $0x1088] sm:$0xf]
  %v1116 = vld [vmem:[%s1 + $0x108c] sm:$0xf]
  %v1117 = vld [vmem:[%s1 + $0x1090] sm:$0xf]
  %v1118 = vld [vmem:[%s1 + $0x1094] sm:$0xf]
  %v1119 = vld [vmem:[%s1 + $0x1098] sm:$0xf]
  %v1120 = vld [vmem:[%s1 + $0x109c] sm:$0xf]
  %v1121 = vld [vmem:[%s1 + $0x10a0] sm:$0xf]
  %v1122 = vld [vmem:[%s1 + $0x10a4] sm:$0xf]
  %v1123 = vld [vmem:[%s1 + $0x10a8] sm:$0xf]
  %v1124 = vld [vmem:[%s1 + $0x10ac] sm:$0xf]
  %v1125 = vld [vmem:[%s1 + $0x10b0] sm:$0xf]
  %v1126 = vld [vmem:[%s1 + $0x10b4] sm:$0xf]
  %v1127 = vld [vmem:[%s1 + $0x10b8] sm:$0xf]
  %v1128 = vld [vmem:[%s1 + $0x10bc] sm:$0xf]
  %v1129 = vld [vmem:[%s1 + $0x10c0] sm:$0xf]
  %v1130 = vld [vmem:[%s1 + $0x10c4] sm:$0xf]
  %v1131 = vld [vmem:[%s1 + $0x10c8] sm:$0xf]
  %v1132 = vld [vmem:[%s1 + $0x10cc] sm:$0xf]
  %v1133 = vld [vmem:[%s1 + $0x10d0] sm:$0xf]
  %v1134 = vld [vmem:[%s1 + $0x10d4] sm:$0xf]
  %v1135 = vld [vmem:[%s1 + $0x10d8] sm:$0xf]
  %v1136 = vld [vmem:[%s1 + $0x10dc] sm:$0xf]
  %v1137 = vld [vmem:[%s1 + $0x10e0] sm:$0xf]
  %v1138 = vld [vmem:[%s1 + $0x10e4] sm:$0xf]
  %v1139 = vld [vmem:[%s1 + $0x10e8] sm:$0xf]
  %v1140 = vld [vmem:[%s1 + $0x10ec] sm:$0xf]
  %v1141 = vld [vmem:[%s1 + $0x10f0] sm:$0xf]
  %v1142 = vld [vmem:[%s1 + $0x10f4] sm:$0xf]
  %v1143 = vld [vmem:[%s1 + $0x10f8] sm:$0xf]
  %v1144 = vld [vmem:[%s1 + $0x10fc] sm:$0xf]
  %v1145 = vld [vmem:[%s1 + $0x1100] sm:$0xf]
  %v1146 = vld [vmem:[%s1 + $0x1104] sm:$0xf]
  %v1147 = vld [vmem:[%s1 + $0x1108] sm:$0xf]
  %v1148 = vld [vmem:[%s1 + $0x110c] sm:$0xf]
  %v1149 = vld [vmem:[%s1 + $0x1110] sm:$0xf]
  %v1150 = vld [vmem:[%s1 + $0x1114] sm:$0xf]
  %v1151 = vld [vmem:[%s1 + $0x1118] sm:$0xf]
  %v1152 = vld [vmem:[%s1 + $0x111c] sm:$0xf]
  %v1153 = vld [vmem:[%s1 + $0x1120] sm:$0xf]
  %v1154 = vld [vmem:[%s1 + $0x1124] sm:$0xf]
  %v1155 = vld [vmem:[%s1 + $0x1128] sm:$0xf]
  %v1156 = vld [vmem:[%s1 + $0x112c] sm:$0xf]
  %v1157 = vld [vmem:[%s1 + $0x1130] sm:$0xf]
  %v1158 = vld [vmem:[%s1 + $0x1134] sm:$0xf]
  %v1159 = vld [vmem:[%s1 + $0x1138] sm:$0xf]
  %v1160 = vld [vmem:[%s1 + $0x113c] sm:$0xf]
  %v1161 = vld [vmem:[%s1 + $0x1140] sm:$0xf]
  %v1162 = vld [vmem:[%s1 + $0x1144] sm:$0xf]
  %v1163 = vld [vmem:[%s1 + $0x1148] sm:$0xf]
  %v1164 = vld [vmem:[%s1 + $0x114c] sm:$0xf]
  %v1165 = vld [vmem:[%s1 + $0x1150] sm:$0xf]
  %v1166 = vld [vmem:[%s1 + $0x1154] sm:$0xf]
  %v1167 = vld [vmem:[%s1 + $0x1158] sm:$0xf]
  %v1168 = vld [vmem:[%s1 + $0x115c] sm:$0xf]
  %v1169 = vld [vmem:[%s1 + $0x1160] sm:$0xf]
  %v1170 = vld [vmem:[%s1 + $0x1164] sm:$0xf]
  %v1171 = vld [vmem:[%s1 + $0x1168] sm:$0xf]
  %v1172 = vld [vmem:[%s1 + $0x116c] sm:$0xf]
  %v1173 = vld [vmem:[%s1 + $0x1170] sm:$0xf]
  %v1174 = vld [vmem:[%s1 + $0x1174] sm:$0xf]
  %v1175 = vld [vmem:[%s1 + $0x1178] sm:$0xf]
  %v1176 = vld [vmem:[%s1 + $0x117c] sm:$0xf]
  %v1177 = vld [vmem:[%s1 + $0x1180] sm:$0xf]
  %v1178 = vld [vmem:[%s1 + $0x1184] sm:$0xf]
  %v1179 = vld [vmem:[%s1 + $0x1188] sm:$0xf]
  %v1180 = vld [vmem:[%s1 + $0x118c] sm:$0xf]
  %v1181 = vld [vmem:[%s1 + $0x1190] sm:$0xf]
  %v1182 = vld [vmem:[%s1 + $0x1194] sm:$0xf]
  %v1183 = vld [vmem:[%s1 + $0x1198] sm:$0xf]
  %v1184 = vld [vmem:[%s1 + $0x119c] sm:$0xf]
  %v1185 = vld [vmem:[%s1 + $0x11a0] sm:$0xf]
  %v1186 = vld [vmem:[%s1 + $0x11a4] sm:$0xf]
  %v1187 = vld [vmem:[%s1 + $0x11a8] sm:$0xf]
  %v1188 = vld [vmem:[%s1 + $0x11ac] sm:$0xf]
  %v1189 = vld [vmem:[%s1 + $0x11b0] sm:$0xf]
  %v1190 = vld [vmem:[%s1 + $0x11b4] sm:$0xf]
  %v1191 = vld [vmem:[%s1 + $0x11b8] sm:$0xf]
  %v1192 = vld [vmem:[%s1 + $0x11bc] sm:$0xf]
  %v1193 = vld [vmem:[%s1 + $0x11c0] sm:$0xf]
  %v1194 = vld [vmem:[%s1 + $0x11c4] sm:$0xf]
  %v1195 = vld [vmem:[%s1 + $0x11c8] sm:$0xf]
  %v1196 = vld [vmem:[%s1 + $0x11cc] sm:$0xf]
  %v1197 = vld [vmem:[%s1 + $0x11d0] sm:$0xf]
  %v1198 = vld [vmem:[%s1 + $0x11d4] sm:$0xf]
  %v1199 = vld [vmem:[%s1 + $0x11d8] sm:$0xf]
  %v1200 = vld [vmem:[%s1 + $0x11dc] sm:$0xf]
  %v1201 = vld [vmem:[%s1 + $0x11e0] sm:$0xf]
  %v1202 = vld [vmem:[%s1 + $0x11e4] sm:$0xf]
  %v1203 = vld [vmem:[%s1 + $0x11e8] sm:$0xf]
  %v1204 = vld [vmem:[%s1 + $0x11ec] sm:$0xf]
  %v1205 = vld [vmem:[%s1 + $0x11f0] sm:$0xf]
  %v1206 = vld [vmem:[%s1 + $0x11f4] sm:$0xf]
  %v1207 = vld [vmem:[%s1 + $0x11f8] sm:$0xf]
  %v1208 = vld [vmem:[%s1 + $0x11fc] sm:$0xf]
  %v1209 = vld [vmem:[%s2] sm:$0x1]
  %v1211 = vlaneseq
  %v1212 = vshrl.u32 %v1211, 7
  %v1213 = vsub.s32 0, %v1212
  %v1214 = vrot.slane %v1209, %v1213
  %v1252 = vunpack.c.l.b16 %v21
  %v1253 = vunpack.c.h.b16 %v21
  %v1254 = vunpack.c.l.b16 %v22
  %v1255 = vunpack.c.h.b16 %v22
  %v1256 = vunpack.c.l.b16 %v23
  %v1257 = vunpack.c.h.b16 %v23
  %v1258 = vunpack.c.l.b16 %v24
  %v1259 = vunpack.c.h.b16 %v24
  %v1260 = vunpack.c.l.b16 %v25
  %v1261 = vunpack.c.h.b16 %v25
  %v1262 = vunpack.c.l.b16 %v26
  %v1263 = vunpack.c.h.b16 %v26
  %v1264 = vunpack.c.l.b16 %v27
  %v1265 = vunpack.c.h.b16 %v27
  %v1266 = vunpack.c.l.b16 %v28
  %v1267 = vunpack.c.h.b16 %v28
  %v1268 = vunpack.c.l.b16 %v29
  %v1269 = vunpack.c.h.b16 %v29
  %v1270 = vunpack.c.l.b16 %v30
  %v1271 = vunpack.c.h.b16 %v30
  %v1272 = vunpack.c.l.b16 %v31
  %v1273 = vunpack.c.h.b16 %v31
  %v1274 = vunpack.c.l.b16 %v32
  %v1275 = vunpack.c.h.b16 %v32
  %v1276 = vunpack.c.l.b16 %v33
  %v1277 = vunpack.c.h.b16 %v33
  %v1278 = vunpack.c.l.b16 %v34
  %v1279 = vunpack.c.h.b16 %v34
  %v1280 = vunpack.c.l.b16 %v35
  %v1281 = vunpack.c.h.b16 %v35
  %v1282 = vunpack.c.l.b16 %v36
  %v1283 = vunpack.c.h.b16 %v36
  %v1284 = vunpack.c.l.b16 %v37
  %v1285 = vunpack.c.h.b16 %v37
  %v1286 = vunpack.c.l.b16 %v38
  %v1287 = vunpack.c.h.b16 %v38
  %v1288 = vunpack.c.l.b16 %v39
  %v1289 = vunpack.c.h.b16 %v39
  %v1290 = vunpack.c.l.b16 %v40
  %v1291 = vunpack.c.h.b16 %v40
  %v1292 = vunpack.c.l.b16 %v41
  %v1293 = vunpack.c.h.b16 %v41
  %v1294 = vunpack.c.l.b16 %v42
  %v1295 = vunpack.c.h.b16 %v42
  %v1296 = vunpack.c.l.b16 %v43
  %v1297 = vunpack.c.h.b16 %v43
  %v1298 = vunpack.c.l.b16 %v44
  %v1299 = vunpack.c.h.b16 %v44
  %v1300 = vunpack.c.l.b16 %v45
  %v1301 = vunpack.c.h.b16 %v45
  %v1302 = vunpack.c.l.b16 %v46
  %v1303 = vunpack.c.h.b16 %v46
  %v1304 = vunpack.c.l.b16 %v47
  %v1305 = vunpack.c.h.b16 %v47
  %v1306 = vunpack.c.l.b16 %v48
  %v1307 = vunpack.c.h.b16 %v48
  %v1308 = vunpack.c.l.b16 %v49
  %v1309 = vunpack.c.h.b16 %v49
  %v1310 = vunpack.c.l.b16 %v50
  %v1311 = vunpack.c.h.b16 %v50
  %v1312 = vunpack.c.l.b16 %v51
  %v1313 = vunpack.c.h.b16 %v51
  %v1314 = vunpack.c.l.b16 %v52
  %v1315 = vunpack.c.h.b16 %v52
  %v1316 = vunpack.c.l.b16 %v53
  %v1317 = vunpack.c.h.b16 %v53
  %v1318 = vunpack.c.l.b16 %v54
  %v1319 = vunpack.c.h.b16 %v54
  %v1320 = vunpack.c.l.b16 %v55
  %v1321 = vunpack.c.h.b16 %v55
  %v1322 = vunpack.c.l.b16 %v56
  %v1323 = vunpack.c.h.b16 %v56
  %v1324 = vpack.c.b16 %v1252, %v1252
  %v1325 = vpack.c.b16 %v1253, %v1253
  %v1326 = vpack.c.b16 %v1254, %v1254
  %v1327 = vpack.c.b16 %v1255, %v1255
  %v1328 = vpack.c.b16 %v1256, %v1256
  %v1329 = vpack.c.b16 %v1257, %v1257
  %v1330 = vpack.c.b16 %v1258, %v1258
  %v1331 = vpack.c.b16 %v1259, %v1259
  %v1332 = vpack.c.b16 %v1260, %v1260
  %v1333 = vpack.c.b16 %v1261, %v1261
  %v1334 = vpack.c.b16 %v1262, %v1262
  %v1335 = vpack.c.b16 %v1263, %v1263
  %v1336 = vpack.c.b16 %v1264, %v1264
  %v1337 = vpack.c.b16 %v1265, %v1265
  %v1338 = vpack.c.b16 %v1266, %v1266
  %v1339 = vpack.c.b16 %v1267, %v1267
  %v1340 = vpack.c.b16 %v1268, %v1268
  %v1341 = vpack.c.b16 %v1269, %v1269
  %v1342 = vpack.c.b16 %v1270, %v1270
  %v1343 = vpack.c.b16 %v1271, %v1271
  %v1344 = vpack.c.b16 %v1272, %v1272
  %v1345 = vpack.c.b16 %v1273, %v1273
  %v1346 = vpack.c.b16 %v1274, %v1274
  %v1347 = vpack.c.b16 %v1275, %v1275
  %v1348 = vpack.c.b16 %v1276, %v1276
  %v1349 = vpack.c.b16 %v1277, %v1277
  %v1350 = vpack.c.b16 %v1278, %v1278
  %v1351 = vpack.c.b16 %v1279, %v1279
  %v1352 = vpack.c.b16 %v1280, %v1280
  %v1353 = vpack.c.b16 %v1281, %v1281
  %v1354 = vpack.c.b16 %v1282, %v1282
  %v1355 = vpack.c.b16 %v1283, %v1283
  %v1356 = vpack.c.b16 %v1284, %v1284
  %v1357 = vpack.c.b16 %v1285, %v1285
  %v1358 = vpack.c.b16 %v1286, %v1286
  %v1359 = vpack.c.b16 %v1287, %v1287
  %v1360 = vpack.c.b16 %v1288, %v1288
  %v1361 = vpack.c.b16 %v1289, %v1289
  %v1362 = vpack.c.b16 %v1290, %v1290
  %v1363 = vpack.c.b16 %v1291, %v1291
  %v1364 = vpack.c.b16 %v1292, %v1292
  %v1365 = vpack.c.b16 %v1293, %v1293
  %v1366 = vpack.c.b16 %v1294, %v1294
  %v1367 = vpack.c.b16 %v1295, %v1295
  %v1368 = vpack.c.b16 %v1296, %v1296
  %v1369 = vpack.c.b16 %v1297, %v1297
  %v1370 = vpack.c.b16 %v1298, %v1298
  %v1371 = vpack.c.b16 %v1299, %v1299
  %v1372 = vpack.c.b16 %v1300, %v1300
  %v1373 = vpack.c.b16 %v1301, %v1301
  %v1374 = vpack.c.b16 %v1302, %v1302
  %v1375 = vpack.c.b16 %v1303, %v1303
  %v1376 = vpack.c.b16 %v1304, %v1304
  %v1377 = vpack.c.b16 %v1305, %v1305
  %v1378 = vpack.c.b16 %v1306, %v1306
  %v1379 = vpack.c.b16 %v1307, %v1307
  %v1380 = vpack.c.b16 %v1308, %v1308
  %v1381 = vpack.c.b16 %v1309, %v1309
  %v1382 = vpack.c.b16 %v1310, %v1310
  %v1383 = vpack.c.b16 %v1311, %v1311
  %v1384 = vpack.c.b16 %v1312, %v1312
  %v1385 = vpack.c.b16 %v1313, %v1313
  %v1386 = vpack.c.b16 %v1314, %v1314
  %v1387 = vpack.c.b16 %v1315, %v1315
  %v1388 = vpack.c.b16 %v1316, %v1316
  %v1389 = vpack.c.b16 %v1317, %v1317
  %v1390 = vpack.c.b16 %v1318, %v1318
  %v1391 = vpack.c.b16 %v1319, %v1319
  %v1392 = vpack.c.b16 %v1320, %v1320
  %v1393 = vpack.c.b16 %v1321, %v1321
  %v1394 = vpack.c.b16 %v1322, %v1322
  %v1395 = vpack.c.b16 %v1323, %v1323
  %v2620 = vunpack.c.l.b16 %v57
  %v2621 = vunpack.c.l.b16 %v58
  %v2622 = vunpack.c.l.b16 %v59
  %v2623 = vunpack.c.l.b16 %v60
  %v2624 = vunpack.c.l.b16 %v61
  %v2625 = vunpack.c.l.b16 %v62
  %v2626 = vunpack.c.l.b16 %v63
  %v2627 = vunpack.c.l.b16 %v64
  %v2628 = vunpack.c.l.b16 %v65
  %v2629 = vunpack.c.l.b16 %v66
  %v2630 = vunpack.c.l.b16 %v67
  %v2631 = vunpack.c.l.b16 %v68
  %v2632 = vunpack.c.l.b16 %v69
  %v2633 = vunpack.c.l.b16 %v70
  %v2634 = vunpack.c.l.b16 %v71
  %v2635 = vunpack.c.l.b16 %v72
  %v2636 = vunpack.c.l.b16 %v73
  %v2637 = vunpack.c.l.b16 %v74
  %v2638 = vunpack.c.l.b16 %v75
  %v2639 = vunpack.c.l.b16 %v76
  %v2640 = vunpack.c.l.b16 %v77
  %v2641 = vunpack.c.l.b16 %v78
  %v2642 = vunpack.c.l.b16 %v79
  %v2643 = vunpack.c.l.b16 %v80
  %v2644 = vunpack.c.l.b16 %v81
  %v2645 = vunpack.c.l.b16 %v82
  %v2646 = vunpack.c.l.b16 %v83
  %v2647 = vunpack.c.l.b16 %v84
  %v2648 = vunpack.c.l.b16 %v85
  %v2649 = vunpack.c.l.b16 %v86
  %v2650 = vunpack.c.l.b16 %v87
  %v2651 = vunpack.c.l.b16 %v88
  %v2652 = vunpack.c.l.b16 %v89
  %v2653 = vunpack.c.l.b16 %v90
  %v2654 = vunpack.c.l.b16 %v91
  %v2655 = vunpack.c.l.b16 %v92
  %v2656 = vunpack.c.l.b16 %v93
  %v2657 = vunpack.c.l.b16 %v94
  %v2658 = vunpack.c.l.b16 %v95
  %v2659 = vunpack.c.l.b16 %v96
  %v2660 = vunpack.c.l.b16 %v97
  %v2661 = vunpack.c.l.b16 %v98
  %v2662 = vunpack.c.l.b16 %v99
  %v2663 = vunpack.c.l.b16 %v100
  %v2664 = vunpack.c.l.b16 %v101
  %v2665 = vunpack.c.l.b16 %v102
  %v2666 = vunpack.c.l.b16 %v103
  %v2667 = vunpack.c.l.b16 %v104
  %v2668 = vunpack.c.l.b16 %v105
  %v2669 = vunpack.c.l.b16 %v106
  %v2670 = vunpack.c.l.b16 %v107
  %v2671 = vunpack.c.l.b16 %v108
  %v2672 = vunpack.c.l.b16 %v109
  %v2673 = vunpack.c.l.b16 %v110
  %v2674 = vunpack.c.l.b16 %v111
  %v2675 = vunpack.c.l.b16 %v112
  %v2676 = vunpack.c.l.b16 %v113
  %v2677 = vunpack.c.l.b16 %v114
  %v2678 = vunpack.c.l.b16 %v115
  %v2679 = vunpack.c.l.b16 %v116
  %v2680 = vunpack.c.l.b16 %v117
  %v2681 = vunpack.c.l.b16 %v118
  %v2682 = vunpack.c.l.b16 %v119
  %v2683 = vunpack.c.l.b16 %v120
  %v2684 = vunpack.c.l.b16 %v121
  %v2685 = vunpack.c.l.b16 %v122
  %v2686 = vunpack.c.l.b16 %v123
  %v2687 = vunpack.c.l.b16 %v124
  %v2688 = vunpack.c.l.b16 %v125
  %v2689 = vunpack.c.l.b16 %v126
  %v2690 = vunpack.c.l.b16 %v127
  %v2691 = vunpack.c.l.b16 %v128
  %v2692 = vunpack.c.l.b16 %v129
  %v2693 = vunpack.c.l.b16 %v130
  %v2694 = vunpack.c.l.b16 %v131
  %v2695 = vunpack.c.l.b16 %v132
  %v2696 = vunpack.c.l.b16 %v133
  %v2697 = vunpack.c.l.b16 %v134
  %v2698 = vunpack.c.l.b16 %v135
  %v2699 = vunpack.c.l.b16 %v136
  %v2700 = vunpack.c.l.b16 %v137
  %v2701 = vunpack.c.l.b16 %v138
  %v2702 = vunpack.c.l.b16 %v139
  %v2703 = vunpack.c.l.b16 %v140
  %v2704 = vunpack.c.l.b16 %v141
  %v2705 = vunpack.c.l.b16 %v142
  %v2706 = vunpack.c.l.b16 %v143
  %v2707 = vunpack.c.l.b16 %v144
  %v2708 = vunpack.c.l.b16 %v145
  %v2709 = vunpack.c.l.b16 %v146
  %v2710 = vunpack.c.l.b16 %v147
  %v2711 = vunpack.c.l.b16 %v148
  %v2712 = vunpack.c.l.b16 %v149
  %v2713 = vunpack.c.l.b16 %v150
  %v2714 = vunpack.c.l.b16 %v151
  %v2715 = vunpack.c.l.b16 %v152
  %v2716 = vunpack.c.l.b16 %v153
  %v2717 = vunpack.c.l.b16 %v154
  %v2718 = vunpack.c.l.b16 %v155
  %v2719 = vunpack.c.l.b16 %v156
  %v2720 = vunpack.c.l.b16 %v157
  %v2721 = vunpack.c.l.b16 %v158
  %v2722 = vunpack.c.l.b16 %v159
  %v2723 = vunpack.c.l.b16 %v160
  %v2724 = vunpack.c.l.b16 %v161
  %v2725 = vunpack.c.l.b16 %v162
  %v2726 = vunpack.c.l.b16 %v163
  %v2727 = vunpack.c.l.b16 %v164
  %v2728 = vunpack.c.l.b16 %v165
  %v2729 = vunpack.c.l.b16 %v166
  %v2730 = vunpack.c.l.b16 %v167
  %v2731 = vunpack.c.l.b16 %v168
  %v2732 = vunpack.c.l.b16 %v169
  %v2733 = vunpack.c.l.b16 %v170
  %v2734 = vunpack.c.l.b16 %v171
  %v2735 = vunpack.c.l.b16 %v172
  %v2736 = vunpack.c.l.b16 %v173
  %v2737 = vunpack.c.l.b16 %v174
  %v2738 = vunpack.c.l.b16 %v175
  %v2739 = vunpack.c.l.b16 %v176
  %v2740 = vunpack.c.l.b16 %v177
  %v2741 = vunpack.c.l.b16 %v178
  %v2742 = vunpack.c.l.b16 %v179
  %v2743 = vunpack.c.l.b16 %v180
  %v2744 = vunpack.c.l.b16 %v181
  %v2745 = vunpack.c.l.b16 %v182
  %v2746 = vunpack.c.l.b16 %v183
  %v2747 = vunpack.c.l.b16 %v184
  %v2748 = vunpack.c.l.b16 %v185
  %v2749 = vunpack.c.l.b16 %v186
  %v2750 = vunpack.c.l.b16 %v187
  %v2751 = vunpack.c.l.b16 %v188
  %v2752 = vunpack.c.l.b16 %v189
  %v2753 = vunpack.c.l.b16 %v190
  %v2754 = vunpack.c.l.b16 %v191
  %v2755 = vunpack.c.l.b16 %v192
  %v2756 = vunpack.c.l.b16 %v193
  %v2757 = vunpack.c.l.b16 %v194
  %v2758 = vunpack.c.l.b16 %v195
  %v2759 = vunpack.c.l.b16 %v196
  %v2760 = vunpack.c.l.b16 %v197
  %v2761 = vunpack.c.l.b16 %v198
  %v2762 = vunpack.c.l.b16 %v199
  %v2763 = vunpack.c.l.b16 %v200
  %v2764 = vunpack.c.l.b16 %v201
  %v2765 = vunpack.c.l.b16 %v202
  %v2766 = vunpack.c.l.b16 %v203
  %v2767 = vunpack.c.l.b16 %v204
  %v2768 = vunpack.c.l.b16 %v205
  %v2769 = vunpack.c.l.b16 %v206
  %v2770 = vunpack.c.l.b16 %v207
  %v2771 = vunpack.c.l.b16 %v208
  %v2772 = vunpack.c.l.b16 %v209
  %v2773 = vunpack.c.l.b16 %v210
  %v2774 = vunpack.c.l.b16 %v211
  %v2775 = vunpack.c.l.b16 %v212
  %v2776 = vunpack.c.l.b16 %v213
  %v2777 = vunpack.c.l.b16 %v214
  %v2778 = vunpack.c.l.b16 %v215
  %v2779 = vunpack.c.l.b16 %v216
  %v2780 = vunpack.c.l.b16 %v217
  %v2781 = vunpack.c.l.b16 %v218
  %v2782 = vunpack.c.l.b16 %v219
  %v2783 = vunpack.c.l.b16 %v220
  %v2784 = vunpack.c.l.b16 %v221
  %v2785 = vunpack.c.l.b16 %v222
  %v2786 = vunpack.c.l.b16 %v223
  %v2787 = vunpack.c.l.b16 %v224
  %v2788 = vunpack.c.l.b16 %v225
  %v2789 = vunpack.c.l.b16 %v226
  %v2790 = vunpack.c.l.b16 %v227
  %v2791 = vunpack.c.l.b16 %v228
  %v2792 = vunpack.c.l.b16 %v229
  %v2793 = vunpack.c.l.b16 %v230
  %v2794 = vunpack.c.l.b16 %v231
  %v2795 = vunpack.c.l.b16 %v232
  %v2796 = vunpack.c.l.b16 %v233
  %v2797 = vunpack.c.l.b16 %v234
  %v2798 = vunpack.c.l.b16 %v235
  %v2799 = vunpack.c.l.b16 %v236
  %v2800 = vunpack.c.l.b16 %v237
  %v2801 = vunpack.c.l.b16 %v238
  %v2802 = vunpack.c.l.b16 %v239
  %v2803 = vunpack.c.l.b16 %v240
  %v2804 = vunpack.c.l.b16 %v241
  %v2805 = vunpack.c.l.b16 %v242
  %v2806 = vunpack.c.l.b16 %v243
  %v2807 = vunpack.c.l.b16 %v244
  %v2808 = vunpack.c.l.b16 %v245
  %v2809 = vunpack.c.l.b16 %v246
  %v2810 = vunpack.c.l.b16 %v247
  %v2811 = vunpack.c.l.b16 %v248
  %v2812 = vunpack.c.l.b16 %v249
  %v2813 = vunpack.c.l.b16 %v250
  %v2814 = vunpack.c.l.b16 %v251
  %v2815 = vunpack.c.l.b16 %v252
  %v2816 = vunpack.c.l.b16 %v253
  %v2817 = vunpack.c.l.b16 %v254
  %v2818 = vunpack.c.l.b16 %v255
  %v2819 = vunpack.c.l.b16 %v256
  %v2820 = vunpack.c.l.b16 %v257
  %v2821 = vunpack.c.l.b16 %v258
  %v2822 = vunpack.c.l.b16 %v259
  %v2823 = vunpack.c.l.b16 %v260
  %v2824 = vunpack.c.l.b16 %v261
  %v2825 = vunpack.c.l.b16 %v262
  %v2826 = vunpack.c.l.b16 %v263
  %v2827 = vunpack.c.l.b16 %v264
  %v2828 = vunpack.c.l.b16 %v265
  %v2829 = vunpack.c.l.b16 %v266
  %v2830 = vunpack.c.l.b16 %v267
  %v2831 = vunpack.c.l.b16 %v268
  %v2832 = vunpack.c.l.b16 %v269
  %v2833 = vunpack.c.l.b16 %v270
  %v2834 = vunpack.c.l.b16 %v271
  %v2835 = vunpack.c.l.b16 %v272
  %v2836 = vunpack.c.l.b16 %v273
  %v2837 = vunpack.c.l.b16 %v274
  %v2838 = vunpack.c.l.b16 %v275
  %v2839 = vunpack.c.l.b16 %v276
  %v2840 = vunpack.c.l.b16 %v277
  %v2841 = vunpack.c.l.b16 %v278
  %v2842 = vunpack.c.l.b16 %v279
  %v2843 = vunpack.c.l.b16 %v280
  %v2844 = vunpack.c.l.b16 %v281
  %v2845 = vunpack.c.l.b16 %v282
  %v2846 = vunpack.c.l.b16 %v283
  %v2847 = vunpack.c.l.b16 %v284
  %v2848 = vunpack.c.l.b16 %v285
  %v2849 = vunpack.c.l.b16 %v286
  %v2850 = vunpack.c.l.b16 %v287
  %v2851 = vunpack.c.l.b16 %v288
  %v2852 = vunpack.c.l.b16 %v289
  %v2853 = vunpack.c.l.b16 %v290
  %v2854 = vunpack.c.l.b16 %v291
  %v2855 = vunpack.c.l.b16 %v292
  %v2856 = vunpack.c.l.b16 %v293
  %v2857 = vunpack.c.l.b16 %v294
  %v2858 = vunpack.c.l.b16 %v295
  %v2859 = vunpack.c.l.b16 %v296
  %v2860 = vunpack.c.l.b16 %v297
  %v2861 = vunpack.c.l.b16 %v298
  %v2862 = vunpack.c.l.b16 %v299
  %v2863 = vunpack.c.l.b16 %v300
  %v2864 = vunpack.c.l.b16 %v301
  %v2865 = vunpack.c.l.b16 %v302
  %v2866 = vunpack.c.l.b16 %v303
  %v2867 = vunpack.c.l.b16 %v304
  %v2868 = vunpack.c.l.b16 %v305
  %v2869 = vunpack.c.l.b16 %v306
  %v2870 = vunpack.c.l.b16 %v307
  %v2871 = vunpack.c.l.b16 %v308
  %v2872 = vunpack.c.l.b16 %v309
  %v2873 = vunpack.c.l.b16 %v310
  %v2874 = vunpack.c.l.b16 %v311
  %v2875 = vunpack.c.l.b16 %v312
  %v2876 = vunpack.c.l.b16 %v313
  %v2877 = vunpack.c.l.b16 %v314
  %v2878 = vunpack.c.l.b16 %v315
  %v2879 = vunpack.c.l.b16 %v316
  %v2880 = vunpack.c.l.b16 %v317
  %v2881 = vunpack.c.l.b16 %v318
  %v2882 = vunpack.c.l.b16 %v319
  %v2883 = vunpack.c.l.b16 %v320
  %v2884 = vunpack.c.l.b16 %v321
  %v2885 = vunpack.c.l.b16 %v322
  %v2886 = vunpack.c.l.b16 %v323
  %v2887 = vunpack.c.l.b16 %v324
  %v2888 = vunpack.c.l.b16 %v325
  %v2889 = vunpack.c.l.b16 %v326
  %v2890 = vunpack.c.l.b16 %v327
  %v2891 = vunpack.c.l.b16 %v328
  %v2892 = vunpack.c.l.b16 %v329
  %v2893 = vunpack.c.l.b16 %v330
  %v2894 = vunpack.c.l.b16 %v331
  %v2895 = vunpack.c.l.b16 %v332
  %v2896 = vunpack.c.l.b16 %v333
  %v2897 = vunpack.c.l.b16 %v334
  %v2898 = vunpack.c.l.b16 %v335
  %v2899 = vunpack.c.l.b16 %v336
  %v2900 = vunpack.c.l.b16 %v337
  %v2901 = vunpack.c.l.b16 %v338
  %v2902 = vunpack.c.l.b16 %v339
  %v2903 = vunpack.c.l.b16 %v340
  %v2904 = vunpack.c.l.b16 %v341
  %v2905 = vunpack.c.l.b16 %v342
  %v2906 = vunpack.c.l.b16 %v343
  %v2907 = vunpack.c.l.b16 %v344
  %v2908 = vunpack.c.l.b16 %v345
  %v2909 = vunpack.c.l.b16 %v346
  %v2910 = vunpack.c.l.b16 %v347
  %v2911 = vunpack.c.l.b16 %v348
  %v2912 = vunpack.c.l.b16 %v349
  %v2913 = vunpack.c.l.b16 %v350
  %v2914 = vunpack.c.l.b16 %v351
  %v2915 = vunpack.c.l.b16 %v352
  %v2916 = vunpack.c.l.b16 %v353
  %v2917 = vunpack.c.l.b16 %v354
  %v2918 = vunpack.c.l.b16 %v355
  %v2919 = vunpack.c.l.b16 %v356
  %v2920 = vunpack.c.l.b16 %v357
  %v2921 = vunpack.c.l.b16 %v358
  %v2922 = vunpack.c.l.b16 %v359
  %v2923 = vunpack.c.l.b16 %v360
  %v2924 = vunpack.c.l.b16 %v361
  %v2925 = vunpack.c.l.b16 %v362
  %v2926 = vunpack.c.l.b16 %v363
  %v2927 = vunpack.c.l.b16 %v364
  %v2928 = vunpack.c.l.b16 %v365
  %v2929 = vunpack.c.l.b16 %v366
  %v2930 = vunpack.c.l.b16 %v367
  %v2931 = vunpack.c.l.b16 %v368
  %v2932 = vunpack.c.l.b16 %v369
  %v2933 = vunpack.c.l.b16 %v370
  %v2934 = vunpack.c.l.b16 %v371
  %v2935 = vunpack.c.l.b16 %v372
  %v2936 = vunpack.c.l.b16 %v373
  %v2937 = vunpack.c.l.b16 %v374
  %v2938 = vunpack.c.l.b16 %v375
  %v2939 = vunpack.c.l.b16 %v376
  %v2940 = vunpack.c.l.b16 %v377
  %v2941 = vunpack.c.l.b16 %v378
  %v2942 = vunpack.c.l.b16 %v379
  %v2943 = vunpack.c.l.b16 %v380
  %v2944 = vunpack.c.l.b16 %v381
  %v2945 = vunpack.c.l.b16 %v382
  %v2946 = vunpack.c.l.b16 %v383
  %v2947 = vunpack.c.l.b16 %v384
  %v2948 = vunpack.c.l.b16 %v385
  %v2949 = vunpack.c.l.b16 %v386
  %v2950 = vunpack.c.l.b16 %v387
  %v2951 = vunpack.c.l.b16 %v388
  %v2952 = vunpack.c.l.b16 %v389
  %v2953 = vunpack.c.l.b16 %v390
  %v2954 = vunpack.c.l.b16 %v391
  %v2955 = vunpack.c.l.b16 %v392
  %v2956 = vunpack.c.l.b16 %v393
  %v2957 = vunpack.c.l.b16 %v394
  %v2958 = vunpack.c.l.b16 %v395
  %v2959 = vunpack.c.l.b16 %v396
  %v2960 = vunpack.c.l.b16 %v397
  %v2961 = vunpack.c.l.b16 %v398
  %v2962 = vunpack.c.l.b16 %v399
  %v2963 = vunpack.c.l.b16 %v400
  %v2964 = vunpack.c.l.b16 %v401
  %v2965 = vunpack.c.l.b16 %v402
  %v2966 = vunpack.c.l.b16 %v403
  %v2967 = vunpack.c.l.b16 %v404
  %v2968 = vunpack.c.l.b16 %v405
  %v2969 = vunpack.c.l.b16 %v406
  %v2970 = vunpack.c.l.b16 %v407
  %v2971 = vunpack.c.l.b16 %v408
  %v2972 = vunpack.c.l.b16 %v409
  %v2973 = vunpack.c.l.b16 %v410
  %v2974 = vunpack.c.l.b16 %v411
  %v2975 = vunpack.c.l.b16 %v412
  %v2976 = vunpack.c.l.b16 %v413
  %v2977 = vunpack.c.l.b16 %v414
  %v2978 = vunpack.c.l.b16 %v415
  %v2979 = vunpack.c.l.b16 %v416
  %v2980 = vunpack.c.l.b16 %v417
  %v2981 = vunpack.c.l.b16 %v418
  %v2982 = vunpack.c.l.b16 %v419
  %v2983 = vunpack.c.l.b16 %v420
  %v2984 = vunpack.c.l.b16 %v421
  %v2985 = vunpack.c.l.b16 %v422
  %v2986 = vunpack.c.l.b16 %v423
  %v2987 = vunpack.c.l.b16 %v424
  %v2988 = vunpack.c.l.b16 %v425
  %v2989 = vunpack.c.l.b16 %v426
  %v2990 = vunpack.c.l.b16 %v427
  %v2991 = vunpack.c.l.b16 %v428
  %v2992 = vunpack.c.l.b16 %v429
  %v2993 = vunpack.c.l.b16 %v430
  %v2994 = vunpack.c.l.b16 %v431
  %v2995 = vunpack.c.l.b16 %v432
  %v2996 = vunpack.c.l.b16 %v433
  %v2997 = vunpack.c.l.b16 %v434
  %v2998 = vunpack.c.l.b16 %v435
  %v2999 = vunpack.c.l.b16 %v436
  %v3000 = vunpack.c.l.b16 %v437
  %v3001 = vunpack.c.l.b16 %v438
  %v3002 = vunpack.c.l.b16 %v439
  %v3003 = vunpack.c.l.b16 %v440
  %v3004 = vunpack.c.l.b16 %v441
  %v3005 = vunpack.c.l.b16 %v442
  %v3006 = vunpack.c.l.b16 %v443
  %v3007 = vunpack.c.l.b16 %v444
  %v3008 = vunpack.c.l.b16 %v445
  %v3009 = vunpack.c.l.b16 %v446
  %v3010 = vunpack.c.l.b16 %v447
  %v3011 = vunpack.c.l.b16 %v448
  %v3012 = vunpack.c.l.b16 %v449
  %v3013 = vunpack.c.l.b16 %v450
  %v3014 = vunpack.c.l.b16 %v451
  %v3015 = vunpack.c.l.b16 %v452
  %v3016 = vunpack.c.l.b16 %v453
  %v3017 = vunpack.c.l.b16 %v454
  %v3018 = vunpack.c.l.b16 %v455
  %v3019 = vunpack.c.l.b16 %v456
  %v3020 = vunpack.c.l.b16 %v457
  %v3021 = vunpack.c.l.b16 %v458
  %v3022 = vunpack.c.l.b16 %v459
  %v3023 = vunpack.c.l.b16 %v460
  %v3024 = vunpack.c.l.b16 %v461
  %v3025 = vunpack.c.l.b16 %v462
  %v3026 = vunpack.c.l.b16 %v463
  %v3027 = vunpack.c.l.b16 %v464
  %v3028 = vunpack.c.l.b16 %v465
  %v3029 = vunpack.c.l.b16 %v466
  %v3030 = vunpack.c.l.b16 %v467
  %v3031 = vunpack.c.l.b16 %v468
  %v3032 = vunpack.c.l.b16 %v469
  %v3033 = vunpack.c.l.b16 %v470
  %v3034 = vunpack.c.l.b16 %v471
  %v3035 = vunpack.c.l.b16 %v472
  %v3036 = vunpack.c.l.b16 %v473
  %v3037 = vunpack.c.l.b16 %v474
  %v3038 = vunpack.c.l.b16 %v475
  %v3039 = vunpack.c.l.b16 %v476
  %v3040 = vunpack.c.l.b16 %v477
  %v3041 = vunpack.c.l.b16 %v478
  %v3042 = vunpack.c.l.b16 %v479
  %v3043 = vunpack.c.l.b16 %v480
  %v3044 = vunpack.c.l.b16 %v481
  %v3045 = vunpack.c.l.b16 %v482
  %v3046 = vunpack.c.l.b16 %v483
  %v3047 = vunpack.c.l.b16 %v484
  %v3048 = vunpack.c.l.b16 %v485
  %v3049 = vunpack.c.l.b16 %v486
  %v3050 = vunpack.c.l.b16 %v487
  %v3051 = vunpack.c.l.b16 %v488
  %v3052 = vunpack.c.l.b16 %v489
  %v3053 = vunpack.c.l.b16 %v490
  %v3054 = vunpack.c.l.b16 %v491
  %v3055 = vunpack.c.l.b16 %v492
  %v3056 = vunpack.c.l.b16 %v493
  %v3057 = vunpack.c.l.b16 %v494
  %v3058 = vunpack.c.l.b16 %v495
  %v3059 = vunpack.c.l.b16 %v496
  %v3060 = vunpack.c.l.b16 %v497
  %v3061 = vunpack.c.l.b16 %v498
  %v3062 = vunpack.c.l.b16 %v499
  %v3063 = vunpack.c.l.b16 %v500
  %v3064 = vunpack.c.l.b16 %v501
  %v3065 = vunpack.c.l.b16 %v502
  %v3066 = vunpack.c.l.b16 %v503
  %v3067 = vunpack.c.l.b16 %v504
  %v3068 = vunpack.c.l.b16 %v505
  %v3069 = vunpack.c.l.b16 %v506
  %v3070 = vunpack.c.l.b16 %v507
  %v3071 = vunpack.c.l.b16 %v508
  %v3072 = vunpack.c.l.b16 %v509
  %v3073 = vunpack.c.l.b16 %v510
  %v3074 = vunpack.c.l.b16 %v511
  %v3075 = vunpack.c.l.b16 %v512
  %v3076 = vunpack.c.l.b16 %v513
  %v3077 = vunpack.c.l.b16 %v514
  %v3078 = vunpack.c.l.b16 %v515
  %v3079 = vunpack.c.l.b16 %v516
  %v3080 = vunpack.c.l.b16 %v517
  %v3081 = vunpack.c.l.b16 %v518
  %v3082 = vunpack.c.l.b16 %v519
  %v3083 = vunpack.c.l.b16 %v520
  %v3084 = vunpack.c.l.b16 %v521
  %v3085 = vunpack.c.l.b16 %v522
  %v3086 = vunpack.c.l.b16 %v523
  %v3087 = vunpack.c.l.b16 %v524
  %v3088 = vunpack.c.l.b16 %v525
  %v3089 = vunpack.c.l.b16 %v526
  %v3090 = vunpack.c.l.b16 %v527
  %v3091 = vunpack.c.l.b16 %v528
  %v3092 = vunpack.c.l.b16 %v529
  %v3093 = vunpack.c.l.b16 %v530
  %v3094 = vunpack.c.l.b16 %v531
  %v3095 = vunpack.c.l.b16 %v532
  %v3096 = vunpack.c.l.b16 %v533
  %v3097 = vunpack.c.l.b16 %v534
  %v3098 = vunpack.c.l.b16 %v535
  %v3099 = vunpack.c.l.b16 %v536
  %v3100 = vunpack.c.l.b16 %v537
  %v3101 = vunpack.c.l.b16 %v538
  %v3102 = vunpack.c.l.b16 %v539
  %v3103 = vunpack.c.l.b16 %v540
  %v3104 = vunpack.c.l.b16 %v541
  %v3105 = vunpack.c.l.b16 %v542
  %v3106 = vunpack.c.l.b16 %v543
  %v3107 = vunpack.c.l.b16 %v544
  %v3108 = vunpack.c.l.b16 %v545
  %v3109 = vunpack.c.l.b16 %v546
  %v3110 = vunpack.c.l.b16 %v547
  %v3111 = vunpack.c.l.b16 %v548
  %v3112 = vunpack.c.l.b16 %v549
  %v3113 = vunpack.c.l.b16 %v550
  %v3114 = vunpack.c.l.b16 %v551
  %v3115 = vunpack.c.l.b16 %v552
  %v3116 = vunpack.c.l.b16 %v553
  %v3117 = vunpack.c.l.b16 %v554
  %v3118 = vunpack.c.l.b16 %v555
  %v3119 = vunpack.c.l.b16 %v556
  %v3120 = vunpack.c.l.b16 %v557
  %v3121 = vunpack.c.l.b16 %v558
  %v3122 = vunpack.c.l.b16 %v559
  %v3123 = vunpack.c.l.b16 %v560
  %v3124 = vunpack.c.l.b16 %v561
  %v3125 = vunpack.c.l.b16 %v562
  %v3126 = vunpack.c.l.b16 %v563
  %v3127 = vunpack.c.l.b16 %v564
  %v3128 = vunpack.c.l.b16 %v565
  %v3129 = vunpack.c.l.b16 %v566
  %v3130 = vunpack.c.l.b16 %v567
  %v3131 = vunpack.c.l.b16 %v568
  %v3132 = vunpack.c.l.b16 %v569
  %v3133 = vunpack.c.l.b16 %v570
  %v3134 = vunpack.c.l.b16 %v571
  %v3135 = vunpack.c.l.b16 %v572
  %v3136 = vunpack.c.l.b16 %v573
  %v3137 = vunpack.c.l.b16 %v574
  %v3138 = vunpack.c.l.b16 %v575
  %v3139 = vunpack.c.l.b16 %v576
  %v3140 = vunpack.c.l.b16 %v577
  %v3141 = vunpack.c.l.b16 %v578
  %v3142 = vunpack.c.l.b16 %v579
  %v3143 = vunpack.c.l.b16 %v580
  %v3144 = vunpack.c.l.b16 %v581
  %v3145 = vunpack.c.l.b16 %v582
  %v3146 = vunpack.c.l.b16 %v583
  %v3147 = vunpack.c.l.b16 %v584
  %v3148 = vunpack.c.l.b16 %v585
  %v3149 = vunpack.c.l.b16 %v586
  %v3150 = vunpack.c.l.b16 %v587
  %v3151 = vunpack.c.l.b16 %v588
  %v3152 = vunpack.c.l.b16 %v589
  %v3153 = vunpack.c.l.b16 %v590
  %v3154 = vunpack.c.l.b16 %v591
  %v3155 = vunpack.c.l.b16 %v592
  %v3156 = vunpack.c.l.b16 %v593
  %v3157 = vunpack.c.l.b16 %v594
  %v3158 = vunpack.c.l.b16 %v595
  %v3159 = vunpack.c.l.b16 %v596
  %v3160 = vunpack.c.l.b16 %v597
  %v3161 = vunpack.c.l.b16 %v598
  %v3162 = vunpack.c.l.b16 %v599
  %v3163 = vunpack.c.l.b16 %v600
  %v3164 = vunpack.c.l.b16 %v601
  %v3165 = vunpack.c.l.b16 %v602
  %v3166 = vunpack.c.l.b16 %v603
  %v3167 = vunpack.c.l.b16 %v604
  %v3168 = vunpack.c.l.b16 %v605
  %v3169 = vunpack.c.l.b16 %v606
  %v3170 = vunpack.c.l.b16 %v607
  %v3171 = vunpack.c.l.b16 %v608
  %v3172 = vunpack.c.l.b16 %v609
  %v3173 = vunpack.c.l.b16 %v610
  %v3174 = vunpack.c.l.b16 %v611
  %v3175 = vunpack.c.l.b16 %v612
  %v3176 = vunpack.c.l.b16 %v613
  %v3177 = vunpack.c.l.b16 %v614
  %v3178 = vunpack.c.l.b16 %v615
  %v3179 = vunpack.c.l.b16 %v616
  %v3180 = vunpack.c.l.b16 %v617
  %v3181 = vunpack.c.l.b16 %v618
  %v3182 = vunpack.c.l.b16 %v619
  %v3183 = vunpack.c.l.b16 %v620
  %v3184 = vunpack.c.l.b16 %v621
  %v3185 = vunpack.c.l.b16 %v622
  %v3186 = vunpack.c.l.b16 %v623
  %v3187 = vunpack.c.l.b16 %v624
  %v3188 = vunpack.c.l.b16 %v625
  %v3189 = vunpack.c.l.b16 %v626
  %v3190 = vunpack.c.l.b16 %v627
  %v3191 = vunpack.c.l.b16 %v628
  %v3192 = vunpack.c.l.b16 %v629
  %v3193 = vunpack.c.l.b16 %v630
  %v3194 = vunpack.c.l.b16 %v631
  %v3195 = vunpack.c.l.b16 %v632
  %v3196 = vunpack.c.l.b16 %v633
  %v3197 = vunpack.c.l.b16 %v634
  %v3198 = vunpack.c.l.b16 %v635
  %v3199 = vunpack.c.l.b16 %v636
  %v3200 = vunpack.c.l.b16 %v637
  %v3201 = vunpack.c.l.b16 %v638
  %v3202 = vunpack.c.l.b16 %v639
  %v3203 = vunpack.c.l.b16 %v640
  %v3204 = vunpack.c.l.b16 %v641
  %v3205 = vunpack.c.l.b16 %v642
  %v3206 = vunpack.c.l.b16 %v643
  %v3207 = vunpack.c.l.b16 %v644
  %v3208 = vunpack.c.l.b16 %v645
  %v3209 = vunpack.c.l.b16 %v646
  %v3210 = vunpack.c.l.b16 %v647
  %v3211 = vunpack.c.l.b16 %v648
  %v3212 = vunpack.c.l.b16 %v649
  %v3213 = vunpack.c.l.b16 %v650
  %v3214 = vunpack.c.l.b16 %v651
  %v3215 = vunpack.c.l.b16 %v652
  %v3216 = vunpack.c.l.b16 %v653
  %v3217 = vunpack.c.l.b16 %v654
  %v3218 = vunpack.c.l.b16 %v655
  %v3219 = vunpack.c.l.b16 %v656
  %v3220 = vunpack.c.l.b16 %v657
  %v3221 = vunpack.c.l.b16 %v658
  %v3222 = vunpack.c.l.b16 %v659
  %v3223 = vunpack.c.l.b16 %v660
  %v3224 = vunpack.c.l.b16 %v661
  %v3225 = vunpack.c.l.b16 %v662
  %v3226 = vunpack.c.l.b16 %v663
  %v3227 = vunpack.c.l.b16 %v664
  %v3228 = vunpack.c.l.b16 %v665
  %v3229 = vunpack.c.l.b16 %v666
  %v3230 = vunpack.c.l.b16 %v667
  %v3231 = vunpack.c.l.b16 %v668
  %v3232 = vunpack.c.l.b16 %v669
  %v3233 = vunpack.c.l.b16 %v670
  %v3234 = vunpack.c.l.b16 %v671
  %v3235 = vunpack.c.l.b16 %v672
  %v3236 = vunpack.c.l.b16 %v673
  %v3237 = vunpack.c.l.b16 %v674
  %v3238 = vunpack.c.l.b16 %v675
  %v3239 = vunpack.c.l.b16 %v676
  %v3240 = vunpack.c.l.b16 %v677
  %v3241 = vunpack.c.l.b16 %v678
  %v3242 = vunpack.c.l.b16 %v679
  %v3243 = vunpack.c.l.b16 %v680
  %v3244 = vunpack.c.l.b16 %v681
  %v3245 = vunpack.c.l.b16 %v682
  %v3246 = vunpack.c.l.b16 %v683
  %v3247 = vunpack.c.l.b16 %v684
  %v3248 = vunpack.c.l.b16 %v685
  %v3249 = vunpack.c.l.b16 %v686
  %v3250 = vunpack.c.l.b16 %v687
  %v3251 = vunpack.c.l.b16 %v688
  %v3252 = vunpack.c.l.b16 %v689
  %v3253 = vunpack.c.l.b16 %v690
  %v3254 = vunpack.c.l.b16 %v691
  %v3255 = vunpack.c.l.b16 %v692
  %v3256 = vunpack.c.l.b16 %v693
  %v3257 = vunpack.c.l.b16 %v694
  %v3258 = vunpack.c.l.b16 %v695
  %v3259 = vunpack.c.l.b16 %v696
  %v3260 = vunpack.c.l.b16 %v697
  %v3261 = vunpack.c.l.b16 %v698
  %v3262 = vunpack.c.l.b16 %v699
  %v3263 = vunpack.c.l.b16 %v700
  %v3264 = vunpack.c.l.b16 %v701
  %v3265 = vunpack.c.l.b16 %v702
  %v3266 = vunpack.c.l.b16 %v703
  %v3267 = vunpack.c.l.b16 %v704
  %v3268 = vunpack.c.l.b16 %v705
  %v3269 = vunpack.c.l.b16 %v706
  %v3270 = vunpack.c.l.b16 %v707
  %v3271 = vunpack.c.l.b16 %v708
  %v3272 = vunpack.c.l.b16 %v709
  %v3273 = vunpack.c.l.b16 %v710
  %v3274 = vunpack.c.l.b16 %v711
  %v3275 = vunpack.c.l.b16 %v712
  %v3276 = vunpack.c.l.b16 %v713
  %v3277 = vunpack.c.l.b16 %v714
  %v3278 = vunpack.c.l.b16 %v715
  %v3279 = vunpack.c.l.b16 %v716
  %v3280 = vunpack.c.l.b16 %v717
  %v3281 = vunpack.c.l.b16 %v718
  %v3282 = vunpack.c.l.b16 %v719
  %v3283 = vunpack.c.l.b16 %v720
  %v3284 = vunpack.c.l.b16 %v721
  %v3285 = vunpack.c.l.b16 %v722
  %v3286 = vunpack.c.l.b16 %v723
  %v3287 = vunpack.c.l.b16 %v724
  %v3288 = vunpack.c.l.b16 %v725
  %v3289 = vunpack.c.l.b16 %v726
  %v3290 = vunpack.c.l.b16 %v727
  %v3291 = vunpack.c.l.b16 %v728
  %v3292 = vunpack.c.l.b16 %v729
  %v3293 = vunpack.c.l.b16 %v730
  %v3294 = vunpack.c.l.b16 %v731
  %v3295 = vunpack.c.l.b16 %v732
  %v3296 = vunpack.c.l.b16 %v733
  %v3297 = vunpack.c.l.b16 %v734
  %v3298 = vunpack.c.l.b16 %v735
  %v3299 = vunpack.c.l.b16 %v736
  %v3300 = vunpack.c.l.b16 %v737
  %v3301 = vunpack.c.l.b16 %v738
  %v3302 = vunpack.c.l.b16 %v739
  %v3303 = vunpack.c.l.b16 %v740
  %v3304 = vunpack.c.l.b16 %v741
  %v3305 = vunpack.c.l.b16 %v742
  %v3306 = vunpack.c.l.b16 %v743
  %v3307 = vunpack.c.l.b16 %v744
  %v3308 = vunpack.c.l.b16 %v745
  %v3309 = vunpack.c.l.b16 %v746
  %v3310 = vunpack.c.l.b16 %v747
  %v3311 = vunpack.c.l.b16 %v748
  %v3312 = vunpack.c.l.b16 %v749
  %v3313 = vunpack.c.l.b16 %v750
  %v3314 = vunpack.c.l.b16 %v751
  %v3315 = vunpack.c.l.b16 %v752
  %v3316 = vunpack.c.l.b16 %v753
  %v3317 = vunpack.c.l.b16 %v754
  %v3318 = vunpack.c.l.b16 %v755
  %v3319 = vunpack.c.l.b16 %v756
  %v3320 = vunpack.c.l.b16 %v757
  %v3321 = vunpack.c.l.b16 %v758
  %v3322 = vunpack.c.l.b16 %v759
  %v3323 = vunpack.c.l.b16 %v760
  %v3324 = vunpack.c.l.b16 %v761
  %v3325 = vunpack.c.l.b16 %v762
  %v3326 = vunpack.c.l.b16 %v763
  %v3327 = vunpack.c.l.b16 %v764
  %v3328 = vunpack.c.l.b16 %v765
  %v3329 = vunpack.c.l.b16 %v766
  %v3330 = vunpack.c.l.b16 %v767
  %v3331 = vunpack.c.l.b16 %v768
  %v3332 = vunpack.c.l.b16 %v769
  %v3333 = vunpack.c.l.b16 %v770
  %v3334 = vunpack.c.l.b16 %v771
  %v3335 = vunpack.c.l.b16 %v772
  %v3336 = vunpack.c.l.b16 %v773
  %v3337 = vunpack.c.l.b16 %v774
  %v3338 = vunpack.c.l.b16 %v775
  %v3339 = vunpack.c.l.b16 %v776
  %v3340 = vunpack.c.l.b16 %v777
  %v3341 = vunpack.c.l.b16 %v778
  %v3342 = vunpack.c.l.b16 %v779
  %v3343 = vunpack.c.l.b16 %v780
  %v3344 = vunpack.c.l.b16 %v781
  %v3345 = vunpack.c.l.b16 %v782
  %v3346 = vunpack.c.l.b16 %v783
  %v3347 = vunpack.c.l.b16 %v784
  %v3348 = vunpack.c.l.b16 %v785
  %v3349 = vunpack.c.l.b16 %v786
  %v3350 = vunpack.c.l.b16 %v787
  %v3351 = vunpack.c.l.b16 %v788
  %v3352 = vunpack.c.l.b16 %v789
  %v3353 = vunpack.c.l.b16 %v790
  %v3354 = vunpack.c.l.b16 %v791
  %v3355 = vunpack.c.l.b16 %v792
  %v3356 = vunpack.c.l.b16 %v793
  %v3357 = vunpack.c.l.b16 %v794
  %v3358 = vunpack.c.l.b16 %v795
  %v3359 = vunpack.c.l.b16 %v796
  %v3360 = vunpack.c.l.b16 %v797
  %v3361 = vunpack.c.l.b16 %v798
  %v3362 = vunpack.c.l.b16 %v799
  %v3363 = vunpack.c.l.b16 %v800
  %v3364 = vunpack.c.l.b16 %v801
  %v3365 = vunpack.c.l.b16 %v802
  %v3366 = vunpack.c.l.b16 %v803
  %v3367 = vunpack.c.l.b16 %v804
  %v3368 = vunpack.c.l.b16 %v805
  %v3369 = vunpack.c.l.b16 %v806
  %v3370 = vunpack.c.l.b16 %v807
  %v3371 = vunpack.c.l.b16 %v808
  %v3372 = vunpack.c.l.b16 %v809
  %v3373 = vunpack.c.l.b16 %v810
  %v3374 = vunpack.c.l.b16 %v811
  %v3375 = vunpack.c.l.b16 %v812
  %v3376 = vunpack.c.l.b16 %v813
  %v3377 = vunpack.c.l.b16 %v814
  %v3378 = vunpack.c.l.b16 %v815
  %v3379 = vunpack.c.l.b16 %v816
  %v3380 = vunpack.c.l.b16 %v817
  %v3381 = vunpack.c.l.b16 %v818
  %v3382 = vunpack.c.l.b16 %v819
  %v3383 = vunpack.c.l.b16 %v820
  %v3384 = vunpack.c.l.b16 %v821
  %v3385 = vunpack.c.l.b16 %v822
  %v3386 = vunpack.c.l.b16 %v823
  %v3387 = vunpack.c.l.b16 %v824
  %v3388 = vunpack.c.l.b16 %v825
  %v3389 = vunpack.c.l.b16 %v826
  %v3390 = vunpack.c.l.b16 %v827
  %v3391 = vunpack.c.l.b16 %v828
  %v3392 = vunpack.c.l.b16 %v829
  %v3393 = vunpack.c.l.b16 %v830
  %v3394 = vunpack.c.l.b16 %v831
  %v3395 = vunpack.c.l.b16 %v832
  %v3396 = vunpack.c.l.b16 %v833
  %v3397 = vunpack.c.l.b16 %v834
  %v3398 = vunpack.c.l.b16 %v835
  %v3399 = vunpack.c.l.b16 %v836
  %v3400 = vunpack.c.l.b16 %v837
  %v3401 = vunpack.c.l.b16 %v838
  %v3402 = vunpack.c.l.b16 %v839
  %v3403 = vunpack.c.l.b16 %v840
  %v3404 = vunpack.c.l.b16 %v841
  %v3405 = vunpack.c.l.b16 %v842
  %v3406 = vunpack.c.l.b16 %v843
  %v3407 = vunpack.c.l.b16 %v844
  %v3408 = vunpack.c.l.b16 %v845
  %v3409 = vunpack.c.l.b16 %v846
  %v3410 = vunpack.c.l.b16 %v847
  %v3411 = vunpack.c.l.b16 %v848
  %v3412 = vunpack.c.l.b16 %v849
  %v3413 = vunpack.c.l.b16 %v850
  %v3414 = vunpack.c.l.b16 %v851
  %v3415 = vunpack.c.l.b16 %v852
  %v3416 = vunpack.c.l.b16 %v853
  %v3417 = vunpack.c.l.b16 %v854
  %v3418 = vunpack.c.l.b16 %v855
  %v3419 = vunpack.c.l.b16 %v856
  %v3420 = vunpack.c.l.b16 %v857
  %v3421 = vunpack.c.l.b16 %v858
  %v3422 = vunpack.c.l.b16 %v859
  %v3423 = vunpack.c.l.b16 %v860
  %v3424 = vunpack.c.l.b16 %v861
  %v3425 = vunpack.c.l.b16 %v862
  %v3426 = vunpack.c.l.b16 %v863
  %v3427 = vunpack.c.l.b16 %v864
  %v3428 = vunpack.c.l.b16 %v865
  %v3429 = vunpack.c.l.b16 %v866
  %v3430 = vunpack.c.l.b16 %v867
  %v3431 = vunpack.c.l.b16 %v868
  %v3432 = vunpack.c.l.b16 %v869
  %v3433 = vunpack.c.l.b16 %v870
  %v3434 = vunpack.c.l.b16 %v871
  %v3435 = vunpack.c.l.b16 %v872
  %v3436 = vunpack.c.l.b16 %v873
  %v3437 = vunpack.c.l.b16 %v874
  %v3438 = vunpack.c.l.b16 %v875
  %v3439 = vunpack.c.l.b16 %v876
  %v3440 = vunpack.c.l.b16 %v877
  %v3441 = vunpack.c.l.b16 %v878
  %v3442 = vunpack.c.l.b16 %v879
  %v3443 = vunpack.c.l.b16 %v880
  %v3444 = vunpack.c.l.b16 %v881
  %v3445 = vunpack.c.l.b16 %v882
  %v3446 = vunpack.c.l.b16 %v883
  %v3447 = vunpack.c.l.b16 %v884
  %v3448 = vunpack.c.l.b16 %v885
  %v3449 = vunpack.c.l.b16 %v886
  %v3450 = vunpack.c.l.b16 %v887
  %v3451 = vunpack.c.l.b16 %v888
  %v3452 = vunpack.c.l.b16 %v889
  %v3453 = vunpack.c.l.b16 %v890
  %v3454 = vunpack.c.l.b16 %v891
  %v3455 = vunpack.c.l.b16 %v892
  %v3456 = vunpack.c.l.b16 %v893
  %v3457 = vunpack.c.l.b16 %v894
  %v3458 = vunpack.c.l.b16 %v895
  %v3459 = vunpack.c.l.b16 %v896
  %v3460 = vunpack.c.l.b16 %v897
  %v3461 = vunpack.c.l.b16 %v898
  %v3462 = vunpack.c.l.b16 %v899
  %v3463 = vunpack.c.l.b16 %v900
  %v3464 = vunpack.c.l.b16 %v901
  %v3465 = vunpack.c.l.b16 %v902
  %v3466 = vunpack.c.l.b16 %v903
  %v3467 = vunpack.c.l.b16 %v904
  %v3468 = vunpack.c.l.b16 %v905
  %v3469 = vunpack.c.l.b16 %v906
  %v3470 = vunpack.c.l.b16 %v907
  %v3471 = vunpack.c.l.b16 %v908
  %v3472 = vunpack.c.l.b16 %v909
  %v3473 = vunpack.c.l.b16 %v910
  %v3474 = vunpack.c.l.b16 %v911
  %v3475 = vunpack.c.l.b16 %v912
  %v3476 = vunpack.c.l.b16 %v913
  %v3477 = vunpack.c.l.b16 %v914
  %v3478 = vunpack.c.l.b16 %v915
  %v3479 = vunpack.c.l.b16 %v916
  %v3480 = vunpack.c.l.b16 %v917
  %v3481 = vunpack.c.l.b16 %v918
  %v3482 = vunpack.c.l.b16 %v919
  %v3483 = vunpack.c.l.b16 %v920
  %v3484 = vunpack.c.l.b16 %v921
  %v3485 = vunpack.c.l.b16 %v922
  %v3486 = vunpack.c.l.b16 %v923
  %v3487 = vunpack.c.l.b16 %v924
  %v3488 = vunpack.c.l.b16 %v925
  %v3489 = vunpack.c.l.b16 %v926
  %v3490 = vunpack.c.l.b16 %v927
  %v3491 = vunpack.c.l.b16 %v928
  %v3492 = vunpack.c.l.b16 %v929
  %v3493 = vunpack.c.l.b16 %v930
  %v3494 = vunpack.c.l.b16 %v931
  %v3495 = vunpack.c.l.b16 %v932
  %v3496 = vunpack.c.l.b16 %v933
  %v3497 = vunpack.c.l.b16 %v934
  %v3498 = vunpack.c.l.b16 %v935
  %v3499 = vunpack.c.l.b16 %v936
  %v3500 = vunpack.c.l.b16 %v937
  %v3501 = vunpack.c.l.b16 %v938
  %v3502 = vunpack.c.l.b16 %v939
  %v3503 = vunpack.c.l.b16 %v940
  %v3504 = vunpack.c.l.b16 %v941
  %v3505 = vunpack.c.l.b16 %v942
  %v3506 = vunpack.c.l.b16 %v943
  %v3507 = vunpack.c.l.b16 %v944
  %v3508 = vunpack.c.l.b16 %v945
  %v3509 = vunpack.c.l.b16 %v946
  %v3510 = vunpack.c.l.b16 %v947
  %v3511 = vunpack.c.l.b16 %v948
  %v3512 = vunpack.c.l.b16 %v949
  %v3513 = vunpack.c.l.b16 %v950
  %v3514 = vunpack.c.l.b16 %v951
  %v3515 = vunpack.c.l.b16 %v952
  %v3516 = vunpack.c.l.b16 %v953
  %v3517 = vunpack.c.l.b16 %v954
  %v3518 = vunpack.c.l.b16 %v955
  %v3519 = vunpack.c.l.b16 %v956
  %v3520 = vunpack.c.l.b16 %v957
  %v3521 = vunpack.c.l.b16 %v958
  %v3522 = vunpack.c.l.b16 %v959
  %v3523 = vunpack.c.l.b16 %v960
  %v3524 = vunpack.c.l.b16 %v961
  %v3525 = vunpack.c.l.b16 %v962
  %v3526 = vunpack.c.l.b16 %v963
  %v3527 = vunpack.c.l.b16 %v964
  %v3528 = vunpack.c.l.b16 %v965
  %v3529 = vunpack.c.l.b16 %v966
  %v3530 = vunpack.c.l.b16 %v967
  %v3531 = vunpack.c.l.b16 %v968
  %v3532 = vunpack.c.l.b16 %v969
  %v3533 = vunpack.c.l.b16 %v970
  %v3534 = vunpack.c.l.b16 %v971
  %v3535 = vunpack.c.l.b16 %v972
  %v3536 = vunpack.c.l.b16 %v973
  %v3537 = vunpack.c.l.b16 %v974
  %v3538 = vunpack.c.l.b16 %v975
  %v3539 = vunpack.c.l.b16 %v976
  %v3540 = vunpack.c.l.b16 %v977
  %v3541 = vunpack.c.l.b16 %v978
  %v3542 = vunpack.c.l.b16 %v979
  %v3543 = vunpack.c.l.b16 %v980
  %v3544 = vunpack.c.l.b16 %v981
  %v3545 = vunpack.c.l.b16 %v982
  %v3546 = vunpack.c.l.b16 %v983
  %v3547 = vunpack.c.l.b16 %v984
  %v3548 = vunpack.c.l.b16 %v985
  %v3549 = vunpack.c.l.b16 %v986
  %v3550 = vunpack.c.l.b16 %v987
  %v3551 = vunpack.c.l.b16 %v988
  %v3552 = vunpack.c.l.b16 %v989
  %v3553 = vunpack.c.l.b16 %v990
  %v3554 = vunpack.c.l.b16 %v991
  %v3555 = vunpack.c.l.b16 %v992
  %v3556 = vunpack.c.l.b16 %v993
  %v3557 = vunpack.c.l.b16 %v994
  %v3558 = vunpack.c.l.b16 %v995
  %v3559 = vunpack.c.l.b16 %v996
  %v3560 = vunpack.c.l.b16 %v997
  %v3561 = vunpack.c.l.b16 %v998
  %v3562 = vunpack.c.l.b16 %v999
  %v3563 = vunpack.c.l.b16 %v1000
  %v3564 = vunpack.c.l.b16 %v1001
  %v3565 = vunpack.c.l.b16 %v1002
  %v3566 = vunpack.c.l.b16 %v1003
  %v3567 = vunpack.c.l.b16 %v1004
  %v3568 = vunpack.c.l.b16 %v1005
  %v3569 = vunpack.c.l.b16 %v1006
  %v3570 = vunpack.c.l.b16 %v1007
  %v3571 = vunpack.c.l.b16 %v1008
  %v3572 = vunpack.c.l.b16 %v1009
  %v3573 = vunpack.c.l.b16 %v1010
  %v3574 = vunpack.c.l.b16 %v1011
  %v3575 = vunpack.c.l.b16 %v1012
  %v3576 = vunpack.c.l.b16 %v1013
  %v3577 = vunpack.c.l.b16 %v1014
  %v3578 = vunpack.c.l.b16 %v1015
  %v3579 = vunpack.c.l.b16 %v1016
  %v3580 = vunpack.c.l.b16 %v1017
  %v3581 = vunpack.c.l.b16 %v1018
  %v3582 = vunpack.c.l.b16 %v1019
  %v3583 = vunpack.c.l.b16 %v1020
  %v3584 = vunpack.c.l.b16 %v1021
  %v3585 = vunpack.c.l.b16 %v1022
  %v3586 = vunpack.c.l.b16 %v1023
  %v3587 = vunpack.c.l.b16 %v1024
  %v3588 = vunpack.c.l.b16 %v1025
  %v3589 = vunpack.c.l.b16 %v1026
  %v3590 = vunpack.c.l.b16 %v1027
  %v3591 = vunpack.c.l.b16 %v1028
  %v3592 = vunpack.c.l.b16 %v1029
  %v3593 = vunpack.c.l.b16 %v1030
  %v3594 = vunpack.c.l.b16 %v1031
  %v3595 = vunpack.c.l.b16 %v1032
  %v3596 = vunpack.c.l.b16 %v1033
  %v3597 = vunpack.c.l.b16 %v1034
  %v3598 = vunpack.c.l.b16 %v1035
  %v3599 = vunpack.c.l.b16 %v1036
  %v3600 = vunpack.c.l.b16 %v1037
  %v3601 = vunpack.c.l.b16 %v1038
  %v3602 = vunpack.c.l.b16 %v1039
  %v3603 = vunpack.c.l.b16 %v1040
  %v3604 = vunpack.c.l.b16 %v1041
  %v3605 = vunpack.c.l.b16 %v1042
  %v3606 = vunpack.c.l.b16 %v1043
  %v3607 = vunpack.c.l.b16 %v1044
  %v3608 = vunpack.c.l.b16 %v1045
  %v3609 = vunpack.c.l.b16 %v1046
  %v3610 = vunpack.c.l.b16 %v1047
  %v3611 = vunpack.c.l.b16 %v1048
  %v3612 = vunpack.c.l.b16 %v1049
  %v3613 = vunpack.c.l.b16 %v1050
  %v3614 = vunpack.c.l.b16 %v1051
  %v3615 = vunpack.c.l.b16 %v1052
  %v3616 = vunpack.c.l.b16 %v1053
  %v3617 = vunpack.c.l.b16 %v1054
  %v3618 = vunpack.c.l.b16 %v1055
  %v3619 = vunpack.c.l.b16 %v1056
  %v3620 = vunpack.c.l.b16 %v1057
  %v3621 = vunpack.c.l.b16 %v1058
  %v3622 = vunpack.c.l.b16 %v1059
  %v3623 = vunpack.c.l.b16 %v1060
  %v3624 = vunpack.c.l.b16 %v1061
  %v3625 = vunpack.c.l.b16 %v1062
  %v3626 = vunpack.c.l.b16 %v1063
  %v3627 = vunpack.c.l.b16 %v1064
  %v3628 = vunpack.c.l.b16 %v1065
  %v3629 = vunpack.c.l.b16 %v1066
  %v3630 = vunpack.c.l.b16 %v1067
  %v3631 = vunpack.c.l.b16 %v1068
  %v3632 = vunpack.c.l.b16 %v1069
  %v3633 = vunpack.c.l.b16 %v1070
  %v3634 = vunpack.c.l.b16 %v1071
  %v3635 = vunpack.c.l.b16 %v1072
  %v3636 = vunpack.c.l.b16 %v1073
  %v3637 = vunpack.c.l.b16 %v1074
  %v3638 = vunpack.c.l.b16 %v1075
  %v3639 = vunpack.c.l.b16 %v1076
  %v3640 = vunpack.c.l.b16 %v1077
  %v3641 = vunpack.c.l.b16 %v1078
  %v3642 = vunpack.c.l.b16 %v1079
  %v3643 = vunpack.c.l.b16 %v1080
  %v3644 = vunpack.c.l.b16 %v1081
  %v3645 = vunpack.c.l.b16 %v1082
  %v3646 = vunpack.c.l.b16 %v1083
  %v3647 = vunpack.c.l.b16 %v1084
  %v3648 = vunpack.c.l.b16 %v1085
  %v3649 = vunpack.c.l.b16 %v1086
  %v3650 = vunpack.c.l.b16 %v1087
  %v3651 = vunpack.c.l.b16 %v1088
  %v3652 = vunpack.c.l.b16 %v1089
  %v3653 = vunpack.c.l.b16 %v1090
  %v3654 = vunpack.c.l.b16 %v1091
  %v3655 = vunpack.c.l.b16 %v1092
  %v3656 = vunpack.c.l.b16 %v1093
  %v3657 = vunpack.c.l.b16 %v1094
  %v3658 = vunpack.c.l.b16 %v1095
  %v3659 = vunpack.c.l.b16 %v1096
  %v3660 = vunpack.c.l.b16 %v1097
  %v3661 = vunpack.c.l.b16 %v1098
  %v3662 = vunpack.c.l.b16 %v1099
  %v3663 = vunpack.c.l.b16 %v1100
  %v3664 = vunpack.c.l.b16 %v1101
  %v3665 = vunpack.c.l.b16 %v1102
  %v3666 = vunpack.c.l.b16 %v1103
  %v3667 = vunpack.c.l.b16 %v1104
  %v3668 = vunpack.c.l.b16 %v1105
  %v3669 = vunpack.c.l.b16 %v1106
  %v3670 = vunpack.c.l.b16 %v1107
  %v3671 = vunpack.c.l.b16 %v1108
  %v3672 = vunpack.c.l.b16 %v1109
  %v3673 = vunpack.c.l.b16 %v1110
  %v3674 = vunpack.c.l.b16 %v1111
  %v3675 = vunpack.c.l.b16 %v1112
  %v3676 = vunpack.c.l.b16 %v1113
  %v3677 = vunpack.c.l.b16 %v1114
  %v3678 = vunpack.c.l.b16 %v1115
  %v3679 = vunpack.c.l.b16 %v1116
  %v3680 = vunpack.c.l.b16 %v1117
  %v3681 = vunpack.c.l.b16 %v1118
  %v3682 = vunpack.c.l.b16 %v1119
  %v3683 = vunpack.c.l.b16 %v1120
  %v3684 = vunpack.c.l.b16 %v1121
  %v3685 = vunpack.c.l.b16 %v1122
  %v3686 = vunpack.c.l.b16 %v1123
  %v3687 = vunpack.c.l.b16 %v1124
  %v3688 = vunpack.c.l.b16 %v1125
  %v3689 = vunpack.c.l.b16 %v1126
  %v3690 = vunpack.c.l.b16 %v1127
  %v3691 = vunpack.c.l.b16 %v1128
  %v3692 = vunpack.c.l.b16 %v1129
  %v3693 = vunpack.c.l.b16 %v1130
  %v3694 = vunpack.c.l.b16 %v1131
  %v3695 = vunpack.c.l.b16 %v1132
  %v3696 = vunpack.c.l.b16 %v1133
  %v3697 = vunpack.c.l.b16 %v1134
  %v3698 = vunpack.c.l.b16 %v1135
  %v3699 = vunpack.c.l.b16 %v1136
  %v3700 = vunpack.c.l.b16 %v1137
  %v3701 = vunpack.c.l.b16 %v1138
  %v3702 = vunpack.c.l.b16 %v1139
  %v3703 = vunpack.c.l.b16 %v1140
  %v3704 = vunpack.c.l.b16 %v1141
  %v3705 = vunpack.c.l.b16 %v1142
  %v3706 = vunpack.c.l.b16 %v1143
  %v3707 = vunpack.c.l.b16 %v1144
  %v3708 = vunpack.c.l.b16 %v1145
  %v3709 = vunpack.c.l.b16 %v1146
  %v3710 = vunpack.c.l.b16 %v1147
  %v3711 = vunpack.c.l.b16 %v1148
  %v3712 = vunpack.c.l.b16 %v1149
  %v3713 = vunpack.c.l.b16 %v1150
  %v3714 = vunpack.c.l.b16 %v1151
  %v3715 = vunpack.c.l.b16 %v1152
  %v3716 = vunpack.c.l.b16 %v1153
  %v3717 = vunpack.c.l.b16 %v1154
  %v3718 = vunpack.c.l.b16 %v1155
  %v3719 = vunpack.c.l.b16 %v1156
  %v3720 = vunpack.c.l.b16 %v1157
  %v3721 = vunpack.c.l.b16 %v1158
  %v3722 = vunpack.c.l.b16 %v1159
  %v3723 = vunpack.c.l.b16 %v1160
  %v3724 = vunpack.c.l.b16 %v1161
  %v3725 = vunpack.c.l.b16 %v1162
  %v3726 = vunpack.c.l.b16 %v1163
  %v3727 = vunpack.c.l.b16 %v1164
  %v3728 = vunpack.c.l.b16 %v1165
  %v3729 = vunpack.c.l.b16 %v1166
  %v3730 = vunpack.c.l.b16 %v1167
  %v3731 = vunpack.c.l.b16 %v1168
  %v3732 = vunpack.c.l.b16 %v1169
  %v3733 = vunpack.c.l.b16 %v1170
  %v3734 = vunpack.c.l.b16 %v1171
  %v3735 = vunpack.c.l.b16 %v1172
  %v3736 = vunpack.c.l.b16 %v1173
  %v3737 = vunpack.c.l.b16 %v1174
  %v3738 = vunpack.c.l.b16 %v1175
  %v3739 = vunpack.c.l.b16 %v1176
  %v3740 = vunpack.c.l.b16 %v1177
  %v3741 = vunpack.c.l.b16 %v1178
  %v3742 = vunpack.c.l.b16 %v1179
  %v3743 = vunpack.c.l.b16 %v1180
  %v3744 = vunpack.c.l.b16 %v1181
  %v3745 = vunpack.c.l.b16 %v1182
  %v3746 = vunpack.c.l.b16 %v1183
  %v3747 = vunpack.c.l.b16 %v1184
  %v3748 = vunpack.c.l.b16 %v1185
  %v3749 = vunpack.c.l.b16 %v1186
  %v3750 = vunpack.c.l.b16 %v1187
  %v3751 = vunpack.c.l.b16 %v1188
  %v3752 = vunpack.c.l.b16 %v1189
  %v3753 = vunpack.c.l.b16 %v1190
  %v3754 = vunpack.c.l.b16 %v1191
  %v3755 = vunpack.c.l.b16 %v1192
  %v3756 = vunpack.c.l.b16 %v1193
  %v3757 = vunpack.c.l.b16 %v1194
  %v3758 = vunpack.c.l.b16 %v1195
  %v3759 = vunpack.c.l.b16 %v1196
  %v3760 = vunpack.c.l.b16 %v1197
  %v3761 = vunpack.c.l.b16 %v1198
  %v3762 = vunpack.c.l.b16 %v1199
  %v3763 = vunpack.c.l.b16 %v1200
  %v3764 = vunpack.c.l.b16 %v1201
  %v3765 = vunpack.c.l.b16 %v1202
  %v3766 = vunpack.c.l.b16 %v1203
  %v3767 = vunpack.c.l.b16 %v1204
  %v3768 = vunpack.c.l.b16 %v1205
  %v3769 = vunpack.c.l.b16 %v1206
  %v3770 = vunpack.c.l.b16 %v1207
  %v3771 = vunpack.c.l.b16 %v1208
  %v3772 = vpack.c.b16 %v2621, %v2620
  %v3773 = vpack.c.b16 %v2623, %v2622
  %v3774 = vpack.c.b16 %v2625, %v2624
  %v3775 = vpack.c.b16 %v2627, %v2626
  %v3776 = vpack.c.b16 %v2629, %v2628
  %v3777 = vpack.c.b16 %v2631, %v2630
  %v3778 = vpack.c.b16 %v2633, %v2632
  %v3779 = vpack.c.b16 %v2635, %v2634
  %v3780 = vpack.c.b16 %v2637, %v2636
  %v3781 = vpack.c.b16 %v2639, %v2638
  %v3782 = vpack.c.b16 %v2641, %v2640
  %v3783 = vpack.c.b16 %v2643, %v2642
  %v3784 = vpack.c.b16 %v2645, %v2644
  %v3785 = vpack.c.b16 %v2647, %v2646
  %v3786 = vpack.c.b16 %v2649, %v2648
  %v3787 = vpack.c.b16 %v2651, %v2650
  %v3788 = vpack.c.b16 %v2653, %v2652
  %v3789 = vpack.c.b16 %v2655, %v2654
  %v3790 = vpack.c.b16 %v2657, %v2656
  %v3791 = vpack.c.b16 %v2659, %v2658
  %v3792 = vpack.c.b16 %v2661, %v2660
  %v3793 = vpack.c.b16 %v2663, %v2662
  %v3794 = vpack.c.b16 %v2665, %v2664
  %v3795 = vpack.c.b16 %v2667, %v2666
  %v3796 = vpack.c.b16 %v2669, %v2668
  %v3797 = vpack.c.b16 %v2671, %v2670
  %v3798 = vpack.c.b16 %v2673, %v2672
  %v3799 = vpack.c.b16 %v2675, %v2674
  %v3800 = vpack.c.b16 %v2677, %v2676
  %v3801 = vpack.c.b16 %v2679, %v2678
  %v3802 = vpack.c.b16 %v2681, %v2680
  %v3803 = vpack.c.b16 %v2683, %v2682
  %v3804 = vpack.c.b16 %v2685, %v2684
  %v3805 = vpack.c.b16 %v2687, %v2686
  %v3806 = vpack.c.b16 %v2689, %v2688
  %v3807 = vpack.c.b16 %v2691, %v2690
  %v3808 = vpack.c.b16 %v2693, %v2692
  %v3809 = vpack.c.b16 %v2695, %v2694
  %v3810 = vpack.c.b16 %v2697, %v2696
  %v3811 = vpack.c.b16 %v2699, %v2698
  %v3812 = vpack.c.b16 %v2701, %v2700
  %v3813 = vpack.c.b16 %v2703, %v2702
  %v3814 = vpack.c.b16 %v2705, %v2704
  %v3815 = vpack.c.b16 %v2707, %v2706
  %v3816 = vpack.c.b16 %v2709, %v2708
  %v3817 = vpack.c.b16 %v2711, %v2710
  %v3818 = vpack.c.b16 %v2713, %v2712
  %v3819 = vpack.c.b16 %v2715, %v2714
  %v3820 = vpack.c.b16 %v2717, %v2716
  %v3821 = vpack.c.b16 %v2719, %v2718
  %v3822 = vpack.c.b16 %v2721, %v2720
  %v3823 = vpack.c.b16 %v2723, %v2722
  %v3824 = vpack.c.b16 %v2725, %v2724
  %v3825 = vpack.c.b16 %v2727, %v2726
  %v3826 = vpack.c.b16 %v2729, %v2728
  %v3827 = vpack.c.b16 %v2731, %v2730
  %v3828 = vpack.c.b16 %v2733, %v2732
  %v3829 = vpack.c.b16 %v2735, %v2734
  %v3830 = vpack.c.b16 %v2737, %v2736
  %v3831 = vpack.c.b16 %v2739, %v2738
  %v3832 = vpack.c.b16 %v2741, %v2740
  %v3833 = vpack.c.b16 %v2743, %v2742
  %v3834 = vpack.c.b16 %v2745, %v2744
  %v3835 = vpack.c.b16 %v2747, %v2746
  %v3836 = vpack.c.b16 %v2749, %v2748
  %v3837 = vpack.c.b16 %v2751, %v2750
  %v3838 = vpack.c.b16 %v2753, %v2752
  %v3839 = vpack.c.b16 %v2755, %v2754
  %v3840 = vpack.c.b16 %v2757, %v2756
  %v3841 = vpack.c.b16 %v2759, %v2758
  %v3842 = vpack.c.b16 %v2761, %v2760
  %v3843 = vpack.c.b16 %v2763, %v2762
  %v3844 = vpack.c.b16 %v2765, %v2764
  %v3845 = vpack.c.b16 %v2767, %v2766
  %v3846 = vpack.c.b16 %v2769, %v2768
  %v3847 = vpack.c.b16 %v2771, %v2770
  %v3848 = vpack.c.b16 %v2773, %v2772
  %v3849 = vpack.c.b16 %v2775, %v2774
  %v3850 = vpack.c.b16 %v2777, %v2776
  %v3851 = vpack.c.b16 %v2779, %v2778
  %v3852 = vpack.c.b16 %v2781, %v2780
  %v3853 = vpack.c.b16 %v2783, %v2782
  %v3854 = vpack.c.b16 %v2785, %v2784
  %v3855 = vpack.c.b16 %v2787, %v2786
  %v3856 = vpack.c.b16 %v2789, %v2788
  %v3857 = vpack.c.b16 %v2791, %v2790
  %v3858 = vpack.c.b16 %v2793, %v2792
  %v3859 = vpack.c.b16 %v2795, %v2794
  %v3860 = vpack.c.b16 %v2797, %v2796
  %v3861 = vpack.c.b16 %v2799, %v2798
  %v3862 = vpack.c.b16 %v2801, %v2800
  %v3863 = vpack.c.b16 %v2803, %v2802
  %v3864 = vpack.c.b16 %v2805, %v2804
  %v3865 = vpack.c.b16 %v2807, %v2806
  %v3866 = vpack.c.b16 %v2809, %v2808
  %v3867 = vpack.c.b16 %v2811, %v2810
  %v3868 = vpack.c.b16 %v2813, %v2812
  %v3869 = vpack.c.b16 %v2815, %v2814
  %v3870 = vpack.c.b16 %v2817, %v2816
  %v3871 = vpack.c.b16 %v2819, %v2818
  %v3872 = vpack.c.b16 %v2821, %v2820
  %v3873 = vpack.c.b16 %v2823, %v2822
  %v3874 = vpack.c.b16 %v2825, %v2824
  %v3875 = vpack.c.b16 %v2827, %v2826
  %v3876 = vpack.c.b16 %v2829, %v2828
  %v3877 = vpack.c.b16 %v2831, %v2830
  %v3878 = vpack.c.b16 %v2833, %v2832
  %v3879 = vpack.c.b16 %v2835, %v2834
  %v3880 = vpack.c.b16 %v2837, %v2836
  %v3881 = vpack.c.b16 %v2839, %v2838
  %v3882 = vpack.c.b16 %v2841, %v2840
  %v3883 = vpack.c.b16 %v2843, %v2842
  %v3884 = vpack.c.b16 %v2845, %v2844
  %v3885 = vpack.c.b16 %v2847, %v2846
  %v3886 = vpack.c.b16 %v2849, %v2848
  %v3887 = vpack.c.b16 %v2851, %v2850
  %v3888 = vpack.c.b16 %v2853, %v2852
  %v3889 = vpack.c.b16 %v2855, %v2854
  %v3890 = vpack.c.b16 %v2857, %v2856
  %v3891 = vpack.c.b16 %v2859, %v2858
  %v3892 = vpack.c.b16 %v2861, %v2860
  %v3893 = vpack.c.b16 %v2863, %v2862
  %v3894 = vpack.c.b16 %v2865, %v2864
  %v3895 = vpack.c.b16 %v2867, %v2866
  %v3896 = vpack.c.b16 %v2869, %v2868
  %v3897 = vpack.c.b16 %v2871, %v2870
  %v3898 = vpack.c.b16 %v2873, %v2872
  %v3899 = vpack.c.b16 %v2875, %v2874
  %v3900 = vpack.c.b16 %v2877, %v2876
  %v3901 = vpack.c.b16 %v2879, %v2878
  %v3902 = vpack.c.b16 %v2881, %v2880
  %v3903 = vpack.c.b16 %v2883, %v2882
  %v3904 = vpack.c.b16 %v2885, %v2884
  %v3905 = vpack.c.b16 %v2887, %v2886
  %v3906 = vpack.c.b16 %v2889, %v2888
  %v3907 = vpack.c.b16 %v2891, %v2890
  %v3908 = vpack.c.b16 %v2893, %v2892
  %v3909 = vpack.c.b16 %v2895, %v2894
  %v3910 = vpack.c.b16 %v2897, %v2896
  %v3911 = vpack.c.b16 %v2899, %v2898
  %v3912 = vpack.c.b16 %v2901, %v2900
  %v3913 = vpack.c.b16 %v2903, %v2902
  %v3914 = vpack.c.b16 %v2905, %v2904
  %v3915 = vpack.c.b16 %v2907, %v2906
  %v3916 = vpack.c.b16 %v2909, %v2908
  %v3917 = vpack.c.b16 %v2911, %v2910
  %v3918 = vpack.c.b16 %v2913, %v2912
  %v3919 = vpack.c.b16 %v2915, %v2914
  %v3920 = vpack.c.b16 %v2917, %v2916
  %v3921 = vpack.c.b16 %v2919, %v2918
  %v3922 = vpack.c.b16 %v2921, %v2920
  %v3923 = vpack.c.b16 %v2923, %v2922
  %v3924 = vpack.c.b16 %v2925, %v2924
  %v3925 = vpack.c.b16 %v2927, %v2926
  %v3926 = vpack.c.b16 %v2929, %v2928
  %v3927 = vpack.c.b16 %v2931, %v2930
  %v3928 = vpack.c.b16 %v2933, %v2932
  %v3929 = vpack.c.b16 %v2935, %v2934
  %v3930 = vpack.c.b16 %v2937, %v2936
  %v3931 = vpack.c.b16 %v2939, %v2938
  %v3932 = vpack.c.b16 %v2941, %v2940
  %v3933 = vpack.c.b16 %v2943, %v2942
  %v3934 = vpack.c.b16 %v2945, %v2944
  %v3935 = vpack.c.b16 %v2947, %v2946
  %v3936 = vpack.c.b16 %v2949, %v2948
  %v3937 = vpack.c.b16 %v2951, %v2950
  %v3938 = vpack.c.b16 %v2953, %v2952
  %v3939 = vpack.c.b16 %v2955, %v2954
  %v3940 = vpack.c.b16 %v2957, %v2956
  %v3941 = vpack.c.b16 %v2959, %v2958
  %v3942 = vpack.c.b16 %v2961, %v2960
  %v3943 = vpack.c.b16 %v2963, %v2962
  %v3944 = vpack.c.b16 %v2965, %v2964
  %v3945 = vpack.c.b16 %v2967, %v2966
  %v3946 = vpack.c.b16 %v2969, %v2968
  %v3947 = vpack.c.b16 %v2971, %v2970
  %v3948 = vpack.c.b16 %v2973, %v2972
  %v3949 = vpack.c.b16 %v2975, %v2974
  %v3950 = vpack.c.b16 %v2977, %v2976
  %v3951 = vpack.c.b16 %v2979, %v2978
  %v3952 = vpack.c.b16 %v2981, %v2980
  %v3953 = vpack.c.b16 %v2983, %v2982
  %v3954 = vpack.c.b16 %v2985, %v2984
  %v3955 = vpack.c.b16 %v2987, %v2986
  %v3956 = vpack.c.b16 %v2989, %v2988
  %v3957 = vpack.c.b16 %v2991, %v2990
  %v3958 = vpack.c.b16 %v2993, %v2992
  %v3959 = vpack.c.b16 %v2995, %v2994
  %v3960 = vpack.c.b16 %v2997, %v2996
  %v3961 = vpack.c.b16 %v2999, %v2998
  %v3962 = vpack.c.b16 %v3001, %v3000
  %v3963 = vpack.c.b16 %v3003, %v3002
  %v3964 = vpack.c.b16 %v3005, %v3004
  %v3965 = vpack.c.b16 %v3007, %v3006
  %v3966 = vpack.c.b16 %v3009, %v3008
  %v3967 = vpack.c.b16 %v3011, %v3010
  %v3968 = vpack.c.b16 %v3013, %v3012
  %v3969 = vpack.c.b16 %v3015, %v3014
  %v3970 = vpack.c.b16 %v3017, %v3016
  %v3971 = vpack.c.b16 %v3019, %v3018
  %v3972 = vpack.c.b16 %v3021, %v3020
  %v3973 = vpack.c.b16 %v3023, %v3022
  %v3974 = vpack.c.b16 %v3025, %v3024
  %v3975 = vpack.c.b16 %v3027, %v3026
  %v3976 = vpack.c.b16 %v3029, %v3028
  %v3977 = vpack.c.b16 %v3031, %v3030
  %v3978 = vpack.c.b16 %v3033, %v3032
  %v3979 = vpack.c.b16 %v3035, %v3034
  %v3980 = vpack.c.b16 %v3037, %v3036
  %v3981 = vpack.c.b16 %v3039, %v3038
  %v3982 = vpack.c.b16 %v3041, %v3040
  %v3983 = vpack.c.b16 %v3043, %v3042
  %v3984 = vpack.c.b16 %v3045, %v3044
  %v3985 = vpack.c.b16 %v3047, %v3046
  %v3986 = vpack.c.b16 %v3049, %v3048
  %v3987 = vpack.c.b16 %v3051, %v3050
  %v3988 = vpack.c.b16 %v3053, %v3052
  %v3989 = vpack.c.b16 %v3055, %v3054
  %v3990 = vpack.c.b16 %v3057, %v3056
  %v3991 = vpack.c.b16 %v3059, %v3058
  %v3992 = vpack.c.b16 %v3061, %v3060
  %v3993 = vpack.c.b16 %v3063, %v3062
  %v3994 = vpack.c.b16 %v3065, %v3064
  %v3995 = vpack.c.b16 %v3067, %v3066
  %v3996 = vpack.c.b16 %v3069, %v3068
  %v3997 = vpack.c.b16 %v3071, %v3070
  %v3998 = vpack.c.b16 %v3073, %v3072
  %v3999 = vpack.c.b16 %v3075, %v3074
  %v4000 = vpack.c.b16 %v3077, %v3076
  %v4001 = vpack.c.b16 %v3079, %v3078
  %v4002 = vpack.c.b16 %v3081, %v3080
  %v4003 = vpack.c.b16 %v3083, %v3082
  %v4004 = vpack.c.b16 %v3085, %v3084
  %v4005 = vpack.c.b16 %v3087, %v3086
  %v4006 = vpack.c.b16 %v3089, %v3088
  %v4007 = vpack.c.b16 %v3091, %v3090
  %v4008 = vpack.c.b16 %v3093, %v3092
  %v4009 = vpack.c.b16 %v3095, %v3094
  %v4010 = vpack.c.b16 %v3097, %v3096
  %v4011 = vpack.c.b16 %v3099, %v3098
  %v4012 = vpack.c.b16 %v3101, %v3100
  %v4013 = vpack.c.b16 %v3103, %v3102
  %v4014 = vpack.c.b16 %v3105, %v3104
  %v4015 = vpack.c.b16 %v3107, %v3106
  %v4016 = vpack.c.b16 %v3109, %v3108
  %v4017 = vpack.c.b16 %v3111, %v3110
  %v4018 = vpack.c.b16 %v3113, %v3112
  %v4019 = vpack.c.b16 %v3115, %v3114
  %v4020 = vpack.c.b16 %v3117, %v3116
  %v4021 = vpack.c.b16 %v3119, %v3118
  %v4022 = vpack.c.b16 %v3121, %v3120
  %v4023 = vpack.c.b16 %v3123, %v3122
  %v4024 = vpack.c.b16 %v3125, %v3124
  %v4025 = vpack.c.b16 %v3127, %v3126
  %v4026 = vpack.c.b16 %v3129, %v3128
  %v4027 = vpack.c.b16 %v3131, %v3130
  %v4028 = vpack.c.b16 %v3133, %v3132
  %v4029 = vpack.c.b16 %v3135, %v3134
  %v4030 = vpack.c.b16 %v3137, %v3136
  %v4031 = vpack.c.b16 %v3139, %v3138
  %v4032 = vpack.c.b16 %v3141, %v3140
  %v4033 = vpack.c.b16 %v3143, %v3142
  %v4034 = vpack.c.b16 %v3145, %v3144
  %v4035 = vpack.c.b16 %v3147, %v3146
  %v4036 = vpack.c.b16 %v3149, %v3148
  %v4037 = vpack.c.b16 %v3151, %v3150
  %v4038 = vpack.c.b16 %v3153, %v3152
  %v4039 = vpack.c.b16 %v3155, %v3154
  %v4040 = vpack.c.b16 %v3157, %v3156
  %v4041 = vpack.c.b16 %v3159, %v3158
  %v4042 = vpack.c.b16 %v3161, %v3160
  %v4043 = vpack.c.b16 %v3163, %v3162
  %v4044 = vpack.c.b16 %v3165, %v3164
  %v4045 = vpack.c.b16 %v3167, %v3166
  %v4046 = vpack.c.b16 %v3169, %v3168
  %v4047 = vpack.c.b16 %v3171, %v3170
  %v4048 = vpack.c.b16 %v3173, %v3172
  %v4049 = vpack.c.b16 %v3175, %v3174
  %v4050 = vpack.c.b16 %v3177, %v3176
  %v4051 = vpack.c.b16 %v3179, %v3178
  %v4052 = vpack.c.b16 %v3181, %v3180
  %v4053 = vpack.c.b16 %v3183, %v3182
  %v4054 = vpack.c.b16 %v3185, %v3184
  %v4055 = vpack.c.b16 %v3187, %v3186
  %v4056 = vpack.c.b16 %v3189, %v3188
  %v4057 = vpack.c.b16 %v3191, %v3190
  %v4058 = vpack.c.b16 %v3193, %v3192
  %v4059 = vpack.c.b16 %v3195, %v3194
  %v4060 = vpack.c.b16 %v3197, %v3196
  %v4061 = vpack.c.b16 %v3199, %v3198
  %v4062 = vpack.c.b16 %v3201, %v3200
  %v4063 = vpack.c.b16 %v3203, %v3202
  %v4064 = vpack.c.b16 %v3205, %v3204
  %v4065 = vpack.c.b16 %v3207, %v3206
  %v4066 = vpack.c.b16 %v3209, %v3208
  %v4067 = vpack.c.b16 %v3211, %v3210
  %v4068 = vpack.c.b16 %v3213, %v3212
  %v4069 = vpack.c.b16 %v3215, %v3214
  %v4070 = vpack.c.b16 %v3217, %v3216
  %v4071 = vpack.c.b16 %v3219, %v3218
  %v4072 = vpack.c.b16 %v3221, %v3220
  %v4073 = vpack.c.b16 %v3223, %v3222
  %v4074 = vpack.c.b16 %v3225, %v3224
  %v4075 = vpack.c.b16 %v3227, %v3226
  %v4076 = vpack.c.b16 %v3229, %v3228
  %v4077 = vpack.c.b16 %v3231, %v3230
  %v4078 = vpack.c.b16 %v3233, %v3232
  %v4079 = vpack.c.b16 %v3235, %v3234
  %v4080 = vpack.c.b16 %v3237, %v3236
  %v4081 = vpack.c.b16 %v3239, %v3238
  %v4082 = vpack.c.b16 %v3241, %v3240
  %v4083 = vpack.c.b16 %v3243, %v3242
  %v4084 = vpack.c.b16 %v3245, %v3244
  %v4085 = vpack.c.b16 %v3247, %v3246
  %v4086 = vpack.c.b16 %v3249, %v3248
  %v4087 = vpack.c.b16 %v3251, %v3250
  %v4088 = vpack.c.b16 %v3253, %v3252
  %v4089 = vpack.c.b16 %v3255, %v3254
  %v4090 = vpack.c.b16 %v3257, %v3256
  %v4091 = vpack.c.b16 %v3259, %v3258
  %v4092 = vpack.c.b16 %v3261, %v3260
  %v4093 = vpack.c.b16 %v3263, %v3262
  %v4094 = vpack.c.b16 %v3265, %v3264
  %v4095 = vpack.c.b16 %v3267, %v3266
  %v4096 = vpack.c.b16 %v3269, %v3268
  %v4097 = vpack.c.b16 %v3271, %v3270
  %v4098 = vpack.c.b16 %v3273, %v3272
  %v4099 = vpack.c.b16 %v3275, %v3274
  %v4100 = vpack.c.b16 %v3277, %v3276
  %v4101 = vpack.c.b16 %v3279, %v3278
  %v4102 = vpack.c.b16 %v3281, %v3280
  %v4103 = vpack.c.b16 %v3283, %v3282
  %v4104 = vpack.c.b16 %v3285, %v3284
  %v4105 = vpack.c.b16 %v3287, %v3286
  %v4106 = vpack.c.b16 %v3289, %v3288
  %v4107 = vpack.c.b16 %v3291, %v3290
  %v4108 = vpack.c.b16 %v3293, %v3292
  %v4109 = vpack.c.b16 %v3295, %v3294
  %v4110 = vpack.c.b16 %v3297, %v3296
  %v4111 = vpack.c.b16 %v3299, %v3298
  %v4112 = vpack.c.b16 %v3301, %v3300
  %v4113 = vpack.c.b16 %v3303, %v3302
  %v4114 = vpack.c.b16 %v3305, %v3304
  %v4115 = vpack.c.b16 %v3307, %v3306
  %v4116 = vpack.c.b16 %v3309, %v3308
  %v4117 = vpack.c.b16 %v3311, %v3310
  %v4118 = vpack.c.b16 %v3313, %v3312
  %v4119 = vpack.c.b16 %v3315, %v3314
  %v4120 = vpack.c.b16 %v3317, %v3316
  %v4121 = vpack.c.b16 %v3319, %v3318
  %v4122 = vpack.c.b16 %v3321, %v3320
  %v4123 = vpack.c.b16 %v3323, %v3322
  %v4124 = vpack.c.b16 %v3325, %v3324
  %v4125 = vpack.c.b16 %v3327, %v3326
  %v4126 = vpack.c.b16 %v3329, %v3328
  %v4127 = vpack.c.b16 %v3331, %v3330
  %v4128 = vpack.c.b16 %v3333, %v3332
  %v4129 = vpack.c.b16 %v3335, %v3334
  %v4130 = vpack.c.b16 %v3337, %v3336
  %v4131 = vpack.c.b16 %v3339, %v3338
  %v4132 = vpack.c.b16 %v3341, %v3340
  %v4133 = vpack.c.b16 %v3343, %v3342
  %v4134 = vpack.c.b16 %v3345, %v3344
  %v4135 = vpack.c.b16 %v3347, %v3346
  %v4136 = vpack.c.b16 %v3349, %v3348
  %v4137 = vpack.c.b16 %v3351, %v3350
  %v4138 = vpack.c.b16 %v3353, %v3352
  %v4139 = vpack.c.b16 %v3355, %v3354
  %v4140 = vpack.c.b16 %v3357, %v3356
  %v4141 = vpack.c.b16 %v3359, %v3358
  %v4142 = vpack.c.b16 %v3361, %v3360
  %v4143 = vpack.c.b16 %v3363, %v3362
  %v4144 = vpack.c.b16 %v3365, %v3364
  %v4145 = vpack.c.b16 %v3367, %v3366
  %v4146 = vpack.c.b16 %v3369, %v3368
  %v4147 = vpack.c.b16 %v3371, %v3370
  %v4148 = vpack.c.b16 %v3373, %v3372
  %v4149 = vpack.c.b16 %v3375, %v3374
  %v4150 = vpack.c.b16 %v3377, %v3376
  %v4151 = vpack.c.b16 %v3379, %v3378
  %v4152 = vpack.c.b16 %v3381, %v3380
  %v4153 = vpack.c.b16 %v3383, %v3382
  %v4154 = vpack.c.b16 %v3385, %v3384
  %v4155 = vpack.c.b16 %v3387, %v3386
  %v4156 = vpack.c.b16 %v3389, %v3388
  %v4157 = vpack.c.b16 %v3391, %v3390
  %v4158 = vpack.c.b16 %v3393, %v3392
  %v4159 = vpack.c.b16 %v3395, %v3394
  %v4160 = vpack.c.b16 %v3397, %v3396
  %v4161 = vpack.c.b16 %v3399, %v3398
  %v4162 = vpack.c.b16 %v3401, %v3400
  %v4163 = vpack.c.b16 %v3403, %v3402
  %v4164 = vpack.c.b16 %v3405, %v3404
  %v4165 = vpack.c.b16 %v3407, %v3406
  %v4166 = vpack.c.b16 %v3409, %v3408
  %v4167 = vpack.c.b16 %v3411, %v3410
  %v4168 = vpack.c.b16 %v3413, %v3412
  %v4169 = vpack.c.b16 %v3415, %v3414
  %v4170 = vpack.c.b16 %v3417, %v3416
  %v4171 = vpack.c.b16 %v3419, %v3418
  %v4172 = vpack.c.b16 %v3421, %v3420
  %v4173 = vpack.c.b16 %v3423, %v3422
  %v4174 = vpack.c.b16 %v3425, %v3424
  %v4175 = vpack.c.b16 %v3427, %v3426
  %v4176 = vpack.c.b16 %v3429, %v3428
  %v4177 = vpack.c.b16 %v3431, %v3430
  %v4178 = vpack.c.b16 %v3433, %v3432
  %v4179 = vpack.c.b16 %v3435, %v3434
  %v4180 = vpack.c.b16 %v3437, %v3436
  %v4181 = vpack.c.b16 %v3439, %v3438
  %v4182 = vpack.c.b16 %v3441, %v3440
  %v4183 = vpack.c.b16 %v3443, %v3442
  %v4184 = vpack.c.b16 %v3445, %v3444
  %v4185 = vpack.c.b16 %v3447, %v3446
  %v4186 = vpack.c.b16 %v3449, %v3448
  %v4187 = vpack.c.b16 %v3451, %v3450
  %v4188 = vpack.c.b16 %v3453, %v3452
  %v4189 = vpack.c.b16 %v3455, %v3454
  %v4190 = vpack.c.b16 %v3457, %v3456
  %v4191 = vpack.c.b16 %v3459, %v3458
  %v4192 = vpack.c.b16 %v3461, %v3460
  %v4193 = vpack.c.b16 %v3463, %v3462
  %v4194 = vpack.c.b16 %v3465, %v3464
  %v4195 = vpack.c.b16 %v3467, %v3466
  %v4196 = vpack.c.b16 %v3469, %v3468
  %v4197 = vpack.c.b16 %v3471, %v3470
  %v4198 = vpack.c.b16 %v3473, %v3472
  %v4199 = vpack.c.b16 %v3475, %v3474
  %v4200 = vpack.c.b16 %v3477, %v3476
  %v4201 = vpack.c.b16 %v3479, %v3478
  %v4202 = vpack.c.b16 %v3481, %v3480
  %v4203 = vpack.c.b16 %v3483, %v3482
  %v4204 = vpack.c.b16 %v3485, %v3484
  %v4205 = vpack.c.b16 %v3487, %v3486
  %v4206 = vpack.c.b16 %v3489, %v3488
  %v4207 = vpack.c.b16 %v3491, %v3490
  %v4208 = vpack.c.b16 %v3493, %v3492
  %v4209 = vpack.c.b16 %v3495, %v3494
  %v4210 = vpack.c.b16 %v3497, %v3496
  %v4211 = vpack.c.b16 %v3499, %v3498
  %v4212 = vpack.c.b16 %v3501, %v3500
  %v4213 = vpack.c.b16 %v3503, %v3502
  %v4214 = vpack.c.b16 %v3505, %v3504
  %v4215 = vpack.c.b16 %v3507, %v3506
  %v4216 = vpack.c.b16 %v3509, %v3508
  %v4217 = vpack.c.b16 %v3511, %v3510
  %v4218 = vpack.c.b16 %v3513, %v3512
  %v4219 = vpack.c.b16 %v3515, %v3514
  %v4220 = vpack.c.b16 %v3517, %v3516
  %v4221 = vpack.c.b16 %v3519, %v3518
  %v4222 = vpack.c.b16 %v3521, %v3520
  %v4223 = vpack.c.b16 %v3523, %v3522
  %v4224 = vpack.c.b16 %v3525, %v3524
  %v4225 = vpack.c.b16 %v3527, %v3526
  %v4226 = vpack.c.b16 %v3529, %v3528
  %v4227 = vpack.c.b16 %v3531, %v3530
  %v4228 = vpack.c.b16 %v3533, %v3532
  %v4229 = vpack.c.b16 %v3535, %v3534
  %v4230 = vpack.c.b16 %v3537, %v3536
  %v4231 = vpack.c.b16 %v3539, %v3538
  %v4232 = vpack.c.b16 %v3541, %v3540
  %v4233 = vpack.c.b16 %v3543, %v3542
  %v4234 = vpack.c.b16 %v3545, %v3544
  %v4235 = vpack.c.b16 %v3547, %v3546
  %v4236 = vpack.c.b16 %v3549, %v3548
  %v4237 = vpack.c.b16 %v3551, %v3550
  %v4238 = vpack.c.b16 %v3553, %v3552
  %v4239 = vpack.c.b16 %v3555, %v3554
  %v4240 = vpack.c.b16 %v3557, %v3556
  %v4241 = vpack.c.b16 %v3559, %v3558
  %v4242 = vpack.c.b16 %v3561, %v3560
  %v4243 = vpack.c.b16 %v3563, %v3562
  %v4244 = vpack.c.b16 %v3565, %v3564
  %v4245 = vpack.c.b16 %v3567, %v3566
  %v4246 = vpack.c.b16 %v3569, %v3568
  %v4247 = vpack.c.b16 %v3571, %v3570
  %v4248 = vpack.c.b16 %v3573, %v3572
  %v4249 = vpack.c.b16 %v3575, %v3574
  %v4250 = vpack.c.b16 %v3577, %v3576
  %v4251 = vpack.c.b16 %v3579, %v3578
  %v4252 = vpack.c.b16 %v3581, %v3580
  %v4253 = vpack.c.b16 %v3583, %v3582
  %v4254 = vpack.c.b16 %v3585, %v3584
  %v4255 = vpack.c.b16 %v3587, %v3586
  %v4256 = vpack.c.b16 %v3589, %v3588
  %v4257 = vpack.c.b16 %v3591, %v3590
  %v4258 = vpack.c.b16 %v3593, %v3592
  %v4259 = vpack.c.b16 %v3595, %v3594
  %v4260 = vpack.c.b16 %v3597, %v3596
  %v4261 = vpack.c.b16 %v3599, %v3598
  %v4262 = vpack.c.b16 %v3601, %v3600
  %v4263 = vpack.c.b16 %v3603, %v3602
  %v4264 = vpack.c.b16 %v3605, %v3604
  %v4265 = vpack.c.b16 %v3607, %v3606
  %v4266 = vpack.c.b16 %v3609, %v3608
  %v4267 = vpack.c.b16 %v3611, %v3610
  %v4268 = vpack.c.b16 %v3613, %v3612
  %v4269 = vpack.c.b16 %v3615, %v3614
  %v4270 = vpack.c.b16 %v3617, %v3616
  %v4271 = vpack.c.b16 %v3619, %v3618
  %v4272 = vpack.c.b16 %v3621, %v3620
  %v4273 = vpack.c.b16 %v3623, %v3622
  %v4274 = vpack.c.b16 %v3625, %v3624
  %v4275 = vpack.c.b16 %v3627, %v3626
  %v4276 = vpack.c.b16 %v3629, %v3628
  %v4277 = vpack.c.b16 %v3631, %v3630
  %v4278 = vpack.c.b16 %v3633, %v3632
  %v4279 = vpack.c.b16 %v3635, %v3634
  %v4280 = vpack.c.b16 %v3637, %v3636
  %v4281 = vpack.c.b16 %v3639, %v3638
  %v4282 = vpack.c.b16 %v3641, %v3640
  %v4283 = vpack.c.b16 %v3643, %v3642
  %v4284 = vpack.c.b16 %v3645, %v3644
  %v4285 = vpack.c.b16 %v3647, %v3646
  %v4286 = vpack.c.b16 %v3649, %v3648
  %v4287 = vpack.c.b16 %v3651, %v3650
  %v4288 = vpack.c.b16 %v3653, %v3652
  %v4289 = vpack.c.b16 %v3655, %v3654
  %v4290 = vpack.c.b16 %v3657, %v3656
  %v4291 = vpack.c.b16 %v3659, %v3658
  %v4292 = vpack.c.b16 %v3661, %v3660
  %v4293 = vpack.c.b16 %v3663, %v3662
  %v4294 = vpack.c.b16 %v3665, %v3664
  %v4295 = vpack.c.b16 %v3667, %v3666
  %v4296 = vpack.c.b16 %v3669, %v3668
  %v4297 = vpack.c.b16 %v3671, %v3670
  %v4298 = vpack.c.b16 %v3673, %v3672
  %v4299 = vpack.c.b16 %v3675, %v3674
  %v4300 = vpack.c.b16 %v3677, %v3676
  %v4301 = vpack.c.b16 %v3679, %v3678
  %v4302 = vpack.c.b16 %v3681, %v3680
  %v4303 = vpack.c.b16 %v3683, %v3682
  %v4304 = vpack.c.b16 %v3685, %v3684
  %v4305 = vpack.c.b16 %v3687, %v3686
  %v4306 = vpack.c.b16 %v3689, %v3688
  %v4307 = vpack.c.b16 %v3691, %v3690
  %v4308 = vpack.c.b16 %v3693, %v3692
  %v4309 = vpack.c.b16 %v3695, %v3694
  %v4310 = vpack.c.b16 %v3697, %v3696
  %v4311 = vpack.c.b16 %v3699, %v3698
  %v4312 = vpack.c.b16 %v3701, %v3700
  %v4313 = vpack.c.b16 %v3703, %v3702
  %v4314 = vpack.c.b16 %v3705, %v3704
  %v4315 = vpack.c.b16 %v3707, %v3706
  %v4316 = vpack.c.b16 %v3709, %v3708
  %v4317 = vpack.c.b16 %v3711, %v3710
  %v4318 = vpack.c.b16 %v3713, %v3712
  %v4319 = vpack.c.b16 %v3715, %v3714
  %v4320 = vpack.c.b16 %v3717, %v3716
  %v4321 = vpack.c.b16 %v3719, %v3718
  %v4322 = vpack.c.b16 %v3721, %v3720
  %v4323 = vpack.c.b16 %v3723, %v3722
  %v4324 = vpack.c.b16 %v3725, %v3724
  %v4325 = vpack.c.b16 %v3727, %v3726
  %v4326 = vpack.c.b16 %v3729, %v3728
  %v4327 = vpack.c.b16 %v3731, %v3730
  %v4328 = vpack.c.b16 %v3733, %v3732
  %v4329 = vpack.c.b16 %v3735, %v3734
  %v4330 = vpack.c.b16 %v3737, %v3736
  %v4331 = vpack.c.b16 %v3739, %v3738
  %v4332 = vpack.c.b16 %v3741, %v3740
  %v4333 = vpack.c.b16 %v3743, %v3742
  %v4334 = vpack.c.b16 %v3745, %v3744
  %v4335 = vpack.c.b16 %v3747, %v3746
  %v4336 = vpack.c.b16 %v3749, %v3748
  %v4337 = vpack.c.b16 %v3751, %v3750
  %v4338 = vpack.c.b16 %v3753, %v3752
  %v4339 = vpack.c.b16 %v3755, %v3754
  %v4340 = vpack.c.b16 %v3757, %v3756
  %v4341 = vpack.c.b16 %v3759, %v3758
  %v4342 = vpack.c.b16 %v3761, %v3760
  %v4343 = vpack.c.b16 %v3763, %v3762
  %v4344 = vpack.c.b16 %v3765, %v3764
  %v4345 = vpack.c.b16 %v3767, %v3766
  %v4346 = vpack.c.b16 %v3769, %v3768
  %v4347 = vpack.c.b16 %v3771, %v3770
  %4924 = vmatprep.subr.bf16.mxu0 0
  %4925 = vmatpush1.bf16.msra.mxu0 %v3772
  %4926 = vmatprep.subr.bf16.mxu0 0
  %4927 = vmatpush1.bf16.msra.mxu0 %v3773
  %4928 = vmatprep.subr.bf16.mxu0 0
  %4929 = vmatpush1.bf16.msra.mxu0 %v3774
  %4930 = vmatprep.subr.bf16.mxu0 0
  %4931 = vmatpush1.bf16.msra.mxu0 %v3775
  %4932 = vmatprep.subr.bf16.mxu0 0
  %4933 = vmatpush1.bf16.msra.mxu0 %v3776
  %4934 = vmatprep.subr.bf16.mxu0 0
  %4935 = vmatpush1.bf16.msra.mxu0 %v3777
  %4936 = vmatprep.subr.bf16.mxu0 0
  %4937 = vmatpush1.bf16.msra.mxu0 %v3778
  %4938 = vmatprep.subr.bf16.mxu0 0
  %4939 = vmatpush1.bf16.msra.mxu0 %v3779
  %4940 = vmatprep.subr.bf16.mxu0 0
  %4941 = vmatpush1.bf16.msra.mxu0 %v3780
  %4942 = vmatprep.subr.bf16.mxu0 0
  %4943 = vmatpush1.bf16.msra.mxu0 %v3781
  %4944 = vmatprep.subr.bf16.mxu0 0
  %4945 = vmatpush1.bf16.msra.mxu0 %v3782
  %4946 = vmatprep.subr.bf16.mxu0 0
  %4947 = vmatpush1.bf16.msra.mxu0 %v3783
  %4948 = vmatprep.subr.bf16.mxu0 0
  %4949 = vmatpush1.bf16.msra.mxu0 %v3784
  %4950 = vmatprep.subr.bf16.mxu0 0
  %4951 = vmatpush1.bf16.msra.mxu0 %v3785
  %4952 = vmatprep.subr.bf16.mxu0 0
  %4953 = vmatpush1.bf16.msra.mxu0 %v3786
  %4954 = vmatprep.subr.bf16.mxu0 0
  %4955 = vmatpush1.bf16.msra.mxu0 %v3787
  %4956 = vmatprep.mubr.bf16.mxu0 %v1325
  %4957 = vmatmul.mubr.bf16.gmra.mrb[0].mxu0 %v1324
  %v4958 = vpop.f32.mrb[0].mxu0
  %v4959 = vadd.f32 %v1214, %v4958
  %v4960 = vpop.f32.mrb[0].mxu0
  %v4961 = vpop.f32.mrb[0].mxu0
  %v4962 = vpop.f32.mrb[0].mxu0
  %4963 = vdwg.mxu0
  %4964 = vmatprep.subr.bf16.mxu0 0
  %4965 = vmatpush1.bf16.msra.mxu0 %v3788
  %4966 = vmatprep.subr.bf16.mxu0 0
  %4967 = vmatpush1.bf16.msra.mxu0 %v3789
  %4968 = vmatprep.subr.bf16.mxu0 0
  %4969 = vmatpush1.bf16.msra.mxu0 %v3790
  %4970 = vmatprep.subr.bf16.mxu0 0
  %4971 = vmatpush1.bf16.msra.mxu0 %v3791
  %4972 = vmatprep.subr.bf16.mxu0 0
  %4973 = vmatpush1.bf16.msra.mxu0 %v3792
  %4974 = vmatprep.subr.bf16.mxu0 0
  %4975 = vmatpush1.bf16.msra.mxu0 %v3793
  %4976 = vmatprep.subr.bf16.mxu0 0
  %4977 = vmatpush1.bf16.msra.mxu0 %v3794
  %4978 = vmatprep.subr.bf16.mxu0 0
  %4979 = vmatpush1.bf16.msra.mxu0 %v3795
  %4980 = vmatprep.subr.bf16.mxu0 0
  %4981 = vmatpush1.bf16.msra.mxu0 %v3796
  %4982 = vmatprep.subr.bf16.mxu0 0
  %4983 = vmatpush1.bf16.msra.mxu0 %v3797
  %4984 = vmatprep.subr.bf16.mxu0 0
  %4985 = vmatpush1.bf16.msra.mxu0 %v3798
  %4986 = vmatprep.subr.bf16.mxu0 0
  %4987 = vmatpush1.bf16.msra.mxu0 %v3799
  %4988 = vmatprep.subr.bf16.mxu0 0
  %4989 = vmatpush1.bf16.msra.mxu0 %v3800
  %4990 = vmatprep.subr.bf16.mxu0 0
  %4991 = vmatpush1.bf16.msra.mxu0 %v3801
  %4992 = vmatprep.subr.bf16.mxu0 0
  %4993 = vmatpush1.bf16.msra.mxu0 %v3802
  %4994 = vmatprep.subr.bf16.mxu0 0
  %4995 = vmatpush1.bf16.msra.mxu0 %v3803
  %4996 = vmatprep.mubr.bf16.mxu0 %v1327
  %4997 = vmatmul.mubr.bf16.gmra.mrb[0].mxu0 %v1326
  %v4998 = vpop.f32.mrb[0].mxu0
  %v4999 = vadd.f32 %v4959, %v4998
  %v5000 = vpop.f32.mrb[0].mxu0
  %v5001 = vpop.f32.mrb[0].mxu0
  %v5002 = vpop.f32.mrb[0].mxu0
  %5003 = vdwg.mxu0
  %5004 = vmatprep.subr.bf16.mxu0 0
  %5005 = vmatpush1.bf16.msra.mxu0 %v3804
  %5006 = vmatprep.subr.bf16.mxu0 0
  %5007 = vmatpush1.bf16.msra.mxu0 %v3805
  %5008 = vmatprep.subr.bf16.mxu0 0
  %5009 = vmatpush1.bf16.msra.mxu0 %v3806
  %5010 = vmatprep.subr.bf16.mxu0 0
  %5011 = vmatpush1.bf16.msra.mxu0 %v3807
  %5012 = vmatprep.subr.bf16.mxu0 0
  %5013 = vmatpush1.bf16.msra.mxu0 %v3808
  %5014 = vmatprep.subr.bf16.mxu0 0
  %5015 = vmatpush1.bf16.msra.mxu0 %v3809
  %5016 = vmatprep.subr.bf16.mxu0 0
  %5017 = vmatpush1.bf16.msra.mxu0 %v3810
  %5018 = vmatprep.subr.bf16.mxu0 0
  %5019 = vmatpush1.bf16.msra.mxu0 %v3811
  %5020 = vmatprep.subr.bf16.mxu0 0
  %5021 = vmatpush1.bf16.msra.mxu0 %v3812
  %5022 = vmatprep.subr.bf16.mxu0 0
  %5023 = vmatpush1.bf16.msra.mxu0 %v3813
  %5024 = vmatprep.subr.bf16.mxu0 0
  %5025 = vmatpush1.bf16.msra.mxu0 %v3814
  %5026 = vmatprep.subr.bf16.mxu0 0
  %5027 = vmatpush1.bf16.msra.mxu0 %v3815
  %5028 = vmatprep.subr.bf16.mxu0 0
  %5029 = vmatpush1.bf16.msra.mxu0 %v3816
  %5030 = vmatprep.subr.bf16.mxu0 0
  %5031 = vmatpush1.bf16.msra.mxu0 %v3817
  %5032 = vmatprep.subr.bf16.mxu0 0
  %5033 = vmatpush1.bf16.msra.mxu0 %v3818
  %5034 = vmatprep.subr.bf16.mxu0 0
  %5035 = vmatpush1.bf16.msra.mxu0 %v3819
  %5036 = vmatprep.mubr.bf16.mxu0 %v1329
  %5037 = vmatmul.mubr.bf16.gmra.mrb[0].mxu0 %v1328
  %v5038 = vpop.f32.mrb[0].mxu0
  %v5039 = vadd.f32 %v4999, %v5038
  %v5040 = vpop.f32.mrb[0].mxu0
  %v5041 = vpop.f32.mrb[0].mxu0
  %v5042 = vpop.f32.mrb[0].mxu0
  %5043 = vdwg.mxu0
  %5044 = vmatprep.subr.bf16.mxu0 0
  %5045 = vmatpush1.bf16.msra.mxu0 %v3820
  %5046 = vmatprep.subr.bf16.mxu0 0
  %5047 = vmatpush1.bf16.msra.mxu0 %v3821
  %5048 = vmatprep.subr.bf16.mxu0 0
  %5049 = vmatpush1.bf16.msra.mxu0 %v3822
  %5050 = vmatprep.subr.bf16.mxu0 0
  %5051 = vmatpush1.bf16.msra.mxu0 %v3823
  %5052 = vmatprep.subr.bf16.mxu0 0
  %5053 = vmatpush1.bf16.msra.mxu0 %v3824
  %5054 = vmatprep.subr.bf16.mxu0 0
  %5055 = vmatpush1.bf16.msra.mxu0 %v3825
  %5056 = vmatprep.subr.bf16.mxu0 0
  %5057 = vmatpush1.bf16.msra.mxu0 %v3826
  %5058 = vmatprep.subr.bf16.mxu0 0
  %5059 = vmatpush1.bf16.msra.mxu0 %v3827
  %5060 = vmatprep.subr.bf16.mxu0 0
  %5061 = vmatpush1.bf16.msra.mxu0 %v3828
  %5062 = vmatprep.subr.bf16.mxu0 0
  %5063 = vmatpush1.bf16.msra.mxu0 %v3829
  %5064 = vmatprep.subr.bf16.mxu0 0
  %5065 = vmatpush1.bf16.msra.mxu0 %v3830
  %5066 = vmatprep.subr.bf16.mxu0 0
  %5067 = vmatpush1.bf16.msra.mxu0 %v3831
  %5068 = vmatprep.subr.bf16.mxu0 0
  %5069 = vmatpush1.bf16.msra.mxu0 %v3832
  %5070 = vmatprep.subr.bf16.mxu0 0
  %5071 = vmatpush1.bf16.msra.mxu0 %v3833
  %5072 = vmatprep.subr.bf16.mxu0 0
  %5073 = vmatpush1.bf16.msra.mxu0 %v3834
  %5074 = vmatprep.subr.bf16.mxu0 0
  %5075 = vmatpush1.bf16.msra.mxu0 %v3835
  %5076 = vmatprep.mubr.bf16.mxu0 %v1331
  %5077 = vmatmul.mubr.bf16.gmra.mrb[0].mxu0 %v1330
  %v5078 = vpop.f32.mrb[0].mxu0
  %v5079 = vadd.f32 %v5039, %v5078
  %v5080 = vpop.f32.mrb[0].mxu0
  %v5081 = vpop.f32.mrb[0].mxu0
  %v5082 = vpop.f32.mrb[0].mxu0
  %5083 = vdwg.mxu0
  %5084 = vmatprep.subr.bf16.mxu0 0
  %5085 = vmatpush1.bf16.msra.mxu0 %v3836
  %5086 = vmatprep.subr.bf16.mxu0 0
  %5087 = vmatpush1.bf16.msra.mxu0 %v3837
  %5088 = vmatprep.subr.bf16.mxu0 0
  %5089 = vmatpush1.bf16.msra.mxu0 %v3838
  %5090 = vmatprep.subr.bf16.mxu0 0
  %5091 = vmatpush1.bf16.msra.mxu0 %v3839
  %5092 = vmatprep.subr.bf16.mxu0 0
  %5093 = vmatpush1.bf16.msra.mxu0 %v3840
  %5094 = vmatprep.subr.bf16.mxu0 0
  %5095 = vmatpush1.bf16.msra.mxu0 %v3841
  %5096 = vmatprep.subr.bf16.mxu0 0
  %5097 = vmatpush1.bf16.msra.mxu0 %v3842
  %5098 = vmatprep.subr.bf16.mxu0 0
  %5099 = vmatpush1.bf16.msra.mxu0 %v3843
  %5100 = vmatprep.subr.bf16.mxu0 0
  %5101 = vmatpush1.bf16.msra.mxu0 %v3844
  %5102 = vmatprep.subr.bf16.mxu0 0
  %5103 = vmatpush1.bf16.msra.mxu0 %v3845
  %5104 = vmatprep.subr.bf16.mxu0 0
  %5105 = vmatpush1.bf16.msra.mxu0 %v3846
  %5106 = vmatprep.subr.bf16.mxu0 0
  %5107 = vmatpush1.bf16.msra.mxu0 %v3847
  %5108 = vmatprep.subr.bf16.mxu0 0
  %5109 = vmatpush1.bf16.msra.mxu0 %v3848
  %5110 = vmatprep.subr.bf16.mxu0 0
  %5111 = vmatpush1.bf16.msra.mxu0 %v3849
  %5112 = vmatprep.subr.bf16.mxu0 0
  %5113 = vmatpush1.bf16.msra.mxu0 %v3850
  %5114 = vmatprep.subr.bf16.mxu0 0
  %5115 = vmatpush1.bf16.msra.mxu0 %v3851
  %5116 = vmatprep.mubr.bf16.mxu0 %v1333
  %5117 = vmatmul.mubr.bf16.gmra.mrb[0].mxu0 %v1332
  %v5118 = vpop.f32.mrb[0].mxu0
  %v5119 = vadd.f32 %v5079, %v5118
  %v5120 = vpop.f32.mrb[0].mxu0
  %v5121 = vpop.f32.mrb[0].mxu0
  %v5122 = vpop.f32.mrb[0].mxu0
  %5123 = vdwg.mxu0
  %5124 = vmatprep.subr.bf16.mxu0 0
  %5125 = vmatpush1.bf16.msra.mxu0 %v3852
  %5126 = vmatprep.subr.bf16.mxu0 0
  %5127 = vmatpush1.bf16.msra.mxu0 %v3853
  %5128 = vmatprep.subr.bf16.mxu0 0
  %5129 = vmatpush1.bf16.msra.mxu0 %v3854
  %5130 = vmatprep.subr.bf16.mxu0 0
  %5131 = vmatpush1.bf16.msra.mxu0 %v3855
  %5132 = vmatprep.subr.bf16.mxu0 0
  %5133 = vmatpush1.bf16.msra.mxu0 %v3856
  %5134 = vmatprep.subr.bf16.mxu0 0
  %5135 = vmatpush1.bf16.msra.mxu0 %v3857
  %5136 = vmatprep.subr.bf16.mxu0 0
  %5137 = vmatpush1.bf16.msra.mxu0 %v3858
  %5138 = vmatprep.subr.bf16.mxu0 0
  %5139 = vmatpush1.bf16.msra.mxu0 %v3859
  %5140 = vmatprep.subr.bf16.mxu0 0
  %5141 = vmatpush1.bf16.msra.mxu0 %v3860
  %5142 = vmatprep.subr.bf16.mxu0 0
  %5143 = vmatpush1.bf16.msra.mxu0 %v3861
  %5144 = vmatprep.subr.bf16.mxu0 0
  %5145 = vmatpush1.bf16.msra.mxu0 %v3862
  %5146 = vmatprep.subr.bf16.mxu0 0
  %5147 = vmatpush1.bf16.msra.mxu0 %v3863
  %5148 = vmatprep.subr.bf16.mxu0 0
  %5149 = vmatpush1.bf16.msra.mxu0 %v3864
  %5150 = vmatprep.subr.bf16.mxu0 0
  %5151 = vmatpush1.bf16.msra.mxu0 %v3865
  %5152 = vmatprep.subr.bf16.mxu0 0
  %5153 = vmatpush1.bf16.msra.mxu0 %v3866
  %5154 = vmatprep.subr.bf16.mxu0 0
  %5155 = vmatpush1.bf16.msra.mxu0 %v3867
  %5156 = vmatprep.mubr.bf16.mxu0 %v1335
  %5157 = vmatmul.mubr.bf16.gmra.mrb[0].mxu0 %v1334
  %v5158 = vpop.f32.mrb[0].mxu0
  %v5159 = vadd.f32 %v5119, %v5158
  %v5160 = vpop.f32.mrb[0].mxu0
  %v5161 = vpop.f32.mrb[0].mxu0
  %v5162 = vpop.f32.mrb[0].mxu0
  %5163 = vdwg.mxu0
  %5164 = vmatprep.subr.bf16.mxu0 0
  %5165 = vmatpush1.bf16.msra.mxu0 %v3868
  %5166 = vmatprep.subr.bf16.mxu0 0
  %5167 = vmatpush1.bf16.msra.mxu0 %v3869
  %5168 = vmatprep.subr.bf16.mxu0 0
  %5169 = vmatpush1.bf16.msra.mxu0 %v3870
  %5170 = vmatprep.subr.bf16.mxu0 0
  %5171 = vmatpush1.bf16.msra.mxu0 %v3871
  %5172 = vmatprep.subr.bf16.mxu0 0
  %5173 = vmatpush1.bf16.msra.mxu0 %v3872
  %5174 = vmatprep.subr.bf16.mxu0 0
  %5175 = vmatpush1.bf16.msra.mxu0 %v3873
  %5176 = vmatprep.subr.bf16.mxu0 0
  %5177 = vmatpush1.bf16.msra.mxu0 %v3874
  %5178 = vmatprep.subr.bf16.mxu0 0
  %5179 = vmatpush1.bf16.msra.mxu0 %v3875
  %5180 = vmatprep.subr.bf16.mxu0 0
  %5181 = vmatpush1.bf16.msra.mxu0 %v3876
  %5182 = vmatprep.subr.bf16.mxu0 0
  %5183 = vmatpush1.bf16.msra.mxu0 %v3877
  %5184 = vmatprep.subr.bf16.mxu0 0
  %5185 = vmatpush1.bf16.msra.mxu0 %v3878
  %5186 = vmatprep.subr.bf16.mxu0 0
  %5187 = vmatpush1.bf16.msra.mxu0 %v3879
  %5188 = vmatprep.subr.bf16.mxu0 0
  %5189 = vmatpush1.bf16.msra.mxu0 %v3880
  %5190 = vmatprep.subr.bf16.mxu0 0
  %5191 = vmatpush1.bf16.msra.mxu0 %v3881
  %5192 = vmatprep.subr.bf16.mxu0 0
  %5193 = vmatpush1.bf16.msra.mxu0 %v3882
  %5194 = vmatprep.subr.bf16.mxu0 0
  %5195 = vmatpush1.bf16.msra.mxu0 %v3883
  %5196 = vmatprep.mubr.bf16.mxu0 %v1337
  %5197 = vmatmul.mubr.bf16.gmra.mrb[0].mxu0 %v1336
  %v5198 = vpop.f32.mrb[0].mxu0
  %v5199 = vadd.f32 %v5159, %v5198
  %v5200 = vpop.f32.mrb[0].mxu0
  %v5201 = vpop.f32.mrb[0].mxu0
  %v5202 = vpop.f32.mrb[0].mxu0
  %5203 = vdwg.mxu0
  %5204 = vmatprep.subr.bf16.mxu0 0
  %5205 = vmatpush1.bf16.msra.mxu0 %v3884
  %5206 = vmatprep.subr.bf16.mxu0 0
  %5207 = vmatpush1.bf16.msra.mxu0 %v3885
  %5208 = vmatprep.subr.bf16.mxu0 0
  %5209 = vmatpush1.bf16.msra.mxu0 %v3886
  %5210 = vmatprep.subr.bf16.mxu0 0
  %5211 = vmatpush1.bf16.msra.mxu0 %v3887
  %5212 = vmatprep.subr.bf16.mxu0 0
  %5213 = vmatpush1.bf16.msra.mxu0 %v3888
  %5214 = vmatprep.subr.bf16.mxu0 0
  %5215 = vmatpush1.bf16.msra.mxu0 %v3889
  %5216 = vmatprep.subr.bf16.mxu0 0
  %5217 = vmatpush1.bf16.msra.mxu0 %v3890
  %5218 = vmatprep.subr.bf16.mxu0 0
  %5219 = vmatpush1.bf16.msra.mxu0 %v3891
  %5220 = vmatprep.subr.bf16.mxu0 0
  %5221 = vmatpush1.bf16.msra.mxu0 %v3892
  %5222 = vmatprep.subr.bf16.mxu0 0
  %5223 = vmatpush1.bf16.msra.mxu0 %v3893
  %5224 = vmatprep.subr.bf16.mxu0 0
  %5225 = vmatpush1.bf16.msra.mxu0 %v3894
  %5226 = vmatprep.subr.bf16.mxu0 0
  %5227 = vmatpush1.bf16.msra.mxu0 %v3895
  %5228 = vmatprep.subr.bf16.mxu0 0
  %5229 = vmatpush1.bf16.msra.mxu0 %v3896
  %5230 = vmatprep.subr.bf16.mxu0 0
  %5231 = vmatpush1.bf16.msra.mxu0 %v3897
  %5232 = vmatprep.subr.bf16.mxu0 0
  %5233 = vmatpush1.bf16.msra.mxu0 %v3898
  %5234 = vmatprep.subr.bf16.mxu0 0
  %5235 = vmatpush1.bf16.msra.mxu0 %v3899
  %5236 = vmatprep.mubr.bf16.mxu0 %v1339
  %5237 = vmatmul.mubr.bf16.gmra.mrb[0].mxu0 %v1338
  %v5238 = vpop.f32.mrb[0].mxu0
  %v5239 = vadd.f32 %v5199, %v5238
  %v5240 = vpop.f32.mrb[0].mxu0
  %v5241 = vpop.f32.mrb[0].mxu0
  %v5242 = vpop.f32.mrb[0].mxu0
  %5243 = vdwg.mxu0
  %5244 = vmatprep.subr.bf16.mxu0 0
  %5245 = vmatpush1.bf16.msra.mxu0 %v3900
  %5246 = vmatprep.subr.bf16.mxu0 0
  %5247 = vmatpush1.bf16.msra.mxu0 %v3901
  %5248 = vmatprep.subr.bf16.mxu0 0
  %5249 = vmatpush1.bf16.msra.mxu0 %v3902
  %5250 = vmatprep.subr.bf16.mxu0 0
  %5251 = vmatpush1.bf16.msra.mxu0 %v3903
  %5252 = vmatprep.subr.bf16.mxu0 0
  %5253 = vmatpush1.bf16.msra.mxu0 %v3904
  %5254 = vmatprep.subr.bf16.mxu0 0
  %5255 = vmatpush1.bf16.msra.mxu0 %v3905
  %5256 = vmatprep.subr.bf16.mxu0 0
  %5257 = vmatpush1.bf16.msra.mxu0 %v3906
  %5258 = vmatprep.subr.bf16.mxu0 0
  %5259 = vmatpush1.bf16.msra.mxu0 %v3907
  %5260 = vmatprep.subr.bf16.mxu0 0
  %5261 = vmatpush1.bf16.msra.mxu0 %v3908
  %5262 = vmatprep.subr.bf16.mxu0 0
  %5263 = vmatpush1.bf16.msra.mxu0 %v3909
  %5264 = vmatprep.subr.bf16.mxu0 0
  %5265 = vmatpush1.bf16.msra.mxu0 %v3910
  %5266 = vmatprep.subr.bf16.mxu0 0
  %5267 = vmatpush1.bf16.msra.mxu0 %v3911
  %5268 = vmatprep.subr.bf16.mxu0 0
  %5269 = vmatpush1.bf16.msra.mxu0 %v3912
  %5270 = vmatprep.subr.bf16.mxu0 0
  %5271 = vmatpush1.bf16.msra.mxu0 %v3913
  %5272 = vmatprep.subr.bf16.mxu0 0
  %5273 = vmatpush1.bf16.msra.mxu0 %v3914
  %5274 = vmatprep.subr.bf16.mxu0 0
  %5275 = vmatpush1.bf16.msra.mxu0 %v3915
  %5276 = vmatprep.mubr.bf16.mxu0 %v1341
  %5277 = vmatmul.mubr.bf16.gmra.mrb[0].mxu0 %v1340
  %v5278 = vpop.f32.mrb[0].mxu0
  %v5279 = vadd.f32 %v5239, %v5278
  %v5280 = vpop.f32.mrb[0].mxu0
  %v5281 = vpop.f32.mrb[0].mxu0
  %v5282 = vpop.f32.mrb[0].mxu0
  %5283 = vdwg.mxu0
  %5284 = vmatprep.subr.bf16.mxu0 0
  %5285 = vmatpush1.bf16.msra.mxu0 %v3916
  %5286 = vmatprep.subr.bf16.mxu0 0
  %5287 = vmatpush1.bf16.msra.mxu0 %v3917
  %5288 = vmatprep.subr.bf16.mxu0 0
  %5289 = vmatpush1.bf16.msra.mxu0 %v3918
  %5290 = vmatprep.subr.bf16.mxu0 0
  %5291 = vmatpush1.bf16.msra.mxu0 %v3919
  %5292 = vmatprep.subr.bf16.mxu0 0
  %5293 = vmatpush1.bf16.msra.mxu0 %v3920
  %5294 = vmatprep.subr.bf16.mxu0 0
  %5295 = vmatpush1.bf16.msra.mxu0 %v3921
  %5296 = vmatprep.subr.bf16.mxu0 0
  %5297 = vmatpush1.bf16.msra.mxu0 %v3922
  %5298 = vmatprep.subr.bf16.mxu0 0
  %5299 = vmatpush1.bf16.msra.mxu0 %v3923
  %5300 = vmatprep.subr.bf16.mxu0 0
  %5301 = vmatpush1.bf16.msra.mxu0 %v3924
  %5302 = vmatprep.subr.bf16.mxu0 0
  %5303 = vmatpush1.bf16.msra.mxu0 %v3925
  %5304 = vmatprep.subr.bf16.mxu0 0
  %5305 = vmatpush1.bf16.msra.mxu0 %v3926
  %5306 = vmatprep.subr.bf16.mxu0 0
  %5307 = vmatpush1.bf16.msra.mxu0 %v3927
  %5308 = vmatprep.subr.bf16.mxu0 0
  %5309 = vmatpush1.bf16.msra.mxu0 %v3928
  %5310 = vmatprep.subr.bf16.mxu0 0
  %5311 = vmatpush1.bf16.msra.mxu0 %v3929
  %5312 = vmatprep.subr.bf16.mxu0 0
  %5313 = vmatpush1.bf16.msra.mxu0 %v3930
  %5314 = vmatprep.subr.bf16.mxu0 0
  %5315 = vmatpush1.bf16.msra.mxu0 %v3931
  %5316 = vmatprep.mubr.bf16.mxu0 %v1343
  %5317 = vmatmul.mubr.bf16.gmra.mrb[0].mxu0 %v1342
  %v5318 = vpop.f32.mrb[0].mxu0
  %v5319 = vadd.f32 %v5279, %v5318
  %v5320 = vpop.f32.mrb[0].mxu0
  %v5321 = vpop.f32.mrb[0].mxu0
  %v5322 = vpop.f32.mrb[0].mxu0
  %5323 = vdwg.mxu0
  %5324 = vmatprep.subr.bf16.mxu0 0
  %5325 = vmatpush1.bf16.msra.mxu0 %v3932
  %5326 = vmatprep.subr.bf16.mxu0 0
  %5327 = vmatpush1.bf16.msra.mxu0 %v3933
  %5328 = vmatprep.subr.bf16.mxu0 0
  %5329 = vmatpush1.bf16.msra.mxu0 %v3934
  %5330 = vmatprep.subr.bf16.mxu0 0
  %5331 = vmatpush1.bf16.msra.mxu0 %v3935
  %5332 = vmatprep.subr.bf16.mxu0 0
  %5333 = vmatpush1.bf16.msra.mxu0 %v3936
  %5334 = vmatprep.subr.bf16.mxu0 0
  %5335 = vmatpush1.bf16.msra.mxu0 %v3937
  %5336 = vmatprep.subr.bf16.mxu0 0
  %5337 = vmatpush1.bf16.msra.mxu0 %v3938
  %5338 = vmatprep.subr.bf16.mxu0 0
  %5339 = vmatpush1.bf16.msra.mxu0 %v3939
  %5340 = vmatprep.subr.bf16.mxu0 0
  %5341 = vmatpush1.bf16.msra.mxu0 %v3940
  %5342 = vmatprep.subr.bf16.mxu0 0
  %5343 = vmatpush1.bf16.msra.mxu0 %v3941
  %5344 = vmatprep.subr.bf16.mxu0 0
  %5345 = vmatpush1.bf16.msra.mxu0 %v3942
  %5346 = vmatprep.subr.bf16.mxu0 0
  %5347 = vmatpush1.bf16.msra.mxu0 %v3943
  %5348 = vmatprep.subr.bf16.mxu0 0
  %5349 = vmatpush1.bf16.msra.mxu0 %v3944
  %5350 = vmatprep.subr.bf16.mxu0 0
  %5351 = vmatpush1.bf16.msra.mxu0 %v3945
  %5352 = vmatprep.subr.bf16.mxu0 0
  %5353 = vmatpush1.bf16.msra.mxu0 %v3946
  %5354 = vmatprep.subr.bf16.mxu0 0
  %5355 = vmatpush1.bf16.msra.mxu0 %v3947
  %5356 = vmatprep.mubr.bf16.mxu0 %v1345
  %5357 = vmatmul.mubr.bf16.gmra.mrb[0].mxu0 %v1344
  %v5358 = vpop.f32.mrb[0].mxu0
  %v5359 = vadd.f32 %v5319, %v5358
  %v5360 = vpop.f32.mrb[0].mxu0
  %v5361 = vpop.f32.mrb[0].mxu0
  %v5362 = vpop.f32.mrb[0].mxu0
  %5363 = vdwg.mxu0
  %5364 = vmatprep.subr.bf16.mxu0 0
  %5365 = vmatpush1.bf16.msra.mxu0 %v3948
  %5366 = vmatprep.subr.bf16.mxu0 0
  %5367 = vmatpush1.bf16.msra.mxu0 %v3949
  %5368 = vmatprep.subr.bf16.mxu0 0
  %5369 = vmatpush1.bf16.msra.mxu0 %v3950
  %5370 = vmatprep.subr.bf16.mxu0 0
  %5371 = vmatpush1.bf16.msra.mxu0 %v3951
  %5372 = vmatprep.subr.bf16.mxu0 0
  %5373 = vmatpush1.bf16.msra.mxu0 %v3952
  %5374 = vmatprep.subr.bf16.mxu0 0
  %5375 = vmatpush1.bf16.msra.mxu0 %v3953
  %5376 = vmatprep.subr.bf16.mxu0 0
  %5377 = vmatpush1.bf16.msra.mxu0 %v3954
  %5378 = vmatprep.subr.bf16.mxu0 0
  %5379 = vmatpush1.bf16.msra.mxu0 %v3955
  %5380 = vmatprep.subr.bf16.mxu0 0
  %5381 = vmatpush1.bf16.msra.mxu0 %v3956
  %5382 = vmatprep.subr.bf16.mxu0 0
  %5383 = vmatpush1.bf16.msra.mxu0 %v3957
  %5384 = vmatprep.subr.bf16.mxu0 0
  %5385 = vmatpush1.bf16.msra.mxu0 %v3958
  %5386 = vmatprep.subr.bf16.mxu0 0
  %5387 = vmatpush1.bf16.msra.mxu0 %v3959
  %5388 = vmatprep.subr.bf16.mxu0 0
  %5389 = vmatpush1.bf16.msra.mxu0 %v3960
  %5390 = vmatprep.subr.bf16.mxu0 0
  %5391 = vmatpush1.bf16.msra.mxu0 %v3961
  %5392 = vmatprep.subr.bf16.mxu0 0
  %5393 = vmatpush1.bf16.msra.mxu0 %v3962
  %5394 = vmatprep.subr.bf16.mxu0 0
  %5395 = vmatpush1.bf16.msra.mxu0 %v3963
  %5396 = vmatprep.mubr.bf16.mxu0 %v1347
  %5397 = vmatmul.mubr.bf16.gmra.mrb[0].mxu0 %v1346
  %v5398 = vpop.f32.mrb[0].mxu0
  %v5399 = vadd.f32 %v5359, %v5398
  %v5400 = vpop.f32.mrb[0].mxu0
  %v5401 = vpop.f32.mrb[0].mxu0
  %v5402 = vpop.f32.mrb[0].mxu0
  %5403 = vdwg.mxu0
  %5404 = vmatprep.subr.bf16.mxu0 0
  %5405 = vmatpush1.bf16.msra.mxu0 %v3964
  %5406 = vmatprep.subr.bf16.mxu0 0
  %5407 = vmatpush1.bf16.msra.mxu0 %v3965
  %5408 = vmatprep.subr.bf16.mxu0 0
  %5409 = vmatpush1.bf16.msra.mxu0 %v3966
  %5410 = vmatprep.subr.bf16.mxu0 0
  %5411 = vmatpush1.bf16.msra.mxu0 %v3967
  %5412 = vmatprep.subr.bf16.mxu0 0
  %5413 = vmatpush1.bf16.msra.mxu0 %v3968
  %5414 = vmatprep.subr.bf16.mxu0 0
  %5415 = vmatpush1.bf16.msra.mxu0 %v3969
  %5416 = vmatprep.subr.bf16.mxu0 0
  %5417 = vmatpush1.bf16.msra.mxu0 %v3970
  %5418 = vmatprep.subr.bf16.mxu0 0
  %5419 = vmatpush1.bf16.msra.mxu0 %v3971
  %5420 = vmatprep.subr.bf16.mxu0 0
  %5421 = vmatpush1.bf16.msra.mxu0 %v3972
  %5422 = vmatprep.subr.bf16.mxu0 0
  %5423 = vmatpush1.bf16.msra.mxu0 %v3973
  %5424 = vmatprep.subr.bf16.mxu0 0
  %5425 = vmatpush1.bf16.msra.mxu0 %v3974
  %5426 = vmatprep.subr.bf16.mxu0 0
  %5427 = vmatpush1.bf16.msra.mxu0 %v3975
  %5428 = vmatprep.subr.bf16.mxu0 0
  %5429 = vmatpush1.bf16.msra.mxu0 %v3976
  %5430 = vmatprep.subr.bf16.mxu0 0
  %5431 = vmatpush1.bf16.msra.mxu0 %v3977
  %5432 = vmatprep.subr.bf16.mxu0 0
  %5433 = vmatpush1.bf16.msra.mxu0 %v3978
  %5434 = vmatprep.subr.bf16.mxu0 0
  %5435 = vmatpush1.bf16.msra.mxu0 %v3979
  %5436 = vmatprep.mubr.bf16.mxu0 %v1349
  %5437 = vmatmul.mubr.bf16.gmra.mrb[0].mxu0 %v1348
  %v5438 = vpop.f32.mrb[0].mxu0
  %v5439 = vadd.f32 %v5399, %v5438
  %v5440 = vpop.f32.mrb[0].mxu0
  %v5441 = vpop.f32.mrb[0].mxu0
  %v5442 = vpop.f32.mrb[0].mxu0
  %5443 = vdwg.mxu0
  %5444 = vmatprep.subr.bf16.mxu0 0
  %5445 = vmatpush1.bf16.msra.mxu0 %v3980
  %5446 = vmatprep.subr.bf16.mxu0 0
  %5447 = vmatpush1.bf16.msra.mxu0 %v3981
  %5448 = vmatprep.subr.bf16.mxu0 0
  %5449 = vmatpush1.bf16.msra.mxu0 %v3982
  %5450 = vmatprep.subr.bf16.mxu0 0
  %5451 = vmatpush1.bf16.msra.mxu0 %v3983
  %5452 = vmatprep.subr.bf16.mxu0 0
  %5453 = vmatpush1.bf16.msra.mxu0 %v3984
  %5454 = vmatprep.subr.bf16.mxu0 0
  %5455 = vmatpush1.bf16.msra.mxu0 %v3985
  %5456 = vmatprep.subr.bf16.mxu0 0
  %5457 = vmatpush1.bf16.msra.mxu0 %v3986
  %5458 = vmatprep.subr.bf16.mxu0 0
  %5459 = vmatpush1.bf16.msra.mxu0 %v3987
  %5460 = vmatprep.subr.bf16.mxu0 0
  %5461 = vmatpush1.bf16.msra.mxu0 %v3988
  %5462 = vmatprep.subr.bf16.mxu0 0
  %5463 = vmatpush1.bf16.msra.mxu0 %v3989
  %5464 = vmatprep.subr.bf16.mxu0 0
  %5465 = vmatpush1.bf16.msra.mxu0 %v3990
  %5466 = vmatprep.subr.bf16.mxu0 0
  %5467 = vmatpush1.bf16.msra.mxu0 %v3991
  %5468 = vmatprep.subr.bf16.mxu0 0
  %5469 = vmatpush1.bf16.msra.mxu0 %v3992
  %5470 = vmatprep.subr.bf16.mxu0 0
  %5471 = vmatpush1.bf16.msra.mxu0 %v3993
  %5472 = vmatprep.subr.bf16.mxu0 0
  %5473 = vmatpush1.bf16.msra.mxu0 %v3994
  %5474 = vmatprep.subr.bf16.mxu0 0
  %5475 = vmatpush1.bf16.msra.mxu0 %v3995
  %5476 = vmatprep.mubr.bf16.mxu0 %v1351
  %5477 = vmatmul.mubr.bf16.gmra.mrb[0].mxu0 %v1350
  %v5478 = vpop.f32.mrb[0].mxu0
  %v5479 = vadd.f32 %v5439, %v5478
  %v5480 = vpop.f32.mrb[0].mxu0
  %v5481 = vpop.f32.mrb[0].mxu0
  %v5482 = vpop.f32.mrb[0].mxu0
  %5483 = vdwg.mxu0
  %5484 = vmatprep.subr.bf16.mxu0 0
  %5485 = vmatpush1.bf16.msra.mxu0 %v3996
  %5486 = vmatprep.subr.bf16.mxu0 0
  %5487 = vmatpush1.bf16.msra.mxu0 %v3997
  %5488 = vmatprep.subr.bf16.mxu0 0
  %5489 = vmatpush1.bf16.msra.mxu0 %v3998
  %5490 = vmatprep.subr.bf16.mxu0 0
  %5491 = vmatpush1.bf16.msra.mxu0 %v3999
  %5492 = vmatprep.subr.bf16.mxu0 0
  %5493 = vmatpush1.bf16.msra.mxu0 %v4000
  %5494 = vmatprep.subr.bf16.mxu0 0
  %5495 = vmatpush1.bf16.msra.mxu0 %v4001
  %5496 = vmatprep.subr.bf16.mxu0 0
  %5497 = vmatpush1.bf16.msra.mxu0 %v4002
  %5498 = vmatprep.subr.bf16.mxu0 0
  %5499 = vmatpush1.bf16.msra.mxu0 %v4003
  %5500 = vmatprep.subr.bf16.mxu0 0
  %5501 = vmatpush1.bf16.msra.mxu0 %v4004
  %5502 = vmatprep.subr.bf16.mxu0 0
  %5503 = vmatpush1.bf16.msra.mxu0 %v4005
  %5504 = vmatprep.subr.bf16.mxu0 0
  %5505 = vmatpush1.bf16.msra.mxu0 %v4006
  %5506 = vmatprep.subr.bf16.mxu0 0
  %5507 = vmatpush1.bf16.msra.mxu0 %v4007
  %5508 = vmatprep.subr.bf16.mxu0 0
  %5509 = vmatpush1.bf16.msra.mxu0 %v4008
  %5510 = vmatprep.subr.bf16.mxu0 0
  %5511 = vmatpush1.bf16.msra.mxu0 %v4009
  %5512 = vmatprep.subr.bf16.mxu0 0
  %5513 = vmatpush1.bf16.msra.mxu0 %v4010
  %5514 = vmatprep.subr.bf16.mxu0 0
  %5515 = vmatpush1.bf16.msra.mxu0 %v4011
  %5516 = vmatprep.mubr.bf16.mxu0 %v1353
  %5517 = vmatmul.mubr.bf16.gmra.mrb[0].mxu0 %v1352
  %v5518 = vpop.f32.mrb[0].mxu0
  %v5519 = vadd.f32 %v5479, %v5518
  %v5520 = vpop.f32.mrb[0].mxu0
  %v5521 = vpop.f32.mrb[0].mxu0
  %v5522 = vpop.f32.mrb[0].mxu0
  %5523 = vdwg.mxu0
  %5524 = vmatprep.subr.bf16.mxu0 0
  %5525 = vmatpush1.bf16.msra.mxu0 %v4012
  %5526 = vmatprep.subr.bf16.mxu0 0
  %5527 = vmatpush1.bf16.msra.mxu0 %v4013
  %5528 = vmatprep.subr.bf16.mxu0 0
  %5529 = vmatpush1.bf16.msra.mxu0 %v4014
  %5530 = vmatprep.subr.bf16.mxu0 0
  %5531 = vmatpush1.bf16.msra.mxu0 %v4015
  %5532 = vmatprep.subr.bf16.mxu0 0
  %5533 = vmatpush1.bf16.msra.mxu0 %v4016
  %5534 = vmatprep.subr.bf16.mxu0 0
  %5535 = vmatpush1.bf16.msra.mxu0 %v4017
  %5536 = vmatprep.subr.bf16.mxu0 0
  %5537 = vmatpush1.bf16.msra.mxu0 %v4018
  %5538 = vmatprep.subr.bf16.mxu0 0
  %5539 = vmatpush1.bf16.msra.mxu0 %v4019
  %5540 = vmatprep.subr.bf16.mxu0 0
  %5541 = vmatpush1.bf16.msra.mxu0 %v4020
  %5542 = vmatprep.subr.bf16.mxu0 0
  %5543 = vmatpush1.bf16.msra.mxu0 %v4021
  %5544 = vmatprep.subr.bf16.mxu0 0
  %5545 = vmatpush1.bf16.msra.mxu0 %v4022
  %5546 = vmatprep.subr.bf16.mxu0 0
  %5547 = vmatpush1.bf16.msra.mxu0 %v4023
  %5548 = vmatprep.subr.bf16.mxu0 0
  %5549 = vmatpush1.bf16.msra.mxu0 %v4024
  %5550 = vmatprep.subr.bf16.mxu0 0
  %5551 = vmatpush1.bf16.msra.mxu0 %v4025
  %5552 = vmatprep.subr.bf16.mxu0 0
  %5553 = vmatpush1.bf16.msra.mxu0 %v4026
  %5554 = vmatprep.subr.bf16.mxu0 0
  %5555 = vmatpush1.bf16.msra.mxu0 %v4027
  %5556 = vmatprep.mubr.bf16.mxu0 %v1355
  %5557 = vmatmul.mubr.bf16.gmra.mrb[0].mxu0 %v1354
  %v5558 = vpop.f32.mrb[0].mxu0
  %v5559 = vadd.f32 %v5519, %v5558
  %v5560 = vpop.f32.mrb[0].mxu0
  %v5561 = vpop.f32.mrb[0].mxu0
  %v5562 = vpop.f32.mrb[0].mxu0
  %5563 = vdwg.mxu0
  %5564 = vmatprep.subr.bf16.mxu0 0
  %5565 = vmatpush1.bf16.msra.mxu0 %v4028
  %5566 = vmatprep.subr.bf16.mxu0 0
  %5567 = vmatpush1.bf16.msra.mxu0 %v4029
  %5568 = vmatprep.subr.bf16.mxu0 0
  %5569 = vmatpush1.bf16.msra.mxu0 %v4030
  %5570 = vmatprep.subr.bf16.mxu0 0
  %5571 = vmatpush1.bf16.msra.mxu0 %v4031
  %5572 = vmatprep.subr.bf16.mxu0 0
  %5573 = vmatpush1.bf16.msra.mxu0 %v4032
  %5574 = vmatprep.subr.bf16.mxu0 0
  %5575 = vmatpush1.bf16.msra.mxu0 %v4033
  %5576 = vmatprep.subr.bf16.mxu0 0
  %5577 = vmatpush1.bf16.msra.mxu0 %v4034
  %5578 = vmatprep.subr.bf16.mxu0 0
  %5579 = vmatpush1.bf16.msra.mxu0 %v4035
  %5580 = vmatprep.subr.bf16.mxu0 0
  %5581 = vmatpush1.bf16.msra.mxu0 %v4036
  %5582 = vmatprep.subr.bf16.mxu0 0
  %5583 = vmatpush1.bf16.msra.mxu0 %v4037
  %5584 = vmatprep.subr.bf16.mxu0 0
  %5585 = vmatpush1.bf16.msra.mxu0 %v4038
  %5586 = vmatprep.subr.bf16.mxu0 0
  %5587 = vmatpush1.bf16.msra.mxu0 %v4039
  %5588 = vmatprep.subr.bf16.mxu0 0
  %5589 = vmatpush1.bf16.msra.mxu0 %v4040
  %5590 = vmatprep.subr.bf16.mxu0 0
  %5591 = vmatpush1.bf16.msra.mxu0 %v4041
  %5592 = vmatprep.subr.bf16.mxu0 0
  %5593 = vmatpush1.bf16.msra.mxu0 %v4042
  %5594 = vmatprep.subr.bf16.mxu0 0
  %5595 = vmatpush1.bf16.msra.mxu0 %v4043
  %5596 = vmatprep.mubr.bf16.mxu0 %v1357
  %5597 = vmatmul.mubr.bf16.gmra.mrb[0].mxu0 %v1356
  %v5598 = vpop.f32.mrb[0].mxu0
  %v5599 = vadd.f32 %v5559, %v5598
  %v5600 = vpop.f32.mrb[0].mxu0
  %v5601 = vpop.f32.mrb[0].mxu0
  %v5602 = vpop.f32.mrb[0].mxu0
  %5603 = vdwg.mxu0
  %5604 = vmatprep.subr.bf16.mxu0 0
  %5605 = vmatpush1.bf16.msra.mxu0 %v4044
  %5606 = vmatprep.subr.bf16.mxu0 0
  %5607 = vmatpush1.bf16.msra.mxu0 %v4045
  %5608 = vmatprep.subr.bf16.mxu0 0
  %5609 = vmatpush1.bf16.msra.mxu0 %v4046
  %5610 = vmatprep.subr.bf16.mxu0 0
  %5611 = vmatpush1.bf16.msra.mxu0 %v4047
  %5612 = vmatprep.subr.bf16.mxu0 0
  %5613 = vmatpush1.bf16.msra.mxu0 %v4048
  %5614 = vmatprep.subr.bf16.mxu0 0
  %5615 = vmatpush1.bf16.msra.mxu0 %v4049
  %5616 = vmatprep.subr.bf16.mxu0 0
  %5617 = vmatpush1.bf16.msra.mxu0 %v4050
  %5618 = vmatprep.subr.bf16.mxu0 0
  %5619 = vmatpush1.bf16.msra.mxu0 %v4051
  %5620 = vmatprep.subr.bf16.mxu0 0
  %5621 = vmatpush1.bf16.msra.mxu0 %v4052
  %5622 = vmatprep.subr.bf16.mxu0 0
  %5623 = vmatpush1.bf16.msra.mxu0 %v4053
  %5624 = vmatprep.subr.bf16.mxu0 0
  %5625 = vmatpush1.bf16.msra.mxu0 %v4054
  %5626 = vmatprep.subr.bf16.mxu0 0
  %5627 = vmatpush1.bf16.msra.mxu0 %v4055
  %5628 = vmatprep.subr.bf16.mxu0 0
  %5629 = vmatpush1.bf16.msra.mxu0 %v4056
  %5630 = vmatprep.subr.bf16.mxu0 0
  %5631 = vmatpush1.bf16.msra.mxu0 %v4057
  %5632 = vmatprep.subr.bf16.mxu0 0
  %5633 = vmatpush1.bf16.msra.mxu0 %v4058
  %5634 = vmatprep.subr.bf16.mxu0 0
  %5635 = vmatpush1.bf16.msra.mxu0 %v4059
  %5636 = vmatprep.mubr.bf16.mxu0 %v1359
  %5637 = vmatmul.mubr.bf16.gmra.mrb[0].mxu0 %v1358
  %v5638 = vpop.f32.mrb[0].mxu0
  %v5639 = vadd.f32 %v5599, %v5638
  %v5640 = vpop.f32.mrb[0].mxu0
  %v5641 = vpop.f32.mrb[0].mxu0
  %v5642 = vpop.f32.mrb[0].mxu0
  %5643 = vdwg.mxu0
  %5644 = vmatprep.subr.bf16.mxu0 0
  %5645 = vmatpush1.bf16.msra.mxu0 %v4060
  %5646 = vmatprep.subr.bf16.mxu0 0
  %5647 = vmatpush1.bf16.msra.mxu0 %v4061
  %5648 = vmatprep.subr.bf16.mxu0 0
  %5649 = vmatpush1.bf16.msra.mxu0 %v4062
  %5650 = vmatprep.subr.bf16.mxu0 0
  %5651 = vmatpush1.bf16.msra.mxu0 %v4063
  %5652 = vmatprep.subr.bf16.mxu0 0
  %5653 = vmatpush1.bf16.msra.mxu0 %v4064
  %5654 = vmatprep.subr.bf16.mxu0 0
  %5655 = vmatpush1.bf16.msra.mxu0 %v4065
  %5656 = vmatprep.subr.bf16.mxu0 0
  %5657 = vmatpush1.bf16.msra.mxu0 %v4066
  %5658 = vmatprep.subr.bf16.mxu0 0
  %5659 = vmatpush1.bf16.msra.mxu0 %v4067
  %5660 = vmatprep.subr.bf16.mxu0 0
  %5661 = vmatpush1.bf16.msra.mxu0 %v4068
  %5662 = vmatprep.subr.bf16.mxu0 0
  %5663 = vmatpush1.bf16.msra.mxu0 %v4069
  %5664 = vmatprep.subr.bf16.mxu0 0
  %5665 = vmatpush1.bf16.msra.mxu0 %v4070
  %5666 = vmatprep.subr.bf16.mxu0 0
  %5667 = vmatpush1.bf16.msra.mxu0 %v4071
  %5668 = vmatprep.subr.bf16.mxu0 0
  %5669 = vmatpush1.bf16.msra.mxu0 %v4072
  %5670 = vmatprep.subr.bf16.mxu0 0
  %5671 = vmatpush1.bf16.msra.mxu0 %v4073
  %5672 = vmatprep.subr.bf16.mxu0 0
  %5673 = vmatpush1.bf16.msra.mxu0 %v4074
  %5674 = vmatprep.subr.bf16.mxu0 0
  %5675 = vmatpush1.bf16.msra.mxu0 %v4075
  %5676 = vmatprep.mubr.bf16.mxu0 %v1361
  %5677 = vmatmul.mubr.bf16.gmra.mrb[0].mxu0 %v1360
  %v5678 = vpop.f32.mrb[0].mxu0
  %v5679 = vadd.f32 %v5639, %v5678
  %v5680 = vpop.f32.mrb[0].mxu0
  %v5681 = vpop.f32.mrb[0].mxu0
  %v5682 = vpop.f32.mrb[0].mxu0
  %5683 = vdwg.mxu0
  %5684 = vmatprep.subr.bf16.mxu0 0
  %5685 = vmatpush1.bf16.msra.mxu0 %v4076
  %5686 = vmatprep.subr.bf16.mxu0 0
  %5687 = vmatpush1.bf16.msra.mxu0 %v4077
  %5688 = vmatprep.subr.bf16.mxu0 0
  %5689 = vmatpush1.bf16.msra.mxu0 %v4078
  %5690 = vmatprep.subr.bf16.mxu0 0
  %5691 = vmatpush1.bf16.msra.mxu0 %v4079
  %5692 = vmatprep.subr.bf16.mxu0 0
  %5693 = vmatpush1.bf16.msra.mxu0 %v4080
  %5694 = vmatprep.subr.bf16.mxu0 0
  %5695 = vmatpush1.bf16.msra.mxu0 %v4081
  %5696 = vmatprep.subr.bf16.mxu0 0
  %5697 = vmatpush1.bf16.msra.mxu0 %v4082
  %5698 = vmatprep.subr.bf16.mxu0 0
  %5699 = vmatpush1.bf16.msra.mxu0 %v4083
  %5700 = vmatprep.subr.bf16.mxu0 0
  %5701 = vmatpush1.bf16.msra.mxu0 %v4084
  %5702 = vmatprep.subr.bf16.mxu0 0
  %5703 = vmatpush1.bf16.msra.mxu0 %v4085
  %5704 = vmatprep.subr.bf16.mxu0 0
  %5705 = vmatpush1.bf16.msra.mxu0 %v4086
  %5706 = vmatprep.subr.bf16.mxu0 0
  %5707 = vmatpush1.bf16.msra.mxu0 %v4087
  %5708 = vmatprep.subr.bf16.mxu0 0
  %5709 = vmatpush1.bf16.msra.mxu0 %v4088
  %5710 = vmatprep.subr.bf16.mxu0 0
  %5711 = vmatpush1.bf16.msra.mxu0 %v4089
  %5712 = vmatprep.subr.bf16.mxu0 0
  %5713 = vmatpush1.bf16.msra.mxu0 %v4090
  %5714 = vmatprep.subr.bf16.mxu0 0
  %5715 = vmatpush1.bf16.msra.mxu0 %v4091
  %5716 = vmatprep.mubr.bf16.mxu0 %v1363
  %5717 = vmatmul.mubr.bf16.gmra.mrb[0].mxu0 %v1362
  %v5718 = vpop.f32.mrb[0].mxu0
  %v5719 = vadd.f32 %v5679, %v5718
  %v5720 = vpop.f32.mrb[0].mxu0
  %v5721 = vpop.f32.mrb[0].mxu0
  %v5722 = vpop.f32.mrb[0].mxu0
  %5723 = vdwg.mxu0
  %5724 = vmatprep.subr.bf16.mxu0 0
  %5725 = vmatpush1.bf16.msra.mxu0 %v4092
  %5726 = vmatprep.subr.bf16.mxu0 0
  %5727 = vmatpush1.bf16.msra.mxu0 %v4093
  %5728 = vmatprep.subr.bf16.mxu0 0
  %5729 = vmatpush1.bf16.msra.mxu0 %v4094
  %5730 = vmatprep.subr.bf16.mxu0 0
  %5731 = vmatpush1.bf16.msra.mxu0 %v4095
  %5732 = vmatprep.subr.bf16.mxu0 0
  %5733 = vmatpush1.bf16.msra.mxu0 %v4096
  %5734 = vmatprep.subr.bf16.mxu0 0
  %5735 = vmatpush1.bf16.msra.mxu0 %v4097
  %5736 = vmatprep.subr.bf16.mxu0 0
  %5737 = vmatpush1.bf16.msra.mxu0 %v4098
  %5738 = vmatprep.subr.bf16.mxu0 0
  %5739 = vmatpush1.bf16.msra.mxu0 %v4099
  %5740 = vmatprep.subr.bf16.mxu0 0
  %5741 = vmatpush1.bf16.msra.mxu0 %v4100
  %5742 = vmatprep.subr.bf16.mxu0 0
  %5743 = vmatpush1.bf16.msra.mxu0 %v4101
  %5744 = vmatprep.subr.bf16.mxu0 0
  %5745 = vmatpush1.bf16.msra.mxu0 %v4102
  %5746 = vmatprep.subr.bf16.mxu0 0
  %5747 = vmatpush1.bf16.msra.mxu0 %v4103
  %5748 = vmatprep.subr.bf16.mxu0 0
  %5749 = vmatpush1.bf16.msra.mxu0 %v4104
  %5750 = vmatprep.subr.bf16.mxu0 0
  %5751 = vmatpush1.bf16.msra.mxu0 %v4105
  %5752 = vmatprep.subr.bf16.mxu0 0
  %5753 = vmatpush1.bf16.msra.mxu0 %v4106
  %5754 = vmatprep.subr.bf16.mxu0 0
  %5755 = vmatpush1.bf16.msra.mxu0 %v4107
  %5756 = vmatprep.mubr.bf16.mxu0 %v1365
  %5757 = vmatmul.mubr.bf16.gmra.mrb[0].mxu0 %v1364
  %v5758 = vpop.f32.mrb[0].mxu0
  %v5759 = vadd.f32 %v5719, %v5758
  %v5760 = vpop.f32.mrb[0].mxu0
  %v5761 = vpop.f32.mrb[0].mxu0
  %v5762 = vpop.f32.mrb[0].mxu0
  %5763 = vdwg.mxu0
  %5764 = vmatprep.subr.bf16.mxu0 0
  %5765 = vmatpush1.bf16.msra.mxu0 %v4108
  %5766 = vmatprep.subr.bf16.mxu0 0
  %5767 = vmatpush1.bf16.msra.mxu0 %v4109
  %5768 = vmatprep.subr.bf16.mxu0 0
  %5769 = vmatpush1.bf16.msra.mxu0 %v4110
  %5770 = vmatprep.subr.bf16.mxu0 0
  %5771 = vmatpush1.bf16.msra.mxu0 %v4111
  %5772 = vmatprep.subr.bf16.mxu0 0
  %5773 = vmatpush1.bf16.msra.mxu0 %v4112
  %5774 = vmatprep.subr.bf16.mxu0 0
  %5775 = vmatpush1.bf16.msra.mxu0 %v4113
  %5776 = vmatprep.subr.bf16.mxu0 0
  %5777 = vmatpush1.bf16.msra.mxu0 %v4114
  %5778 = vmatprep.subr.bf16.mxu0 0
  %5779 = vmatpush1.bf16.msra.mxu0 %v4115
  %5780 = vmatprep.subr.bf16.mxu0 0
  %5781 = vmatpush1.bf16.msra.mxu0 %v4116
  %5782 = vmatprep.subr.bf16.mxu0 0
  %5783 = vmatpush1.bf16.msra.mxu0 %v4117
  %5784 = vmatprep.subr.bf16.mxu0 0
  %5785 = vmatpush1.bf16.msra.mxu0 %v4118
  %5786 = vmatprep.subr.bf16.mxu0 0
  %5787 = vmatpush1.bf16.msra.mxu0 %v4119
  %5788 = vmatprep.subr.bf16.mxu0 0
  %5789 = vmatpush1.bf16.msra.mxu0 %v4120
  %5790 = vmatprep.subr.bf16.mxu0 0
  %5791 = vmatpush1.bf16.msra.mxu0 %v4121
  %5792 = vmatprep.subr.bf16.mxu0 0
  %5793 = vmatpush1.bf16.msra.mxu0 %v4122
  %5794 = vmatprep.subr.bf16.mxu0 0
  %5795 = vmatpush1.bf16.msra.mxu0 %v4123
  %5796 = vmatprep.mubr.bf16.mxu0 %v1367
  %5797 = vmatmul.mubr.bf16.gmra.mrb[0].mxu0 %v1366
  %v5798 = vpop.f32.mrb[0].mxu0
  %v5799 = vadd.f32 %v5759, %v5798
  %v5800 = vpop.f32.mrb[0].mxu0
  %v5801 = vpop.f32.mrb[0].mxu0
  %v5802 = vpop.f32.mrb[0].mxu0
  %5803 = vdwg.mxu0
  %5804 = vmatprep.subr.bf16.mxu0 0
  %5805 = vmatpush1.bf16.msra.mxu0 %v4124
  %5806 = vmatprep.subr.bf16.mxu0 0
  %5807 = vmatpush1.bf16.msra.mxu0 %v4125
  %5808 = vmatprep.subr.bf16.mxu0 0
  %5809 = vmatpush1.bf16.msra.mxu0 %v4126
  %5810 = vmatprep.subr.bf16.mxu0 0
  %5811 = vmatpush1.bf16.msra.mxu0 %v4127
  %5812 = vmatprep.subr.bf16.mxu0 0
  %5813 = vmatpush1.bf16.msra.mxu0 %v4128
  %5814 = vmatprep.subr.bf16.mxu0 0
  %5815 = vmatpush1.bf16.msra.mxu0 %v4129
  %5816 = vmatprep.subr.bf16.mxu0 0
  %5817 = vmatpush1.bf16.msra.mxu0 %v4130
  %5818 = vmatprep.subr.bf16.mxu0 0
  %5819 = vmatpush1.bf16.msra.mxu0 %v4131
  %5820 = vmatprep.subr.bf16.mxu0 0
  %5821 = vmatpush1.bf16.msra.mxu0 %v4132
  %5822 = vmatprep.subr.bf16.mxu0 0
  %5823 = vmatpush1.bf16.msra.mxu0 %v4133
  %5824 = vmatprep.subr.bf16.mxu0 0
  %5825 = vmatpush1.bf16.msra.mxu0 %v4134
  %5826 = vmatprep.subr.bf16.mxu0 0
  %5827 = vmatpush1.bf16.msra.mxu0 %v4135
  %5828 = vmatprep.subr.bf16.mxu0 0
  %5829 = vmatpush1.bf16.msra.mxu0 %v4136
  %5830 = vmatprep.subr.bf16.mxu0 0
  %5831 = vmatpush1.bf16.msra.mxu0 %v4137
  %5832 = vmatprep.subr.bf16.mxu0 0
  %5833 = vmatpush1.bf16.msra.mxu0 %v4138
  %5834 = vmatprep.subr.bf16.mxu0 0
  %5835 = vmatpush1.bf16.msra.mxu0 %v4139
  %5836 = vmatprep.mubr.bf16.mxu0 %v1369
  %5837 = vmatmul.mubr.bf16.gmra.mrb[0].mxu0 %v1368
  %v5838 = vpop.f32.mrb[0].mxu0
  %v5839 = vadd.f32 %v5799, %v5838
  %v5840 = vpop.f32.mrb[0].mxu0
  %v5841 = vpop.f32.mrb[0].mxu0
  %v5842 = vpop.f32.mrb[0].mxu0
  %5843 = vdwg.mxu0
  %5844 = vmatprep.subr.bf16.mxu0 0
  %5845 = vmatpush1.bf16.msra.mxu0 %v4140
  %5846 = vmatprep.subr.bf16.mxu0 0
  %5847 = vmatpush1.bf16.msra.mxu0 %v4141
  %5848 = vmatprep.subr.bf16.mxu0 0
  %5849 = vmatpush1.bf16.msra.mxu0 %v4142
  %5850 = vmatprep.subr.bf16.mxu0 0
  %5851 = vmatpush1.bf16.msra.mxu0 %v4143
  %5852 = vmatprep.subr.bf16.mxu0 0
  %5853 = vmatpush1.bf16.msra.mxu0 %v4144
  %5854 = vmatprep.subr.bf16.mxu0 0
  %5855 = vmatpush1.bf16.msra.mxu0 %v4145
  %5856 = vmatprep.subr.bf16.mxu0 0
  %5857 = vmatpush1.bf16.msra.mxu0 %v4146
  %5858 = vmatprep.subr.bf16.mxu0 0
  %5859 = vmatpush1.bf16.msra.mxu0 %v4147
  %5860 = vmatprep.subr.bf16.mxu0 0
  %5861 = vmatpush1.bf16.msra.mxu0 %v4148
  %5862 = vmatprep.subr.bf16.mxu0 0
  %5863 = vmatpush1.bf16.msra.mxu0 %v4149
  %5864 = vmatprep.subr.bf16.mxu0 0
  %5865 = vmatpush1.bf16.msra.mxu0 %v4150
  %5866 = vmatprep.subr.bf16.mxu0 0
  %5867 = vmatpush1.bf16.msra.mxu0 %v4151
  %5868 = vmatprep.subr.bf16.mxu0 0
  %5869 = vmatpush1.bf16.msra.mxu0 %v4152
  %5870 = vmatprep.subr.bf16.mxu0 0
  %5871 = vmatpush1.bf16.msra.mxu0 %v4153
  %5872 = vmatprep.subr.bf16.mxu0 0
  %5873 = vmatpush1.bf16.msra.mxu0 %v4154
  %5874 = vmatprep.subr.bf16.mxu0 0
  %5875 = vmatpush1.bf16.msra.mxu0 %v4155
  %5876 = vmatprep.mubr.bf16.mxu0 %v1371
  %5877 = vmatmul.mubr.bf16.gmra.mrb[0].mxu0 %v1370
  %v5878 = vpop.f32.mrb[0].mxu0
  %v5879 = vadd.f32 %v5839, %v5878
  %v5880 = vpop.f32.mrb[0].mxu0
  %v5881 = vpop.f32.mrb[0].mxu0
  %v5882 = vpop.f32.mrb[0].mxu0
  %5883 = vdwg.mxu0
  %5884 = vmatprep.subr.bf16.mxu0 0
  %5885 = vmatpush1.bf16.msra.mxu0 %v4156
  %5886 = vmatprep.subr.bf16.mxu0 0
  %5887 = vmatpush1.bf16.msra.mxu0 %v4157
  %5888 = vmatprep.subr.bf16.mxu0 0
  %5889 = vmatpush1.bf16.msra.mxu0 %v4158
  %5890 = vmatprep.subr.bf16.mxu0 0
  %5891 = vmatpush1.bf16.msra.mxu0 %v4159
  %5892 = vmatprep.subr.bf16.mxu0 0
  %5893 = vmatpush1.bf16.msra.mxu0 %v4160
  %5894 = vmatprep.subr.bf16.mxu0 0
  %5895 = vmatpush1.bf16.msra.mxu0 %v4161
  %5896 = vmatprep.subr.bf16.mxu0 0
  %5897 = vmatpush1.bf16.msra.mxu0 %v4162
  %5898 = vmatprep.subr.bf16.mxu0 0
  %5899 = vmatpush1.bf16.msra.mxu0 %v4163
  %5900 = vmatprep.subr.bf16.mxu0 0
  %5901 = vmatpush1.bf16.msra.mxu0 %v4164
  %5902 = vmatprep.subr.bf16.mxu0 0
  %5903 = vmatpush1.bf16.msra.mxu0 %v4165
  %5904 = vmatprep.subr.bf16.mxu0 0
  %5905 = vmatpush1.bf16.msra.mxu0 %v4166
  %5906 = vmatprep.subr.bf16.mxu0 0
  %5907 = vmatpush1.bf16.msra.mxu0 %v4167
  %5908 = vmatprep.subr.bf16.mxu0 0
  %5909 = vmatpush1.bf16.msra.mxu0 %v4168
  %5910 = vmatprep.subr.bf16.mxu0 0
  %5911 = vmatpush1.bf16.msra.mxu0 %v4169
  %5912 = vmatprep.subr.bf16.mxu0 0
  %5913 = vmatpush1.bf16.msra.mxu0 %v4170
  %5914 = vmatprep.subr.bf16.mxu0 0
  %5915 = vmatpush1.bf16.msra.mxu0 %v4171
  %5916 = vmatprep.mubr.bf16.mxu0 %v1373
  %5917 = vmatmul.mubr.bf16.gmra.mrb[0].mxu0 %v1372
  %v5918 = vpop.f32.mrb[0].mxu0
  %v5919 = vadd.f32 %v5879, %v5918
  %v5920 = vpop.f32.mrb[0].mxu0
  %v5921 = vpop.f32.mrb[0].mxu0
  %v5922 = vpop.f32.mrb[0].mxu0
  %5923 = vdwg.mxu0
  %5924 = vmatprep.subr.bf16.mxu0 0
  %5925 = vmatpush1.bf16.msra.mxu0 %v4172
  %5926 = vmatprep.subr.bf16.mxu0 0
  %5927 = vmatpush1.bf16.msra.mxu0 %v4173
  %5928 = vmatprep.subr.bf16.mxu0 0
  %5929 = vmatpush1.bf16.msra.mxu0 %v4174
  %5930 = vmatprep.subr.bf16.mxu0 0
  %5931 = vmatpush1.bf16.msra.mxu0 %v4175
  %5932 = vmatprep.subr.bf16.mxu0 0
  %5933 = vmatpush1.bf16.msra.mxu0 %v4176
  %5934 = vmatprep.subr.bf16.mxu0 0
  %5935 = vmatpush1.bf16.msra.mxu0 %v4177
  %5936 = vmatprep.subr.bf16.mxu0 0
  %5937 = vmatpush1.bf16.msra.mxu0 %v4178
  %5938 = vmatprep.subr.bf16.mxu0 0
  %5939 = vmatpush1.bf16.msra.mxu0 %v4179
  %5940 = vmatprep.subr.bf16.mxu0 0
  %5941 = vmatpush1.bf16.msra.mxu0 %v4180
  %5942 = vmatprep.subr.bf16.mxu0 0
  %5943 = vmatpush1.bf16.msra.mxu0 %v4181
  %5944 = vmatprep.subr.bf16.mxu0 0
  %5945 = vmatpush1.bf16.msra.mxu0 %v4182
  %5946 = vmatprep.subr.bf16.mxu0 0
  %5947 = vmatpush1.bf16.msra.mxu0 %v4183
  %5948 = vmatprep.subr.bf16.mxu0 0
  %5949 = vmatpush1.bf16.msra.mxu0 %v4184
  %5950 = vmatprep.subr.bf16.mxu0 0
  %5951 = vmatpush1.bf16.msra.mxu0 %v4185
  %5952 = vmatprep.subr.bf16.mxu0 0
  %5953 = vmatpush1.bf16.msra.mxu0 %v4186
  %5954 = vmatprep.subr.bf16.mxu0 0
  %5955 = vmatpush1.bf16.msra.mxu0 %v4187
  %5956 = vmatprep.mubr.bf16.mxu0 %v1375
  %5957 = vmatmul.mubr.bf16.gmra.mrb[0].mxu0 %v1374
  %v5958 = vpop.f32.mrb[0].mxu0
  %v5959 = vadd.f32 %v5919, %v5958
  %v5960 = vpop.f32.mrb[0].mxu0
  %v5961 = vpop.f32.mrb[0].mxu0
  %v5962 = vpop.f32.mrb[0].mxu0
  %5963 = vdwg.mxu0
  %5964 = vmatprep.subr.bf16.mxu0 0
  %5965 = vmatpush1.bf16.msra.mxu0 %v4188
  %5966 = vmatprep.subr.bf16.mxu0 0
  %5967 = vmatpush1.bf16.msra.mxu0 %v4189
  %5968 = vmatprep.subr.bf16.mxu0 0
  %5969 = vmatpush1.bf16.msra.mxu0 %v4190
  %5970 = vmatprep.subr.bf16.mxu0 0
  %5971 = vmatpush1.bf16.msra.mxu0 %v4191
  %5972 = vmatprep.subr.bf16.mxu0 0
  %5973 = vmatpush1.bf16.msra.mxu0 %v4192
  %5974 = vmatprep.subr.bf16.mxu0 0
  %5975 = vmatpush1.bf16.msra.mxu0 %v4193
  %5976 = vmatprep.subr.bf16.mxu0 0
  %5977 = vmatpush1.bf16.msra.mxu0 %v4194
  %5978 = vmatprep.subr.bf16.mxu0 0
  %5979 = vmatpush1.bf16.msra.mxu0 %v4195
  %5980 = vmatprep.subr.bf16.mxu0 0
  %5981 = vmatpush1.bf16.msra.mxu0 %v4196
  %5982 = vmatprep.subr.bf16.mxu0 0
  %5983 = vmatpush1.bf16.msra.mxu0 %v4197
  %5984 = vmatprep.subr.bf16.mxu0 0
  %5985 = vmatpush1.bf16.msra.mxu0 %v4198
  %5986 = vmatprep.subr.bf16.mxu0 0
  %5987 = vmatpush1.bf16.msra.mxu0 %v4199
  %5988 = vmatprep.subr.bf16.mxu0 0
  %5989 = vmatpush1.bf16.msra.mxu0 %v4200
  %5990 = vmatprep.subr.bf16.mxu0 0
  %5991 = vmatpush1.bf16.msra.mxu0 %v4201
  %5992 = vmatprep.subr.bf16.mxu0 0
  %5993 = vmatpush1.bf16.msra.mxu0 %v4202
  %5994 = vmatprep.subr.bf16.mxu0 0
  %5995 = vmatpush1.bf16.msra.mxu0 %v4203
  %5996 = vmatprep.mubr.bf16.mxu0 %v1377
  %5997 = vmatmul.mubr.bf16.gmra.mrb[0].mxu0 %v1376
  %v5998 = vpop.f32.mrb[0].mxu0
  %v5999 = vadd.f32 %v5959, %v5998
  %v6000 = vpop.f32.mrb[0].mxu0
  %v6001 = vpop.f32.mrb[0].mxu0
  %v6002 = vpop.f32.mrb[0].mxu0
  %6003 = vdwg.mxu0
  %6004 = vmatprep.subr.bf16.mxu0 0
  %6005 = vmatpush1.bf16.msra.mxu0 %v4204
  %6006 = vmatprep.subr.bf16.mxu0 0
  %6007 = vmatpush1.bf16.msra.mxu0 %v4205
  %6008 = vmatprep.subr.bf16.mxu0 0
  %6009 = vmatpush1.bf16.msra.mxu0 %v4206
  %6010 = vmatprep.subr.bf16.mxu0 0
  %6011 = vmatpush1.bf16.msra.mxu0 %v4207
  %6012 = vmatprep.subr.bf16.mxu0 0
  %6013 = vmatpush1.bf16.msra.mxu0 %v4208
  %6014 = vmatprep.subr.bf16.mxu0 0
  %6015 = vmatpush1.bf16.msra.mxu0 %v4209
  %6016 = vmatprep.subr.bf16.mxu0 0
  %6017 = vmatpush1.bf16.msra.mxu0 %v4210
  %6018 = vmatprep.subr.bf16.mxu0 0
  %6019 = vmatpush1.bf16.msra.mxu0 %v4211
  %6020 = vmatprep.subr.bf16.mxu0 0
  %6021 = vmatpush1.bf16.msra.mxu0 %v4212
  %6022 = vmatprep.subr.bf16.mxu0 0
  %6023 = vmatpush1.bf16.msra.mxu0 %v4213
  %6024 = vmatprep.subr.bf16.mxu0 0
  %6025 = vmatpush1.bf16.msra.mxu0 %v4214
  %6026 = vmatprep.subr.bf16.mxu0 0
  %6027 = vmatpush1.bf16.msra.mxu0 %v4215
  %6028 = vmatprep.subr.bf16.mxu0 0
  %6029 = vmatpush1.bf16.msra.mxu0 %v4216
  %6030 = vmatprep.subr.bf16.mxu0 0
  %6031 = vmatpush1.bf16.msra.mxu0 %v4217
  %6032 = vmatprep.subr.bf16.mxu0 0
  %6033 = vmatpush1.bf16.msra.mxu0 %v4218
  %6034 = vmatprep.subr.bf16.mxu0 0
  %6035 = vmatpush1.bf16.msra.mxu0 %v4219
  %6036 = vmatprep.mubr.bf16.mxu0 %v1379
  %6037 = vmatmul.mubr.bf16.gmra.mrb[0].mxu0 %v1378
  %v6038 = vpop.f32.mrb[0].mxu0
  %v6039 = vadd.f32 %v5999, %v6038
  %v6040 = vpop.f32.mrb[0].mxu0
  %v6041 = vpop.f32.mrb[0].mxu0
  %v6042 = vpop.f32.mrb[0].mxu0
  %6043 = vdwg.mxu0
  %6044 = vmatprep.subr.bf16.mxu0 0
  %6045 = vmatpush1.bf16.msra.mxu0 %v4220
  %6046 = vmatprep.subr.bf16.mxu0 0
  %6047 = vmatpush1.bf16.msra.mxu0 %v4221
  %6048 = vmatprep.subr.bf16.mxu0 0
  %6049 = vmatpush1.bf16.msra.mxu0 %v4222
  %6050 = vmatprep.subr.bf16.mxu0 0
  %6051 = vmatpush1.bf16.msra.mxu0 %v4223
  %6052 = vmatprep.subr.bf16.mxu0 0
  %6053 = vmatpush1.bf16.msra.mxu0 %v4224
  %6054 = vmatprep.subr.bf16.mxu0 0
  %6055 = vmatpush1.bf16.msra.mxu0 %v4225
  %6056 = vmatprep.subr.bf16.mxu0 0
  %6057 = vmatpush1.bf16.msra.mxu0 %v4226
  %6058 = vmatprep.subr.bf16.mxu0 0
  %6059 = vmatpush1.bf16.msra.mxu0 %v4227
  %6060 = vmatprep.subr.bf16.mxu0 0
  %6061 = vmatpush1.bf16.msra.mxu0 %v4228
  %6062 = vmatprep.subr.bf16.mxu0 0
  %6063 = vmatpush1.bf16.msra.mxu0 %v4229
  %6064 = vmatprep.subr.bf16.mxu0 0
  %6065 = vmatpush1.bf16.msra.mxu0 %v4230
  %6066 = vmatprep.subr.bf16.mxu0 0
  %6067 = vmatpush1.bf16.msra.mxu0 %v4231
  %6068 = vmatprep.subr.bf16.mxu0 0
  %6069 = vmatpush1.bf16.msra.mxu0 %v4232
  %6070 = vmatprep.subr.bf16.mxu0 0
  %6071 = vmatpush1.bf16.msra.mxu0 %v4233
  %6072 = vmatprep.subr.bf16.mxu0 0
  %6073 = vmatpush1.bf16.msra.mxu0 %v4234
  %6074 = vmatprep.subr.bf16.mxu0 0
  %6075 = vmatpush1.bf16.msra.mxu0 %v4235
  %6076 = vmatprep.mubr.bf16.mxu0 %v1381
  %6077 = vmatmul.mubr.bf16.gmra.mrb[0].mxu0 %v1380
  %v6078 = vpop.f32.mrb[0].mxu0
  %v6079 = vadd.f32 %v6039, %v6078
  %v6080 = vpop.f32.mrb[0].mxu0
  %v6081 = vpop.f32.mrb[0].mxu0
  %v6082 = vpop.f32.mrb[0].mxu0
  %6083 = vdwg.mxu0
  %6084 = vmatprep.subr.bf16.mxu0 0
  %6085 = vmatpush1.bf16.msra.mxu0 %v4236
  %6086 = vmatprep.subr.bf16.mxu0 0
  %6087 = vmatpush1.bf16.msra.mxu0 %v4237
  %6088 = vmatprep.subr.bf16.mxu0 0
  %6089 = vmatpush1.bf16.msra.mxu0 %v4238
  %6090 = vmatprep.subr.bf16.mxu0 0
  %6091 = vmatpush1.bf16.msra.mxu0 %v4239
  %6092 = vmatprep.subr.bf16.mxu0 0
  %6093 = vmatpush1.bf16.msra.mxu0 %v4240
  %6094 = vmatprep.subr.bf16.mxu0 0
  %6095 = vmatpush1.bf16.msra.mxu0 %v4241
  %6096 = vmatprep.subr.bf16.mxu0 0
  %6097 = vmatpush1.bf16.msra.mxu0 %v4242
  %6098 = vmatprep.subr.bf16.mxu0 0
  %6099 = vmatpush1.bf16.msra.mxu0 %v4243
  %6100 = vmatprep.subr.bf16.mxu0 0
  %6101 = vmatpush1.bf16.msra.mxu0 %v4244
  %6102 = vmatprep.subr.bf16.mxu0 0
  %6103 = vmatpush1.bf16.msra.mxu0 %v4245
  %6104 = vmatprep.subr.bf16.mxu0 0
  %6105 = vmatpush1.bf16.msra.mxu0 %v4246
  %6106 = vmatprep.subr.bf16.mxu0 0
  %6107 = vmatpush1.bf16.msra.mxu0 %v4247
  %6108 = vmatprep.subr.bf16.mxu0 0
  %6109 = vmatpush1.bf16.msra.mxu0 %v4248
  %6110 = vmatprep.subr.bf16.mxu0 0
  %6111 = vmatpush1.bf16.msra.mxu0 %v4249
  %6112 = vmatprep.subr.bf16.mxu0 0
  %6113 = vmatpush1.bf16.msra.mxu0 %v4250
  %6114 = vmatprep.subr.bf16.mxu0 0
  %6115 = vmatpush1.bf16.msra.mxu0 %v4251
  %6116 = vmatprep.mubr.bf16.mxu0 %v1383
  %6117 = vmatmul.mubr.bf16.gmra.mrb[0].mxu0 %v1382
  %v6118 = vpop.f32.mrb[0].mxu0
  %v6119 = vadd.f32 %v6079, %v6118
  %v6120 = vpop.f32.mrb[0].mxu0
  %v6121 = vpop.f32.mrb[0].mxu0
  %v6122 = vpop.f32.mrb[0].mxu0
  %6123 = vdwg.mxu0
  %6124 = vmatprep.subr.bf16.mxu0 0
  %6125 = vmatpush1.bf16.msra.mxu0 %v4252
  %6126 = vmatprep.subr.bf16.mxu0 0
  %6127 = vmatpush1.bf16.msra.mxu0 %v4253
  %6128 = vmatprep.subr.bf16.mxu0 0
  %6129 = vmatpush1.bf16.msra.mxu0 %v4254
  %6130 = vmatprep.subr.bf16.mxu0 0
  %6131 = vmatpush1.bf16.msra.mxu0 %v4255
  %6132 = vmatprep.subr.bf16.mxu0 0
  %6133 = vmatpush1.bf16.msra.mxu0 %v4256
  %6134 = vmatprep.subr.bf16.mxu0 0
  %6135 = vmatpush1.bf16.msra.mxu0 %v4257
  %6136 = vmatprep.subr.bf16.mxu0 0
  %6137 = vmatpush1.bf16.msra.mxu0 %v4258
  %6138 = vmatprep.subr.bf16.mxu0 0
  %6139 = vmatpush1.bf16.msra.mxu0 %v4259
  %6140 = vmatprep.subr.bf16.mxu0 0
  %6141 = vmatpush1.bf16.msra.mxu0 %v4260
  %6142 = vmatprep.subr.bf16.mxu0 0
  %6143 = vmatpush1.bf16.msra.mxu0 %v4261
  %6144 = vmatprep.subr.bf16.mxu0 0
  %6145 = vmatpush1.bf16.msra.mxu0 %v4262
  %6146 = vmatprep.subr.bf16.mxu0 0
  %6147 = vmatpush1.bf16.msra.mxu0 %v4263
  %6148 = vmatprep.subr.bf16.mxu0 0
  %6149 = vmatpush1.bf16.msra.mxu0 %v4264
  %6150 = vmatprep.subr.bf16.mxu0 0
  %6151 = vmatpush1.bf16.msra.mxu0 %v4265
  %6152 = vmatprep.subr.bf16.mxu0 0
  %6153 = vmatpush1.bf16.msra.mxu0 %v4266
  %6154 = vmatprep.subr.bf16.mxu0 0
  %6155 = vmatpush1.bf16.msra.mxu0 %v4267
  %6156 = vmatprep.mubr.bf16.mxu0 %v1385
  %6157 = vmatmul.mubr.bf16.gmra.mrb[0].mxu0 %v1384
  %v6158 = vpop.f32.mrb[0].mxu0
  %v6159 = vadd.f32 %v6119, %v6158
  %v6160 = vpop.f32.mrb[0].mxu0
  %v6161 = vpop.f32.mrb[0].mxu0
  %v6162 = vpop.f32.mrb[0].mxu0
  %6163 = vdwg.mxu0
  %6164 = vmatprep.subr.bf16.mxu0 0
  %6165 = vmatpush1.bf16.msra.mxu0 %v4268
  %6166 = vmatprep.subr.bf16.mxu0 0
  %6167 = vmatpush1.bf16.msra.mxu0 %v4269
  %6168 = vmatprep.subr.bf16.mxu0 0
  %6169 = vmatpush1.bf16.msra.mxu0 %v4270
  %6170 = vmatprep.subr.bf16.mxu0 0
  %6171 = vmatpush1.bf16.msra.mxu0 %v4271
  %6172 = vmatprep.subr.bf16.mxu0 0
  %6173 = vmatpush1.bf16.msra.mxu0 %v4272
  %6174 = vmatprep.subr.bf16.mxu0 0
  %6175 = vmatpush1.bf16.msra.mxu0 %v4273
  %6176 = vmatprep.subr.bf16.mxu0 0
  %6177 = vmatpush1.bf16.msra.mxu0 %v4274
  %6178 = vmatprep.subr.bf16.mxu0 0
  %6179 = vmatpush1.bf16.msra.mxu0 %v4275
  %6180 = vmatprep.subr.bf16.mxu0 0
  %6181 = vmatpush1.bf16.msra.mxu0 %v4276
  %6182 = vmatprep.subr.bf16.mxu0 0
  %6183 = vmatpush1.bf16.msra.mxu0 %v4277
  %6184 = vmatprep.subr.bf16.mxu0 0
  %6185 = vmatpush1.bf16.msra.mxu0 %v4278
  %6186 = vmatprep.subr.bf16.mxu0 0
  %6187 = vmatpush1.bf16.msra.mxu0 %v4279
  %6188 = vmatprep.subr.bf16.mxu0 0
  %6189 = vmatpush1.bf16.msra.mxu0 %v4280
  %6190 = vmatprep.subr.bf16.mxu0 0
  %6191 = vmatpush1.bf16.msra.mxu0 %v4281
  %6192 = vmatprep.subr.bf16.mxu0 0
  %6193 = vmatpush1.bf16.msra.mxu0 %v4282
  %6194 = vmatprep.subr.bf16.mxu0 0
  %6195 = vmatpush1.bf16.msra.mxu0 %v4283
  %6196 = vmatprep.mubr.bf16.mxu0 %v1387
  %6197 = vmatmul.mubr.bf16.gmra.mrb[0].mxu0 %v1386
  %v6198 = vpop.f32.mrb[0].mxu0
  %v6199 = vadd.f32 %v6159, %v6198
  %v6200 = vpop.f32.mrb[0].mxu0
  %v6201 = vpop.f32.mrb[0].mxu0
  %v6202 = vpop.f32.mrb[0].mxu0
  %6203 = vdwg.mxu0
  %6204 = vmatprep.subr.bf16.mxu0 0
  %6205 = vmatpush1.bf16.msra.mxu0 %v4284
  %6206 = vmatprep.subr.bf16.mxu0 0
  %6207 = vmatpush1.bf16.msra.mxu0 %v4285
  %6208 = vmatprep.subr.bf16.mxu0 0
  %6209 = vmatpush1.bf16.msra.mxu0 %v4286
  %6210 = vmatprep.subr.bf16.mxu0 0
  %6211 = vmatpush1.bf16.msra.mxu0 %v4287
  %6212 = vmatprep.subr.bf16.mxu0 0
  %6213 = vmatpush1.bf16.msra.mxu0 %v4288
  %6214 = vmatprep.subr.bf16.mxu0 0
  %6215 = vmatpush1.bf16.msra.mxu0 %v4289
  %6216 = vmatprep.subr.bf16.mxu0 0
  %6217 = vmatpush1.bf16.msra.mxu0 %v4290
  %6218 = vmatprep.subr.bf16.mxu0 0
  %6219 = vmatpush1.bf16.msra.mxu0 %v4291
  %6220 = vmatprep.subr.bf16.mxu0 0
  %6221 = vmatpush1.bf16.msra.mxu0 %v4292
  %6222 = vmatprep.subr.bf16.mxu0 0
  %6223 = vmatpush1.bf16.msra.mxu0 %v4293
  %6224 = vmatprep.subr.bf16.mxu0 0
  %6225 = vmatpush1.bf16.msra.mxu0 %v4294
  %6226 = vmatprep.subr.bf16.mxu0 0
  %6227 = vmatpush1.bf16.msra.mxu0 %v4295
  %6228 = vmatprep.subr.bf16.mxu0 0
  %6229 = vmatpush1.bf16.msra.mxu0 %v4296
  %6230 = vmatprep.subr.bf16.mxu0 0
  %6231 = vmatpush1.bf16.msra.mxu0 %v4297
  %6232 = vmatprep.subr.bf16.mxu0 0
  %6233 = vmatpush1.bf16.msra.mxu0 %v4298
  %6234 = vmatprep.subr.bf16.mxu0 0
  %6235 = vmatpush1.bf16.msra.mxu0 %v4299
  %6236 = vmatprep.mubr.bf16.mxu0 %v1389
  %6237 = vmatmul.mubr.bf16.gmra.mrb[0].mxu0 %v1388
  %v6238 = vpop.f32.mrb[0].mxu0
  %v6239 = vadd.f32 %v6199, %v6238
  %v6240 = vpop.f32.mrb[0].mxu0
  %v6241 = vpop.f32.mrb[0].mxu0
  %v6242 = vpop.f32.mrb[0].mxu0
  %6243 = vdwg.mxu0
  %6244 = vmatprep.subr.bf16.mxu0 0
  %6245 = vmatpush1.bf16.msra.mxu0 %v4300
  %6246 = vmatprep.subr.bf16.mxu0 0
  %6247 = vmatpush1.bf16.msra.mxu0 %v4301
  %6248 = vmatprep.subr.bf16.mxu0 0
  %6249 = vmatpush1.bf16.msra.mxu0 %v4302
  %6250 = vmatprep.subr.bf16.mxu0 0
  %6251 = vmatpush1.bf16.msra.mxu0 %v4303
  %6252 = vmatprep.subr.bf16.mxu0 0
  %6253 = vmatpush1.bf16.msra.mxu0 %v4304
  %6254 = vmatprep.subr.bf16.mxu0 0
  %6255 = vmatpush1.bf16.msra.mxu0 %v4305
  %6256 = vmatprep.subr.bf16.mxu0 0
  %6257 = vmatpush1.bf16.msra.mxu0 %v4306
  %6258 = vmatprep.subr.bf16.mxu0 0
  %6259 = vmatpush1.bf16.msra.mxu0 %v4307
  %6260 = vmatprep.subr.bf16.mxu0 0
  %6261 = vmatpush1.bf16.msra.mxu0 %v4308
  %6262 = vmatprep.subr.bf16.mxu0 0
  %6263 = vmatpush1.bf16.msra.mxu0 %v4309
  %6264 = vmatprep.subr.bf16.mxu0 0
  %6265 = vmatpush1.bf16.msra.mxu0 %v4310
  %6266 = vmatprep.subr.bf16.mxu0 0
  %6267 = vmatpush1.bf16.msra.mxu0 %v4311
  %6268 = vmatprep.subr.bf16.mxu0 0
  %6269 = vmatpush1.bf16.msra.mxu0 %v4312
  %6270 = vmatprep.subr.bf16.mxu0 0
  %6271 = vmatpush1.bf16.msra.mxu0 %v4313
  %6272 = vmatprep.subr.bf16.mxu0 0
  %6273 = vmatpush1.bf16.msra.mxu0 %v4314
  %6274 = vmatprep.subr.bf16.mxu0 0
  %6275 = vmatpush1.bf16.msra.mxu0 %v4315
  %6276 = vmatprep.mubr.bf16.mxu0 %v1391
  %6277 = vmatmul.mubr.bf16.gmra.mrb[0].mxu0 %v1390
  %v6278 = vpop.f32.mrb[0].mxu0
  %v6279 = vadd.f32 %v6239, %v6278
  %v6280 = vpop.f32.mrb[0].mxu0
  %v6281 = vpop.f32.mrb[0].mxu0
  %v6282 = vpop.f32.mrb[0].mxu0
  %6283 = vdwg.mxu0
  %6284 = vmatprep.subr.bf16.mxu0 0
  %6285 = vmatpush1.bf16.msra.mxu0 %v4316
  %6286 = vmatprep.subr.bf16.mxu0 0
  %6287 = vmatpush1.bf16.msra.mxu0 %v4317
  %6288 = vmatprep.subr.bf16.mxu0 0
  %6289 = vmatpush1.bf16.msra.mxu0 %v4318
  %6290 = vmatprep.subr.bf16.mxu0 0
  %6291 = vmatpush1.bf16.msra.mxu0 %v4319
  %6292 = vmatprep.subr.bf16.mxu0 0
  %6293 = vmatpush1.bf16.msra.mxu0 %v4320
  %6294 = vmatprep.subr.bf16.mxu0 0
  %6295 = vmatpush1.bf16.msra.mxu0 %v4321
  %6296 = vmatprep.subr.bf16.mxu0 0
  %6297 = vmatpush1.bf16.msra.mxu0 %v4322
  %6298 = vmatprep.subr.bf16.mxu0 0
  %6299 = vmatpush1.bf16.msra.mxu0 %v4323
  %6300 = vmatprep.subr.bf16.mxu0 0
  %6301 = vmatpush1.bf16.msra.mxu0 %v4324
  %6302 = vmatprep.subr.bf16.mxu0 0
  %6303 = vmatpush1.bf16.msra.mxu0 %v4325
  %6304 = vmatprep.subr.bf16.mxu0 0
  %6305 = vmatpush1.bf16.msra.mxu0 %v4326
  %6306 = vmatprep.subr.bf16.mxu0 0
  %6307 = vmatpush1.bf16.msra.mxu0 %v4327
  %6308 = vmatprep.subr.bf16.mxu0 0
  %6309 = vmatpush1.bf16.msra.mxu0 %v4328
  %6310 = vmatprep.subr.bf16.mxu0 0
  %6311 = vmatpush1.bf16.msra.mxu0 %v4329
  %6312 = vmatprep.subr.bf16.mxu0 0
  %6313 = vmatpush1.bf16.msra.mxu0 %v4330
  %6314 = vmatprep.subr.bf16.mxu0 0
  %6315 = vmatpush1.bf16.msra.mxu0 %v4331
  %6316 = vmatprep.mubr.bf16.mxu0 %v1393
  %6317 = vmatmul.mubr.bf16.gmra.mrb[0].mxu0 %v1392
  %v6318 = vpop.f32.mrb[0].mxu0
  %v6319 = vadd.f32 %v6279, %v6318
  %v6320 = vpop.f32.mrb[0].mxu0
  %v6321 = vpop.f32.mrb[0].mxu0
  %v6322 = vpop.f32.mrb[0].mxu0
  %6323 = vdwg.mxu0
  %6324 = vmatprep.subr.bf16.mxu0 0
  %6325 = vmatpush1.bf16.msra.mxu0 %v4332
  %6326 = vmatprep.subr.bf16.mxu0 0
  %6327 = vmatpush1.bf16.msra.mxu0 %v4333
  %6328 = vmatprep.subr.bf16.mxu0 0
  %6329 = vmatpush1.bf16.msra.mxu0 %v4334
  %6330 = vmatprep.subr.bf16.mxu0 0
  %6331 = vmatpush1.bf16.msra.mxu0 %v4335
  %6332 = vmatprep.subr.bf16.mxu0 0
  %6333 = vmatpush1.bf16.msra.mxu0 %v4336
  %6334 = vmatprep.subr.bf16.mxu0 0
  %6335 = vmatpush1.bf16.msra.mxu0 %v4337
  %6336 = vmatprep.subr.bf16.mxu0 0
  %6337 = vmatpush1.bf16.msra.mxu0 %v4338
  %6338 = vmatprep.subr.bf16.mxu0 0
  %6339 = vmatpush1.bf16.msra.mxu0 %v4339
  %6340 = vmatprep.subr.bf16.mxu0 0
  %6341 = vmatpush1.bf16.msra.mxu0 %v4340
  %6342 = vmatprep.subr.bf16.mxu0 0
  %6343 = vmatpush1.bf16.msra.mxu0 %v4341
  %6344 = vmatprep.subr.bf16.mxu0 0
  %6345 = vmatpush1.bf16.msra.mxu0 %v4342
  %6346 = vmatprep.subr.bf16.mxu0 0
  %6347 = vmatpush1.bf16.msra.mxu0 %v4343
  %6348 = vmatprep.subr.bf16.mxu0 0
  %6349 = vmatpush1.bf16.msra.mxu0 %v4344
  %6350 = vmatprep.subr.bf16.mxu0 0
  %6351 = vmatpush1.bf16.msra.mxu0 %v4345
  %6352 = vmatprep.subr.bf16.mxu0 0
  %6353 = vmatpush1.bf16.msra.mxu0 %v4346
  %6354 = vmatprep.subr.bf16.mxu0 0
  %6355 = vmatpush1.bf16.msra.mxu0 %v4347
  %6356 = vmatprep.mubr.bf16.mxu0 %v1395
  %6357 = vmatmul.mubr.bf16.gmra.mrb[0].mxu0 %v1394
  %v6358 = vpop.f32.mrb[0].mxu0
  %v6359 = vadd.f32 %v6319, %v6358
  %v6360 = vpop.f32.mrb[0].mxu0
  %v6361 = vpop.f32.mrb[0].mxu0
  %v6362 = vpop.f32.mrb[0].mxu0
  %6363 = vdwg.mxu0
  %v6364 = vmax.f32 %v6359, 0.0
  %v6365 = vpack.c.bf16 %v6364, %v6364
  %v6366 = vld [vmem:[%s3] sm:$0xf]
  %v6367 = vld [vmem:[%s3 + $0x4] sm:$0xf]
  %v6368 = vld [vmem:[%s3 + $0x8] sm:$0xf]
  %v6369 = vld [vmem:[%s3 + $0xc] sm:$0xf]
  %v6370 = vld [vmem:[%s3 + $0x10] sm:$0xf]
  %v6371 = vld [vmem:[%s3 + $0x14] sm:$0xf]
  %v6372 = vld [vmem:[%s3 + $0x18] sm:$0xf]
  %v6373 = vld [vmem:[%s3 + $0x1c] sm:$0xf]
  %v6374 = vld [vmem:[%s3 + $0x20] sm:$0xf]
  %v6375 = vld [vmem:[%s3 + $0x24] sm:$0xf]
  %v6376 = vld [vmem:[%s3 + $0x28] sm:$0xf]
  %v6377 = vld [vmem:[%s3 + $0x2c] sm:$0xf]
  %v6378 = vld [vmem:[%s3 + $0x30] sm:$0xf]
  %v6379 = vld [vmem:[%s3 + $0x34] sm:$0xf]
  %v6380 = vld [vmem:[%s3 + $0x38] sm:$0xf]
  %v6381 = vld [vmem:[%s3 + $0x3c] sm:$0xf]
  %v6382 = vld [vmem:[%s4] sm:$0x1]
  %v6384 = vlaneseq
  %v6385 = vshrl.u32 %v6384, 7
  %v6386 = vsub.s32 0, %v6385
  %v6387 = vrot.slane %v6382, %v6386
  %v6405 = vunpack.c.l.b16 %v6366
  %v6406 = vunpack.c.l.b16 %v6367
  %v6407 = vunpack.c.l.b16 %v6368
  %v6408 = vunpack.c.l.b16 %v6369
  %v6409 = vunpack.c.l.b16 %v6370
  %v6410 = vunpack.c.l.b16 %v6371
  %v6411 = vunpack.c.l.b16 %v6372
  %v6412 = vunpack.c.l.b16 %v6373
  %v6413 = vunpack.c.l.b16 %v6374
  %v6414 = vunpack.c.l.b16 %v6375
  %v6415 = vunpack.c.l.b16 %v6376
  %v6416 = vunpack.c.l.b16 %v6377
  %v6417 = vunpack.c.l.b16 %v6378
  %v6418 = vunpack.c.l.b16 %v6379
  %v6419 = vunpack.c.l.b16 %v6380
  %v6420 = vunpack.c.l.b16 %v6381
  %v6421 = vpack.c.b16 %v6406, %v6405
  %v6422 = vpack.c.b16 %v6408, %v6407
  %v6423 = vpack.c.b16 %v6410, %v6409
  %v6424 = vpack.c.b16 %v6412, %v6411
  %v6425 = vpack.c.b16 %v6414, %v6413
  %v6426 = vpack.c.b16 %v6416, %v6415
  %v6427 = vpack.c.b16 %v6418, %v6417
  %v6428 = vpack.c.b16 %v6420, %v6419
  %6437 = vmatprep.subr.bf16.mxu0 0
  %6438 = vmatpush1.bf16.msra.mxu0 %v6421
  %6439 = vmatprep.subr.bf16.mxu0 0
  %6440 = vmatpush1.bf16.msra.mxu0 %v6422
  %6441 = vmatprep.subr.bf16.mxu0 0
  %6442 = vmatpush1.bf16.msra.mxu0 %v6423
  %6443 = vmatprep.subr.bf16.mxu0 0
  %6444 = vmatpush1.bf16.msra.mxu0 %v6424
  %6445 = vmatprep.subr.bf16.mxu0 0
  %6446 = vmatpush1.bf16.msra.mxu0 %v6425
  %6447 = vmatprep.subr.bf16.mxu0 0
  %6448 = vmatpush1.bf16.msra.mxu0 %v6426
  %6449 = vmatprep.subr.bf16.mxu0 0
  %6450 = vmatpush1.bf16.msra.mxu0 %v6427
  %6451 = vmatprep.subr.bf16.mxu0 0
  %6452 = vmatpush1.bf16.msra.mxu0 %v6428
  %6453 = vmatprep.subr.bf16.mxu0 0
  %6454 = vmatpush1.bf16.msra.mxu0 0
  %6455 = vmatprep.subr.bf16.mxu0 0
  %6456 = vmatpush1.bf16.msra.mxu0 0
  %6457 = vmatprep.subr.bf16.mxu0 0
  %6458 = vmatpush1.bf16.msra.mxu0 0
  %6459 = vmatprep.subr.bf16.mxu0 0
  %6460 = vmatpush1.bf16.msra.mxu0 0
  %6461 = vmatprep.subr.bf16.mxu0 0
  %6462 = vmatpush1.bf16.msra.mxu0 0
  %6463 = vmatprep.subr.bf16.mxu0 0
  %6464 = vmatpush1.bf16.msra.mxu0 0
  %6465 = vmatprep.subr.bf16.mxu0 0
  %6466 = vmatpush1.bf16.msra.mxu0 0
  %6467 = vmatprep.subr.bf16.mxu0 0
  %6468 = vmatpush1.bf16.msra.mxu0 0
  %6469 = vmatprep.mubr.bf16.mxu0 0
  %6470 = vmatmul.mubr.bf16.gmra.mrb[0].mxu0 %v6365
  %v6471 = vpop.f32.mrb[0].mxu0
  %v6472 = vadd.f32 %v6387, %v6471
  %v6473 = vpop.f32.mrb[0].mxu0
  %v6474 = vpop.f32.mrb[0].mxu0
  %v6475 = vpop.f32.mrb[0].mxu0
  %6476 = vdwg.mxu0
  %vm6477 = vcmask 80896
  %6478 = vst.msk [vmem:[%s5] sm:$0xff] %vm6477, %v6472
  // Predicated region
  $region22: #{net_forward.9} parent=0 // pred_check
    _
  $region23: #{net_forward.9} parent=0 // pred_check_branch
    %6480 = sbr.rel (0) target = $region25
  $region24: #{net_forward.9} parent=0 // pred_region
    _
  $region25: #{net_forward.9} parent=0 // pred_fallthru
    _
  // Predicated region
  $region26: #{net_forward.9} parent=0 // pred_check
    _
  $region27: #{net_forward.9} parent=0 // pred_check_branch
    %6482 = sbr.rel (0) target = $region29
  $region28: #{net_forward.9} parent=0 // pred_region
    _
  $region29: #{net_forward.9} parent=0 // pred_fallthru
    _

</llo_original>
